<compile_context>
chip_gen: v7x
topology: tpu7x:2x2x1
jax: 0.10.0
libtpu: 0.0.40
codegen_flags: <defaults>
</compile_context>

<pallas_src>
import jax
import jax.numpy as jnp
from jax.experimental import pallas as pl
from jax.experimental.pallas import tpu as pltpu

EPS = 0.8                       # nn.BatchNorm1d(out_feat, 0.8) -> eps=0.8
NEG_SLOPE = 0.2                 # LeakyReLU(0.2)
HIDDEN_DIMS = (256, 512, 1024, 2048)   # Decoder: attr_num -> 256 -> 512 -> 1024 -> 2048
TN = 1024                       # layer-4 output-column tile; grid=(2,) -> one block per v7x core


def _fused_block(h_f32, w_bf16, gb):
    """Linear (bf16 MXU, f32 accum, no bias) -> BatchNorm1d (batch stats) -> LeakyReLU(0.2).

    gb is a [2, dout] f32 array: row 0 = gamma, row 1 = beta.
    The Linear bias is omitted: it is exactly cancelled by BN's mean subtraction.
    """
    y = jnp.dot(h_f32.astype(jnp.bfloat16), w_bf16,
                preferred_element_type=jnp.float32)
    mean = jnp.mean(y, axis=0, keepdims=True)
    var = jnp.mean((y - mean) ** 2, axis=0, keepdims=True)   # two-pass, biased (matches BN1d fwd)
    scale = gb[0:1, :] * jax.lax.rsqrt(var + EPS)            # rsqrt -> EUP slot
    shift = gb[1:2, :] - mean * scale
    y = y * scale + shift                                    # fused BN affine
    return jnp.maximum(y, NEG_SLOPE * y)                     # LeakyReLU(0.2), single VPU max


def decoder_kernel(x_ref,
                   w1, gb1,
                   w2, gb2,
                   w3, gb3,
                   w4, gb4,
                   o_ref):
    # Layers 1-3: small VMEM-resident weights, recomputed every grid step (cheap at N=8).
    # This keeps every grid step independent -> column axis can run "parallel" (v7x 2-TC split).
    h = x_ref[...]
    h = _fused_block(h, w1[...], gb1[...])
    h = _fused_block(h, w2[...], gb2[...])
    h = _fused_block(h, w3[...], gb3[...])
    # Layer 4: W4 streamed as contiguous block-major [d3, TN] tiles; BN stats are per-feature
    # over the batch, so per-column-block stats equal the batch-global stats.
    o_ref[...] = _fused_block(h, w4[...], gb4[...])


def init_params(key, attr_num):
    """Deterministic init matching weights_init_kaiming; weights stored as [in, out]."""
    dims = (attr_num,) + HIDDEN_DIMS
    params = []
    for i in range(4):
        fan_in, fan_out = dims[i], dims[i + 1]
        key, kw, kg = jax.random.split(key, 3)
        # kaiming_normal_(mode='fan_out', a=0) on a PyTorch [out, in] weight -> std = sqrt(2 / out)
        w = jax.random.normal(kw, (fan_in, fan_out), jnp.float32) * jnp.sqrt(2.0 / fan_out)
        b = jnp.zeros((fan_out,), jnp.float32)                 # kept for the reference only
        gamma = 1.0 + 0.02 * jax.random.normal(kg, (fan_out,), jnp.float32)
        beta = jnp.zeros((fan_out,), jnp.float32)
        params.append((w, b, gamma, beta))
    return params


def pack_params(params, tn=TN):
    """One-time host-side packing (reused across forward calls).

    Layers 1-3: bf16 [in, out] weights + a single f32 [2, out] (gamma; beta) row pair.
    Layer 4   : bf16 block-major weight [d4//tn, d3, tn] so each grid step's tile is one
                contiguous DMA, + f32 [2, d4] (gamma; beta).
    The Linear bias is dropped (cancelled by BN mean subtraction).
    """
    packed = []
    for li, (w, _b, g, beta) in enumerate(params):
        gb = jnp.stack([g, beta], axis=0)                      # [2, out]
        if li == 3:
            d_in, d_out = w.shape
            assert d_out % tn == 0
            w_blk = (w.reshape(d_in, d_out // tn, tn)
                       .transpose(1, 0, 2)                     # [nblk, d_in, tn], contiguous tiles
                       .astype(jnp.bfloat16))
            packed.append((w_blk, gb))
        else:
            packed.append((w.astype(jnp.bfloat16), gb))
    return packed


def decoder_forward(x, packed):
    n, attr_num = x.shape
    d1, d2, d3, d4 = HIDDEN_DIMS
    nblk, _, tn = packed[3][0].shape                           # grid size from packed W4
    assert nblk * tn == d4
    grid = (nblk,)

    def const(shape):
        return pl.BlockSpec(shape, lambda j: tuple(0 for _ in shape))

    in_specs = [const((n, attr_num))]
    # layers 1-3: fully VMEM-resident (constant block index across the grid)
    for (w, _gb), dout in zip(packed[:3], (d1, d2, d3)):
        din = w.shape[0]
        in_specs += [const((din, dout)), const((2, dout))]
    # layer 4: stream contiguous block-major W4 tiles + gamma/beta columns (auto double-buffered)
    in_specs += [pl.BlockSpec((None, d3, tn), lambda j: (j, 0, 0)),   # leading dim squeezed
                 pl.BlockSpec((2, tn), lambda j: (0, j))]

    flat_args = [x]
    for layer in packed:
        flat_args.extend(layer)

    return pl.pallas_call(
        decoder_kernel,
        out_shape=jax.ShapeDtypeStruct((n, d4), jnp.float32),
        grid=grid,
        in_specs=in_specs,
        out_specs=pl.BlockSpec((n, tn), lambda j: (0, j)),     # lane-dense 1024-wide output blocks
        compiler_params=pltpu.CompilerParams(
            dimension_semantics=("parallel",),   # independent column blocks -> v7x megacore
            vmem_limit_bytes=32 << 20),          # safe on v5e/v6e/v7x (64 MiB physical on v7x)
    )(*flat_args)


def decoder_reference(x, params):
    """Pure-JAX reference mirroring PyTorch forward semantics (bf16 matmul, f32 BN).

    Keeps the (zero / BN-cancelled) Linear bias to stay faithful to the original module.
    """
    h = x
    for (w, b, g, beta) in params:
        y = jnp.dot(h.astype(jnp.bfloat16), w.astype(jnp.bfloat16),
                    preferred_element_type=jnp.float32) + b
        mean = jnp.mean(y, axis=0, keepdims=True)
        var = jnp.mean((y - mean) ** 2, axis=0, keepdims=True)
        y = (y - mean) / jnp.sqrt(var + EPS)
        y = g * y + beta
        h = jnp.where(y > 0, y, NEG_SLOPE * y)
    return h


if __name__ == "__main__":
    key = jax.random.PRNGKey(0)
    kx, kp = jax.random.split(key)

    batch = 8
    attr_num = 32                # opt.attr_num
    x = jax.random.normal(kx, (batch, attr_num), jnp.float32)

    params = init_params(kp, attr_num)
    packed = pack_params(params)            # one-time packing; reused across forward calls

    out = decoder_forward(x, packed)
    out = jax.block_until_ready(out)

    ref = decoder_reference(x, params)
    assert out.shape == (batch, HIDDEN_DIMS[-1])
    assert jnp.allclose(out, ref, atol=5e-3, rtol=5e-3), "mismatch vs reference"

    print("KERNEL_OK")
</pallas_src>

<mosaic_0001>
module attributes {stable_mosaic.version = 11 : i64} {
  func.func @decoder_kernel(%arg0: i32, %arg1: memref<8x32xf32, #tpu.memory_space<vmem>>, %arg2: memref<32x256xbf16, #tpu.memory_space<vmem>>, %arg3: memref<2x256xf32, #tpu.memory_space<vmem>>, %arg4: memref<256x512xbf16, #tpu.memory_space<vmem>>, %arg5: memref<2x512xf32, #tpu.memory_space<vmem>>, %arg6: memref<512x1024xbf16, #tpu.memory_space<vmem>>, %arg7: memref<2x1024xf32, #tpu.memory_space<vmem>>, %arg8: memref<1x1024x1024xbf16, #tpu.memory_space<vmem>>, %arg9: memref<2x1024xf32, #tpu.memory_space<vmem>>, %arg10: memref<8x1024xf32, #tpu.memory_space<vmem>>) attributes {dimension_semantics = [#tpu.dimension_semantics<parallel>], iteration_bounds = array<i64: 2>, scalar_prefetch = 0 : i64, scratch_operands = 0 : i64, tpu.core_type = #tpu.core_type<tc>, window_params = [{pipeline_mode = #tpu.pipeline_mode<synchronous>, transform_indices = @transform_0, window_bounds = array<i64: 8, 32>}, {pipeline_mode = #tpu.pipeline_mode<synchronous>, transform_indices = @transform_1, window_bounds = array<i64: 32, 256>}, {pipeline_mode = #tpu.pipeline_mode<synchronous>, transform_indices = @transform_2, window_bounds = array<i64: 2, 256>}, {pipeline_mode = #tpu.pipeline_mode<synchronous>, transform_indices = @transform_3, window_bounds = array<i64: 256, 512>}, {pipeline_mode = #tpu.pipeline_mode<synchronous>, transform_indices = @transform_4, window_bounds = array<i64: 2, 512>}, {pipeline_mode = #tpu.pipeline_mode<synchronous>, transform_indices = @transform_5, window_bounds = array<i64: 512, 1024>}, {pipeline_mode = #tpu.pipeline_mode<synchronous>, transform_indices = @transform_6, window_bounds = array<i64: 2, 1024>}, {transform_indices = @transform_7, window_bounds = array<i64: 1, 1024, 1024>}, {transform_indices = @transform_8, window_bounds = array<i64: 2, 1024>}, {transform_indices = @transform_9, window_bounds = array<i64: 8, 1024>}]} {
    %c0 = arith.constant 0 : index
    %c0_0 = arith.constant 0 : index
    %0 = vector.load %arg1[%c0, %c0_0] : memref<8x32xf32, #tpu.memory_space<vmem>>, vector<8x32xf32>
    %c0_1 = arith.constant 0 : index
    %c0_2 = arith.constant 0 : index
    %1 = vector.load %arg2[%c0_1, %c0_2] : memref<32x256xbf16, #tpu.memory_space<vmem>>, vector<32x256xbf16>
    %c0_3 = arith.constant 0 : index
    %c0_4 = arith.constant 0 : index
    %2 = vector.load %arg3[%c0_3, %c0_4] : memref<2x256xf32, #tpu.memory_space<vmem>>, vector<2x256xf32>
    %3 = arith.truncf %0 : vector<8x32xf32> to vector<8x32xbf16>
    %cst = arith.constant dense<0.000000e+00> : vector<8x256xf32>
    %4 = tpu.matmul %3, %1, %cst {dimension_numbers = #tpu.dot_dimension_numbers<[1], [0], [0], [1], [0, 0, 1, 1], [], []>} : vector<8x32xbf16>, vector<32x256xbf16>, vector<8x256xf32> -> vector<8x256xf32>
    %cst_5 = arith.constant dense<0.000000e+00> : vector<256xf32>
    %5 = vector.multi_reduction <add>, %4, %cst_5 [0] : vector<8x256xf32> to vector<256xf32>
    %6 = vector.shape_cast %5 : vector<256xf32> to vector<1x256xf32>
    %cst_6 = arith.constant 8.000000e+00 : f32
    %7 = vector.broadcast %cst_6 : f32 to vector<1x256xf32>
    %8 = arith.divf %6, %7 : vector<1x256xf32>
    %9 = vector.broadcast %8 : vector<1x256xf32> to vector<8x256xf32>
    %10 = arith.subf %4, %9 : vector<8x256xf32>
    %11 = arith.mulf %10, %10 : vector<8x256xf32>
    %cst_7 = arith.constant dense<0.000000e+00> : vector<256xf32>
    %12 = vector.multi_reduction <add>, %11, %cst_7 [0] : vector<8x256xf32> to vector<256xf32>
    %13 = vector.shape_cast %12 : vector<256xf32> to vector<1x256xf32>
    %cst_8 = arith.constant 8.000000e+00 : f32
    %14 = vector.broadcast %cst_8 : f32 to vector<1x256xf32>
    %15 = arith.divf %13, %14 : vector<1x256xf32>
    %16 = vector.extract_strided_slice %2 {offsets = [0, 0], sizes = [1, 256], strides = [1, 1]} : vector<2x256xf32> to vector<1x256xf32>
    %cst_9 = arith.constant 8.000000e-01 : f32
    %17 = vector.broadcast %cst_9 : f32 to vector<1x256xf32>
    %18 = arith.addf %15, %17 : vector<1x256xf32>
    %19 = math.rsqrt %18 : vector<1x256xf32>
    %20 = arith.mulf %16, %19 : vector<1x256xf32>
    %21 = vector.extract_strided_slice %2 {offsets = [1, 0], sizes = [1, 256], strides = [1, 1]} : vector<2x256xf32> to vector<1x256xf32>
    %22 = arith.mulf %8, %20 : vector<1x256xf32>
    %23 = arith.subf %21, %22 : vector<1x256xf32>
    %24 = vector.broadcast %20 : vector<1x256xf32> to vector<8x256xf32>
    %25 = arith.mulf %4, %24 : vector<8x256xf32>
    %26 = vector.broadcast %23 : vector<1x256xf32> to vector<8x256xf32>
    %27 = arith.addf %25, %26 : vector<8x256xf32>
    %cst_10 = arith.constant 2.000000e-01 : f32
    %28 = vector.broadcast %cst_10 : f32 to vector<8x256xf32>
    %29 = arith.mulf %28, %27 : vector<8x256xf32>
    %30 = arith.maximumf %27, %29 : vector<8x256xf32>
    %c0_11 = arith.constant 0 : index
    %c0_12 = arith.constant 0 : index
    %31 = vector.load %arg4[%c0_11, %c0_12] : memref<256x512xbf16, #tpu.memory_space<vmem>>, vector<256x512xbf16>
    %c0_13 = arith.constant 0 : index
    %c0_14 = arith.constant 0 : index
    %32 = vector.load %arg5[%c0_13, %c0_14] : memref<2x512xf32, #tpu.memory_space<vmem>>, vector<2x512xf32>
    %33 = arith.truncf %30 : vector<8x256xf32> to vector<8x256xbf16>
    %cst_15 = arith.constant dense<0.000000e+00> : vector<8x512xf32>
    %34 = tpu.matmul %33, %31, %cst_15 {dimension_numbers = #tpu.dot_dimension_numbers<[1], [0], [0], [1], [0, 0, 1, 1], [], []>} : vector<8x256xbf16>, vector<256x512xbf16>, vector<8x512xf32> -> vector<8x512xf32>
    %cst_16 = arith.constant dense<0.000000e+00> : vector<512xf32>
    %35 = vector.multi_reduction <add>, %34, %cst_16 [0] : vector<8x512xf32> to vector<512xf32>
    %36 = vector.shape_cast %35 : vector<512xf32> to vector<1x512xf32>
    %cst_17 = arith.constant 8.000000e+00 : f32
    %37 = vector.broadcast %cst_17 : f32 to vector<1x512xf32>
    %38 = arith.divf %36, %37 : vector<1x512xf32>
    %39 = vector.broadcast %38 : vector<1x512xf32> to vector<8x512xf32>
    %40 = arith.subf %34, %39 : vector<8x512xf32>
    %41 = arith.mulf %40, %40 : vector<8x512xf32>
    %cst_18 = arith.constant dense<0.000000e+00> : vector<512xf32>
    %42 = vector.multi_reduction <add>, %41, %cst_18 [0] : vector<8x512xf32> to vector<512xf32>
    %43 = vector.shape_cast %42 : vector<512xf32> to vector<1x512xf32>
    %cst_19 = arith.constant 8.000000e+00 : f32
    %44 = vector.broadcast %cst_19 : f32 to vector<1x512xf32>
    %45 = arith.divf %43, %44 : vector<1x512xf32>
    %46 = vector.extract_strided_slice %32 {offsets = [0, 0], sizes = [1, 512], strides = [1, 1]} : vector<2x512xf32> to vector<1x512xf32>
    %cst_20 = arith.constant 8.000000e-01 : f32
    %47 = vector.broadcast %cst_20 : f32 to vector<1x512xf32>
    %48 = arith.addf %45, %47 : vector<1x512xf32>
    %49 = math.rsqrt %48 : vector<1x512xf32>
    %50 = arith.mulf %46, %49 : vector<1x512xf32>
    %51 = vector.extract_strided_slice %32 {offsets = [1, 0], sizes = [1, 512], strides = [1, 1]} : vector<2x512xf32> to vector<1x512xf32>
    %52 = arith.mulf %38, %50 : vector<1x512xf32>
    %53 = arith.subf %51, %52 : vector<1x512xf32>
    %54 = vector.broadcast %50 : vector<1x512xf32> to vector<8x512xf32>
    %55 = arith.mulf %34, %54 : vector<8x512xf32>
    %56 = vector.broadcast %53 : vector<1x512xf32> to vector<8x512xf32>
    %57 = arith.addf %55, %56 : vector<8x512xf32>
    %cst_21 = arith.constant 2.000000e-01 : f32
    %58 = vector.broadcast %cst_21 : f32 to vector<8x512xf32>
    %59 = arith.mulf %58, %57 : vector<8x512xf32>
    %60 = arith.maximumf %57, %59 : vector<8x512xf32>
    %c0_22 = arith.constant 0 : index
    %c0_23 = arith.constant 0 : index
    %61 = vector.load %arg6[%c0_22, %c0_23] : memref<512x1024xbf16, #tpu.memory_space<vmem>>, vector<512x1024xbf16>
    %c0_24 = arith.constant 0 : index
    %c0_25 = arith.constant 0 : index
    %62 = vector.load %arg7[%c0_24, %c0_25] : memref<2x1024xf32, #tpu.memory_space<vmem>>, vector<2x1024xf32>
    %63 = arith.truncf %60 : vector<8x512xf32> to vector<8x512xbf16>
    %cst_26 = arith.constant dense<0.000000e+00> : vector<8x1024xf32>
    %64 = tpu.matmul %63, %61, %cst_26 {dimension_numbers = #tpu.dot_dimension_numbers<[1], [0], [0], [1], [0, 0, 1, 1], [], []>} : vector<8x512xbf16>, vector<512x1024xbf16>, vector<8x1024xf32> -> vector<8x1024xf32>
    %cst_27 = arith.constant dense<0.000000e+00> : vector<1024xf32>
    %65 = vector.multi_reduction <add>, %64, %cst_27 [0] : vector<8x1024xf32> to vector<1024xf32>
    %66 = vector.shape_cast %65 : vector<1024xf32> to vector<1x1024xf32>
    %cst_28 = arith.constant 8.000000e+00 : f32
    %67 = vector.broadcast %cst_28 : f32 to vector<1x1024xf32>
    %68 = arith.divf %66, %67 : vector<1x1024xf32>
    %69 = vector.broadcast %68 : vector<1x1024xf32> to vector<8x1024xf32>
    %70 = arith.subf %64, %69 : vector<8x1024xf32>
    %71 = arith.mulf %70, %70 : vector<8x1024xf32>
    %cst_29 = arith.constant dense<0.000000e+00> : vector<1024xf32>
    %72 = vector.multi_reduction <add>, %71, %cst_29 [0] : vector<8x1024xf32> to vector<1024xf32>
    %73 = vector.shape_cast %72 : vector<1024xf32> to vector<1x1024xf32>
    %cst_30 = arith.constant 8.000000e+00 : f32
    %74 = vector.broadcast %cst_30 : f32 to vector<1x1024xf32>
    %75 = arith.divf %73, %74 : vector<1x1024xf32>
    %76 = vector.extract_strided_slice %62 {offsets = [0, 0], sizes = [1, 1024], strides = [1, 1]} : vector<2x1024xf32> to vector<1x1024xf32>
    %cst_31 = arith.constant 8.000000e-01 : f32
    %77 = vector.broadcast %cst_31 : f32 to vector<1x1024xf32>
    %78 = arith.addf %75, %77 : vector<1x1024xf32>
    %79 = math.rsqrt %78 : vector<1x1024xf32>
    %80 = arith.mulf %76, %79 : vector<1x1024xf32>
    %81 = vector.extract_strided_slice %62 {offsets = [1, 0], sizes = [1, 1024], strides = [1, 1]} : vector<2x1024xf32> to vector<1x1024xf32>
    %82 = arith.mulf %68, %80 : vector<1x1024xf32>
    %83 = arith.subf %81, %82 : vector<1x1024xf32>
    %84 = vector.broadcast %80 : vector<1x1024xf32> to vector<8x1024xf32>
    %85 = arith.mulf %64, %84 : vector<8x1024xf32>
    %86 = vector.broadcast %83 : vector<1x1024xf32> to vector<8x1024xf32>
    %87 = arith.addf %85, %86 : vector<8x1024xf32>
    %cst_32 = arith.constant 2.000000e-01 : f32
    %88 = vector.broadcast %cst_32 : f32 to vector<8x1024xf32>
    %89 = arith.mulf %88, %87 : vector<8x1024xf32>
    %90 = arith.maximumf %87, %89 : vector<8x1024xf32>
    %c0_33 = arith.constant 0 : index
    %c0_34 = arith.constant 0 : index
    %c0_35 = arith.constant 0 : index
    %91 = vector.load %arg8[%c0_33, %c0_34, %c0_35] : memref<1x1024x1024xbf16, #tpu.memory_space<vmem>>, vector<1x1024x1024xbf16>
    %92 = vector.shape_cast %91 : vector<1x1024x1024xbf16> to vector<1024x1024xbf16>
    %c0_36 = arith.constant 0 : index
    %c0_37 = arith.constant 0 : index
    %93 = vector.load %arg9[%c0_36, %c0_37] : memref<2x1024xf32, #tpu.memory_space<vmem>>, vector<2x1024xf32>
    %94 = arith.truncf %90 : vector<8x1024xf32> to vector<8x1024xbf16>
    %cst_38 = arith.constant dense<0.000000e+00> : vector<8x1024xf32>
    %95 = tpu.matmul %94, %92, %cst_38 {dimension_numbers = #tpu.dot_dimension_numbers<[1], [0], [0], [1], [0, 0, 1, 1], [], []>} : vector<8x1024xbf16>, vector<1024x1024xbf16>, vector<8x1024xf32> -> vector<8x1024xf32>
    %cst_39 = arith.constant dense<0.000000e+00> : vector<1024xf32>
    %96 = vector.multi_reduction <add>, %95, %cst_39 [0] : vector<8x1024xf32> to vector<1024xf32>
    %97 = vector.shape_cast %96 : vector<1024xf32> to vector<1x1024xf32>
    %cst_40 = arith.constant 8.000000e+00 : f32
    %98 = vector.broadcast %cst_40 : f32 to vector<1x1024xf32>
    %99 = arith.divf %97, %98 : vector<1x1024xf32>
    %100 = vector.broadcast %99 : vector<1x1024xf32> to vector<8x1024xf32>
    %101 = arith.subf %95, %100 : vector<8x1024xf32>
    %102 = arith.mulf %101, %101 : vector<8x1024xf32>
    %cst_41 = arith.constant dense<0.000000e+00> : vector<1024xf32>
    %103 = vector.multi_reduction <add>, %102, %cst_41 [0] : vector<8x1024xf32> to vector<1024xf32>
    %104 = vector.shape_cast %103 : vector<1024xf32> to vector<1x1024xf32>
    %cst_42 = arith.constant 8.000000e+00 : f32
    %105 = vector.broadcast %cst_42 : f32 to vector<1x1024xf32>
    %106 = arith.divf %104, %105 : vector<1x1024xf32>
    %107 = vector.extract_strided_slice %93 {offsets = [0, 0], sizes = [1, 1024], strides = [1, 1]} : vector<2x1024xf32> to vector<1x1024xf32>
    %cst_43 = arith.constant 8.000000e-01 : f32
    %108 = vector.broadcast %cst_43 : f32 to vector<1x1024xf32>
    %109 = arith.addf %106, %108 : vector<1x1024xf32>
    %110 = math.rsqrt %109 : vector<1x1024xf32>
    %111 = arith.mulf %107, %110 : vector<1x1024xf32>
    %112 = vector.extract_strided_slice %93 {offsets = [1, 0], sizes = [1, 1024], strides = [1, 1]} : vector<2x1024xf32> to vector<1x1024xf32>
    %113 = arith.mulf %99, %111 : vector<1x1024xf32>
    %114 = arith.subf %112, %113 : vector<1x1024xf32>
    %115 = vector.broadcast %111 : vector<1x1024xf32> to vector<8x1024xf32>
    %116 = arith.mulf %95, %115 : vector<8x1024xf32>
    %117 = vector.broadcast %114 : vector<1x1024xf32> to vector<8x1024xf32>
    %118 = arith.addf %116, %117 : vector<8x1024xf32>
    %cst_44 = arith.constant 2.000000e-01 : f32
    %119 = vector.broadcast %cst_44 : f32 to vector<8x1024xf32>
    %120 = arith.mulf %119, %118 : vector<8x1024xf32>
    %121 = arith.maximumf %118, %120 : vector<8x1024xf32>
    %c0_45 = arith.constant 0 : index
    %c0_46 = arith.constant 0 : index
    %122 = vector.load %arg10[%c0_45, %c0_46] : memref<8x1024xf32, #tpu.memory_space<vmem>>, vector<8x1024xf32>
    tpu.vector_store %arg10[%c0_45, %c0_46], %121 {strides = array<i32>} : memref<8x1024xf32, #tpu.memory_space<vmem>>, vector<8x1024xf32>,
    return
  }
  func.func @transform_0(%arg0: i32) -> (i32, i32) {
    %c0_i32 = arith.constant 0 : i32
    %c0_i32_0 = arith.constant 0 : i32
    %c0_i32_1 = arith.constant 0 : i32
    return %c0_i32, %c0_i32_0 : i32, i32
  }
  func.func @transform_1(%arg0: i32) -> (i32, i32) {
    %c0_i32 = arith.constant 0 : i32
    %c0_i32_0 = arith.constant 0 : i32
    %c0_i32_1 = arith.constant 0 : i32
    return %c0_i32, %c0_i32_0 : i32, i32
  }
  func.func @transform_2(%arg0: i32) -> (i32, i32) {
    %c0_i32 = arith.constant 0 : i32
    %c0_i32_0 = arith.constant 0 : i32
    %c0_i32_1 = arith.constant 0 : i32
    return %c0_i32, %c0_i32_0 : i32, i32
  }
  func.func @transform_3(%arg0: i32) -> (i32, i32) {
    %c0_i32 = arith.constant 0 : i32
    %c0_i32_0 = arith.constant 0 : i32
    %c0_i32_1 = arith.constant 0 : i32
    return %c0_i32, %c0_i32_0 : i32, i32
  }
  func.func @transform_4(%arg0: i32) -> (i32, i32) {
    %c0_i32 = arith.constant 0 : i32
    %c0_i32_0 = arith.constant 0 : i32
    %c0_i32_1 = arith.constant 0 : i32
    return %c0_i32, %c0_i32_0 : i32, i32
  }
  func.func @transform_5(%arg0: i32) -> (i32, i32) {
    %c0_i32 = arith.constant 0 : i32
    %c0_i32_0 = arith.constant 0 : i32
    %c0_i32_1 = arith.constant 0 : i32
    return %c0_i32, %c0_i32_0 : i32, i32
  }
  func.func @transform_6(%arg0: i32) -> (i32, i32) {
    %c0_i32 = arith.constant 0 : i32
    %c0_i32_0 = arith.constant 0 : i32
    %c0_i32_1 = arith.constant 0 : i32
    return %c0_i32, %c0_i32_0 : i32, i32
  }
  func.func @transform_7(%arg0: i32) -> (i32, i32, i32) {
    %c0_i32 = arith.constant 0 : i32
    %c0_i32_0 = arith.constant 0 : i32
    %c0_i32_1 = arith.constant 0 : i32
    return %arg0, %c0_i32, %c0_i32_0 : i32, i32, i32
  }
  func.func @transform_8(%arg0: i32) -> (i32, i32) {
    %c0_i32 = arith.constant 0 : i32
    %c0_i32_0 = arith.constant 0 : i32
    return %c0_i32, %arg0 : i32, i32
  }
  func.func @transform_9(%arg0: i32) -> (i32, i32) {
    %c0_i32 = arith.constant 0 : i32
    %c0_i32_0 = arith.constant 0 : i32
    return %c0_i32, %arg0 : i32, i32
  }
}

</mosaic_0001>

<llo_original>
// kernel: tpu_custom_call.1
$region0: #{tpu_custom_call.1}
  #allocation0 [shape = 'u32[]', space=smem, size = 0x4, offset = 0x4, fixed_abs, tag = 'smem constant byte address 0x4 - core index']
  #allocation1 [shape = 'u32[144,128]{1,0:T(1,128)}', space=vmem, size = 0x12000, scoped, tag = 'internal scratch']
  %s0 = inlined_call_operand.hbm [shape: f32[8,32], index: 0, kind: input, shape index: {}]
  %s1 = inlined_call_operand.hbm [shape: bf16[32,256], index: 1, kind: input, shape index: {}]
  %s2 = inlined_call_operand.hbm [shape: f32[2,256], index: 2, kind: input, shape index: {}]
  %s3 = inlined_call_operand.hbm [shape: bf16[256,512], index: 3, kind: input, shape index: {}]
  %s4 = inlined_call_operand.hbm [shape: f32[2,512], index: 4, kind: input, shape index: {}]
  %s5 = inlined_call_operand.hbm [shape: bf16[512,1024], index: 5, kind: input, shape index: {}]
  %s6 = inlined_call_operand.hbm [shape: f32[2,1024], index: 6, kind: input, shape index: {}]
  %s7 = inlined_call_operand.hbm [shape: bf16[2,1024,1024], index: 7, kind: input, shape index: {}]
  %s8 = inlined_call_operand.hbm [shape: f32[2,2048], index: 8, kind: input, shape index: {}]
  %s9 = inlined_call_operand.hbm [shape: f32[8,2048], index: 9, kind: output, shape index: {}]
  %s10 = sld [smem:[#allocation0]]
  $region105: #{tpu_custom_call.1} parent=0
    _
  %s12 = ssub.s32 1, %s10
  %s13 = scalar_select 0, %s12, %s10
  $region1: #{tpu_custom_call.1} parent=0
    #allocation2 [shape = 'u8[4096]{0}', space=vmem, size = 0x1000, scoped, tag = 'input window, operand 0, single buffered']
    #allocation3 [shape = 's32[2]{0}', space=sflag, size = 0x8, scoped, tag = 'scoped memory for tpu_custom_call.1']
    #allocation4 [shape = 's32[2]{0}', space=sflag, size = 0x8, scoped, tag = 'scoped memory for tpu_custom_call.1']
    #allocation5 [shape = 'u8[16384]{0}', space=vmem, size = 0x4000, scoped, tag = 'input window, operand 1, single buffered']
    #allocation6 [shape = 's32[1]{0}', space=sflag, size = 0x4, scoped, tag = 'scoped memory for tpu_custom_call.1']
    #allocation7 [shape = 'u8[2048]{0}', space=vmem, size = 0x800, scoped, tag = 'input window, operand 2, single buffered']
    #allocation8 [shape = 'u8[262144]{0}', space=vmem, size = 0x40000, scoped, tag = 'input window, operand 3, single buffered']
    #allocation9 [shape = 's32[1]{0}', space=sflag, size = 0x4, scoped, tag = 'scoped memory for tpu_custom_call.1']
    #allocation10 [shape = 'u8[4096]{0}', space=vmem, size = 0x1000, scoped, tag = 'input window, operand 4, single buffered']
    #allocation11 [shape = 'u8[1048576]{0}', space=vmem, size = 0x100000, scoped, tag = 'input window, operand 5, single buffered']
    #allocation12 [shape = 's32[1]{0}', space=sflag, size = 0x4, scoped, tag = 'scoped memory for tpu_custom_call.1']
    #allocation13 [shape = 'u8[8192]{0}', space=vmem, size = 0x2000, scoped, tag = 'input window, operand 6, single buffered']
    #allocation14 [shape = 'u8[4194304]{0}', space=vmem, size = 0x400000, scoped, tag = 'input window, operand 7']
    #allocation15 [shape = 's32[2]{0}', space=sflag, size = 0x8, scoped, tag = 'scoped memory for tpu_custom_call.1']
    #allocation16 [shape = 'u8[16384]{0}', space=vmem, size = 0x4000, scoped, tag = 'input window, operand 8']
    #allocation17 [shape = 'u8[65536]{0}', space=vmem, size = 0x10000, scoped, tag = 'output window, operand 0']
    %14 = vsyncpa [#allocation3], 0
    %15 = vsyncpa [#allocation6], 0
    %16 = vsyncpa [#allocation9], 0
    %17 = vsyncpa [#allocation12], 0
    %18 = vsyncpa [#allocation15], 0
    %s19 = scalar_lea.sflag [#allocation15], 1
    %20 = vsyncpa %s19, 0
    %21 = vsyncpa [#allocation4], 0
    %s22 = scalar_lea.sflag [#allocation4], 1
    %23 = vsyncpa %s22, 0
    loop: start=0, step=1, limit=4
    $region2: #{tpu_custom_call.1} parent=1 // loop_pre_header
      _
    $region3: #{tpu_custom_call.1} parent=1 // loop_header
      %s25 = sphi 0, %s29
      %p26 = scmp.ge.s32.totalorder %s25, 4
      %s33 = sphi 0, %s33
      %s35 = sphi 0, %s33
      %s36 = sphi 0, %s35
      %s50 = sphi 0, %s36
      %s54 = sphi 0, %s54
      %s56 = sphi 0, %s54
      %s57 = sphi 0, %s56
      %s71 = sphi 0, %s57
      %s75 = sphi 0, %s75
      %s77 = sphi 0, %s75
      %s78 = sphi 0, %s77
      %s92 = sphi 0, %s78
      %s96 = sphi 0, %s96
      %s98 = sphi 0, %s96
      %s99 = sphi 0, %s98
      %s113 = sphi 0, %s99
      %s117 = sphi 0, %s117
      %s119 = sphi 0, %s117
      %s120 = sphi 0, %s119
      %s134 = sphi 0, %s120
      %s138 = sphi 0, %s138
      %s140 = sphi 0, %s138
      %s141 = sphi 0, %s140
      %s155 = sphi 0, %s141
      %s159 = sphi 0, %s159
      %s161 = sphi 0, %s159
      %s162 = sphi 0, %s161
      %s176 = sphi 0, %s162
      %s182 = sphi 0, %s184
      %s185 = sphi 0, %s182
      %s186 = sphi 0, %s185
      %s202 = sphi 0, %s186
      %s208 = sphi 0, %s210
      %s211 = sphi 0, %s208
      %s212 = sphi 0, %s211
      %s228 = sphi 0, %s212
      %s234 = sphi 0, %s236
      %s237 = sphi 0, %s234
      %s238 = sphi 0, %s237
      %s254 = sphi 0, %s238
    $region4: #{tpu_custom_call.1} parent=1 // loop_header_branch
      %28 = sbr.rel (%p26) target = $region8
    $region5: #{tpu_custom_call.1} parent=1 // loop_body
      %s30 = ssub.s32 %s25, 1
      %s31 = ssub.s32 %s25, 2
      %s32 = sadd.s32 %s25, 1
      %s34 = sadd.s32 %s33, 1
      %p37 = scmp.eq.s32.totalorder %s25, 1
      %p38 = scmp.ne.s32.totalorder %s33, %s35
      %p39 = scmp.eq.s32.totalorder %s25, 0
      %p40 = por %p38, %p39
      %p41 = scmp.ne.s32.totalorder %s33, %s35
      %p42 = scmp.eq.s32.totalorder %s30, 1
      %p43 = por %p41, %p42
      %p44 = scmp.ne.s32.totalorder %s35, %s36
      %p45 = scmp.eq.s32.totalorder %s30, 0
      %p46 = por %p44, %p45
      %p47 = scmp.ne.s32.totalorder %s35, %s36
      %p48 = scmp.eq.s32.totalorder %s31, 1
      %p49 = por %p47, %p48
      %p51 = scmp.ne.s32.totalorder %s36, %s50
      %p52 = scmp.eq.s32.totalorder %s31, 0
      %p53 = por %p51, %p52
      %s55 = sadd.s32 %s54, 1
      %p58 = scmp.eq.s32.totalorder %s25, 1
      %p59 = scmp.ne.s32.totalorder %s54, %s56
      %p60 = scmp.eq.s32.totalorder %s25, 0
      %p61 = por %p59, %p60
      %p62 = scmp.ne.s32.totalorder %s54, %s56
      %p63 = scmp.eq.s32.totalorder %s30, 1
      %p64 = por %p62, %p63
      %p65 = scmp.ne.s32.totalorder %s56, %s57
      %p66 = scmp.eq.s32.totalorder %s30, 0
      %p67 = por %p65, %p66
      %p68 = scmp.ne.s32.totalorder %s56, %s57
      %p69 = scmp.eq.s32.totalorder %s31, 1
      %p70 = por %p68, %p69
      %p72 = scmp.ne.s32.totalorder %s57, %s71
      %p73 = scmp.eq.s32.totalorder %s31, 0
      %p74 = por %p72, %p73
      %s76 = sadd.s32 %s75, 1
      %p79 = scmp.eq.s32.totalorder %s25, 1
      %p80 = scmp.ne.s32.totalorder %s75, %s77
      %p81 = scmp.eq.s32.totalorder %s25, 0
      %p82 = por %p80, %p81
      %p83 = scmp.ne.s32.totalorder %s75, %s77
      %p84 = scmp.eq.s32.totalorder %s30, 1
      %p85 = por %p83, %p84
      %p86 = scmp.ne.s32.totalorder %s77, %s78
      %p87 = scmp.eq.s32.totalorder %s30, 0
      %p88 = por %p86, %p87
      %p89 = scmp.ne.s32.totalorder %s77, %s78
      %p90 = scmp.eq.s32.totalorder %s31, 1
      %p91 = por %p89, %p90
      %p93 = scmp.ne.s32.totalorder %s78, %s92
      %p94 = scmp.eq.s32.totalorder %s31, 0
      %p95 = por %p93, %p94
      %s97 = sadd.s32 %s96, 1
      %p100 = scmp.eq.s32.totalorder %s25, 1
      %p101 = scmp.ne.s32.totalorder %s96, %s98
      %p102 = scmp.eq.s32.totalorder %s25, 0
      %p103 = por %p101, %p102
      %p104 = scmp.ne.s32.totalorder %s96, %s98
      %p105 = scmp.eq.s32.totalorder %s30, 1
      %p106 = por %p104, %p105
      %p107 = scmp.ne.s32.totalorder %s98, %s99
      %p108 = scmp.eq.s32.totalorder %s30, 0
      %p109 = por %p107, %p108
      %p110 = scmp.ne.s32.totalorder %s98, %s99
      %p111 = scmp.eq.s32.totalorder %s31, 1
      %p112 = por %p110, %p111
      %p114 = scmp.ne.s32.totalorder %s99, %s113
      %p115 = scmp.eq.s32.totalorder %s31, 0
      %p116 = por %p114, %p115
      %s118 = sadd.s32 %s117, 1
      %p121 = scmp.eq.s32.totalorder %s25, 1
      %p122 = scmp.ne.s32.totalorder %s117, %s119
      %p123 = scmp.eq.s32.totalorder %s25, 0
      %p124 = por %p122, %p123
      %p125 = scmp.ne.s32.totalorder %s117, %s119
      %p126 = scmp.eq.s32.totalorder %s30, 1
      %p127 = por %p125, %p126
      %p128 = scmp.ne.s32.totalorder %s119, %s120
      %p129 = scmp.eq.s32.totalorder %s30, 0
      %p130 = por %p128, %p129
      %p131 = scmp.ne.s32.totalorder %s119, %s120
      %p132 = scmp.eq.s32.totalorder %s31, 1
      %p133 = por %p131, %p132
      %p135 = scmp.ne.s32.totalorder %s120, %s134
      %p136 = scmp.eq.s32.totalorder %s31, 0
      %p137 = por %p135, %p136
      %s139 = sadd.s32 %s138, 1
      %p142 = scmp.eq.s32.totalorder %s25, 1
      %p143 = scmp.ne.s32.totalorder %s138, %s140
      %p144 = scmp.eq.s32.totalorder %s25, 0
      %p145 = por %p143, %p144
      %p146 = scmp.ne.s32.totalorder %s138, %s140
      %p147 = scmp.eq.s32.totalorder %s30, 1
      %p148 = por %p146, %p147
      %p149 = scmp.ne.s32.totalorder %s140, %s141
      %p150 = scmp.eq.s32.totalorder %s30, 0
      %p151 = por %p149, %p150
      %p152 = scmp.ne.s32.totalorder %s140, %s141
      %p153 = scmp.eq.s32.totalorder %s31, 1
      %p154 = por %p152, %p153
      %p156 = scmp.ne.s32.totalorder %s141, %s155
      %p157 = scmp.eq.s32.totalorder %s31, 0
      %p158 = por %p156, %p157
      %s160 = sadd.s32 %s159, 1
      %p163 = scmp.eq.s32.totalorder %s25, 1
      %p164 = scmp.ne.s32.totalorder %s159, %s161
      %p165 = scmp.eq.s32.totalorder %s25, 0
      %p166 = por %p164, %p165
      %p167 = scmp.ne.s32.totalorder %s159, %s161
      %p168 = scmp.eq.s32.totalorder %s30, 1
      %p169 = por %p167, %p168
      %p170 = scmp.ne.s32.totalorder %s161, %s162
      %p171 = scmp.eq.s32.totalorder %s30, 0
      %p172 = por %p170, %p171
      %p173 = scmp.ne.s32.totalorder %s161, %s162
      %p174 = scmp.eq.s32.totalorder %s31, 1
      %p175 = por %p173, %p174
      %p177 = scmp.ne.s32.totalorder %s162, %s176
      %p178 = scmp.eq.s32.totalorder %s31, 0
      %p179 = por %p177, %p178
      %s180 = ssub.s32 %s25, %s32
      %p181 = scmp.eq.s32.totalorder %s180, 0
      %s183 = sadd.s32 %s182, 1
      %s184 = scalar_select %p181, %s182, %s183
      %p187 = pneg %p181
      %p188 = scmp.eq.s32.totalorder %s25, 1
      %p189 = por %p187, %p188
      %p190 = scmp.ne.s32.totalorder %s182, %s185
      %p191 = scmp.eq.s32.totalorder %s25, 0
      %p192 = por %p190, %p191
      %p193 = scmp.ne.s32.totalorder %s182, %s185
      %p194 = scmp.eq.s32.totalorder %s30, 1
      %p195 = por %p193, %p194
      %p196 = scmp.ne.s32.totalorder %s185, %s186
      %p197 = scmp.eq.s32.totalorder %s30, 0
      %p198 = por %p196, %p197
      %p199 = scmp.ne.s32.totalorder %s185, %s186
      %p200 = scmp.eq.s32.totalorder %s31, 1
      %p201 = por %p199, %p200
      %p203 = scmp.ne.s32.totalorder %s186, %s202
      %p204 = scmp.eq.s32.totalorder %s31, 0
      %p205 = por %p203, %p204
      %s206 = ssub.s32 %s25, %s32
      %p207 = scmp.eq.s32.totalorder %s206, 0
      %s209 = sadd.s32 %s208, 1
      %s210 = scalar_select %p207, %s208, %s209
      %p213 = pneg %p207
      %p214 = scmp.eq.s32.totalorder %s25, 1
      %p215 = por %p213, %p214
      %p216 = scmp.ne.s32.totalorder %s208, %s211
      %p217 = scmp.eq.s32.totalorder %s25, 0
      %p218 = por %p216, %p217
      %p219 = scmp.ne.s32.totalorder %s208, %s211
      %p220 = scmp.eq.s32.totalorder %s30, 1
      %p221 = por %p219, %p220
      %p222 = scmp.ne.s32.totalorder %s211, %s212
      %p223 = scmp.eq.s32.totalorder %s30, 0
      %p224 = por %p222, %p223
      %p225 = scmp.ne.s32.totalorder %s211, %s212
      %p226 = scmp.eq.s32.totalorder %s31, 1
      %p227 = por %p225, %p226
      %p229 = scmp.ne.s32.totalorder %s212, %s228
      %p230 = scmp.eq.s32.totalorder %s31, 0
      %p231 = por %p229, %p230
      %s232 = ssub.s32 %s25, %s32
      %p233 = scmp.eq.s32.totalorder %s232, 0
      %s235 = sadd.s32 %s234, 1
      %s236 = scalar_select %p233, %s234, %s235
      %p239 = pneg %p233
      %p240 = scmp.eq.s32.totalorder %s25, 1
      %p241 = por %p239, %p240
      %p242 = scmp.ne.s32.totalorder %s234, %s237
      %p243 = scmp.eq.s32.totalorder %s25, 0
      %p244 = por %p242, %p243
      %p245 = scmp.ne.s32.totalorder %s234, %s237
      %p246 = scmp.eq.s32.totalorder %s30, 1
      %p247 = por %p245, %p246
      %p248 = scmp.ne.s32.totalorder %s237, %s238
      %p249 = scmp.eq.s32.totalorder %s30, 0
      %p250 = por %p248, %p249
      %p251 = scmp.ne.s32.totalorder %s237, %s238
      %p252 = scmp.eq.s32.totalorder %s31, 1
      %p253 = por %p251, %p252
      %p255 = scmp.ne.s32.totalorder %s238, %s254
      %p256 = scmp.eq.s32.totalorder %s31, 0
      %p257 = por %p255, %p256
      %p258 = scmp.le.s32.totalorder 1, %s25
      %p259 = scmp.lt.s32.totalorder %s25, 3
      %p260 = pnand %p258, %p259
      %p261 = pneg %p260
      // Predicated region
      $region9: #{tpu_custom_call.1} parent=5 // pred_check
        _
      $region10: #{tpu_custom_call.1} parent=5 // pred_check_branch
        %263 = sbr.rel (%p260) target = $region12
      $region11: #{tpu_custom_call.1} parent=5 // pred_region
        %s264 = ssub.s32 %s25, 1
        // Predicated region
        $region13: #{tpu_custom_call.1} parent=11 // pred_check
          %p265 = pneg %p46
        $region14: #{tpu_custom_call.1} parent=11 // pred_check_branch
          %267 = sbr.rel (%p265) target = $region16
        $region15: #{tpu_custom_call.1} parent=11 // pred_region
          %s269 = ssub.s32 128, 128
          %270 = vsyncadd [#allocation3], %s269
          %s272 = sshll.u32 [#allocation2], 4
          %s273 = int_to_ptr.vmem [resolvable:$true] %s272
          %275 = dma.hbm_to_vmem [thread:$0]  %s0, 128, %s273, [#allocation3]
        $region16: #{tpu_custom_call.1} parent=11 // pred_fallthru
          _
        // Predicated region
        $region17: #{tpu_custom_call.1} parent=11 // pred_check
          %p276 = pneg %p67
        $region18: #{tpu_custom_call.1} parent=11 // pred_check_branch
          %278 = sbr.rel (%p276) target = $region20
        $region19: #{tpu_custom_call.1} parent=11 // pred_region
          %s280 = ssub.s32 512, 512
          %281 = vsyncadd [#allocation6], %s280
          %s282 = sshll.u32 [#allocation5], 4
          %s283 = int_to_ptr.vmem [resolvable:$true] %s282
          %288 = dma.hbm_to_vmem [thread:$0]  %s1, 512, %s283, [#allocation6], 128, 128, 8
        $region20: #{tpu_custom_call.1} parent=11 // pred_fallthru
          _
        // Predicated region
        $region21: #{tpu_custom_call.1} parent=11 // pred_check
          %p289 = pneg %p88
        $region22: #{tpu_custom_call.1} parent=11 // pred_check_branch
          %291 = sbr.rel (%p289) target = $region24
        $region23: #{tpu_custom_call.1} parent=11 // pred_region
          %s293 = ssub.s32 64, 64
          %294 = vsyncadd [#allocation6], %s293
          %s296 = sshll.u32 [#allocation7], 4
          %s297 = int_to_ptr.vmem [resolvable:$true] %s296
          %299 = dma.hbm_to_vmem [thread:$0]  %s2, 64, %s297, [#allocation6]
        $region24: #{tpu_custom_call.1} parent=11 // pred_fallthru
          _
        // Predicated region
        $region25: #{tpu_custom_call.1} parent=11 // pred_check
          %p300 = pneg %p109
        $region26: #{tpu_custom_call.1} parent=11 // pred_check_branch
          %302 = sbr.rel (%p300) target = $region28
        $region27: #{tpu_custom_call.1} parent=11 // pred_region
          %s304 = ssub.s32 8192, 8192
          %305 = vsyncadd [#allocation9], %s304
          %s306 = sshll.u32 [#allocation8], 4
          %s307 = int_to_ptr.vmem [resolvable:$true] %s306
          %312 = dma.hbm_to_vmem [thread:$0]  %s3, 8192, %s307, [#allocation9], 256, 256, 16
        $region28: #{tpu_custom_call.1} parent=11 // pred_fallthru
          _
        // Predicated region
        $region29: #{tpu_custom_call.1} parent=11 // pred_check
          %p313 = pneg %p130
        $region30: #{tpu_custom_call.1} parent=11 // pred_check_branch
          %315 = sbr.rel (%p313) target = $region32
        $region31: #{tpu_custom_call.1} parent=11 // pred_region
          %s317 = ssub.s32 128, 128
          %318 = vsyncadd [#allocation9], %s317
          %s320 = sshll.u32 [#allocation10], 4
          %s321 = int_to_ptr.vmem [resolvable:$true] %s320
          %323 = dma.hbm_to_vmem [thread:$0]  %s4, 128, %s321, [#allocation9]
        $region32: #{tpu_custom_call.1} parent=11 // pred_fallthru
          _
        // Predicated region
        $region33: #{tpu_custom_call.1} parent=11 // pred_check
          %p324 = pneg %p151
        $region34: #{tpu_custom_call.1} parent=11 // pred_check_branch
          %326 = sbr.rel (%p324) target = $region36
        $region35: #{tpu_custom_call.1} parent=11 // pred_region
          %s328 = ssub.s32 32768, 32768
          %329 = vsyncadd [#allocation12], %s328
          %s330 = sshll.u32 [#allocation11], 4
          %s331 = int_to_ptr.vmem [resolvable:$true] %s330
          %336 = dma.hbm_to_vmem [thread:$0]  %s5, 32768, %s331, [#allocation12], 512, 512, 32
        $region36: #{tpu_custom_call.1} parent=11 // pred_fallthru
          _
        // Predicated region
        $region37: #{tpu_custom_call.1} parent=11 // pred_check
          %p337 = pneg %p172
        $region38: #{tpu_custom_call.1} parent=11 // pred_check_branch
          %339 = sbr.rel (%p337) target = $region40
        $region39: #{tpu_custom_call.1} parent=11 // pred_region
          %s341 = ssub.s32 256, 256
          %342 = vsyncadd [#allocation12], %s341
          %s344 = sshll.u32 [#allocation13], 4
          %s345 = int_to_ptr.vmem [resolvable:$true] %s344
          %347 = dma.hbm_to_vmem [thread:$0]  %s6, 256, %s345, [#allocation12]
        $region40: #{tpu_custom_call.1} parent=11 // pred_fallthru
          _
      $region12: #{tpu_custom_call.1} parent=5 // pred_fallthru
        _
      %p348 = scmp.lt.s32.totalorder %s25, 2
      // Predicated region
      $region41: #{tpu_custom_call.1} parent=5 // pred_check
        %p349 = pneg %p348
      $region42: #{tpu_custom_call.1} parent=5 // pred_check_branch
        %351 = sbr.rel (%p349) target = $region44
      $region43: #{tpu_custom_call.1} parent=5 // pred_region
        // Predicated region
        $region45: #{tpu_custom_call.1} parent=43 // pred_check
          %p352 = pneg %p192
        $region46: #{tpu_custom_call.1} parent=43 // pred_check_branch
          %354 = sbr.rel (%p352) target = $region48
        $region47: #{tpu_custom_call.1} parent=43 // pred_region
          %s355 = sand.u32 %s25, 1
          %s356 = scalar_lea.sflag [#allocation15], %s355
          %s357 = sand.u32 %s182, 1
          %s358 = smul.addr %s357, 4096
          %s359 = scalar_lea.vmem [#allocation14], %s358
          %s361 = ssub.s32 65536, 65536
          %362 = vsyncadd %s356, %s361
          %s363 = smul.addr %s25, 1024
          %s364 = smul.addr %s363, 64
          %s365 = scalar_lea.hbm %s7, %s364
          %s366 = sshll.u32 %s359, 4
          %s367 = int_to_ptr.vmem [resolvable:$true] %s366
          %372 = dma.hbm_to_vmem [thread:$0]  %s365, 65536, %s367, %s356, 512, 512, 32
        $region48: #{tpu_custom_call.1} parent=43 // pred_fallthru
          _
        // Predicated region
        $region49: #{tpu_custom_call.1} parent=43 // pred_check
          %p373 = pneg %p218
        $region50: #{tpu_custom_call.1} parent=43 // pred_check_branch
          %375 = sbr.rel (%p373) target = $region52
        $region51: #{tpu_custom_call.1} parent=43 // pred_region
          %s376 = sand.u32 %s25, 1
          %s377 = scalar_lea.sflag [#allocation15], %s376
          %s378 = sand.u32 %s208, 1
          %s379 = smul.addr %s378, 16
          %s380 = scalar_lea.vmem [#allocation16], %s379
          %s381 = smul.u32 8, %s25
          %s383 = ssub.s32 256, 256
          %384 = vsyncadd %s377, %s383
          %s385 = smul.addr %s381, 32
          %s386 = scalar_lea.hbm %s8, %s385
          %s388 = sshll.u32 %s380, 4
          %s389 = int_to_ptr.vmem [resolvable:$true] %s388
          %391 = dma.hbm_to_vmem [thread:$0]  %s386, 256, %s389, %s377
        $region52: #{tpu_custom_call.1} parent=43 // pred_fallthru
          _
      $region44: #{tpu_custom_call.1} parent=5 // pred_fallthru
        _
      %p392 = scmp.le.s32.totalorder 1, %s25
      %p393 = scmp.lt.s32.totalorder %s25, 3
      %p394 = pnand %p392, %p393
      %p395 = pneg %p394
      // Predicated region
      $region53: #{tpu_custom_call.1} parent=5 // pred_check
        _
      $region54: #{tpu_custom_call.1} parent=5 // pred_check_branch
        %397 = sbr.rel (%p394) target = $region56
      $region55: #{tpu_custom_call.1} parent=5 // pred_region
        %s398 = ssub.s32 %s25, 1
        // Predicated region
        $region57: #{tpu_custom_call.1} parent=55 // pred_check
          %p399 = pneg %p46
        $region58: #{tpu_custom_call.1} parent=55 // pred_check_branch
          %401 = sbr.rel (%p399) target = $region60
        $region59: #{tpu_custom_call.1} parent=55 // pred_region
          %402 = dma.done [#allocation3], 128
        $region60: #{tpu_custom_call.1} parent=55 // pred_fallthru
          _
        // Predicated region
        $region61: #{tpu_custom_call.1} parent=55 // pred_check
          %p403 = pneg %p67
        $region62: #{tpu_custom_call.1} parent=55 // pred_check_branch
          %405 = sbr.rel (%p403) target = $region64
        $region63: #{tpu_custom_call.1} parent=55 // pred_region
          %406 = dma.done [#allocation6], 512
        $region64: #{tpu_custom_call.1} parent=55 // pred_fallthru
          _
        // Predicated region
        $region65: #{tpu_custom_call.1} parent=55 // pred_check
          %p407 = pneg %p88
        $region66: #{tpu_custom_call.1} parent=55 // pred_check_branch
          %409 = sbr.rel (%p407) target = $region68
        $region67: #{tpu_custom_call.1} parent=55 // pred_region
          %410 = dma.done [#allocation6], 64
        $region68: #{tpu_custom_call.1} parent=55 // pred_fallthru
          _
        // Predicated region
        $region69: #{tpu_custom_call.1} parent=55 // pred_check
          %p411 = pneg %p109
        $region70: #{tpu_custom_call.1} parent=55 // pred_check_branch
          %413 = sbr.rel (%p411) target = $region72
        $region71: #{tpu_custom_call.1} parent=55 // pred_region
          %414 = dma.done [#allocation9], 8192
        $region72: #{tpu_custom_call.1} parent=55 // pred_fallthru
          _
        // Predicated region
        $region73: #{tpu_custom_call.1} parent=55 // pred_check
          %p415 = pneg %p130
        $region74: #{tpu_custom_call.1} parent=55 // pred_check_branch
          %417 = sbr.rel (%p415) target = $region76
        $region75: #{tpu_custom_call.1} parent=55 // pred_region
          %418 = dma.done [#allocation9], 128
        $region76: #{tpu_custom_call.1} parent=55 // pred_fallthru
          _
        // Predicated region
        $region77: #{tpu_custom_call.1} parent=55 // pred_check
          %p419 = pneg %p151
        $region78: #{tpu_custom_call.1} parent=55 // pred_check_branch
          %421 = sbr.rel (%p419) target = $region80
        $region79: #{tpu_custom_call.1} parent=55 // pred_region
          %422 = dma.done [#allocation12], 32768
        $region80: #{tpu_custom_call.1} parent=55 // pred_fallthru
          _
        // Predicated region
        $region81: #{tpu_custom_call.1} parent=55 // pred_check
          %p423 = pneg %p172
        $region82: #{tpu_custom_call.1} parent=55 // pred_check_branch
          %425 = sbr.rel (%p423) target = $region84
        $region83: #{tpu_custom_call.1} parent=55 // pred_region
          %426 = dma.done [#allocation12], 256
        $region84: #{tpu_custom_call.1} parent=55 // pred_fallthru
          _
        %s427 = sand.u32 %s30, 1
        %s428 = scalar_lea.sflag [#allocation15], %s427
        %s429 = sand.u32 %s185, 1
        %s430 = smul.addr %s429, 4096
        %s431 = scalar_lea.vmem [#allocation14], %s430
        // Predicated region
        $region85: #{tpu_custom_call.1} parent=55 // pred_check
          %p432 = pneg %p198
        $region86: #{tpu_custom_call.1} parent=55 // pred_check_branch
          %434 = sbr.rel (%p432) target = $region88
        $region87: #{tpu_custom_call.1} parent=55 // pred_region
          %435 = dma.done %s428, 65536
        $region88: #{tpu_custom_call.1} parent=55 // pred_fallthru
          _
        %s436 = sand.u32 %s30, 1
        %s437 = scalar_lea.sflag [#allocation15], %s436
        %s438 = sand.u32 %s211, 1
        %s439 = smul.addr %s438, 16
        %s440 = scalar_lea.vmem [#allocation16], %s439
        // Predicated region
        $region89: #{tpu_custom_call.1} parent=55 // pred_check
          %p441 = pneg %p224
        $region90: #{tpu_custom_call.1} parent=55 // pred_check_branch
          %443 = sbr.rel (%p441) target = $region92
        $region91: #{tpu_custom_call.1} parent=55 // pred_region
          %444 = dma.done %s437, 256
        $region92: #{tpu_custom_call.1} parent=55 // pred_fallthru
          _
        %p445 = pneg %p46
        %p446 = pneg %p43
        %p447 = pneg %p67
        %p448 = pneg %p64
        %p449 = pneg %p88
        %p450 = pneg %p85
        %p451 = pneg %p109
        %p452 = pneg %p106
        %p453 = pneg %p130
        %p454 = pneg %p127
        %p455 = pneg %p151
        %p456 = pneg %p148
        %p457 = pneg %p172
        %p458 = pneg %p169
        %s459 = sand.u32 %s30, 1
        %s460 = scalar_lea.sflag [#allocation15], %s459
        %s461 = sand.u32 %s185, 1
        %s462 = smul.addr %s461, 4096
        %s463 = scalar_lea.vmem [#allocation14], %s462
        %p464 = pneg %p198
        %p465 = pneg %p195
        %s466 = sand.u32 %s30, 1
        %s467 = scalar_lea.sflag [#allocation15], %s466
        %s468 = sand.u32 %s211, 1
        %s469 = smul.addr %s468, 16
        %s470 = scalar_lea.vmem [#allocation16], %s469
        %p471 = pneg %p224
        %p472 = pneg %p221
        %p473 = pneg %p250
        %p474 = pneg %p247
        %s475 = sand.u32 %s237, 1
        %s476 = scalar_lea.sflag [#allocation4], %s475
        %s477 = sand.u32 %s237, 1
        %s478 = smul.addr %s477, 64
        %s479 = scalar_lea.vmem [#allocation17], %s478
        %s480 = smul.u32 8, %s30
        %s481 = smul.u32 8, %s30
        %v483 = vld [vmem:[#allocation2] sm:$0xff]
        %v484 = vld [vmem:[#allocation5] sm:$0xff]
        %v485 = vld [vmem:[#allocation5 + $0x8] sm:$0xff]
        %v486 = vld [vmem:[#allocation5 + $0x10] sm:$0xff]
        %v487 = vld [vmem:[#allocation5 + $0x18] sm:$0xff]
        %v488 = vld [vmem:[#allocation7] sm:$0xf]
        %v489 = vpack.c.bf16 %v483, %v483
        %v494 = vunpack.c.l.b16 %v484
        %v495 = vunpack.c.h.b16 %v484
        %v496 = vunpack.c.l.b16 %v485
        %v497 = vunpack.c.h.b16 %v485
        %v498 = vunpack.c.l.b16 %v486
        %v499 = vunpack.c.h.b16 %v486
        %v500 = vunpack.c.l.b16 %v487
        %v501 = vunpack.c.h.b16 %v487
        %v502 = vpack.c.b16 %v496, %v494
        %v503 = vpack.c.b16 %v497, %v495
        %v504 = vpack.c.b16 %v500, %v498
        %v505 = vpack.c.b16 %v501, %v499
        %vm510 = vcmask 261120
        %v512 = vsel %vm510, %v489, 0
        %514 = vmatprep.subr.bf16.mxu0 %v503
        %515 = vmatpush1.bf16.msra.mxu0 %v502
        %516 = vmatprep.subr.bf16.mxu0 %v505
        %517 = vmatpush1.bf16.msra.mxu0 %v504
        %518 = vmatprep.subr.bf16.mxu0 0
        %519 = vmatpush1.bf16.msra.mxu0 0
        %520 = vmatprep.subr.bf16.mxu0 0
        %521 = vmatpush1.bf16.msra.mxu0 0
        %522 = vmatprep.subr.bf16.mxu0 0
        %523 = vmatpush1.bf16.msra.mxu0 0
        %524 = vmatprep.subr.bf16.mxu0 0
        %525 = vmatpush1.bf16.msra.mxu0 0
        %526 = vmatprep.subr.bf16.mxu0 0
        %527 = vmatpush1.bf16.msra.mxu0 0
        %528 = vmatprep.subr.bf16.mxu0 0
        %529 = vmatpush1.bf16.msra.mxu0 0
        %530 = vmatprep.subr.bf16.mxu0 0
        %531 = vmatpush1.bf16.msra.mxu0 0
        %532 = vmatprep.subr.bf16.mxu0 0
        %533 = vmatpush1.bf16.msra.mxu0 0
        %534 = vmatprep.subr.bf16.mxu0 0
        %535 = vmatpush1.bf16.msra.mxu0 0
        %536 = vmatprep.subr.bf16.mxu0 0
        %537 = vmatpush1.bf16.msra.mxu0 0
        %538 = vmatprep.subr.bf16.mxu0 0
        %539 = vmatpush1.bf16.msra.mxu0 0
        %540 = vmatprep.subr.bf16.mxu0 0
        %541 = vmatpush1.bf16.msra.mxu0 0
        %542 = vmatprep.subr.bf16.mxu0 0
        %543 = vmatpush1.bf16.msra.mxu0 0
        %544 = vmatprep.subr.bf16.mxu0 0
        %545 = vmatpush1.bf16.msra.mxu0 0
        %546 = vmatprep.mubr.bf16.mxu0 0
        %547 = vmatmul.mubr.bf16.gmra.mrb[0].mxu0 %v512
        %v548 = vpop.f32.mrb[0].mxu0
        %v549 = vadd.f32 0.0, %v548
        %v550 = vpop.f32.mrb[0].mxu0
        %v551 = vadd.f32 0.0, %v550
        %v552 = vpop.f32.mrb[0].mxu0
        %v553 = vpop.f32.mrb[0].mxu0
        %554 = vdwg.mxu0
        %v555 = vrot.slane %v549, 4
        %v556 = vadd.f32 %v549, %v555
        %v557 = vrot.slane %v556, 2
        %v558 = vadd.f32 %v556, %v557
        %v559 = vrot.slane %v558, 1
        %v560 = vadd.f32 %v558, %v559
        %v561 = vrot.slane %v551, 4
        %v562 = vadd.f32 %v551, %v561
        %v563 = vrot.slane %v562, 2
        %v564 = vadd.f32 %v562, %v563
        %v565 = vrot.slane %v564, 1
        %v566 = vadd.f32 %v564, %v565
        %v567 = vrcp.pop 8.0
        %v568 = vmul.f32 %v560, %v567
        %v569 = vmul.f32 %v566, %v567
        %v570 = vsub.f32 %v549, %v568
        %v571 = vsub.f32 %v551, %v569
        %v572 = vmul.f32 %v570, %v570
        %v573 = vmul.f32 %v571, %v571
        %v574 = vrot.slane %v572, 4
        %v575 = vadd.f32 %v572, %v574
        %v576 = vrot.slane %v575, 2
        %v577 = vadd.f32 %v575, %v576
        %v578 = vrot.slane %v577, 1
        %v579 = vadd.f32 %v577, %v578
        %v580 = vrot.slane %v573, 4
        %v581 = vadd.f32 %v573, %v580
        %v582 = vrot.slane %v581, 2
        %v583 = vadd.f32 %v581, %v582
        %v584 = vrot.slane %v583, 1
        %v585 = vadd.f32 %v583, %v584
        %v586 = vmul.f32 %v579, %v567
        %v587 = vmul.f32 %v585, %v567
        %v588 = vadd.f32 %v586, 0.8
        %v589 = vadd.f32 %v587, 0.8
        %v590 = vrsqrt.pop %v588
        %v591 = vrsqrt.pop %v589
        %v594 = vcombine.low %v590, %v591
        %v596 = vunpack.c.l.s4 1983009808
        %v597 = vunpack.c.0.s8 %v596
        %v598 = vlaneseq
        %v599 = vshrl.u32 %v598, 7
        %v600 = vsub.s32 %v597, %v599
        %v601 = vrot.slane %v594, %v600
        %v603 = vmul.f32 %v488, %v601
        %v605 = vlaneseq
        %v606 = vshrl.u32 %v605, 7
        %v607 = vsub.s32 0, %v606
        %v608 = vrot.slane %v603, %v607
        %v609 = vlaneseq
        %v610 = vshrl.u32 %v609, 7
        %v611 = vsub.s32 2, %v610
        %v612 = vrot.slane %v603, %v611
        %v615 = vmul.f32 %v568, %v608
        %v616 = vmul.f32 %v569, %v612
        %v619 = vcombine.low %v615, %v616
        %v621 = vunpack.c.l.s4 1983009808
        %v622 = vunpack.c.0.s8 %v621
        %v623 = vlaneseq
        %v624 = vshrl.u32 %v623, 7
        %v625 = vsub.s32 %v622, %v624
        %v626 = vrot.slane %v619, %v625
        %v627 = vrot.slane %v626, 7
        %v629 = vsub.f32 %v488, %v627
        %v630 = vlaneseq
        %v631 = vshrl.u32 %v630, 7
        %v632 = vsub.s32 0, %v631
        %v633 = vrot.slane %v608, %v632
        %v634 = vlaneseq
        %v635 = vshrl.u32 %v634, 7
        %v636 = vsub.s32 0, %v635
        %v637 = vrot.slane %v612, %v636
        %v638 = vmul.f32 %v549, %v633
        %v639 = vmul.f32 %v551, %v637
        %v641 = vlaneseq
        %v642 = vshrl.u32 %v641, 7
        %v643 = vsub.s32 1, %v642
        %v644 = vrot.slane %v629, %v643
        %v645 = vlaneseq
        %v646 = vshrl.u32 %v645, 7
        %v647 = vsub.s32 3, %v646
        %v648 = vrot.slane %v629, %v647
        %v651 = vlaneseq
        %v652 = vshrl.u32 %v651, 7
        %v653 = vsub.s32 1, %v652
        %v654 = vrot.slane %v644, %v653
        %v655 = vlaneseq
        %v656 = vshrl.u32 %v655, 7
        %v657 = vsub.s32 1, %v656
        %v658 = vrot.slane %v648, %v657
        %v659 = vadd.f32 %v638, %v654
        %v660 = vadd.f32 %v639, %v658
        %v661 = vmul.f32 %v659, 0.2
        %v662 = vmul.f32 %v660, 0.2
        %v663 = vmax.f32 %v659, %v661
        %v664 = vmax.f32 %v660, %v662
        %v665 = vld [vmem:[#allocation8] sm:$0xff]
        %v666 = vld [vmem:[#allocation8 + $0x8] sm:$0xff]
        %v667 = vld [vmem:[#allocation8 + $0x10] sm:$0xff]
        %v668 = vld [vmem:[#allocation8 + $0x18] sm:$0xff]
        %v669 = vld [vmem:[#allocation8 + $0x20] sm:$0xff]
        %v670 = vld [vmem:[#allocation8 + $0x28] sm:$0xff]
        %v671 = vld [vmem:[#allocation8 + $0x30] sm:$0xff]
        %v672 = vld [vmem:[#allocation8 + $0x38] sm:$0xff]
        %v673 = vld [vmem:[#allocation8 + $0x40] sm:$0xff]
        %v674 = vld [vmem:[#allocation8 + $0x48] sm:$0xff]
        %v675 = vld [vmem:[#allocation8 + $0x50] sm:$0xff]
        %v676 = vld [vmem:[#allocation8 + $0x58] sm:$0xff]
        %v677 = vld [vmem:[#allocation8 + $0x60] sm:$0xff]
        %v678 = vld [vmem:[#allocation8 + $0x68] sm:$0xff]
        %v679 = vld [vmem:[#allocation8 + $0x70] sm:$0xff]
        %v680 = vld [vmem:[#allocation8 + $0x78] sm:$0xff]
        %v681 = vld [vmem:[#allocation8 + $0x80] sm:$0xff]
        %v682 = vld [vmem:[#allocation8 + $0x88] sm:$0xff]
        %v683 = vld [vmem:[#allocation8 + $0x90] sm:$0xff]
        %v684 = vld [vmem:[#allocation8 + $0x98] sm:$0xff]
        %v685 = vld [vmem:[#allocation8 + $0xa0] sm:$0xff]
        %v686 = vld [vmem:[#allocation8 + $0xa8] sm:$0xff]
        %v687 = vld [vmem:[#allocation8 + $0xb0] sm:$0xff]
        %v688 = vld [vmem:[#allocation8 + $0xb8] sm:$0xff]
        %v689 = vld [vmem:[#allocation8 + $0xc0] sm:$0xff]
        %v690 = vld [vmem:[#allocation8 + $0xc8] sm:$0xff]
        %v691 = vld [vmem:[#allocation8 + $0xd0] sm:$0xff]
        %v692 = vld [vmem:[#allocation8 + $0xd8] sm:$0xff]
        %v693 = vld [vmem:[#allocation8 + $0xe0] sm:$0xff]
        %v694 = vld [vmem:[#allocation8 + $0xe8] sm:$0xff]
        %v695 = vld [vmem:[#allocation8 + $0xf0] sm:$0xff]
        %v696 = vld [vmem:[#allocation8 + $0xf8] sm:$0xff]
        %v697 = vld [vmem:[#allocation8 + $0x100] sm:$0xff]
        %v698 = vld [vmem:[#allocation8 + $0x108] sm:$0xff]
        %v699 = vld [vmem:[#allocation8 + $0x110] sm:$0xff]
        %v700 = vld [vmem:[#allocation8 + $0x118] sm:$0xff]
        %v701 = vld [vmem:[#allocation8 + $0x120] sm:$0xff]
        %v702 = vld [vmem:[#allocation8 + $0x128] sm:$0xff]
        %v703 = vld [vmem:[#allocation8 + $0x130] sm:$0xff]
        %v704 = vld [vmem:[#allocation8 + $0x138] sm:$0xff]
        %v705 = vld [vmem:[#allocation8 + $0x140] sm:$0xff]
        %v706 = vld [vmem:[#allocation8 + $0x148] sm:$0xff]
        %v707 = vld [vmem:[#allocation8 + $0x150] sm:$0xff]
        %v708 = vld [vmem:[#allocation8 + $0x158] sm:$0xff]
        %v709 = vld [vmem:[#allocation8 + $0x160] sm:$0xff]
        %v710 = vld [vmem:[#allocation8 + $0x168] sm:$0xff]
        %v711 = vld [vmem:[#allocation8 + $0x170] sm:$0xff]
        %v712 = vld [vmem:[#allocation8 + $0x178] sm:$0xff]
        %v713 = vld [vmem:[#allocation8 + $0x180] sm:$0xff]
        %v714 = vld [vmem:[#allocation8 + $0x188] sm:$0xff]
        %v715 = vld [vmem:[#allocation8 + $0x190] sm:$0xff]
        %v716 = vld [vmem:[#allocation8 + $0x198] sm:$0xff]
        %v717 = vld [vmem:[#allocation8 + $0x1a0] sm:$0xff]
        %v718 = vld [vmem:[#allocation8 + $0x1a8] sm:$0xff]
        %v719 = vld [vmem:[#allocation8 + $0x1b0] sm:$0xff]
        %v720 = vld [vmem:[#allocation8 + $0x1b8] sm:$0xff]
        %v721 = vld [vmem:[#allocation8 + $0x1c0] sm:$0xff]
        %v722 = vld [vmem:[#allocation8 + $0x1c8] sm:$0xff]
        %v723 = vld [vmem:[#allocation8 + $0x1d0] sm:$0xff]
        %v724 = vld [vmem:[#allocation8 + $0x1d8] sm:$0xff]
        %v725 = vld [vmem:[#allocation8 + $0x1e0] sm:$0xff]
        %v726 = vld [vmem:[#allocation8 + $0x1e8] sm:$0xff]
        %v727 = vld [vmem:[#allocation8 + $0x1f0] sm:$0xff]
        %v728 = vld [vmem:[#allocation8 + $0x1f8] sm:$0xff]
        %v729 = vld [vmem:[#allocation10] sm:$0xff]
        %v730 = vpack.c.bf16 %v663, %v663
        %v731 = vpack.c.bf16 %v664, %v664
        %v796 = vunpack.c.l.b16 %v665
        %v797 = vunpack.c.h.b16 %v665
        %v798 = vunpack.c.l.b16 %v666
        %v799 = vunpack.c.h.b16 %v666
        %v800 = vunpack.c.l.b16 %v667
        %v801 = vunpack.c.h.b16 %v667
        %v802 = vunpack.c.l.b16 %v668
        %v803 = vunpack.c.h.b16 %v668
        %v804 = vunpack.c.l.b16 %v669
        %v805 = vunpack.c.h.b16 %v669
        %v806 = vunpack.c.l.b16 %v670
        %v807 = vunpack.c.h.b16 %v670
        %v808 = vunpack.c.l.b16 %v671
        %v809 = vunpack.c.h.b16 %v671
        %v810 = vunpack.c.l.b16 %v672
        %v811 = vunpack.c.h.b16 %v672
        %v812 = vunpack.c.l.b16 %v673
        %v813 = vunpack.c.h.b16 %v673
        %v814 = vunpack.c.l.b16 %v674
        %v815 = vunpack.c.h.b16 %v674
        %v816 = vunpack.c.l.b16 %v675
        %v817 = vunpack.c.h.b16 %v675
        %v818 = vunpack.c.l.b16 %v676
        %v819 = vunpack.c.h.b16 %v676
        %v820 = vunpack.c.l.b16 %v677
        %v821 = vunpack.c.h.b16 %v677
        %v822 = vunpack.c.l.b16 %v678
        %v823 = vunpack.c.h.b16 %v678
        %v824 = vunpack.c.l.b16 %v679
        %v825 = vunpack.c.h.b16 %v679
        %v826 = vunpack.c.l.b16 %v680
        %v827 = vunpack.c.h.b16 %v680
        %v828 = vunpack.c.l.b16 %v681
        %v829 = vunpack.c.h.b16 %v681
        %v830 = vunpack.c.l.b16 %v682
        %v831 = vunpack.c.h.b16 %v682
        %v832 = vunpack.c.l.b16 %v683
        %v833 = vunpack.c.h.b16 %v683
        %v834 = vunpack.c.l.b16 %v684
        %v835 = vunpack.c.h.b16 %v684
        %v836 = vunpack.c.l.b16 %v685
        %v837 = vunpack.c.h.b16 %v685
        %v838 = vunpack.c.l.b16 %v686
        %v839 = vunpack.c.h.b16 %v686
        %v840 = vunpack.c.l.b16 %v687
        %v841 = vunpack.c.h.b16 %v687
        %v842 = vunpack.c.l.b16 %v688
        %v843 = vunpack.c.h.b16 %v688
        %v844 = vunpack.c.l.b16 %v689
        %v845 = vunpack.c.h.b16 %v689
        %v846 = vunpack.c.l.b16 %v690
        %v847 = vunpack.c.h.b16 %v690
        %v848 = vunpack.c.l.b16 %v691
        %v849 = vunpack.c.h.b16 %v691
        %v850 = vunpack.c.l.b16 %v692
        %v851 = vunpack.c.h.b16 %v692
        %v852 = vunpack.c.l.b16 %v693
        %v853 = vunpack.c.h.b16 %v693
        %v854 = vunpack.c.l.b16 %v694
        %v855 = vunpack.c.h.b16 %v694
        %v856 = vunpack.c.l.b16 %v695
        %v857 = vunpack.c.h.b16 %v695
        %v858 = vunpack.c.l.b16 %v696
        %v859 = vunpack.c.h.b16 %v696
        %v860 = vunpack.c.l.b16 %v697
        %v861 = vunpack.c.h.b16 %v697
        %v862 = vunpack.c.l.b16 %v698
        %v863 = vunpack.c.h.b16 %v698
        %v864 = vunpack.c.l.b16 %v699
        %v865 = vunpack.c.h.b16 %v699
        %v866 = vunpack.c.l.b16 %v700
        %v867 = vunpack.c.h.b16 %v700
        %v868 = vunpack.c.l.b16 %v701
        %v869 = vunpack.c.h.b16 %v701
        %v870 = vunpack.c.l.b16 %v702
        %v871 = vunpack.c.h.b16 %v702
        %v872 = vunpack.c.l.b16 %v703
        %v873 = vunpack.c.h.b16 %v703
        %v874 = vunpack.c.l.b16 %v704
        %v875 = vunpack.c.h.b16 %v704
        %v876 = vunpack.c.l.b16 %v705
        %v877 = vunpack.c.h.b16 %v705
        %v878 = vunpack.c.l.b16 %v706
        %v879 = vunpack.c.h.b16 %v706
        %v880 = vunpack.c.l.b16 %v707
        %v881 = vunpack.c.h.b16 %v707
        %v882 = vunpack.c.l.b16 %v708
        %v883 = vunpack.c.h.b16 %v708
        %v884 = vunpack.c.l.b16 %v709
        %v885 = vunpack.c.h.b16 %v709
        %v886 = vunpack.c.l.b16 %v710
        %v887 = vunpack.c.h.b16 %v710
        %v888 = vunpack.c.l.b16 %v711
        %v889 = vunpack.c.h.b16 %v711
        %v890 = vunpack.c.l.b16 %v712
        %v891 = vunpack.c.h.b16 %v712
        %v892 = vunpack.c.l.b16 %v713
        %v893 = vunpack.c.h.b16 %v713
        %v894 = vunpack.c.l.b16 %v714
        %v895 = vunpack.c.h.b16 %v714
        %v896 = vunpack.c.l.b16 %v715
        %v897 = vunpack.c.h.b16 %v715
        %v898 = vunpack.c.l.b16 %v716
        %v899 = vunpack.c.h.b16 %v716
        %v900 = vunpack.c.l.b16 %v717
        %v901 = vunpack.c.h.b16 %v717
        %v902 = vunpack.c.l.b16 %v718
        %v903 = vunpack.c.h.b16 %v718
        %v904 = vunpack.c.l.b16 %v719
        %v905 = vunpack.c.h.b16 %v719
        %v906 = vunpack.c.l.b16 %v720
        %v907 = vunpack.c.h.b16 %v720
        %v908 = vunpack.c.l.b16 %v721
        %v909 = vunpack.c.h.b16 %v721
        %v910 = vunpack.c.l.b16 %v722
        %v911 = vunpack.c.h.b16 %v722
        %v912 = vunpack.c.l.b16 %v723
        %v913 = vunpack.c.h.b16 %v723
        %v914 = vunpack.c.l.b16 %v724
        %v915 = vunpack.c.h.b16 %v724
        %v916 = vunpack.c.l.b16 %v725
        %v917 = vunpack.c.h.b16 %v725
        %v918 = vunpack.c.l.b16 %v726
        %v919 = vunpack.c.h.b16 %v726
        %v920 = vunpack.c.l.b16 %v727
        %v921 = vunpack.c.h.b16 %v727
        %v922 = vunpack.c.l.b16 %v728
        %v923 = vunpack.c.h.b16 %v728
        %v924 = vpack.c.b16 %v800, %v796
        %v925 = vpack.c.b16 %v801, %v797
        %v926 = vpack.c.b16 %v802, %v798
        %v927 = vpack.c.b16 %v803, %v799
        %v928 = vpack.c.b16 %v808, %v804
        %v929 = vpack.c.b16 %v809, %v805
        %v930 = vpack.c.b16 %v810, %v806
        %v931 = vpack.c.b16 %v811, %v807
        %v932 = vpack.c.b16 %v816, %v812
        %v933 = vpack.c.b16 %v817, %v813
        %v934 = vpack.c.b16 %v818, %v814
        %v935 = vpack.c.b16 %v819, %v815
        %v936 = vpack.c.b16 %v824, %v820
        %v937 = vpack.c.b16 %v825, %v821
        %v938 = vpack.c.b16 %v826, %v822
        %v939 = vpack.c.b16 %v827, %v823
        %v940 = vpack.c.b16 %v832, %v828
        %v941 = vpack.c.b16 %v833, %v829
        %v942 = vpack.c.b16 %v834, %v830
        %v943 = vpack.c.b16 %v835, %v831
        %v944 = vpack.c.b16 %v840, %v836
        %v945 = vpack.c.b16 %v841, %v837
        %v946 = vpack.c.b16 %v842, %v838
        %v947 = vpack.c.b16 %v843, %v839
        %v948 = vpack.c.b16 %v848, %v844
        %v949 = vpack.c.b16 %v849, %v845
        %v950 = vpack.c.b16 %v850, %v846
        %v951 = vpack.c.b16 %v851, %v847
        %v952 = vpack.c.b16 %v856, %v852
        %v953 = vpack.c.b16 %v857, %v853
        %v954 = vpack.c.b16 %v858, %v854
        %v955 = vpack.c.b16 %v859, %v855
        %v956 = vpack.c.b16 %v864, %v860
        %v957 = vpack.c.b16 %v865, %v861
        %v958 = vpack.c.b16 %v866, %v862
        %v959 = vpack.c.b16 %v867, %v863
        %v960 = vpack.c.b16 %v872, %v868
        %v961 = vpack.c.b16 %v873, %v869
        %v962 = vpack.c.b16 %v874, %v870
        %v963 = vpack.c.b16 %v875, %v871
        %v964 = vpack.c.b16 %v880, %v876
        %v965 = vpack.c.b16 %v881, %v877
        %v966 = vpack.c.b16 %v882, %v878
        %v967 = vpack.c.b16 %v883, %v879
        %v968 = vpack.c.b16 %v888, %v884
        %v969 = vpack.c.b16 %v889, %v885
        %v970 = vpack.c.b16 %v890, %v886
        %v971 = vpack.c.b16 %v891, %v887
        %v972 = vpack.c.b16 %v896, %v892
        %v973 = vpack.c.b16 %v897, %v893
        %v974 = vpack.c.b16 %v898, %v894
        %v975 = vpack.c.b16 %v899, %v895
        %v976 = vpack.c.b16 %v904, %v900
        %v977 = vpack.c.b16 %v905, %v901
        %v978 = vpack.c.b16 %v906, %v902
        %v979 = vpack.c.b16 %v907, %v903
        %v980 = vpack.c.b16 %v912, %v908
        %v981 = vpack.c.b16 %v913, %v909
        %v982 = vpack.c.b16 %v914, %v910
        %v983 = vpack.c.b16 %v915, %v911
        %v984 = vpack.c.b16 %v920, %v916
        %v985 = vpack.c.b16 %v921, %v917
        %v986 = vpack.c.b16 %v922, %v918
        %v987 = vpack.c.b16 %v923, %v919
        %1052 = vmatprep.subr.bf16.mxu0 %v925
        %1053 = vmatpush1.bf16.msra.mxu0 %v924
        %1054 = vmatprep.subr.bf16.mxu0 %v929
        %1055 = vmatpush1.bf16.msra.mxu0 %v928
        %1056 = vmatprep.subr.bf16.mxu0 %v933
        %1057 = vmatpush1.bf16.msra.mxu0 %v932
        %1058 = vmatprep.subr.bf16.mxu0 %v937
        %1059 = vmatpush1.bf16.msra.mxu0 %v936
        %1060 = vmatprep.subr.bf16.mxu0 %v941
        %1061 = vmatpush1.bf16.msra.mxu0 %v940
        %1062 = vmatprep.subr.bf16.mxu0 %v945
        %1063 = vmatpush1.bf16.msra.mxu0 %v944
        %1064 = vmatprep.subr.bf16.mxu0 %v949
        %1065 = vmatpush1.bf16.msra.mxu0 %v948
        %1066 = vmatprep.subr.bf16.mxu0 %v953
        %1067 = vmatpush1.bf16.msra.mxu0 %v952
        %1068 = vmatprep.subr.bf16.mxu0 %v957
        %1069 = vmatpush1.bf16.msra.mxu0 %v956
        %1070 = vmatprep.subr.bf16.mxu0 %v961
        %1071 = vmatpush1.bf16.msra.mxu0 %v960
        %1072 = vmatprep.subr.bf16.mxu0 %v965
        %1073 = vmatpush1.bf16.msra.mxu0 %v964
        %1074 = vmatprep.subr.bf16.mxu0 %v969
        %1075 = vmatpush1.bf16.msra.mxu0 %v968
        %1076 = vmatprep.subr.bf16.mxu0 %v973
        %1077 = vmatpush1.bf16.msra.mxu0 %v972
        %1078 = vmatprep.subr.bf16.mxu0 %v977
        %1079 = vmatpush1.bf16.msra.mxu0 %v976
        %1080 = vmatprep.subr.bf16.mxu0 %v981
        %1081 = vmatpush1.bf16.msra.mxu0 %v980
        %1082 = vmatprep.subr.bf16.mxu0 %v985
        %1083 = vmatpush1.bf16.msra.mxu0 %v984
        %1084 = vmatprep.mubr.bf16.mxu0 %v731
        %1085 = vmatmul.mubr.bf16.gmra.mrb[0].mxu0 %v730
        %v1086 = vpop.f32.mrb[0].mxu0
        %v1087 = vadd.f32 0.0, %v1086
        %v1088 = vpop.f32.mrb[0].mxu0
        %v1089 = vadd.f32 0.0, %v1088
        %v1090 = vpop.f32.mrb[0].mxu0
        %v1091 = vpop.f32.mrb[0].mxu0
        %1092 = vdwg.mxu0
        %1093 = vmatprep.subr.bf16.mxu0 %v927
        %1094 = vmatpush1.bf16.msra.mxu0 %v926
        %1095 = vmatprep.subr.bf16.mxu0 %v931
        %1096 = vmatpush1.bf16.msra.mxu0 %v930
        %1097 = vmatprep.subr.bf16.mxu0 %v935
        %1098 = vmatpush1.bf16.msra.mxu0 %v934
        %1099 = vmatprep.subr.bf16.mxu0 %v939
        %1100 = vmatpush1.bf16.msra.mxu0 %v938
        %1101 = vmatprep.subr.bf16.mxu0 %v943
        %1102 = vmatpush1.bf16.msra.mxu0 %v942
        %1103 = vmatprep.subr.bf16.mxu0 %v947
        %1104 = vmatpush1.bf16.msra.mxu0 %v946
        %1105 = vmatprep.subr.bf16.mxu0 %v951
        %1106 = vmatpush1.bf16.msra.mxu0 %v950
        %1107 = vmatprep.subr.bf16.mxu0 %v955
        %1108 = vmatpush1.bf16.msra.mxu0 %v954
        %1109 = vmatprep.subr.bf16.mxu0 %v959
        %1110 = vmatpush1.bf16.msra.mxu0 %v958
        %1111 = vmatprep.subr.bf16.mxu0 %v963
        %1112 = vmatpush1.bf16.msra.mxu0 %v962
        %1113 = vmatprep.subr.bf16.mxu0 %v967
        %1114 = vmatpush1.bf16.msra.mxu0 %v966
        %1115 = vmatprep.subr.bf16.mxu0 %v971
        %1116 = vmatpush1.bf16.msra.mxu0 %v970
        %1117 = vmatprep.subr.bf16.mxu0 %v975
        %1118 = vmatpush1.bf16.msra.mxu0 %v974
        %1119 = vmatprep.subr.bf16.mxu0 %v979
        %1120 = vmatpush1.bf16.msra.mxu0 %v978
        %1121 = vmatprep.subr.bf16.mxu0 %v983
        %1122 = vmatpush1.bf16.msra.mxu0 %v982
        %1123 = vmatprep.subr.bf16.mxu0 %v987
        %1124 = vmatpush1.bf16.msra.mxu0 %v986
        %1125 = vmatprep.mubr.bf16.mxu0 %v731
        %1126 = vmatmul.mubr.bf16.gmra.mrb[0].mxu0 %v730
        %v1127 = vpop.f32.mrb[0].mxu0
        %v1128 = vadd.f32 0.0, %v1127
        %v1129 = vpop.f32.mrb[0].mxu0
        %v1130 = vadd.f32 0.0, %v1129
        %v1131 = vpop.f32.mrb[0].mxu0
        %v1132 = vpop.f32.mrb[0].mxu0
        %1133 = vdwg.mxu0
        %v1134 = vrot.slane %v1087, 4
        %v1135 = vadd.f32 %v1087, %v1134
        %v1136 = vrot.slane %v1135, 2
        %v1137 = vadd.f32 %v1135, %v1136
        %v1138 = vrot.slane %v1137, 1
        %v1139 = vadd.f32 %v1137, %v1138
        %v1140 = vrot.slane %v1089, 4
        %v1141 = vadd.f32 %v1089, %v1140
        %v1142 = vrot.slane %v1141, 2
        %v1143 = vadd.f32 %v1141, %v1142
        %v1144 = vrot.slane %v1143, 1
        %v1145 = vadd.f32 %v1143, %v1144
        %v1146 = vrot.slane %v1128, 4
        %v1147 = vadd.f32 %v1128, %v1146
        %v1148 = vrot.slane %v1147, 2
        %v1149 = vadd.f32 %v1147, %v1148
        %v1150 = vrot.slane %v1149, 1
        %v1151 = vadd.f32 %v1149, %v1150
        %v1152 = vrot.slane %v1130, 4
        %v1153 = vadd.f32 %v1130, %v1152
        %v1154 = vrot.slane %v1153, 2
        %v1155 = vadd.f32 %v1153, %v1154
        %v1156 = vrot.slane %v1155, 1
        %v1157 = vadd.f32 %v1155, %v1156
        %v1158 = vmul.f32 %v1139, %v567
        %v1159 = vmul.f32 %v1145, %v567
        %v1160 = vmul.f32 %v1151, %v567
        %v1161 = vmul.f32 %v1157, %v567
        %v1162 = vsub.f32 %v1087, %v1158
        %v1163 = vsub.f32 %v1089, %v1159
        %v1164 = vsub.f32 %v1128, %v1160
        %v1165 = vsub.f32 %v1130, %v1161
        %v1166 = vmul.f32 %v1162, %v1162
        %v1167 = vmul.f32 %v1163, %v1163
        %v1168 = vmul.f32 %v1164, %v1164
        %v1169 = vmul.f32 %v1165, %v1165
        %v1170 = vrot.slane %v1166, 4
        %v1171 = vadd.f32 %v1166, %v1170
        %v1172 = vrot.slane %v1171, 2
        %v1173 = vadd.f32 %v1171, %v1172
        %v1174 = vrot.slane %v1173, 1
        %v1175 = vadd.f32 %v1173, %v1174
        %v1176 = vrot.slane %v1167, 4
        %v1177 = vadd.f32 %v1167, %v1176
        %v1178 = vrot.slane %v1177, 2
        %v1179 = vadd.f32 %v1177, %v1178
        %v1180 = vrot.slane %v1179, 1
        %v1181 = vadd.f32 %v1179, %v1180
        %v1182 = vrot.slane %v1168, 4
        %v1183 = vadd.f32 %v1168, %v1182
        %v1184 = vrot.slane %v1183, 2
        %v1185 = vadd.f32 %v1183, %v1184
        %v1186 = vrot.slane %v1185, 1
        %v1187 = vadd.f32 %v1185, %v1186
        %v1188 = vrot.slane %v1169, 4
        %v1189 = vadd.f32 %v1169, %v1188
        %v1190 = vrot.slane %v1189, 2
        %v1191 = vadd.f32 %v1189, %v1190
        %v1192 = vrot.slane %v1191, 1
        %v1193 = vadd.f32 %v1191, %v1192
        %v1194 = vmul.f32 %v1175, %v567
        %v1195 = vmul.f32 %v1181, %v567
        %v1196 = vmul.f32 %v1187, %v567
        %v1197 = vmul.f32 %v1193, %v567
        %v1198 = vadd.f32 %v1194, 0.8
        %v1199 = vadd.f32 %v1195, 0.8
        %v1200 = vadd.f32 %v1196, 0.8
        %v1201 = vadd.f32 %v1197, 0.8
        %v1202 = vrsqrt.pop %v1198
        %v1203 = vrsqrt.pop %v1199
        %v1204 = vrsqrt.pop %v1200
        %v1205 = vrsqrt.pop %v1201
        %v1210 = vcombine.low %v1202, %v1203
        %v1211 = vcombine.low %v1204, %v1205
        %v1213 = vunpack.c.l.s4 1983009808
        %v1214 = vunpack.c.0.s8 %v1213
        %v1215 = vlaneseq
        %v1216 = vshrl.u32 %v1215, 7
        %v1217 = vsub.s32 %v1214, %v1216
        %v1218 = vrot.slane %v1210, %v1217
        %v1220 = vunpack.c.l.s4 1983009808
        %v1221 = vunpack.c.0.s8 %v1220
        %v1222 = vlaneseq
        %v1223 = vshrl.u32 %v1222, 7
        %v1224 = vsub.s32 %v1221, %v1223
        %v1225 = vrot.slane %v1211, %v1224
        %v1226 = vcombine.low %v1218, %v1225
        %v1228 = vmul.f32 %v729, %v1226
        %v1230 = vlaneseq
        %v1231 = vshrl.u32 %v1230, 7
        %v1232 = vsub.s32 0, %v1231
        %v1233 = vrot.slane %v1228, %v1232
        %v1234 = vlaneseq
        %v1235 = vshrl.u32 %v1234, 7
        %v1236 = vsub.s32 2, %v1235
        %v1237 = vrot.slane %v1228, %v1236
        %v1238 = vlaneseq
        %v1239 = vshrl.u32 %v1238, 7
        %v1240 = vsub.s32 4, %v1239
        %v1241 = vrot.slane %v1228, %v1240
        %v1242 = vlaneseq
        %v1243 = vshrl.u32 %v1242, 7
        %v1244 = vsub.s32 6, %v1243
        %v1245 = vrot.slane %v1228, %v1244
        %v1250 = vmul.f32 %v1158, %v1233
        %v1251 = vmul.f32 %v1159, %v1237
        %v1252 = vmul.f32 %v1160, %v1241
        %v1253 = vmul.f32 %v1161, %v1245
        %v1258 = vcombine.low %v1250, %v1251
        %v1259 = vcombine.low %v1252, %v1253
        %v1261 = vunpack.c.l.s4 1983009808
        %v1262 = vunpack.c.0.s8 %v1261
        %v1263 = vlaneseq
        %v1264 = vshrl.u32 %v1263, 7
        %v1265 = vsub.s32 %v1262, %v1264
        %v1266 = vrot.slane %v1258, %v1265
        %v1268 = vunpack.c.l.s4 1983009808
        %v1269 = vunpack.c.0.s8 %v1268
        %v1270 = vlaneseq
        %v1271 = vshrl.u32 %v1270, 7
        %v1272 = vsub.s32 %v1269, %v1271
        %v1273 = vrot.slane %v1259, %v1272
        %v1274 = vcombine.low %v1266, %v1273
        %v1275 = vrot.slane %v1274, 7
        %v1277 = vsub.f32 %v729, %v1275
        %v1278 = vlaneseq
        %v1279 = vshrl.u32 %v1278, 7
        %v1280 = vsub.s32 0, %v1279
        %v1281 = vrot.slane %v1233, %v1280
        %v1282 = vlaneseq
        %v1283 = vshrl.u32 %v1282, 7
        %v1284 = vsub.s32 0, %v1283
        %v1285 = vrot.slane %v1237, %v1284
        %v1286 = vlaneseq
        %v1287 = vshrl.u32 %v1286, 7
        %v1288 = vsub.s32 0, %v1287
        %v1289 = vrot.slane %v1241, %v1288
        %v1290 = vlaneseq
        %v1291 = vshrl.u32 %v1290, 7
        %v1292 = vsub.s32 0, %v1291
        %v1293 = vrot.slane %v1245, %v1292
        %v1294 = vmul.f32 %v1087, %v1281
        %v1295 = vmul.f32 %v1089, %v1285
        %v1296 = vmul.f32 %v1128, %v1289
        %v1297 = vmul.f32 %v1130, %v1293
        %v1299 = vlaneseq
        %v1300 = vshrl.u32 %v1299, 7
        %v1301 = vsub.s32 1, %v1300
        %v1302 = vrot.slane %v1277, %v1301
        %v1303 = vlaneseq
        %v1304 = vshrl.u32 %v1303, 7
        %v1305 = vsub.s32 3, %v1304
        %v1306 = vrot.slane %v1277, %v1305
        %v1307 = vlaneseq
        %v1308 = vshrl.u32 %v1307, 7
        %v1309 = vsub.s32 5, %v1308
        %v1310 = vrot.slane %v1277, %v1309
        %v1311 = vlaneseq
        %v1312 = vshrl.u32 %v1311, 7
        %v1313 = vsub.s32 7, %v1312
        %v1314 = vrot.slane %v1277, %v1313
        %v1319 = vlaneseq
        %v1320 = vshrl.u32 %v1319, 7
        %v1321 = vsub.s32 1, %v1320
        %v1322 = vrot.slane %v1302, %v1321
        %v1323 = vlaneseq
        %v1324 = vshrl.u32 %v1323, 7
        %v1325 = vsub.s32 1, %v1324
        %v1326 = vrot.slane %v1306, %v1325
        %v1327 = vlaneseq
        %v1328 = vshrl.u32 %v1327, 7
        %v1329 = vsub.s32 1, %v1328
        %v1330 = vrot.slane %v1310, %v1329
        %v1331 = vlaneseq
        %v1332 = vshrl.u32 %v1331, 7
        %v1333 = vsub.s32 1, %v1332
        %v1334 = vrot.slane %v1314, %v1333
        %v1335 = vadd.f32 %v1294, %v1322
        %v1336 = vadd.f32 %v1295, %v1326
        %v1337 = vadd.f32 %v1296, %v1330
        %v1338 = vadd.f32 %v1297, %v1334
        %v1339 = vmul.f32 %v1335, 0.2
        %v1340 = vmul.f32 %v1336, 0.2
        %v1341 = vmul.f32 %v1337, 0.2
        %v1342 = vmul.f32 %v1338, 0.2
        %v1343 = vmax.f32 %v1335, %v1339
        %v1344 = vmax.f32 %v1336, %v1340
        %v1345 = vmax.f32 %v1337, %v1341
        %v1346 = vmax.f32 %v1338, %v1342
        %v1347 = vld [vmem:[#allocation11] sm:$0xff]
        %v1348 = vld [vmem:[#allocation11 + $0x8] sm:$0xff]
        %v1349 = vld [vmem:[#allocation11 + $0x10] sm:$0xff]
        %v1350 = vld [vmem:[#allocation11 + $0x18] sm:$0xff]
        %v1351 = vld [vmem:[#allocation11 + $0x20] sm:$0xff]
        %v1352 = vld [vmem:[#allocation11 + $0x28] sm:$0xff]
        %v1353 = vld [vmem:[#allocation11 + $0x30] sm:$0xff]
        %v1354 = vld [vmem:[#allocation11 + $0x38] sm:$0xff]
        %v1355 = vld [vmem:[#allocation11 + $0x40] sm:$0xff]
        %v1356 = vld [vmem:[#allocation11 + $0x48] sm:$0xff]
        %v1357 = vld [vmem:[#allocation11 + $0x50] sm:$0xff]
        %v1358 = vld [vmem:[#allocation11 + $0x58] sm:$0xff]
        %v1359 = vld [vmem:[#allocation11 + $0x60] sm:$0xff]
        %v1360 = vld [vmem:[#allocation11 + $0x68] sm:$0xff]
        %v1361 = vld [vmem:[#allocation11 + $0x70] sm:$0xff]
        %v1362 = vld [vmem:[#allocation11 + $0x78] sm:$0xff]
        %v1363 = vld [vmem:[#allocation11 + $0x80] sm:$0xff]
        %v1364 = vld [vmem:[#allocation11 + $0x88] sm:$0xff]
        %v1365 = vld [vmem:[#allocation11 + $0x90] sm:$0xff]
        %v1366 = vld [vmem:[#allocation11 + $0x98] sm:$0xff]
        %v1367 = vld [vmem:[#allocation11 + $0xa0] sm:$0xff]
        %v1368 = vld [vmem:[#allocation11 + $0xa8] sm:$0xff]
        %v1369 = vld [vmem:[#allocation11 + $0xb0] sm:$0xff]
        %v1370 = vld [vmem:[#allocation11 + $0xb8] sm:$0xff]
        %v1371 = vld [vmem:[#allocation11 + $0xc0] sm:$0xff]
        %v1372 = vld [vmem:[#allocation11 + $0xc8] sm:$0xff]
        %v1373 = vld [vmem:[#allocation11 + $0xd0] sm:$0xff]
        %v1374 = vld [vmem:[#allocation11 + $0xd8] sm:$0xff]
        %v1375 = vld [vmem:[#allocation11 + $0xe0] sm:$0xff]
        %v1376 = vld [vmem:[#allocation11 + $0xe8] sm:$0xff]
        %v1377 = vld [vmem:[#allocation11 + $0xf0] sm:$0xff]
        %v1378 = vld [vmem:[#allocation11 + $0xf8] sm:$0xff]
        %v1379 = vld [vmem:[#allocation11 + $0x100] sm:$0xff]
        %v1380 = vld [vmem:[#allocation11 + $0x108] sm:$0xff]
        %v1381 = vld [vmem:[#allocation11 + $0x110] sm:$0xff]
        %v1382 = vld [vmem:[#allocation11 + $0x118] sm:$0xff]
        %v1383 = vld [vmem:[#allocation11 + $0x120] sm:$0xff]
        %v1384 = vld [vmem:[#allocation11 + $0x128] sm:$0xff]
        %v1385 = vld [vmem:[#allocation11 + $0x130] sm:$0xff]
        %v1386 = vld [vmem:[#allocation11 + $0x138] sm:$0xff]
        %v1387 = vld [vmem:[#allocation11 + $0x140] sm:$0xff]
        %v1388 = vld [vmem:[#allocation11 + $0x148] sm:$0xff]
        %v1389 = vld [vmem:[#allocation11 + $0x150] sm:$0xff]
        %v1390 = vld [vmem:[#allocation11 + $0x158] sm:$0xff]
        %v1391 = vld [vmem:[#allocation11 + $0x160] sm:$0xff]
        %v1392 = vld [vmem:[#allocation11 + $0x168] sm:$0xff]
        %v1393 = vld [vmem:[#allocation11 + $0x170] sm:$0xff]
        %v1394 = vld [vmem:[#allocation11 + $0x178] sm:$0xff]
        %v1395 = vld [vmem:[#allocation11 + $0x180] sm:$0xff]
        %v1396 = vld [vmem:[#allocation11 + $0x188] sm:$0xff]
        %v1397 = vld [vmem:[#allocation11 + $0x190] sm:$0xff]
        %v1398 = vld [vmem:[#allocation11 + $0x198] sm:$0xff]
        %v1399 = vld [vmem:[#allocation11 + $0x1a0] sm:$0xff]
        %v1400 = vld [vmem:[#allocation11 + $0x1a8] sm:$0xff]
        %v1401 = vld [vmem:[#allocation11 + $0x1b0] sm:$0xff]
        %v1402 = vld [vmem:[#allocation11 + $0x1b8] sm:$0xff]
        %v1403 = vld [vmem:[#allocation11 + $0x1c0] sm:$0xff]
        %v1404 = vld [vmem:[#allocation11 + $0x1c8] sm:$0xff]
        %v1405 = vld [vmem:[#allocation11 + $0x1d0] sm:$0xff]
        %v1406 = vld [vmem:[#allocation11 + $0x1d8] sm:$0xff]
        %v1407 = vld [vmem:[#allocation11 + $0x1e0] sm:$0xff]
        %v1408 = vld [vmem:[#allocation11 + $0x1e8] sm:$0xff]
        %v1409 = vld [vmem:[#allocation11 + $0x1f0] sm:$0xff]
        %v1410 = vld [vmem:[#allocation11 + $0x1f8] sm:$0xff]
        %v1411 = vld [vmem:[#allocation11 + $0x200] sm:$0xff]
        %v1412 = vld [vmem:[#allocation11 + $0x208] sm:$0xff]
        %v1413 = vld [vmem:[#allocation11 + $0x210] sm:$0xff]
        %v1414 = vld [vmem:[#allocation11 + $0x218] sm:$0xff]
        %v1415 = vld [vmem:[#allocation11 + $0x220] sm:$0xff]
        %v1416 = vld [vmem:[#allocation11 + $0x228] sm:$0xff]
        %v1417 = vld [vmem:[#allocation11 + $0x230] sm:$0xff]
        %v1418 = vld [vmem:[#allocation11 + $0x238] sm:$0xff]
        %v1419 = vld [vmem:[#allocation11 + $0x240] sm:$0xff]
        %v1420 = vld [vmem:[#allocation11 + $0x248] sm:$0xff]
        %v1421 = vld [vmem:[#allocation11 + $0x250] sm:$0xff]
        %v1422 = vld [vmem:[#allocation11 + $0x258] sm:$0xff]
        %v1423 = vld [vmem:[#allocation11 + $0x260] sm:$0xff]
        %v1424 = vld [vmem:[#allocation11 + $0x268] sm:$0xff]
        %v1425 = vld [vmem:[#allocation11 + $0x270] sm:$0xff]
        %v1426 = vld [vmem:[#allocation11 + $0x278] sm:$0xff]
        %v1427 = vld [vmem:[#allocation11 + $0x280] sm:$0xff]
        %v1428 = vld [vmem:[#allocation11 + $0x288] sm:$0xff]
        %v1429 = vld [vmem:[#allocation11 + $0x290] sm:$0xff]
        %v1430 = vld [vmem:[#allocation11 + $0x298] sm:$0xff]
        %v1431 = vld [vmem:[#allocation11 + $0x2a0] sm:$0xff]
        %v1432 = vld [vmem:[#allocation11 + $0x2a8] sm:$0xff]
        %v1433 = vld [vmem:[#allocation11 + $0x2b0] sm:$0xff]
        %v1434 = vld [vmem:[#allocation11 + $0x2b8] sm:$0xff]
        %v1435 = vld [vmem:[#allocation11 + $0x2c0] sm:$0xff]
        %v1436 = vld [vmem:[#allocation11 + $0x2c8] sm:$0xff]
        %v1437 = vld [vmem:[#allocation11 + $0x2d0] sm:$0xff]
        %v1438 = vld [vmem:[#allocation11 + $0x2d8] sm:$0xff]
        %v1439 = vld [vmem:[#allocation11 + $0x2e0] sm:$0xff]
        %v1440 = vld [vmem:[#allocation11 + $0x2e8] sm:$0xff]
        %v1441 = vld [vmem:[#allocation11 + $0x2f0] sm:$0xff]
        %v1442 = vld [vmem:[#allocation11 + $0x2f8] sm:$0xff]
        %v1443 = vld [vmem:[#allocation11 + $0x300] sm:$0xff]
        %v1444 = vld [vmem:[#allocation11 + $0x308] sm:$0xff]
        %v1445 = vld [vmem:[#allocation11 + $0x310] sm:$0xff]
        %v1446 = vld [vmem:[#allocation11 + $0x318] sm:$0xff]
        %v1447 = vld [vmem:[#allocation11 + $0x320] sm:$0xff]
        %v1448 = vld [vmem:[#allocation11 + $0x328] sm:$0xff]
        %v1449 = vld [vmem:[#allocation11 + $0x330] sm:$0xff]
        %v1450 = vld [vmem:[#allocation11 + $0x338] sm:$0xff]
        %v1451 = vld [vmem:[#allocation11 + $0x340] sm:$0xff]
        %v1452 = vld [vmem:[#allocation11 + $0x348] sm:$0xff]
        %v1453 = vld [vmem:[#allocation11 + $0x350] sm:$0xff]
        %v1454 = vld [vmem:[#allocation11 + $0x358] sm:$0xff]
        %v1455 = vld [vmem:[#allocation11 + $0x360] sm:$0xff]
        %v1456 = vld [vmem:[#allocation11 + $0x368] sm:$0xff]
        %v1457 = vld [vmem:[#allocation11 + $0x370] sm:$0xff]
        %v1458 = vld [vmem:[#allocation11 + $0x378] sm:$0xff]
        %v1459 = vld [vmem:[#allocation11 + $0x380] sm:$0xff]
        %v1460 = vld [vmem:[#allocation11 + $0x388] sm:$0xff]
        %v1461 = vld [vmem:[#allocation11 + $0x390] sm:$0xff]
        %v1462 = vld [vmem:[#allocation11 + $0x398] sm:$0xff]
        %v1463 = vld [vmem:[#allocation11 + $0x3a0] sm:$0xff]
        %v1464 = vld [vmem:[#allocation11 + $0x3a8] sm:$0xff]
        %v1465 = vld [vmem:[#allocation11 + $0x3b0] sm:$0xff]
        %v1466 = vld [vmem:[#allocation11 + $0x3b8] sm:$0xff]
        %v1467 = vld [vmem:[#allocation11 + $0x3c0] sm:$0xff]
        %v1468 = vld [vmem:[#allocation11 + $0x3c8] sm:$0xff]
        %v1469 = vld [vmem:[#allocation11 + $0x3d0] sm:$0xff]
        %v1470 = vld [vmem:[#allocation11 + $0x3d8] sm:$0xff]
        %v1471 = vld [vmem:[#allocation11 + $0x3e0] sm:$0xff]
        %v1472 = vld [vmem:[#allocation11 + $0x3e8] sm:$0xff]
        %v1473 = vld [vmem:[#allocation11 + $0x3f0] sm:$0xff]
        %v1474 = vld [vmem:[#allocation11 + $0x3f8] sm:$0xff]
        %v1475 = vld [vmem:[#allocation11 + $0x400] sm:$0xff]
        %v1476 = vld [vmem:[#allocation11 + $0x408] sm:$0xff]
        %v1477 = vld [vmem:[#allocation11 + $0x410] sm:$0xff]
        %v1478 = vld [vmem:[#allocation11 + $0x418] sm:$0xff]
        %v1479 = vld [vmem:[#allocation11 + $0x420] sm:$0xff]
        %v1480 = vld [vmem:[#allocation11 + $0x428] sm:$0xff]
        %v1481 = vld [vmem:[#allocation11 + $0x430] sm:$0xff]
        %v1482 = vld [vmem:[#allocation11 + $0x438] sm:$0xff]
        %v1483 = vld [vmem:[#allocation11 + $0x440] sm:$0xff]
        %v1484 = vld [vmem:[#allocation11 + $0x448] sm:$0xff]
        %v1485 = vld [vmem:[#allocation11 + $0x450] sm:$0xff]
        %v1486 = vld [vmem:[#allocation11 + $0x458] sm:$0xff]
        %v1487 = vld [vmem:[#allocation11 + $0x460] sm:$0xff]
        %v1488 = vld [vmem:[#allocation11 + $0x468] sm:$0xff]
        %v1489 = vld [vmem:[#allocation11 + $0x470] sm:$0xff]
        %v1490 = vld [vmem:[#allocation11 + $0x478] sm:$0xff]
        %v1491 = vld [vmem:[#allocation11 + $0x480] sm:$0xff]
        %v1492 = vld [vmem:[#allocation11 + $0x488] sm:$0xff]
        %v1493 = vld [vmem:[#allocation11 + $0x490] sm:$0xff]
        %v1494 = vld [vmem:[#allocation11 + $0x498] sm:$0xff]
        %v1495 = vld [vmem:[#allocation11 + $0x4a0] sm:$0xff]
        %v1496 = vld [vmem:[#allocation11 + $0x4a8] sm:$0xff]
        %v1497 = vld [vmem:[#allocation11 + $0x4b0] sm:$0xff]
        %v1498 = vld [vmem:[#allocation11 + $0x4b8] sm:$0xff]
        %v1499 = vld [vmem:[#allocation11 + $0x4c0] sm:$0xff]
        %v1500 = vld [vmem:[#allocation11 + $0x4c8] sm:$0xff]
        %v1501 = vld [vmem:[#allocation11 + $0x4d0] sm:$0xff]
        %v1502 = vld [vmem:[#allocation11 + $0x4d8] sm:$0xff]
        %v1503 = vld [vmem:[#allocation11 + $0x4e0] sm:$0xff]
        %v1504 = vld [vmem:[#allocation11 + $0x4e8] sm:$0xff]
        %v1505 = vld [vmem:[#allocation11 + $0x4f0] sm:$0xff]
        %v1506 = vld [vmem:[#allocation11 + $0x4f8] sm:$0xff]
        %v1507 = vld [vmem:[#allocation11 + $0x500] sm:$0xff]
        %v1508 = vld [vmem:[#allocation11 + $0x508] sm:$0xff]
        %v1509 = vld [vmem:[#allocation11 + $0x510] sm:$0xff]
        %v1510 = vld [vmem:[#allocation11 + $0x518] sm:$0xff]
        %v1511 = vld [vmem:[#allocation11 + $0x520] sm:$0xff]
        %v1512 = vld [vmem:[#allocation11 + $0x528] sm:$0xff]
        %v1513 = vld [vmem:[#allocation11 + $0x530] sm:$0xff]
        %v1514 = vld [vmem:[#allocation11 + $0x538] sm:$0xff]
        %v1515 = vld [vmem:[#allocation11 + $0x540] sm:$0xff]
        %v1516 = vld [vmem:[#allocation11 + $0x548] sm:$0xff]
        %v1517 = vld [vmem:[#allocation11 + $0x550] sm:$0xff]
        %v1518 = vld [vmem:[#allocation11 + $0x558] sm:$0xff]
        %v1519 = vld [vmem:[#allocation11 + $0x560] sm:$0xff]
        %v1520 = vld [vmem:[#allocation11 + $0x568] sm:$0xff]
        %v1521 = vld [vmem:[#allocation11 + $0x570] sm:$0xff]
        %v1522 = vld [vmem:[#allocation11 + $0x578] sm:$0xff]
        %v1523 = vld [vmem:[#allocation11 + $0x580] sm:$0xff]
        %v1524 = vld [vmem:[#allocation11 + $0x588] sm:$0xff]
        %v1525 = vld [vmem:[#allocation11 + $0x590] sm:$0xff]
        %v1526 = vld [vmem:[#allocation11 + $0x598] sm:$0xff]
        %v1527 = vld [vmem:[#allocation11 + $0x5a0] sm:$0xff]
        %v1528 = vld [vmem:[#allocation11 + $0x5a8] sm:$0xff]
        %v1529 = vld [vmem:[#allocation11 + $0x5b0] sm:$0xff]
        %v1530 = vld [vmem:[#allocation11 + $0x5b8] sm:$0xff]
        %v1531 = vld [vmem:[#allocation11 + $0x5c0] sm:$0xff]
        %v1532 = vld [vmem:[#allocation11 + $0x5c8] sm:$0xff]
        %v1533 = vld [vmem:[#allocation11 + $0x5d0] sm:$0xff]
        %v1534 = vld [vmem:[#allocation11 + $0x5d8] sm:$0xff]
        %v1535 = vld [vmem:[#allocation11 + $0x5e0] sm:$0xff]
        %v1536 = vld [vmem:[#allocation11 + $0x5e8] sm:$0xff]
        %v1537 = vld [vmem:[#allocation11 + $0x5f0] sm:$0xff]
        %v1538 = vld [vmem:[#allocation11 + $0x5f8] sm:$0xff]
        %v1539 = vld [vmem:[#allocation11 + $0x600] sm:$0xff]
        %v1540 = vld [vmem:[#allocation11 + $0x608] sm:$0xff]
        %v1541 = vld [vmem:[#allocation11 + $0x610] sm:$0xff]
        %v1542 = vld [vmem:[#allocation11 + $0x618] sm:$0xff]
        %v1543 = vld [vmem:[#allocation11 + $0x620] sm:$0xff]
        %v1544 = vld [vmem:[#allocation11 + $0x628] sm:$0xff]
        %v1545 = vld [vmem:[#allocation11 + $0x630] sm:$0xff]
        %v1546 = vld [vmem:[#allocation11 + $0x638] sm:$0xff]
        %v1547 = vld [vmem:[#allocation11 + $0x640] sm:$0xff]
        %v1548 = vld [vmem:[#allocation11 + $0x648] sm:$0xff]
        %v1549 = vld [vmem:[#allocation11 + $0x650] sm:$0xff]
        %v1550 = vld [vmem:[#allocation11 + $0x658] sm:$0xff]
        %v1551 = vld [vmem:[#allocation11 + $0x660] sm:$0xff]
        %v1552 = vld [vmem:[#allocation11 + $0x668] sm:$0xff]
        %v1553 = vld [vmem:[#allocation11 + $0x670] sm:$0xff]
        %v1554 = vld [vmem:[#allocation11 + $0x678] sm:$0xff]
        %v1555 = vld [vmem:[#allocation11 + $0x680] sm:$0xff]
        %v1556 = vld [vmem:[#allocation11 + $0x688] sm:$0xff]
        %v1557 = vld [vmem:[#allocation11 + $0x690] sm:$0xff]
        %v1558 = vld [vmem:[#allocation11 + $0x698] sm:$0xff]
        %v1559 = vld [vmem:[#allocation11 + $0x6a0] sm:$0xff]
        %v1560 = vld [vmem:[#allocation11 + $0x6a8] sm:$0xff]
        %v1561 = vld [vmem:[#allocation11 + $0x6b0] sm:$0xff]
        %v1562 = vld [vmem:[#allocation11 + $0x6b8] sm:$0xff]
        %v1563 = vld [vmem:[#allocation11 + $0x6c0] sm:$0xff]
        %v1564 = vld [vmem:[#allocation11 + $0x6c8] sm:$0xff]
        %v1565 = vld [vmem:[#allocation11 + $0x6d0] sm:$0xff]
        %v1566 = vld [vmem:[#allocation11 + $0x6d8] sm:$0xff]
        %v1567 = vld [vmem:[#allocation11 + $0x6e0] sm:$0xff]
        %v1568 = vld [vmem:[#allocation11 + $0x6e8] sm:$0xff]
        %v1569 = vld [vmem:[#allocation11 + $0x6f0] sm:$0xff]
        %v1570 = vld [vmem:[#allocation11 + $0x6f8] sm:$0xff]
        %v1571 = vld [vmem:[#allocation11 + $0x700] sm:$0xff]
        %v1572 = vld [vmem:[#allocation11 + $0x708] sm:$0xff]
        %v1573 = vld [vmem:[#allocation11 + $0x710] sm:$0xff]
        %v1574 = vld [vmem:[#allocation11 + $0x718] sm:$0xff]
        %v1575 = vld [vmem:[#allocation11 + $0x720] sm:$0xff]
        %v1576 = vld [vmem:[#allocation11 + $0x728] sm:$0xff]
        %v1577 = vld [vmem:[#allocation11 + $0x730] sm:$0xff]
        %v1578 = vld [vmem:[#allocation11 + $0x738] sm:$0xff]
        %v1579 = vld [vmem:[#allocation11 + $0x740] sm:$0xff]
        %v1580 = vld [vmem:[#allocation11 + $0x748] sm:$0xff]
        %v1581 = vld [vmem:[#allocation11 + $0x750] sm:$0xff]
        %v1582 = vld [vmem:[#allocation11 + $0x758] sm:$0xff]
        %v1583 = vld [vmem:[#allocation11 + $0x760] sm:$0xff]
        %v1584 = vld [vmem:[#allocation11 + $0x768] sm:$0xff]
        %v1585 = vld [vmem:[#allocation11 + $0x770] sm:$0xff]
        %v1586 = vld [vmem:[#allocation11 + $0x778] sm:$0xff]
        %v1587 = vld [vmem:[#allocation11 + $0x780] sm:$0xff]
        %v1588 = vld [vmem:[#allocation11 + $0x788] sm:$0xff]
        %v1589 = vld [vmem:[#allocation11 + $0x790] sm:$0xff]
        %v1590 = vld [vmem:[#allocation11 + $0x798] sm:$0xff]
        %v1591 = vld [vmem:[#allocation11 + $0x7a0] sm:$0xff]
        %v1592 = vld [vmem:[#allocation11 + $0x7a8] sm:$0xff]
        %v1593 = vld [vmem:[#allocation11 + $0x7b0] sm:$0xff]
        %v1594 = vld [vmem:[#allocation11 + $0x7b8] sm:$0xff]
        %v1595 = vld [vmem:[#allocation11 + $0x7c0] sm:$0xff]
        %v1596 = vld [vmem:[#allocation11 + $0x7c8] sm:$0xff]
        %v1597 = vld [vmem:[#allocation11 + $0x7d0] sm:$0xff]
        %v1598 = vld [vmem:[#allocation11 + $0x7d8] sm:$0xff]
        %v1599 = vld [vmem:[#allocation11 + $0x7e0] sm:$0xff]
        %v1600 = vld [vmem:[#allocation11 + $0x7e8] sm:$0xff]
        %v1601 = vld [vmem:[#allocation11 + $0x7f0] sm:$0xff]
        %v1602 = vld [vmem:[#allocation11 + $0x7f8] sm:$0xff]
        %v1603 = vld [vmem:[#allocation13] sm:$0xff]
        %v1604 = vld [vmem:[#allocation13 + $0x8] sm:$0xff]
        %v1605 = vpack.c.bf16 %v1343, %v1343
        %v1606 = vpack.c.bf16 %v1344, %v1344
        %v1607 = vpack.c.bf16 %v1345, %v1345
        %v1608 = vpack.c.bf16 %v1346, %v1346
        %v1865 = vunpack.c.l.b16 %v1347
        %v1866 = vunpack.c.h.b16 %v1347
        %v1867 = vunpack.c.l.b16 %v1348
        %v1868 = vunpack.c.h.b16 %v1348
        %v1869 = vunpack.c.l.b16 %v1349
        %v1870 = vunpack.c.h.b16 %v1349
        %v1871 = vunpack.c.l.b16 %v1350
        %v1872 = vunpack.c.h.b16 %v1350
        %v1873 = vunpack.c.l.b16 %v1351
        %v1874 = vunpack.c.h.b16 %v1351
        %v1875 = vunpack.c.l.b16 %v1352
        %v1876 = vunpack.c.h.b16 %v1352
        %v1877 = vunpack.c.l.b16 %v1353
        %v1878 = vunpack.c.h.b16 %v1353
        %v1879 = vunpack.c.l.b16 %v1354
        %v1880 = vunpack.c.h.b16 %v1354
        %v1881 = vunpack.c.l.b16 %v1355
        %v1882 = vunpack.c.h.b16 %v1355
        %v1883 = vunpack.c.l.b16 %v1356
        %v1884 = vunpack.c.h.b16 %v1356
        %v1885 = vunpack.c.l.b16 %v1357
        %v1886 = vunpack.c.h.b16 %v1357
        %v1887 = vunpack.c.l.b16 %v1358
        %v1888 = vunpack.c.h.b16 %v1358
        %v1889 = vunpack.c.l.b16 %v1359
        %v1890 = vunpack.c.h.b16 %v1359
        %v1891 = vunpack.c.l.b16 %v1360
        %v1892 = vunpack.c.h.b16 %v1360
        %v1893 = vunpack.c.l.b16 %v1361
        %v1894 = vunpack.c.h.b16 %v1361
        %v1895 = vunpack.c.l.b16 %v1362
        %v1896 = vunpack.c.h.b16 %v1362
        %v1897 = vunpack.c.l.b16 %v1363
        %v1898 = vunpack.c.h.b16 %v1363
        %v1899 = vunpack.c.l.b16 %v1364
        %v1900 = vunpack.c.h.b16 %v1364
        %v1901 = vunpack.c.l.b16 %v1365
        %v1902 = vunpack.c.h.b16 %v1365
        %v1903 = vunpack.c.l.b16 %v1366
        %v1904 = vunpack.c.h.b16 %v1366
        %v1905 = vunpack.c.l.b16 %v1367
        %v1906 = vunpack.c.h.b16 %v1367
        %v1907 = vunpack.c.l.b16 %v1368
        %v1908 = vunpack.c.h.b16 %v1368
        %v1909 = vunpack.c.l.b16 %v1369
        %v1910 = vunpack.c.h.b16 %v1369
        %v1911 = vunpack.c.l.b16 %v1370
        %v1912 = vunpack.c.h.b16 %v1370
        %v1913 = vunpack.c.l.b16 %v1371
        %v1914 = vunpack.c.h.b16 %v1371
        %v1915 = vunpack.c.l.b16 %v1372
        %v1916 = vunpack.c.h.b16 %v1372
        %v1917 = vunpack.c.l.b16 %v1373
        %v1918 = vunpack.c.h.b16 %v1373
        %v1919 = vunpack.c.l.b16 %v1374
        %v1920 = vunpack.c.h.b16 %v1374
        %v1921 = vunpack.c.l.b16 %v1375
        %v1922 = vunpack.c.h.b16 %v1375
        %v1923 = vunpack.c.l.b16 %v1376
        %v1924 = vunpack.c.h.b16 %v1376
        %v1925 = vunpack.c.l.b16 %v1377
        %v1926 = vunpack.c.h.b16 %v1377
        %v1927 = vunpack.c.l.b16 %v1378
        %v1928 = vunpack.c.h.b16 %v1378
        %v1929 = vunpack.c.l.b16 %v1379
        %v1930 = vunpack.c.h.b16 %v1379
        %v1931 = vunpack.c.l.b16 %v1380
        %v1932 = vunpack.c.h.b16 %v1380
        %v1933 = vunpack.c.l.b16 %v1381
        %v1934 = vunpack.c.h.b16 %v1381
        %v1935 = vunpack.c.l.b16 %v1382
        %v1936 = vunpack.c.h.b16 %v1382
        %v1937 = vunpack.c.l.b16 %v1383
        %v1938 = vunpack.c.h.b16 %v1383
        %v1939 = vunpack.c.l.b16 %v1384
        %v1940 = vunpack.c.h.b16 %v1384
        %v1941 = vunpack.c.l.b16 %v1385
        %v1942 = vunpack.c.h.b16 %v1385
        %v1943 = vunpack.c.l.b16 %v1386
        %v1944 = vunpack.c.h.b16 %v1386
        %v1945 = vunpack.c.l.b16 %v1387
        %v1946 = vunpack.c.h.b16 %v1387
        %v1947 = vunpack.c.l.b16 %v1388
        %v1948 = vunpack.c.h.b16 %v1388
        %v1949 = vunpack.c.l.b16 %v1389
        %v1950 = vunpack.c.h.b16 %v1389
        %v1951 = vunpack.c.l.b16 %v1390
        %v1952 = vunpack.c.h.b16 %v1390
        %v1953 = vunpack.c.l.b16 %v1391
        %v1954 = vunpack.c.h.b16 %v1391
        %v1955 = vunpack.c.l.b16 %v1392
        %v1956 = vunpack.c.h.b16 %v1392
        %v1957 = vunpack.c.l.b16 %v1393
        %v1958 = vunpack.c.h.b16 %v1393
        %v1959 = vunpack.c.l.b16 %v1394
        %v1960 = vunpack.c.h.b16 %v1394
        %v1961 = vunpack.c.l.b16 %v1395
        %v1962 = vunpack.c.h.b16 %v1395
        %v1963 = vunpack.c.l.b16 %v1396
        %v1964 = vunpack.c.h.b16 %v1396
        %v1965 = vunpack.c.l.b16 %v1397
        %v1966 = vunpack.c.h.b16 %v1397
        %v1967 = vunpack.c.l.b16 %v1398
        %v1968 = vunpack.c.h.b16 %v1398
        %v1969 = vunpack.c.l.b16 %v1399
        %v1970 = vunpack.c.h.b16 %v1399
        %v1971 = vunpack.c.l.b16 %v1400
        %v1972 = vunpack.c.h.b16 %v1400
        %v1973 = vunpack.c.l.b16 %v1401
        %v1974 = vunpack.c.h.b16 %v1401
        %v1975 = vunpack.c.l.b16 %v1402
        %v1976 = vunpack.c.h.b16 %v1402
        %v1977 = vunpack.c.l.b16 %v1403
        %v1978 = vunpack.c.h.b16 %v1403
        %v1979 = vunpack.c.l.b16 %v1404
        %v1980 = vunpack.c.h.b16 %v1404
        %v1981 = vunpack.c.l.b16 %v1405
        %v1982 = vunpack.c.h.b16 %v1405
        %v1983 = vunpack.c.l.b16 %v1406
        %v1984 = vunpack.c.h.b16 %v1406
        %v1985 = vunpack.c.l.b16 %v1407
        %v1986 = vunpack.c.h.b16 %v1407
        %v1987 = vunpack.c.l.b16 %v1408
        %v1988 = vunpack.c.h.b16 %v1408
        %v1989 = vunpack.c.l.b16 %v1409
        %v1990 = vunpack.c.h.b16 %v1409
        %v1991 = vunpack.c.l.b16 %v1410
        %v1992 = vunpack.c.h.b16 %v1410
        %v1993 = vunpack.c.l.b16 %v1411
        %v1994 = vunpack.c.h.b16 %v1411
        %v1995 = vunpack.c.l.b16 %v1412
        %v1996 = vunpack.c.h.b16 %v1412
        %v1997 = vunpack.c.l.b16 %v1413
        %v1998 = vunpack.c.h.b16 %v1413
        %v1999 = vunpack.c.l.b16 %v1414
        %v2000 = vunpack.c.h.b16 %v1414
        %v2001 = vunpack.c.l.b16 %v1415
        %v2002 = vunpack.c.h.b16 %v1415
        %v2003 = vunpack.c.l.b16 %v1416
        %v2004 = vunpack.c.h.b16 %v1416
        %v2005 = vunpack.c.l.b16 %v1417
        %v2006 = vunpack.c.h.b16 %v1417
        %v2007 = vunpack.c.l.b16 %v1418
        %v2008 = vunpack.c.h.b16 %v1418
        %v2009 = vunpack.c.l.b16 %v1419
        %v2010 = vunpack.c.h.b16 %v1419
        %v2011 = vunpack.c.l.b16 %v1420
        %v2012 = vunpack.c.h.b16 %v1420
        %v2013 = vunpack.c.l.b16 %v1421
        %v2014 = vunpack.c.h.b16 %v1421
        %v2015 = vunpack.c.l.b16 %v1422
        %v2016 = vunpack.c.h.b16 %v1422
        %v2017 = vunpack.c.l.b16 %v1423
        %v2018 = vunpack.c.h.b16 %v1423
        %v2019 = vunpack.c.l.b16 %v1424
        %v2020 = vunpack.c.h.b16 %v1424
        %v2021 = vunpack.c.l.b16 %v1425
        %v2022 = vunpack.c.h.b16 %v1425
        %v2023 = vunpack.c.l.b16 %v1426
        %v2024 = vunpack.c.h.b16 %v1426
        %v2025 = vunpack.c.l.b16 %v1427
        %v2026 = vunpack.c.h.b16 %v1427
        %v2027 = vunpack.c.l.b16 %v1428
        %v2028 = vunpack.c.h.b16 %v1428
        %v2029 = vunpack.c.l.b16 %v1429
        %v2030 = vunpack.c.h.b16 %v1429
        %v2031 = vunpack.c.l.b16 %v1430
        %v2032 = vunpack.c.h.b16 %v1430
        %v2033 = vunpack.c.l.b16 %v1431
        %v2034 = vunpack.c.h.b16 %v1431
        %v2035 = vunpack.c.l.b16 %v1432
        %v2036 = vunpack.c.h.b16 %v1432
        %v2037 = vunpack.c.l.b16 %v1433
        %v2038 = vunpack.c.h.b16 %v1433
        %v2039 = vunpack.c.l.b16 %v1434
        %v2040 = vunpack.c.h.b16 %v1434
        %v2041 = vunpack.c.l.b16 %v1435
        %v2042 = vunpack.c.h.b16 %v1435
        %v2043 = vunpack.c.l.b16 %v1436
        %v2044 = vunpack.c.h.b16 %v1436
        %v2045 = vunpack.c.l.b16 %v1437
        %v2046 = vunpack.c.h.b16 %v1437
        %v2047 = vunpack.c.l.b16 %v1438
        %v2048 = vunpack.c.h.b16 %v1438
        %v2049 = vunpack.c.l.b16 %v1439
        %v2050 = vunpack.c.h.b16 %v1439
        %v2051 = vunpack.c.l.b16 %v1440
        %v2052 = vunpack.c.h.b16 %v1440
        %v2053 = vunpack.c.l.b16 %v1441
        %v2054 = vunpack.c.h.b16 %v1441
        %v2055 = vunpack.c.l.b16 %v1442
        %v2056 = vunpack.c.h.b16 %v1442
        %v2057 = vunpack.c.l.b16 %v1443
        %v2058 = vunpack.c.h.b16 %v1443
        %v2059 = vunpack.c.l.b16 %v1444
        %v2060 = vunpack.c.h.b16 %v1444
        %v2061 = vunpack.c.l.b16 %v1445
        %v2062 = vunpack.c.h.b16 %v1445
        %v2063 = vunpack.c.l.b16 %v1446
        %v2064 = vunpack.c.h.b16 %v1446
        %v2065 = vunpack.c.l.b16 %v1447
        %v2066 = vunpack.c.h.b16 %v1447
        %v2067 = vunpack.c.l.b16 %v1448
        %v2068 = vunpack.c.h.b16 %v1448
        %v2069 = vunpack.c.l.b16 %v1449
        %v2070 = vunpack.c.h.b16 %v1449
        %v2071 = vunpack.c.l.b16 %v1450
        %v2072 = vunpack.c.h.b16 %v1450
        %v2073 = vunpack.c.l.b16 %v1451
        %v2074 = vunpack.c.h.b16 %v1451
        %v2075 = vunpack.c.l.b16 %v1452
        %v2076 = vunpack.c.h.b16 %v1452
        %v2077 = vunpack.c.l.b16 %v1453
        %v2078 = vunpack.c.h.b16 %v1453
        %v2079 = vunpack.c.l.b16 %v1454
        %v2080 = vunpack.c.h.b16 %v1454
        %v2081 = vunpack.c.l.b16 %v1455
        %v2082 = vunpack.c.h.b16 %v1455
        %v2083 = vunpack.c.l.b16 %v1456
        %v2084 = vunpack.c.h.b16 %v1456
        %v2085 = vunpack.c.l.b16 %v1457
        %v2086 = vunpack.c.h.b16 %v1457
        %v2087 = vunpack.c.l.b16 %v1458
        %v2088 = vunpack.c.h.b16 %v1458
        %v2089 = vunpack.c.l.b16 %v1459
        %v2090 = vunpack.c.h.b16 %v1459
        %v2091 = vunpack.c.l.b16 %v1460
        %v2092 = vunpack.c.h.b16 %v1460
        %v2093 = vunpack.c.l.b16 %v1461
        %v2094 = vunpack.c.h.b16 %v1461
        %v2095 = vunpack.c.l.b16 %v1462
        %v2096 = vunpack.c.h.b16 %v1462
        %v2097 = vunpack.c.l.b16 %v1463
        %v2098 = vunpack.c.h.b16 %v1463
        %v2099 = vunpack.c.l.b16 %v1464
        %v2100 = vunpack.c.h.b16 %v1464
        %v2101 = vunpack.c.l.b16 %v1465
        %v2102 = vunpack.c.h.b16 %v1465
        %v2103 = vunpack.c.l.b16 %v1466
        %v2104 = vunpack.c.h.b16 %v1466
        %v2105 = vunpack.c.l.b16 %v1467
        %v2106 = vunpack.c.h.b16 %v1467
        %v2107 = vunpack.c.l.b16 %v1468
        %v2108 = vunpack.c.h.b16 %v1468
        %v2109 = vunpack.c.l.b16 %v1469
        %v2110 = vunpack.c.h.b16 %v1469
        %v2111 = vunpack.c.l.b16 %v1470
        %v2112 = vunpack.c.h.b16 %v1470
        %v2113 = vunpack.c.l.b16 %v1471
        %v2114 = vunpack.c.h.b16 %v1471
        %v2115 = vunpack.c.l.b16 %v1472
        %v2116 = vunpack.c.h.b16 %v1472
        %v2117 = vunpack.c.l.b16 %v1473
        %v2118 = vunpack.c.h.b16 %v1473
        %v2119 = vunpack.c.l.b16 %v1474
        %v2120 = vunpack.c.h.b16 %v1474
        %v2121 = vunpack.c.l.b16 %v1475
        %v2122 = vunpack.c.h.b16 %v1475
        %v2123 = vunpack.c.l.b16 %v1476
        %v2124 = vunpack.c.h.b16 %v1476
        %v2125 = vunpack.c.l.b16 %v1477
        %v2126 = vunpack.c.h.b16 %v1477
        %v2127 = vunpack.c.l.b16 %v1478
        %v2128 = vunpack.c.h.b16 %v1478
        %v2129 = vunpack.c.l.b16 %v1479
        %v2130 = vunpack.c.h.b16 %v1479
        %v2131 = vunpack.c.l.b16 %v1480
        %v2132 = vunpack.c.h.b16 %v1480
        %v2133 = vunpack.c.l.b16 %v1481
        %v2134 = vunpack.c.h.b16 %v1481
        %v2135 = vunpack.c.l.b16 %v1482
        %v2136 = vunpack.c.h.b16 %v1482
        %v2137 = vunpack.c.l.b16 %v1483
        %v2138 = vunpack.c.h.b16 %v1483
        %v2139 = vunpack.c.l.b16 %v1484
        %v2140 = vunpack.c.h.b16 %v1484
        %v2141 = vunpack.c.l.b16 %v1485
        %v2142 = vunpack.c.h.b16 %v1485
        %v2143 = vunpack.c.l.b16 %v1486
        %v2144 = vunpack.c.h.b16 %v1486
        %v2145 = vunpack.c.l.b16 %v1487
        %v2146 = vunpack.c.h.b16 %v1487
        %v2147 = vunpack.c.l.b16 %v1488
        %v2148 = vunpack.c.h.b16 %v1488
        %v2149 = vunpack.c.l.b16 %v1489
        %v2150 = vunpack.c.h.b16 %v1489
        %v2151 = vunpack.c.l.b16 %v1490
        %v2152 = vunpack.c.h.b16 %v1490
        %v2153 = vunpack.c.l.b16 %v1491
        %v2154 = vunpack.c.h.b16 %v1491
        %v2155 = vunpack.c.l.b16 %v1492
        %v2156 = vunpack.c.h.b16 %v1492
        %v2157 = vunpack.c.l.b16 %v1493
        %v2158 = vunpack.c.h.b16 %v1493
        %v2159 = vunpack.c.l.b16 %v1494
        %v2160 = vunpack.c.h.b16 %v1494
        %v2161 = vunpack.c.l.b16 %v1495
        %v2162 = vunpack.c.h.b16 %v1495
        %v2163 = vunpack.c.l.b16 %v1496
        %v2164 = vunpack.c.h.b16 %v1496
        %v2165 = vunpack.c.l.b16 %v1497
        %v2166 = vunpack.c.h.b16 %v1497
        %v2167 = vunpack.c.l.b16 %v1498
        %v2168 = vunpack.c.h.b16 %v1498
        %v2169 = vunpack.c.l.b16 %v1499
        %v2170 = vunpack.c.h.b16 %v1499
        %v2171 = vunpack.c.l.b16 %v1500
        %v2172 = vunpack.c.h.b16 %v1500
        %v2173 = vunpack.c.l.b16 %v1501
        %v2174 = vunpack.c.h.b16 %v1501
        %v2175 = vunpack.c.l.b16 %v1502
        %v2176 = vunpack.c.h.b16 %v1502
        %v2177 = vunpack.c.l.b16 %v1503
        %v2178 = vunpack.c.h.b16 %v1503
        %v2179 = vunpack.c.l.b16 %v1504
        %v2180 = vunpack.c.h.b16 %v1504
        %v2181 = vunpack.c.l.b16 %v1505
        %v2182 = vunpack.c.h.b16 %v1505
        %v2183 = vunpack.c.l.b16 %v1506
        %v2184 = vunpack.c.h.b16 %v1506
        %v2185 = vunpack.c.l.b16 %v1507
        %v2186 = vunpack.c.h.b16 %v1507
        %v2187 = vunpack.c.l.b16 %v1508
        %v2188 = vunpack.c.h.b16 %v1508
        %v2189 = vunpack.c.l.b16 %v1509
        %v2190 = vunpack.c.h.b16 %v1509
        %v2191 = vunpack.c.l.b16 %v1510
        %v2192 = vunpack.c.h.b16 %v1510
        %v2193 = vunpack.c.l.b16 %v1511
        %v2194 = vunpack.c.h.b16 %v1511
        %v2195 = vunpack.c.l.b16 %v1512
        %v2196 = vunpack.c.h.b16 %v1512
        %v2197 = vunpack.c.l.b16 %v1513
        %v2198 = vunpack.c.h.b16 %v1513
        %v2199 = vunpack.c.l.b16 %v1514
        %v2200 = vunpack.c.h.b16 %v1514
        %v2201 = vunpack.c.l.b16 %v1515
        %v2202 = vunpack.c.h.b16 %v1515
        %v2203 = vunpack.c.l.b16 %v1516
        %v2204 = vunpack.c.h.b16 %v1516
        %v2205 = vunpack.c.l.b16 %v1517
        %v2206 = vunpack.c.h.b16 %v1517
        %v2207 = vunpack.c.l.b16 %v1518
        %v2208 = vunpack.c.h.b16 %v1518
        %v2209 = vunpack.c.l.b16 %v1519
        %v2210 = vunpack.c.h.b16 %v1519
        %v2211 = vunpack.c.l.b16 %v1520
        %v2212 = vunpack.c.h.b16 %v1520
        %v2213 = vunpack.c.l.b16 %v1521
        %v2214 = vunpack.c.h.b16 %v1521
        %v2215 = vunpack.c.l.b16 %v1522
        %v2216 = vunpack.c.h.b16 %v1522
        %v2217 = vunpack.c.l.b16 %v1523
        %v2218 = vunpack.c.h.b16 %v1523
        %v2219 = vunpack.c.l.b16 %v1524
        %v2220 = vunpack.c.h.b16 %v1524
        %v2221 = vunpack.c.l.b16 %v1525
        %v2222 = vunpack.c.h.b16 %v1525
        %v2223 = vunpack.c.l.b16 %v1526
        %v2224 = vunpack.c.h.b16 %v1526
        %v2225 = vunpack.c.l.b16 %v1527
        %v2226 = vunpack.c.h.b16 %v1527
        %v2227 = vunpack.c.l.b16 %v1528
        %v2228 = vunpack.c.h.b16 %v1528
        %v2229 = vunpack.c.l.b16 %v1529
        %v2230 = vunpack.c.h.b16 %v1529
        %v2231 = vunpack.c.l.b16 %v1530
        %v2232 = vunpack.c.h.b16 %v1530
        %v2233 = vunpack.c.l.b16 %v1531
        %v2234 = vunpack.c.h.b16 %v1531
        %v2235 = vunpack.c.l.b16 %v1532
        %v2236 = vunpack.c.h.b16 %v1532
        %v2237 = vunpack.c.l.b16 %v1533
        %v2238 = vunpack.c.h.b16 %v1533
        %v2239 = vunpack.c.l.b16 %v1534
        %v2240 = vunpack.c.h.b16 %v1534
        %v2241 = vunpack.c.l.b16 %v1535
        %v2242 = vunpack.c.h.b16 %v1535
        %v2243 = vunpack.c.l.b16 %v1536
        %v2244 = vunpack.c.h.b16 %v1536
        %v2245 = vunpack.c.l.b16 %v1537
        %v2246 = vunpack.c.h.b16 %v1537
        %v2247 = vunpack.c.l.b16 %v1538
        %v2248 = vunpack.c.h.b16 %v1538
        %v2249 = vunpack.c.l.b16 %v1539
        %v2250 = vunpack.c.h.b16 %v1539
        %v2251 = vunpack.c.l.b16 %v1540
        %v2252 = vunpack.c.h.b16 %v1540
        %v2253 = vunpack.c.l.b16 %v1541
        %v2254 = vunpack.c.h.b16 %v1541
        %v2255 = vunpack.c.l.b16 %v1542
        %v2256 = vunpack.c.h.b16 %v1542
        %v2257 = vunpack.c.l.b16 %v1543
        %v2258 = vunpack.c.h.b16 %v1543
        %v2259 = vunpack.c.l.b16 %v1544
        %v2260 = vunpack.c.h.b16 %v1544
        %v2261 = vunpack.c.l.b16 %v1545
        %v2262 = vunpack.c.h.b16 %v1545
        %v2263 = vunpack.c.l.b16 %v1546
        %v2264 = vunpack.c.h.b16 %v1546
        %v2265 = vunpack.c.l.b16 %v1547
        %v2266 = vunpack.c.h.b16 %v1547
        %v2267 = vunpack.c.l.b16 %v1548
        %v2268 = vunpack.c.h.b16 %v1548
        %v2269 = vunpack.c.l.b16 %v1549
        %v2270 = vunpack.c.h.b16 %v1549
        %v2271 = vunpack.c.l.b16 %v1550
        %v2272 = vunpack.c.h.b16 %v1550
        %v2273 = vunpack.c.l.b16 %v1551
        %v2274 = vunpack.c.h.b16 %v1551
        %v2275 = vunpack.c.l.b16 %v1552
        %v2276 = vunpack.c.h.b16 %v1552
        %v2277 = vunpack.c.l.b16 %v1553
        %v2278 = vunpack.c.h.b16 %v1553
        %v2279 = vunpack.c.l.b16 %v1554
        %v2280 = vunpack.c.h.b16 %v1554
        %v2281 = vunpack.c.l.b16 %v1555
        %v2282 = vunpack.c.h.b16 %v1555
        %v2283 = vunpack.c.l.b16 %v1556
        %v2284 = vunpack.c.h.b16 %v1556
        %v2285 = vunpack.c.l.b16 %v1557
        %v2286 = vunpack.c.h.b16 %v1557
        %v2287 = vunpack.c.l.b16 %v1558
        %v2288 = vunpack.c.h.b16 %v1558
        %v2289 = vunpack.c.l.b16 %v1559
        %v2290 = vunpack.c.h.b16 %v1559
        %v2291 = vunpack.c.l.b16 %v1560
        %v2292 = vunpack.c.h.b16 %v1560
        %v2293 = vunpack.c.l.b16 %v1561
        %v2294 = vunpack.c.h.b16 %v1561
        %v2295 = vunpack.c.l.b16 %v1562
        %v2296 = vunpack.c.h.b16 %v1562
        %v2297 = vunpack.c.l.b16 %v1563
        %v2298 = vunpack.c.h.b16 %v1563
        %v2299 = vunpack.c.l.b16 %v1564
        %v2300 = vunpack.c.h.b16 %v1564
        %v2301 = vunpack.c.l.b16 %v1565
        %v2302 = vunpack.c.h.b16 %v1565
        %v2303 = vunpack.c.l.b16 %v1566
        %v2304 = vunpack.c.h.b16 %v1566
        %v2305 = vunpack.c.l.b16 %v1567
        %v2306 = vunpack.c.h.b16 %v1567
        %v2307 = vunpack.c.l.b16 %v1568
        %v2308 = vunpack.c.h.b16 %v1568
        %v2309 = vunpack.c.l.b16 %v1569
        %v2310 = vunpack.c.h.b16 %v1569
        %v2311 = vunpack.c.l.b16 %v1570
        %v2312 = vunpack.c.h.b16 %v1570
        %v2313 = vunpack.c.l.b16 %v1571
        %v2314 = vunpack.c.h.b16 %v1571
        %v2315 = vunpack.c.l.b16 %v1572
        %v2316 = vunpack.c.h.b16 %v1572
        %v2317 = vunpack.c.l.b16 %v1573
        %v2318 = vunpack.c.h.b16 %v1573
        %v2319 = vunpack.c.l.b16 %v1574
        %v2320 = vunpack.c.h.b16 %v1574
        %v2321 = vunpack.c.l.b16 %v1575
        %v2322 = vunpack.c.h.b16 %v1575
        %v2323 = vunpack.c.l.b16 %v1576
        %v2324 = vunpack.c.h.b16 %v1576
        %v2325 = vunpack.c.l.b16 %v1577
        %v2326 = vunpack.c.h.b16 %v1577
        %v2327 = vunpack.c.l.b16 %v1578
        %v2328 = vunpack.c.h.b16 %v1578
        %v2329 = vunpack.c.l.b16 %v1579
        %v2330 = vunpack.c.h.b16 %v1579
        %v2331 = vunpack.c.l.b16 %v1580
        %v2332 = vunpack.c.h.b16 %v1580
        %v2333 = vunpack.c.l.b16 %v1581
        %v2334 = vunpack.c.h.b16 %v1581
        %v2335 = vunpack.c.l.b16 %v1582
        %v2336 = vunpack.c.h.b16 %v1582
        %v2337 = vunpack.c.l.b16 %v1583
        %v2338 = vunpack.c.h.b16 %v1583
        %v2339 = vunpack.c.l.b16 %v1584
        %v2340 = vunpack.c.h.b16 %v1584
        %v2341 = vunpack.c.l.b16 %v1585
        %v2342 = vunpack.c.h.b16 %v1585
        %v2343 = vunpack.c.l.b16 %v1586
        %v2344 = vunpack.c.h.b16 %v1586
        %v2345 = vunpack.c.l.b16 %v1587
        %v2346 = vunpack.c.h.b16 %v1587
        %v2347 = vunpack.c.l.b16 %v1588
        %v2348 = vunpack.c.h.b16 %v1588
        %v2349 = vunpack.c.l.b16 %v1589
        %v2350 = vunpack.c.h.b16 %v1589
        %v2351 = vunpack.c.l.b16 %v1590
        %v2352 = vunpack.c.h.b16 %v1590
        %v2353 = vunpack.c.l.b16 %v1591
        %v2354 = vunpack.c.h.b16 %v1591
        %v2355 = vunpack.c.l.b16 %v1592
        %v2356 = vunpack.c.h.b16 %v1592
        %v2357 = vunpack.c.l.b16 %v1593
        %v2358 = vunpack.c.h.b16 %v1593
        %v2359 = vunpack.c.l.b16 %v1594
        %v2360 = vunpack.c.h.b16 %v1594
        %v2361 = vunpack.c.l.b16 %v1595
        %v2362 = vunpack.c.h.b16 %v1595
        %v2363 = vunpack.c.l.b16 %v1596
        %v2364 = vunpack.c.h.b16 %v1596
        %v2365 = vunpack.c.l.b16 %v1597
        %v2366 = vunpack.c.h.b16 %v1597
        %v2367 = vunpack.c.l.b16 %v1598
        %v2368 = vunpack.c.h.b16 %v1598
        %v2369 = vunpack.c.l.b16 %v1599
        %v2370 = vunpack.c.h.b16 %v1599
        %v2371 = vunpack.c.l.b16 %v1600
        %v2372 = vunpack.c.h.b16 %v1600
        %v2373 = vunpack.c.l.b16 %v1601
        %v2374 = vunpack.c.h.b16 %v1601
        %v2375 = vunpack.c.l.b16 %v1602
        %v2376 = vunpack.c.h.b16 %v1602
        %v2377 = vpack.c.b16 %v1873, %v1865
        %v2378 = vpack.c.b16 %v1874, %v1866
        %v2379 = vpack.c.b16 %v1875, %v1867
        %v2380 = vpack.c.b16 %v1876, %v1868
        %v2381 = vpack.c.b16 %v1877, %v1869
        %v2382 = vpack.c.b16 %v1878, %v1870
        %v2383 = vpack.c.b16 %v1879, %v1871
        %v2384 = vpack.c.b16 %v1880, %v1872
        %v2385 = vpack.c.b16 %v1889, %v1881
        %v2386 = vpack.c.b16 %v1890, %v1882
        %v2387 = vpack.c.b16 %v1891, %v1883
        %v2388 = vpack.c.b16 %v1892, %v1884
        %v2389 = vpack.c.b16 %v1893, %v1885
        %v2390 = vpack.c.b16 %v1894, %v1886
        %v2391 = vpack.c.b16 %v1895, %v1887
        %v2392 = vpack.c.b16 %v1896, %v1888
        %v2393 = vpack.c.b16 %v1905, %v1897
        %v2394 = vpack.c.b16 %v1906, %v1898
        %v2395 = vpack.c.b16 %v1907, %v1899
        %v2396 = vpack.c.b16 %v1908, %v1900
        %v2397 = vpack.c.b16 %v1909, %v1901
        %v2398 = vpack.c.b16 %v1910, %v1902
        %v2399 = vpack.c.b16 %v1911, %v1903
        %v2400 = vpack.c.b16 %v1912, %v1904
        %v2401 = vpack.c.b16 %v1921, %v1913
        %v2402 = vpack.c.b16 %v1922, %v1914
        %v2403 = vpack.c.b16 %v1923, %v1915
        %v2404 = vpack.c.b16 %v1924, %v1916
        %v2405 = vpack.c.b16 %v1925, %v1917
        %v2406 = vpack.c.b16 %v1926, %v1918
        %v2407 = vpack.c.b16 %v1927, %v1919
        %v2408 = vpack.c.b16 %v1928, %v1920
        %v2409 = vpack.c.b16 %v1937, %v1929
        %v2410 = vpack.c.b16 %v1938, %v1930
        %v2411 = vpack.c.b16 %v1939, %v1931
        %v2412 = vpack.c.b16 %v1940, %v1932
        %v2413 = vpack.c.b16 %v1941, %v1933
        %v2414 = vpack.c.b16 %v1942, %v1934
        %v2415 = vpack.c.b16 %v1943, %v1935
        %v2416 = vpack.c.b16 %v1944, %v1936
        %v2417 = vpack.c.b16 %v1953, %v1945
        %v2418 = vpack.c.b16 %v1954, %v1946
        %v2419 = vpack.c.b16 %v1955, %v1947
        %v2420 = vpack.c.b16 %v1956, %v1948
        %v2421 = vpack.c.b16 %v1957, %v1949
        %v2422 = vpack.c.b16 %v1958, %v1950
        %v2423 = vpack.c.b16 %v1959, %v1951
        %v2424 = vpack.c.b16 %v1960, %v1952
        %v2425 = vpack.c.b16 %v1969, %v1961
        %v2426 = vpack.c.b16 %v1970, %v1962
        %v2427 = vpack.c.b16 %v1971, %v1963
        %v2428 = vpack.c.b16 %v1972, %v1964
        %v2429 = vpack.c.b16 %v1973, %v1965
        %v2430 = vpack.c.b16 %v1974, %v1966
        %v2431 = vpack.c.b16 %v1975, %v1967
        %v2432 = vpack.c.b16 %v1976, %v1968
        %v2433 = vpack.c.b16 %v1985, %v1977
        %v2434 = vpack.c.b16 %v1986, %v1978
        %v2435 = vpack.c.b16 %v1987, %v1979
        %v2436 = vpack.c.b16 %v1988, %v1980
        %v2437 = vpack.c.b16 %v1989, %v1981
        %v2438 = vpack.c.b16 %v1990, %v1982
        %v2439 = vpack.c.b16 %v1991, %v1983
        %v2440 = vpack.c.b16 %v1992, %v1984
        %v2441 = vpack.c.b16 %v2001, %v1993
        %v2442 = vpack.c.b16 %v2002, %v1994
        %v2443 = vpack.c.b16 %v2003, %v1995
        %v2444 = vpack.c.b16 %v2004, %v1996
        %v2445 = vpack.c.b16 %v2005, %v1997
        %v2446 = vpack.c.b16 %v2006, %v1998
        %v2447 = vpack.c.b16 %v2007, %v1999
        %v2448 = vpack.c.b16 %v2008, %v2000
        %v2449 = vpack.c.b16 %v2017, %v2009
        %v2450 = vpack.c.b16 %v2018, %v2010
        %v2451 = vpack.c.b16 %v2019, %v2011
        %v2452 = vpack.c.b16 %v2020, %v2012
        %v2453 = vpack.c.b16 %v2021, %v2013
        %v2454 = vpack.c.b16 %v2022, %v2014
        %v2455 = vpack.c.b16 %v2023, %v2015
        %v2456 = vpack.c.b16 %v2024, %v2016
        %v2457 = vpack.c.b16 %v2033, %v2025
        %v2458 = vpack.c.b16 %v2034, %v2026
        %v2459 = vpack.c.b16 %v2035, %v2027
        %v2460 = vpack.c.b16 %v2036, %v2028
        %v2461 = vpack.c.b16 %v2037, %v2029
        %v2462 = vpack.c.b16 %v2038, %v2030
        %v2463 = vpack.c.b16 %v2039, %v2031
        %v2464 = vpack.c.b16 %v2040, %v2032
        %v2465 = vpack.c.b16 %v2049, %v2041
        %v2466 = vpack.c.b16 %v2050, %v2042
        %v2467 = vpack.c.b16 %v2051, %v2043
        %v2468 = vpack.c.b16 %v2052, %v2044
        %v2469 = vpack.c.b16 %v2053, %v2045
        %v2470 = vpack.c.b16 %v2054, %v2046
        %v2471 = vpack.c.b16 %v2055, %v2047
        %v2472 = vpack.c.b16 %v2056, %v2048
        %v2473 = vpack.c.b16 %v2065, %v2057
        %v2474 = vpack.c.b16 %v2066, %v2058
        %v2475 = vpack.c.b16 %v2067, %v2059
        %v2476 = vpack.c.b16 %v2068, %v2060
        %v2477 = vpack.c.b16 %v2069, %v2061
        %v2478 = vpack.c.b16 %v2070, %v2062
        %v2479 = vpack.c.b16 %v2071, %v2063
        %v2480 = vpack.c.b16 %v2072, %v2064
        %v2481 = vpack.c.b16 %v2081, %v2073
        %v2482 = vpack.c.b16 %v2082, %v2074
        %v2483 = vpack.c.b16 %v2083, %v2075
        %v2484 = vpack.c.b16 %v2084, %v2076
        %v2485 = vpack.c.b16 %v2085, %v2077
        %v2486 = vpack.c.b16 %v2086, %v2078
        %v2487 = vpack.c.b16 %v2087, %v2079
        %v2488 = vpack.c.b16 %v2088, %v2080
        %v2489 = vpack.c.b16 %v2097, %v2089
        %v2490 = vpack.c.b16 %v2098, %v2090
        %v2491 = vpack.c.b16 %v2099, %v2091
        %v2492 = vpack.c.b16 %v2100, %v2092
        %v2493 = vpack.c.b16 %v2101, %v2093
        %v2494 = vpack.c.b16 %v2102, %v2094
        %v2495 = vpack.c.b16 %v2103, %v2095
        %v2496 = vpack.c.b16 %v2104, %v2096
        %v2497 = vpack.c.b16 %v2113, %v2105
        %v2498 = vpack.c.b16 %v2114, %v2106
        %v2499 = vpack.c.b16 %v2115, %v2107
        %v2500 = vpack.c.b16 %v2116, %v2108
        %v2501 = vpack.c.b16 %v2117, %v2109
        %v2502 = vpack.c.b16 %v2118, %v2110
        %v2503 = vpack.c.b16 %v2119, %v2111
        %v2504 = vpack.c.b16 %v2120, %v2112
        %v2505 = vpack.c.b16 %v2129, %v2121
        %v2506 = vpack.c.b16 %v2130, %v2122
        %v2507 = vpack.c.b16 %v2131, %v2123
        %v2508 = vpack.c.b16 %v2132, %v2124
        %v2509 = vpack.c.b16 %v2133, %v2125
        %v2510 = vpack.c.b16 %v2134, %v2126
        %v2511 = vpack.c.b16 %v2135, %v2127
        %v2512 = vpack.c.b16 %v2136, %v2128
        %v2513 = vpack.c.b16 %v2145, %v2137
        %v2514 = vpack.c.b16 %v2146, %v2138
        %v2515 = vpack.c.b16 %v2147, %v2139
        %v2516 = vpack.c.b16 %v2148, %v2140
        %v2517 = vpack.c.b16 %v2149, %v2141
        %v2518 = vpack.c.b16 %v2150, %v2142
        %v2519 = vpack.c.b16 %v2151, %v2143
        %v2520 = vpack.c.b16 %v2152, %v2144
        %v2521 = vpack.c.b16 %v2161, %v2153
        %v2522 = vpack.c.b16 %v2162, %v2154
        %v2523 = vpack.c.b16 %v2163, %v2155
        %v2524 = vpack.c.b16 %v2164, %v2156
        %v2525 = vpack.c.b16 %v2165, %v2157
        %v2526 = vpack.c.b16 %v2166, %v2158
        %v2527 = vpack.c.b16 %v2167, %v2159
        %v2528 = vpack.c.b16 %v2168, %v2160
        %v2529 = vpack.c.b16 %v2177, %v2169
        %v2530 = vpack.c.b16 %v2178, %v2170
        %v2531 = vpack.c.b16 %v2179, %v2171
        %v2532 = vpack.c.b16 %v2180, %v2172
        %v2533 = vpack.c.b16 %v2181, %v2173
        %v2534 = vpack.c.b16 %v2182, %v2174
        %v2535 = vpack.c.b16 %v2183, %v2175
        %v2536 = vpack.c.b16 %v2184, %v2176
        %v2537 = vpack.c.b16 %v2193, %v2185
        %v2538 = vpack.c.b16 %v2194, %v2186
        %v2539 = vpack.c.b16 %v2195, %v2187
        %v2540 = vpack.c.b16 %v2196, %v2188
        %v2541 = vpack.c.b16 %v2197, %v2189
        %v2542 = vpack.c.b16 %v2198, %v2190
        %v2543 = vpack.c.b16 %v2199, %v2191
        %v2544 = vpack.c.b16 %v2200, %v2192
        %v2545 = vpack.c.b16 %v2209, %v2201
        %v2546 = vpack.c.b16 %v2210, %v2202
        %v2547 = vpack.c.b16 %v2211, %v2203
        %v2548 = vpack.c.b16 %v2212, %v2204
        %v2549 = vpack.c.b16 %v2213, %v2205
        %v2550 = vpack.c.b16 %v2214, %v2206
        %v2551 = vpack.c.b16 %v2215, %v2207
        %v2552 = vpack.c.b16 %v2216, %v2208
        %v2553 = vpack.c.b16 %v2225, %v2217
        %v2554 = vpack.c.b16 %v2226, %v2218
        %v2555 = vpack.c.b16 %v2227, %v2219
        %v2556 = vpack.c.b16 %v2228, %v2220
        %v2557 = vpack.c.b16 %v2229, %v2221
        %v2558 = vpack.c.b16 %v2230, %v2222
        %v2559 = vpack.c.b16 %v2231, %v2223
        %v2560 = vpack.c.b16 %v2232, %v2224
        %v2561 = vpack.c.b16 %v2241, %v2233
        %v2562 = vpack.c.b16 %v2242, %v2234
        %v2563 = vpack.c.b16 %v2243, %v2235
        %v2564 = vpack.c.b16 %v2244, %v2236
        %v2565 = vpack.c.b16 %v2245, %v2237
        %v2566 = vpack.c.b16 %v2246, %v2238
        %v2567 = vpack.c.b16 %v2247, %v2239
        %v2568 = vpack.c.b16 %v2248, %v2240
        %v2569 = vpack.c.b16 %v2257, %v2249
        %v2570 = vpack.c.b16 %v2258, %v2250
        %v2571 = vpack.c.b16 %v2259, %v2251
        %v2572 = vpack.c.b16 %v2260, %v2252
        %v2573 = vpack.c.b16 %v2261, %v2253
        %v2574 = vpack.c.b16 %v2262, %v2254
        %v2575 = vpack.c.b16 %v2263, %v2255
        %v2576 = vpack.c.b16 %v2264, %v2256
        %v2577 = vpack.c.b16 %v2273, %v2265
        %v2578 = vpack.c.b16 %v2274, %v2266
        %v2579 = vpack.c.b16 %v2275, %v2267
        %v2580 = vpack.c.b16 %v2276, %v2268
        %v2581 = vpack.c.b16 %v2277, %v2269
        %v2582 = vpack.c.b16 %v2278, %v2270
        %v2583 = vpack.c.b16 %v2279, %v2271
        %v2584 = vpack.c.b16 %v2280, %v2272
        %v2585 = vpack.c.b16 %v2289, %v2281
        %v2586 = vpack.c.b16 %v2290, %v2282
        %v2587 = vpack.c.b16 %v2291, %v2283
        %v2588 = vpack.c.b16 %v2292, %v2284
        %v2589 = vpack.c.b16 %v2293, %v2285
        %v2590 = vpack.c.b16 %v2294, %v2286
        %v2591 = vpack.c.b16 %v2295, %v2287
        %v2592 = vpack.c.b16 %v2296, %v2288
        %v2593 = vpack.c.b16 %v2305, %v2297
        %v2594 = vpack.c.b16 %v2306, %v2298
        %v2595 = vpack.c.b16 %v2307, %v2299
        %v2596 = vpack.c.b16 %v2308, %v2300
        %v2597 = vpack.c.b16 %v2309, %v2301
        %v2598 = vpack.c.b16 %v2310, %v2302
        %v2599 = vpack.c.b16 %v2311, %v2303
        %v2600 = vpack.c.b16 %v2312, %v2304
        %v2601 = vpack.c.b16 %v2321, %v2313
        %v2602 = vpack.c.b16 %v2322, %v2314
        %v2603 = vpack.c.b16 %v2323, %v2315
        %v2604 = vpack.c.b16 %v2324, %v2316
        %v2605 = vpack.c.b16 %v2325, %v2317
        %v2606 = vpack.c.b16 %v2326, %v2318
        %v2607 = vpack.c.b16 %v2327, %v2319
        %v2608 = vpack.c.b16 %v2328, %v2320
        %v2609 = vpack.c.b16 %v2337, %v2329
        %v2610 = vpack.c.b16 %v2338, %v2330
        %v2611 = vpack.c.b16 %v2339, %v2331
        %v2612 = vpack.c.b16 %v2340, %v2332
        %v2613 = vpack.c.b16 %v2341, %v2333
        %v2614 = vpack.c.b16 %v2342, %v2334
        %v2615 = vpack.c.b16 %v2343, %v2335
        %v2616 = vpack.c.b16 %v2344, %v2336
        %v2617 = vpack.c.b16 %v2353, %v2345
        %v2618 = vpack.c.b16 %v2354, %v2346
        %v2619 = vpack.c.b16 %v2355, %v2347
        %v2620 = vpack.c.b16 %v2356, %v2348
        %v2621 = vpack.c.b16 %v2357, %v2349
        %v2622 = vpack.c.b16 %v2358, %v2350
        %v2623 = vpack.c.b16 %v2359, %v2351
        %v2624 = vpack.c.b16 %v2360, %v2352
        %v2625 = vpack.c.b16 %v2369, %v2361
        %v2626 = vpack.c.b16 %v2370, %v2362
        %v2627 = vpack.c.b16 %v2371, %v2363
        %v2628 = vpack.c.b16 %v2372, %v2364
        %v2629 = vpack.c.b16 %v2373, %v2365
        %v2630 = vpack.c.b16 %v2374, %v2366
        %v2631 = vpack.c.b16 %v2375, %v2367
        %v2632 = vpack.c.b16 %v2376, %v2368
        %2889 = vmatprep.subr.bf16.mxu0 %v2378
        %2890 = vmatpush1.bf16.msra.mxu0 %v2377
        %2891 = vmatprep.subr.bf16.mxu0 %v2386
        %2892 = vmatpush1.bf16.msra.mxu0 %v2385
        %2893 = vmatprep.subr.bf16.mxu0 %v2394
        %2894 = vmatpush1.bf16.msra.mxu0 %v2393
        %2895 = vmatprep.subr.bf16.mxu0 %v2402
        %2896 = vmatpush1.bf16.msra.mxu0 %v2401
        %2897 = vmatprep.subr.bf16.mxu0 %v2410
        %2898 = vmatpush1.bf16.msra.mxu0 %v2409
        %2899 = vmatprep.subr.bf16.mxu0 %v2418
        %2900 = vmatpush1.bf16.msra.mxu0 %v2417
        %2901 = vmatprep.subr.bf16.mxu0 %v2426
        %2902 = vmatpush1.bf16.msra.mxu0 %v2425
        %2903 = vmatprep.subr.bf16.mxu0 %v2434
        %2904 = vmatpush1.bf16.msra.mxu0 %v2433
        %2905 = vmatprep.subr.bf16.mxu0 %v2442
        %2906 = vmatpush1.bf16.msra.mxu0 %v2441
        %2907 = vmatprep.subr.bf16.mxu0 %v2450
        %2908 = vmatpush1.bf16.msra.mxu0 %v2449
        %2909 = vmatprep.subr.bf16.mxu0 %v2458
        %2910 = vmatpush1.bf16.msra.mxu0 %v2457
        %2911 = vmatprep.subr.bf16.mxu0 %v2466
        %2912 = vmatpush1.bf16.msra.mxu0 %v2465
        %2913 = vmatprep.subr.bf16.mxu0 %v2474
        %2914 = vmatpush1.bf16.msra.mxu0 %v2473
        %2915 = vmatprep.subr.bf16.mxu0 %v2482
        %2916 = vmatpush1.bf16.msra.mxu0 %v2481
        %2917 = vmatprep.subr.bf16.mxu0 %v2490
        %2918 = vmatpush1.bf16.msra.mxu0 %v2489
        %2919 = vmatprep.subr.bf16.mxu0 %v2498
        %2920 = vmatpush1.bf16.msra.mxu0 %v2497
        %2921 = vmatprep.mubr.bf16.mxu0 %v1606
        %2922 = vmatmul.mubr.bf16.gmra.mrb[0].mxu0 %v1605
        %v2923 = vpop.f32.mrb[0].mxu0
        %v2924 = vadd.f32 0.0, %v2923
        %v2925 = vpop.f32.mrb[0].mxu0
        %v2926 = vadd.f32 0.0, %v2925
        %v2927 = vpop.f32.mrb[0].mxu0
        %v2928 = vpop.f32.mrb[0].mxu0
        %2929 = vdwg.mxu0
        %2930 = vmatprep.subr.bf16.mxu0 %v2506
        %2931 = vmatpush1.bf16.msra.mxu0 %v2505
        %2932 = vmatprep.subr.bf16.mxu0 %v2514
        %2933 = vmatpush1.bf16.msra.mxu0 %v2513
        %2934 = vmatprep.subr.bf16.mxu0 %v2522
        %2935 = vmatpush1.bf16.msra.mxu0 %v2521
        %2936 = vmatprep.subr.bf16.mxu0 %v2530
        %2937 = vmatpush1.bf16.msra.mxu0 %v2529
        %2938 = vmatprep.subr.bf16.mxu0 %v2538
        %2939 = vmatpush1.bf16.msra.mxu0 %v2537
        %2940 = vmatprep.subr.bf16.mxu0 %v2546
        %2941 = vmatpush1.bf16.msra.mxu0 %v2545
        %2942 = vmatprep.subr.bf16.mxu0 %v2554
        %2943 = vmatpush1.bf16.msra.mxu0 %v2553
        %2944 = vmatprep.subr.bf16.mxu0 %v2562
        %2945 = vmatpush1.bf16.msra.mxu0 %v2561
        %2946 = vmatprep.subr.bf16.mxu0 %v2570
        %2947 = vmatpush1.bf16.msra.mxu0 %v2569
        %2948 = vmatprep.subr.bf16.mxu0 %v2578
        %2949 = vmatpush1.bf16.msra.mxu0 %v2577
        %2950 = vmatprep.subr.bf16.mxu0 %v2586
        %2951 = vmatpush1.bf16.msra.mxu0 %v2585
        %2952 = vmatprep.subr.bf16.mxu0 %v2594
        %2953 = vmatpush1.bf16.msra.mxu0 %v2593
        %2954 = vmatprep.subr.bf16.mxu0 %v2602
        %2955 = vmatpush1.bf16.msra.mxu0 %v2601
        %2956 = vmatprep.subr.bf16.mxu0 %v2610
        %2957 = vmatpush1.bf16.msra.mxu0 %v2609
        %2958 = vmatprep.subr.bf16.mxu0 %v2618
        %2959 = vmatpush1.bf16.msra.mxu0 %v2617
        %2960 = vmatprep.subr.bf16.mxu0 %v2626
        %2961 = vmatpush1.bf16.msra.mxu0 %v2625
        %2962 = vmatprep.mubr.bf16.mxu0 %v1608
        %2963 = vmatmul.mubr.bf16.gmra.mrb[0].mxu0 %v1607
        %v2964 = vpop.f32.mrb[0].mxu0
        %v2965 = vadd.f32 %v2924, %v2964
        %v2966 = vpop.f32.mrb[0].mxu0
        %v2967 = vadd.f32 %v2926, %v2966
        %v2968 = vpop.f32.mrb[0].mxu0
        %v2969 = vpop.f32.mrb[0].mxu0
        %2970 = vdwg.mxu0
        %2971 = vmatprep.subr.bf16.mxu0 %v2380
        %2972 = vmatpush1.bf16.msra.mxu0 %v2379
        %2973 = vmatprep.subr.bf16.mxu0 %v2388
        %2974 = vmatpush1.bf16.msra.mxu0 %v2387
        %2975 = vmatprep.subr.bf16.mxu0 %v2396
        %2976 = vmatpush1.bf16.msra.mxu0 %v2395
        %2977 = vmatprep.subr.bf16.mxu0 %v2404
        %2978 = vmatpush1.bf16.msra.mxu0 %v2403
        %2979 = vmatprep.subr.bf16.mxu0 %v2412
        %2980 = vmatpush1.bf16.msra.mxu0 %v2411
        %2981 = vmatprep.subr.bf16.mxu0 %v2420
        %2982 = vmatpush1.bf16.msra.mxu0 %v2419
        %2983 = vmatprep.subr.bf16.mxu0 %v2428
        %2984 = vmatpush1.bf16.msra.mxu0 %v2427
        %2985 = vmatprep.subr.bf16.mxu0 %v2436
        %2986 = vmatpush1.bf16.msra.mxu0 %v2435
        %2987 = vmatprep.subr.bf16.mxu0 %v2444
        %2988 = vmatpush1.bf16.msra.mxu0 %v2443
        %2989 = vmatprep.subr.bf16.mxu0 %v2452
        %2990 = vmatpush1.bf16.msra.mxu0 %v2451
        %2991 = vmatprep.subr.bf16.mxu0 %v2460
        %2992 = vmatpush1.bf16.msra.mxu0 %v2459
        %2993 = vmatprep.subr.bf16.mxu0 %v2468
        %2994 = vmatpush1.bf16.msra.mxu0 %v2467
        %2995 = vmatprep.subr.bf16.mxu0 %v2476
        %2996 = vmatpush1.bf16.msra.mxu0 %v2475
        %2997 = vmatprep.subr.bf16.mxu0 %v2484
        %2998 = vmatpush1.bf16.msra.mxu0 %v2483
        %2999 = vmatprep.subr.bf16.mxu0 %v2492
        %3000 = vmatpush1.bf16.msra.mxu0 %v2491
        %3001 = vmatprep.subr.bf16.mxu0 %v2500
        %3002 = vmatpush1.bf16.msra.mxu0 %v2499
        %3003 = vmatprep.mubr.bf16.mxu0 %v1606
        %3004 = vmatmul.mubr.bf16.gmra.mrb[0].mxu0 %v1605
        %v3005 = vpop.f32.mrb[0].mxu0
        %v3006 = vadd.f32 0.0, %v3005
        %v3007 = vpop.f32.mrb[0].mxu0
        %v3008 = vadd.f32 0.0, %v3007
        %v3009 = vpop.f32.mrb[0].mxu0
        %v3010 = vpop.f32.mrb[0].mxu0
        %3011 = vdwg.mxu0
        %3012 = vmatprep.subr.bf16.mxu0 %v2508
        %3013 = vmatpush1.bf16.msra.mxu0 %v2507
        %3014 = vmatprep.subr.bf16.mxu0 %v2516
        %3015 = vmatpush1.bf16.msra.mxu0 %v2515
        %3016 = vmatprep.subr.bf16.mxu0 %v2524
        %3017 = vmatpush1.bf16.msra.mxu0 %v2523
        %3018 = vmatprep.subr.bf16.mxu0 %v2532
        %3019 = vmatpush1.bf16.msra.mxu0 %v2531
        %3020 = vmatprep.subr.bf16.mxu0 %v2540
        %3021 = vmatpush1.bf16.msra.mxu0 %v2539
        %3022 = vmatprep.subr.bf16.mxu0 %v2548
        %3023 = vmatpush1.bf16.msra.mxu0 %v2547
        %3024 = vmatprep.subr.bf16.mxu0 %v2556
        %3025 = vmatpush1.bf16.msra.mxu0 %v2555
        %3026 = vmatprep.subr.bf16.mxu0 %v2564
        %3027 = vmatpush1.bf16.msra.mxu0 %v2563
        %3028 = vmatprep.subr.bf16.mxu0 %v2572
        %3029 = vmatpush1.bf16.msra.mxu0 %v2571
        %3030 = vmatprep.subr.bf16.mxu0 %v2580
        %3031 = vmatpush1.bf16.msra.mxu0 %v2579
        %3032 = vmatprep.subr.bf16.mxu0 %v2588
        %3033 = vmatpush1.bf16.msra.mxu0 %v2587
        %3034 = vmatprep.subr.bf16.mxu0 %v2596
        %3035 = vmatpush1.bf16.msra.mxu0 %v2595
        %3036 = vmatprep.subr.bf16.mxu0 %v2604
        %3037 = vmatpush1.bf16.msra.mxu0 %v2603
        %3038 = vmatprep.subr.bf16.mxu0 %v2612
        %3039 = vmatpush1.bf16.msra.mxu0 %v2611
        %3040 = vmatprep.subr.bf16.mxu0 %v2620
        %3041 = vmatpush1.bf16.msra.mxu0 %v2619
        %3042 = vmatprep.subr.bf16.mxu0 %v2628
        %3043 = vmatpush1.bf16.msra.mxu0 %v2627
        %3044 = vmatprep.mubr.bf16.mxu0 %v1608
        %3045 = vmatmul.mubr.bf16.gmra.mrb[0].mxu0 %v1607
        %v3046 = vpop.f32.mrb[0].mxu0
        %v3047 = vadd.f32 %v3006, %v3046
        %v3048 = vpop.f32.mrb[0].mxu0
        %v3049 = vadd.f32 %v3008, %v3048
        %v3050 = vpop.f32.mrb[0].mxu0
        %v3051 = vpop.f32.mrb[0].mxu0
        %3052 = vdwg.mxu0
        %3053 = vmatprep.subr.bf16.mxu0 %v2382
        %3054 = vmatpush1.bf16.msra.mxu0 %v2381
        %3055 = vmatprep.subr.bf16.mxu0 %v2390
        %3056 = vmatpush1.bf16.msra.mxu0 %v2389
        %3057 = vmatprep.subr.bf16.mxu0 %v2398
        %3058 = vmatpush1.bf16.msra.mxu0 %v2397
        %3059 = vmatprep.subr.bf16.mxu0 %v2406
        %3060 = vmatpush1.bf16.msra.mxu0 %v2405
        %3061 = vmatprep.subr.bf16.mxu0 %v2414
        %3062 = vmatpush1.bf16.msra.mxu0 %v2413
        %3063 = vmatprep.subr.bf16.mxu0 %v2422
        %3064 = vmatpush1.bf16.msra.mxu0 %v2421
        %3065 = vmatprep.subr.bf16.mxu0 %v2430
        %3066 = vmatpush1.bf16.msra.mxu0 %v2429
        %3067 = vmatprep.subr.bf16.mxu0 %v2438
        %3068 = vmatpush1.bf16.msra.mxu0 %v2437
        %3069 = vmatprep.subr.bf16.mxu0 %v2446
        %3070 = vmatpush1.bf16.msra.mxu0 %v2445
        %3071 = vmatprep.subr.bf16.mxu0 %v2454
        %3072 = vmatpush1.bf16.msra.mxu0 %v2453
        %3073 = vmatprep.subr.bf16.mxu0 %v2462
        %3074 = vmatpush1.bf16.msra.mxu0 %v2461
        %3075 = vmatprep.subr.bf16.mxu0 %v2470
        %3076 = vmatpush1.bf16.msra.mxu0 %v2469
        %3077 = vmatprep.subr.bf16.mxu0 %v2478
        %3078 = vmatpush1.bf16.msra.mxu0 %v2477
        %3079 = vmatprep.subr.bf16.mxu0 %v2486
        %3080 = vmatpush1.bf16.msra.mxu0 %v2485
        %3081 = vmatprep.subr.bf16.mxu0 %v2494
        %3082 = vmatpush1.bf16.msra.mxu0 %v2493
        %3083 = vmatprep.subr.bf16.mxu0 %v2502
        %3084 = vmatpush1.bf16.msra.mxu0 %v2501
        %3085 = vmatprep.mubr.bf16.mxu0 %v1606
        %3086 = vmatmul.mubr.bf16.gmra.mrb[0].mxu0 %v1605
        %v3087 = vpop.f32.mrb[0].mxu0
        %v3088 = vadd.f32 0.0, %v3087
        %v3089 = vpop.f32.mrb[0].mxu0
        %v3090 = vadd.f32 0.0, %v3089
        %v3091 = vpop.f32.mrb[0].mxu0
        %v3092 = vpop.f32.mrb[0].mxu0
        %3093 = vdwg.mxu0
        %3094 = vmatprep.subr.bf16.mxu0 %v2510
        %3095 = vmatpush1.bf16.msra.mxu0 %v2509
        %3096 = vmatprep.subr.bf16.mxu0 %v2518
        %3097 = vmatpush1.bf16.msra.mxu0 %v2517
        %3098 = vmatprep.subr.bf16.mxu0 %v2526
        %3099 = vmatpush1.bf16.msra.mxu0 %v2525
        %3100 = vmatprep.subr.bf16.mxu0 %v2534
        %3101 = vmatpush1.bf16.msra.mxu0 %v2533
        %3102 = vmatprep.subr.bf16.mxu0 %v2542
        %3103 = vmatpush1.bf16.msra.mxu0 %v2541
        %3104 = vmatprep.subr.bf16.mxu0 %v2550
        %3105 = vmatpush1.bf16.msra.mxu0 %v2549
        %3106 = vmatprep.subr.bf16.mxu0 %v2558
        %3107 = vmatpush1.bf16.msra.mxu0 %v2557
        %3108 = vmatprep.subr.bf16.mxu0 %v2566
        %3109 = vmatpush1.bf16.msra.mxu0 %v2565
        %3110 = vmatprep.subr.bf16.mxu0 %v2574
        %3111 = vmatpush1.bf16.msra.mxu0 %v2573
        %3112 = vmatprep.subr.bf16.mxu0 %v2582
        %3113 = vmatpush1.bf16.msra.mxu0 %v2581
        %3114 = vmatprep.subr.bf16.mxu0 %v2590
        %3115 = vmatpush1.bf16.msra.mxu0 %v2589
        %3116 = vmatprep.subr.bf16.mxu0 %v2598
        %3117 = vmatpush1.bf16.msra.mxu0 %v2597
        %3118 = vmatprep.subr.bf16.mxu0 %v2606
        %3119 = vmatpush1.bf16.msra.mxu0 %v2605
        %3120 = vmatprep.subr.bf16.mxu0 %v2614
        %3121 = vmatpush1.bf16.msra.mxu0 %v2613
        %3122 = vmatprep.subr.bf16.mxu0 %v2622
        %3123 = vmatpush1.bf16.msra.mxu0 %v2621
        %3124 = vmatprep.subr.bf16.mxu0 %v2630
        %3125 = vmatpush1.bf16.msra.mxu0 %v2629
        %3126 = vmatprep.mubr.bf16.mxu0 %v1608
        %3127 = vmatmul.mubr.bf16.gmra.mrb[0].mxu0 %v1607
        %v3128 = vpop.f32.mrb[0].mxu0
        %v3129 = vadd.f32 %v3088, %v3128
        %v3130 = vpop.f32.mrb[0].mxu0
        %v3131 = vadd.f32 %v3090, %v3130
        %v3132 = vpop.f32.mrb[0].mxu0
        %v3133 = vpop.f32.mrb[0].mxu0
        %3134 = vdwg.mxu0
        %3135 = vmatprep.subr.bf16.mxu0 %v2384
        %3136 = vmatpush1.bf16.msra.mxu0 %v2383
        %3137 = vmatprep.subr.bf16.mxu0 %v2392
        %3138 = vmatpush1.bf16.msra.mxu0 %v2391
        %3139 = vmatprep.subr.bf16.mxu0 %v2400
        %3140 = vmatpush1.bf16.msra.mxu0 %v2399
        %3141 = vmatprep.subr.bf16.mxu0 %v2408
        %3142 = vmatpush1.bf16.msra.mxu0 %v2407
        %3143 = vmatprep.subr.bf16.mxu0 %v2416
        %3144 = vmatpush1.bf16.msra.mxu0 %v2415
        %3145 = vmatprep.subr.bf16.mxu0 %v2424
        %3146 = vmatpush1.bf16.msra.mxu0 %v2423
        %3147 = vmatprep.subr.bf16.mxu0 %v2432
        %3148 = vmatpush1.bf16.msra.mxu0 %v2431
        %3149 = vmatprep.subr.bf16.mxu0 %v2440
        %3150 = vmatpush1.bf16.msra.mxu0 %v2439
        %3151 = vmatprep.subr.bf16.mxu0 %v2448
        %3152 = vmatpush1.bf16.msra.mxu0 %v2447
        %3153 = vmatprep.subr.bf16.mxu0 %v2456
        %3154 = vmatpush1.bf16.msra.mxu0 %v2455
        %3155 = vmatprep.subr.bf16.mxu0 %v2464
        %3156 = vmatpush1.bf16.msra.mxu0 %v2463
        %3157 = vmatprep.subr.bf16.mxu0 %v2472
        %3158 = vmatpush1.bf16.msra.mxu0 %v2471
        %3159 = vmatprep.subr.bf16.mxu0 %v2480
        %3160 = vmatpush1.bf16.msra.mxu0 %v2479
        %3161 = vmatprep.subr.bf16.mxu0 %v2488
        %3162 = vmatpush1.bf16.msra.mxu0 %v2487
        %3163 = vmatprep.subr.bf16.mxu0 %v2496
        %3164 = vmatpush1.bf16.msra.mxu0 %v2495
        %3165 = vmatprep.subr.bf16.mxu0 %v2504
        %3166 = vmatpush1.bf16.msra.mxu0 %v2503
        %3167 = vmatprep.mubr.bf16.mxu0 %v1606
        %3168 = vmatmul.mubr.bf16.gmra.mrb[0].mxu0 %v1605
        %v3169 = vpop.f32.mrb[0].mxu0
        %v3170 = vadd.f32 0.0, %v3169
        %v3171 = vpop.f32.mrb[0].mxu0
        %v3172 = vadd.f32 0.0, %v3171
        %v3173 = vpop.f32.mrb[0].mxu0
        %v3174 = vpop.f32.mrb[0].mxu0
        %3175 = vdwg.mxu0
        %3176 = vmatprep.subr.bf16.mxu0 %v2512
        %3177 = vmatpush1.bf16.msra.mxu0 %v2511
        %3178 = vmatprep.subr.bf16.mxu0 %v2520
        %3179 = vmatpush1.bf16.msra.mxu0 %v2519
        %3180 = vmatprep.subr.bf16.mxu0 %v2528
        %3181 = vmatpush1.bf16.msra.mxu0 %v2527
        %3182 = vmatprep.subr.bf16.mxu0 %v2536
        %3183 = vmatpush1.bf16.msra.mxu0 %v2535
        %3184 = vmatprep.subr.bf16.mxu0 %v2544
        %3185 = vmatpush1.bf16.msra.mxu0 %v2543
        %3186 = vmatprep.subr.bf16.mxu0 %v2552
        %3187 = vmatpush1.bf16.msra.mxu0 %v2551
        %3188 = vmatprep.subr.bf16.mxu0 %v2560
        %3189 = vmatpush1.bf16.msra.mxu0 %v2559
        %3190 = vmatprep.subr.bf16.mxu0 %v2568
        %3191 = vmatpush1.bf16.msra.mxu0 %v2567
        %3192 = vmatprep.subr.bf16.mxu0 %v2576
        %3193 = vmatpush1.bf16.msra.mxu0 %v2575
        %3194 = vmatprep.subr.bf16.mxu0 %v2584
        %3195 = vmatpush1.bf16.msra.mxu0 %v2583
        %3196 = vmatprep.subr.bf16.mxu0 %v2592
        %3197 = vmatpush1.bf16.msra.mxu0 %v2591
        %3198 = vmatprep.subr.bf16.mxu0 %v2600
        %3199 = vmatpush1.bf16.msra.mxu0 %v2599
        %3200 = vmatprep.subr.bf16.mxu0 %v2608
        %3201 = vmatpush1.bf16.msra.mxu0 %v2607
        %3202 = vmatprep.subr.bf16.mxu0 %v2616
        %3203 = vmatpush1.bf16.msra.mxu0 %v2615
        %3204 = vmatprep.subr.bf16.mxu0 %v2624
        %3205 = vmatpush1.bf16.msra.mxu0 %v2623
        %3206 = vmatprep.subr.bf16.mxu0 %v2632
        %3207 = vmatpush1.bf16.msra.mxu0 %v2631
        %3208 = vmatprep.mubr.bf16.mxu0 %v1608
        %3209 = vmatmul.mubr.bf16.gmra.mrb[0].mxu0 %v1607
        %v3210 = vpop.f32.mrb[0].mxu0
        %v3211 = vadd.f32 %v3170, %v3210
        %v3212 = vpop.f32.mrb[0].mxu0
        %v3213 = vadd.f32 %v3172, %v3212
        %v3214 = vpop.f32.mrb[0].mxu0
        %v3215 = vpop.f32.mrb[0].mxu0
        %3216 = vdwg.mxu0
        %v3217 = vrot.slane %v2965, 4
        %v3218 = vadd.f32 %v2965, %v3217
        %v3219 = vrot.slane %v3218, 2
        %v3220 = vadd.f32 %v3218, %v3219
        %v3221 = vrot.slane %v3220, 1
        %v3222 = vadd.f32 %v3220, %v3221
        %v3223 = vrot.slane %v2967, 4
        %v3224 = vadd.f32 %v2967, %v3223
        %v3225 = vrot.slane %v3224, 2
        %v3226 = vadd.f32 %v3224, %v3225
        %v3227 = vrot.slane %v3226, 1
        %v3228 = vadd.f32 %v3226, %v3227
        %v3229 = vrot.slane %v3047, 4
        %v3230 = vadd.f32 %v3047, %v3229
        %v3231 = vrot.slane %v3230, 2
        %v3232 = vadd.f32 %v3230, %v3231
        %v3233 = vrot.slane %v3232, 1
        %v3234 = vadd.f32 %v3232, %v3233
        %v3235 = vrot.slane %v3049, 4
        %v3236 = vadd.f32 %v3049, %v3235
        %v3237 = vrot.slane %v3236, 2
        %v3238 = vadd.f32 %v3236, %v3237
        %v3239 = vrot.slane %v3238, 1
        %v3240 = vadd.f32 %v3238, %v3239
        %v3241 = vrot.slane %v3129, 4
        %v3242 = vadd.f32 %v3129, %v3241
        %v3243 = vrot.slane %v3242, 2
        %v3244 = vadd.f32 %v3242, %v3243
        %v3245 = vrot.slane %v3244, 1
        %v3246 = vadd.f32 %v3244, %v3245
        %v3247 = vrot.slane %v3131, 4
        %v3248 = vadd.f32 %v3131, %v3247
        %v3249 = vrot.slane %v3248, 2
        %v3250 = vadd.f32 %v3248, %v3249
        %v3251 = vrot.slane %v3250, 1
        %v3252 = vadd.f32 %v3250, %v3251
        %v3253 = vrot.slane %v3211, 4
        %v3254 = vadd.f32 %v3211, %v3253
        %v3255 = vrot.slane %v3254, 2
        %v3256 = vadd.f32 %v3254, %v3255
        %v3257 = vrot.slane %v3256, 1
        %v3258 = vadd.f32 %v3256, %v3257
        %v3259 = vrot.slane %v3213, 4
        %v3260 = vadd.f32 %v3213, %v3259
        %v3261 = vrot.slane %v3260, 2
        %v3262 = vadd.f32 %v3260, %v3261
        %v3263 = vrot.slane %v3262, 1
        %v3264 = vadd.f32 %v3262, %v3263
        %v3265 = vmul.f32 %v3222, %v567
        %v3266 = vmul.f32 %v3228, %v567
        %v3267 = vmul.f32 %v3234, %v567
        %v3268 = vmul.f32 %v3240, %v567
        %v3269 = vmul.f32 %v3246, %v567
        %v3270 = vmul.f32 %v3252, %v567
        %v3271 = vmul.f32 %v3258, %v567
        %v3272 = vmul.f32 %v3264, %v567
        %v3273 = vsub.f32 %v2965, %v3265
        %v3274 = vsub.f32 %v2967, %v3266
        %v3275 = vsub.f32 %v3047, %v3267
        %v3276 = vsub.f32 %v3049, %v3268
        %v3277 = vsub.f32 %v3129, %v3269
        %v3278 = vsub.f32 %v3131, %v3270
        %v3279 = vsub.f32 %v3211, %v3271
        %v3280 = vsub.f32 %v3213, %v3272
        %v3281 = vmul.f32 %v3273, %v3273
        %v3282 = vmul.f32 %v3274, %v3274
        %v3283 = vmul.f32 %v3275, %v3275
        %v3284 = vmul.f32 %v3276, %v3276
        %v3285 = vmul.f32 %v3277, %v3277
        %v3286 = vmul.f32 %v3278, %v3278
        %v3287 = vmul.f32 %v3279, %v3279
        %v3288 = vmul.f32 %v3280, %v3280
        %v3289 = vrot.slane %v3281, 4
        %v3290 = vadd.f32 %v3281, %v3289
        %v3291 = vrot.slane %v3290, 2
        %v3292 = vadd.f32 %v3290, %v3291
        %v3293 = vrot.slane %v3292, 1
        %v3294 = vadd.f32 %v3292, %v3293
        %v3295 = vrot.slane %v3282, 4
        %v3296 = vadd.f32 %v3282, %v3295
        %v3297 = vrot.slane %v3296, 2
        %v3298 = vadd.f32 %v3296, %v3297
        %v3299 = vrot.slane %v3298, 1
        %v3300 = vadd.f32 %v3298, %v3299
        %v3301 = vrot.slane %v3283, 4
        %v3302 = vadd.f32 %v3283, %v3301
        %v3303 = vrot.slane %v3302, 2
        %v3304 = vadd.f32 %v3302, %v3303
        %v3305 = vrot.slane %v3304, 1
        %v3306 = vadd.f32 %v3304, %v3305
        %v3307 = vrot.slane %v3284, 4
        %v3308 = vadd.f32 %v3284, %v3307
        %v3309 = vrot.slane %v3308, 2
        %v3310 = vadd.f32 %v3308, %v3309
        %v3311 = vrot.slane %v3310, 1
        %v3312 = vadd.f32 %v3310, %v3311
        %v3313 = vrot.slane %v3285, 4
        %v3314 = vadd.f32 %v3285, %v3313
        %v3315 = vrot.slane %v3314, 2
        %v3316 = vadd.f32 %v3314, %v3315
        %v3317 = vrot.slane %v3316, 1
        %v3318 = vadd.f32 %v3316, %v3317
        %v3319 = vrot.slane %v3286, 4
        %v3320 = vadd.f32 %v3286, %v3319
        %v3321 = vrot.slane %v3320, 2
        %v3322 = vadd.f32 %v3320, %v3321
        %v3323 = vrot.slane %v3322, 1
        %v3324 = vadd.f32 %v3322, %v3323
        %v3325 = vrot.slane %v3287, 4
        %v3326 = vadd.f32 %v3287, %v3325
        %v3327 = vrot.slane %v3326, 2
        %v3328 = vadd.f32 %v3326, %v3327
        %v3329 = vrot.slane %v3328, 1
        %v3330 = vadd.f32 %v3328, %v3329
        %v3331 = vrot.slane %v3288, 4
        %v3332 = vadd.f32 %v3288, %v3331
        %v3333 = vrot.slane %v3332, 2
        %v3334 = vadd.f32 %v3332, %v3333
        %v3335 = vrot.slane %v3334, 1
        %v3336 = vadd.f32 %v3334, %v3335
        %v3337 = vmul.f32 %v3294, %v567
        %v3338 = vmul.f32 %v3300, %v567
        %v3339 = vmul.f32 %v3306, %v567
        %v3340 = vmul.f32 %v3312, %v567
        %v3341 = vmul.f32 %v3318, %v567
        %v3342 = vmul.f32 %v3324, %v567
        %v3343 = vmul.f32 %v3330, %v567
        %v3344 = vmul.f32 %v3336, %v567
        %v3345 = vadd.f32 %v3337, 0.8
        %v3346 = vadd.f32 %v3338, 0.8
        %v3347 = vadd.f32 %v3339, 0.8
        %v3348 = vadd.f32 %v3340, 0.8
        %v3349 = vadd.f32 %v3341, 0.8
        %v3350 = vadd.f32 %v3342, 0.8
        %v3351 = vadd.f32 %v3343, 0.8
        %v3352 = vadd.f32 %v3344, 0.8
        %v3353 = vrsqrt.pop %v3345
        %v3354 = vrsqrt.pop %v3346
        %v3355 = vrsqrt.pop %v3347
        %v3356 = vrsqrt.pop %v3348
        %v3357 = vrsqrt.pop %v3349
        %v3358 = vrsqrt.pop %v3350
        %v3359 = vrsqrt.pop %v3351
        %v3360 = vrsqrt.pop %v3352
        %v3369 = vcombine.low %v3353, %v3354
        %v3370 = vcombine.low %v3355, %v3356
        %v3372 = vunpack.c.l.s4 1983009808
        %v3373 = vunpack.c.0.s8 %v3372
        %v3374 = vlaneseq
        %v3375 = vshrl.u32 %v3374, 7
        %v3376 = vsub.s32 %v3373, %v3375
        %v3377 = vrot.slane %v3369, %v3376
        %v3379 = vunpack.c.l.s4 1983009808
        %v3380 = vunpack.c.0.s8 %v3379
        %v3381 = vlaneseq
        %v3382 = vshrl.u32 %v3381, 7
        %v3383 = vsub.s32 %v3380, %v3382
        %v3384 = vrot.slane %v3370, %v3383
        %v3385 = vcombine.low %v3377, %v3384
        %v3386 = vcombine.low %v3357, %v3358
        %v3387 = vcombine.low %v3359, %v3360
        %v3389 = vunpack.c.l.s4 1983009808
        %v3390 = vunpack.c.0.s8 %v3389
        %v3391 = vlaneseq
        %v3392 = vshrl.u32 %v3391, 7
        %v3393 = vsub.s32 %v3390, %v3392
        %v3394 = vrot.slane %v3386, %v3393
        %v3396 = vunpack.c.l.s4 1983009808
        %v3397 = vunpack.c.0.s8 %v3396
        %v3398 = vlaneseq
        %v3399 = vshrl.u32 %v3398, 7
        %v3400 = vsub.s32 %v3397, %v3399
        %v3401 = vrot.slane %v3387, %v3400
        %v3402 = vcombine.low %v3394, %v3401
        %v3405 = vmul.f32 %v1603, %v3385
        %v3406 = vmul.f32 %v1604, %v3402
        %v3409 = vlaneseq
        %v3410 = vshrl.u32 %v3409, 7
        %v3411 = vsub.s32 0, %v3410
        %v3412 = vrot.slane %v3405, %v3411
        %v3413 = vlaneseq
        %v3414 = vshrl.u32 %v3413, 7
        %v3415 = vsub.s32 2, %v3414
        %v3416 = vrot.slane %v3405, %v3415
        %v3417 = vlaneseq
        %v3418 = vshrl.u32 %v3417, 7
        %v3419 = vsub.s32 4, %v3418
        %v3420 = vrot.slane %v3405, %v3419
        %v3421 = vlaneseq
        %v3422 = vshrl.u32 %v3421, 7
        %v3423 = vsub.s32 6, %v3422
        %v3424 = vrot.slane %v3405, %v3423
        %v3425 = vlaneseq
        %v3426 = vshrl.u32 %v3425, 7
        %v3427 = vsub.s32 0, %v3426
        %v3428 = vrot.slane %v3406, %v3427
        %v3429 = vlaneseq
        %v3430 = vshrl.u32 %v3429, 7
        %v3431 = vsub.s32 2, %v3430
        %v3432 = vrot.slane %v3406, %v3431
        %v3433 = vlaneseq
        %v3434 = vshrl.u32 %v3433, 7
        %v3435 = vsub.s32 4, %v3434
        %v3436 = vrot.slane %v3406, %v3435
        %v3437 = vlaneseq
        %v3438 = vshrl.u32 %v3437, 7
        %v3439 = vsub.s32 6, %v3438
        %v3440 = vrot.slane %v3406, %v3439
        %v3449 = vmul.f32 %v3265, %v3412
        %v3450 = vmul.f32 %v3266, %v3416
        %v3451 = vmul.f32 %v3267, %v3420
        %v3452 = vmul.f32 %v3268, %v3424
        %v3453 = vmul.f32 %v3269, %v3428
        %v3454 = vmul.f32 %v3270, %v3432
        %v3455 = vmul.f32 %v3271, %v3436
        %v3456 = vmul.f32 %v3272, %v3440
        %v3465 = vcombine.low %v3449, %v3450
        %v3466 = vcombine.low %v3451, %v3452
        %v3468 = vunpack.c.l.s4 1983009808
        %v3469 = vunpack.c.0.s8 %v3468
        %v3470 = vlaneseq
        %v3471 = vshrl.u32 %v3470, 7
        %v3472 = vsub.s32 %v3469, %v3471
        %v3473 = vrot.slane %v3465, %v3472
        %v3475 = vunpack.c.l.s4 1983009808
        %v3476 = vunpack.c.0.s8 %v3475
        %v3477 = vlaneseq
        %v3478 = vshrl.u32 %v3477, 7
        %v3479 = vsub.s32 %v3476, %v3478
        %v3480 = vrot.slane %v3466, %v3479
        %v3481 = vcombine.low %v3473, %v3480
        %v3482 = vcombine.low %v3453, %v3454
        %v3483 = vcombine.low %v3455, %v3456
        %v3485 = vunpack.c.l.s4 1983009808
        %v3486 = vunpack.c.0.s8 %v3485
        %v3487 = vlaneseq
        %v3488 = vshrl.u32 %v3487, 7
        %v3489 = vsub.s32 %v3486, %v3488
        %v3490 = vrot.slane %v3482, %v3489
        %v3492 = vunpack.c.l.s4 1983009808
        %v3493 = vunpack.c.0.s8 %v3492
        %v3494 = vlaneseq
        %v3495 = vshrl.u32 %v3494, 7
        %v3496 = vsub.s32 %v3493, %v3495
        %v3497 = vrot.slane %v3483, %v3496
        %v3498 = vcombine.low %v3490, %v3497
        %v3499 = vrot.slane %v3481, 7
        %v3500 = vrot.slane %v3498, 7
        %v3503 = vsub.f32 %v1603, %v3499
        %v3504 = vsub.f32 %v1604, %v3500
        %v3505 = vlaneseq
        %v3506 = vshrl.u32 %v3505, 7
        %v3507 = vsub.s32 0, %v3506
        %v3508 = vrot.slane %v3412, %v3507
        %v3509 = vlaneseq
        %v3510 = vshrl.u32 %v3509, 7
        %v3511 = vsub.s32 0, %v3510
        %v3512 = vrot.slane %v3416, %v3511
        %v3513 = vlaneseq
        %v3514 = vshrl.u32 %v3513, 7
        %v3515 = vsub.s32 0, %v3514
        %v3516 = vrot.slane %v3420, %v3515
        %v3517 = vlaneseq
        %v3518 = vshrl.u32 %v3517, 7
        %v3519 = vsub.s32 0, %v3518
        %v3520 = vrot.slane %v3424, %v3519
        %v3521 = vlaneseq
        %v3522 = vshrl.u32 %v3521, 7
        %v3523 = vsub.s32 0, %v3522
        %v3524 = vrot.slane %v3428, %v3523
        %v3525 = vlaneseq
        %v3526 = vshrl.u32 %v3525, 7
        %v3527 = vsub.s32 0, %v3526
        %v3528 = vrot.slane %v3432, %v3527
        %v3529 = vlaneseq
        %v3530 = vshrl.u32 %v3529, 7
        %v3531 = vsub.s32 0, %v3530
        %v3532 = vrot.slane %v3436, %v3531
        %v3533 = vlaneseq
        %v3534 = vshrl.u32 %v3533, 7
        %v3535 = vsub.s32 0, %v3534
        %v3536 = vrot.slane %v3440, %v3535
        %v3537 = vmul.f32 %v2965, %v3508
        %v3538 = vmul.f32 %v2967, %v3512
        %v3539 = vmul.f32 %v3047, %v3516
        %v3540 = vmul.f32 %v3049, %v3520
        %v3541 = vmul.f32 %v3129, %v3524
        %v3542 = vmul.f32 %v3131, %v3528
        %v3543 = vmul.f32 %v3211, %v3532
        %v3544 = vmul.f32 %v3213, %v3536
        %v3547 = vlaneseq
        %v3548 = vshrl.u32 %v3547, 7
        %v3549 = vsub.s32 1, %v3548
        %v3550 = vrot.slane %v3503, %v3549
        %v3551 = vlaneseq
        %v3552 = vshrl.u32 %v3551, 7
        %v3553 = vsub.s32 3, %v3552
        %v3554 = vrot.slane %v3503, %v3553
        %v3555 = vlaneseq
        %v3556 = vshrl.u32 %v3555, 7
        %v3557 = vsub.s32 5, %v3556
        %v3558 = vrot.slane %v3503, %v3557
        %v3559 = vlaneseq
        %v3560 = vshrl.u32 %v3559, 7
        %v3561 = vsub.s32 7, %v3560
        %v3562 = vrot.slane %v3503, %v3561
        %v3563 = vlaneseq
        %v3564 = vshrl.u32 %v3563, 7
        %v3565 = vsub.s32 1, %v3564
        %v3566 = vrot.slane %v3504, %v3565
        %v3567 = vlaneseq
        %v3568 = vshrl.u32 %v3567, 7
        %v3569 = vsub.s32 3, %v3568
        %v3570 = vrot.slane %v3504, %v3569
        %v3571 = vlaneseq
        %v3572 = vshrl.u32 %v3571, 7
        %v3573 = vsub.s32 5, %v3572
        %v3574 = vrot.slane %v3504, %v3573
        %v3575 = vlaneseq
        %v3576 = vshrl.u32 %v3575, 7
        %v3577 = vsub.s32 7, %v3576
        %v3578 = vrot.slane %v3504, %v3577
        %v3587 = vlaneseq
        %v3588 = vshrl.u32 %v3587, 7
        %v3589 = vsub.s32 1, %v3588
        %v3590 = vrot.slane %v3550, %v3589
        %v3591 = vlaneseq
        %v3592 = vshrl.u32 %v3591, 7
        %v3593 = vsub.s32 1, %v3592
        %v3594 = vrot.slane %v3554, %v3593
        %v3595 = vlaneseq
        %v3596 = vshrl.u32 %v3595, 7
        %v3597 = vsub.s32 1, %v3596
        %v3598 = vrot.slane %v3558, %v3597
        %v3599 = vlaneseq
        %v3600 = vshrl.u32 %v3599, 7
        %v3601 = vsub.s32 1, %v3600
        %v3602 = vrot.slane %v3562, %v3601
        %v3603 = vlaneseq
        %v3604 = vshrl.u32 %v3603, 7
        %v3605 = vsub.s32 1, %v3604
        %v3606 = vrot.slane %v3566, %v3605
        %v3607 = vlaneseq
        %v3608 = vshrl.u32 %v3607, 7
        %v3609 = vsub.s32 1, %v3608
        %v3610 = vrot.slane %v3570, %v3609
        %v3611 = vlaneseq
        %v3612 = vshrl.u32 %v3611, 7
        %v3613 = vsub.s32 1, %v3612
        %v3614 = vrot.slane %v3574, %v3613
        %v3615 = vlaneseq
        %v3616 = vshrl.u32 %v3615, 7
        %v3617 = vsub.s32 1, %v3616
        %v3618 = vrot.slane %v3578, %v3617
        %v3619 = vadd.f32 %v3537, %v3590
        %v3620 = vadd.f32 %v3538, %v3594
        %v3621 = vadd.f32 %v3539, %v3598
        %v3622 = vadd.f32 %v3540, %v3602
        %v3623 = vadd.f32 %v3541, %v3606
        %v3624 = vadd.f32 %v3542, %v3610
        %v3625 = vadd.f32 %v3543, %v3614
        %v3626 = vadd.f32 %v3544, %v3618
        %v3627 = vmul.f32 %v3619, 0.2
        %v3628 = vmul.f32 %v3620, 0.2
        %v3629 = vmul.f32 %v3621, 0.2
        %v3630 = vmul.f32 %v3622, 0.2
        %v3631 = vmul.f32 %v3623, 0.2
        %v3632 = vmul.f32 %v3624, 0.2
        %v3633 = vmul.f32 %v3625, 0.2
        %v3634 = vmul.f32 %v3626, 0.2
        %v3635 = vmax.f32 %v3619, %v3627
        %v3636 = vmax.f32 %v3620, %v3628
        %v3637 = vmax.f32 %v3621, %v3629
        %v3638 = vmax.f32 %v3622, %v3630
        %v3639 = vmax.f32 %v3623, %v3631
        %v3640 = vmax.f32 %v3624, %v3632
        %v3641 = vmax.f32 %v3625, %v3633
        %v3642 = vmax.f32 %v3626, %v3634
        %v3643 = vld [vmem:[%s431] sm:$0xff]
        %v3644 = vld [vmem:[%s431 + $0x8] sm:$0xff]
        %v3645 = vld [vmem:[%s431 + $0x10] sm:$0xff]
        %v3646 = vld [vmem:[%s431 + $0x18] sm:$0xff]
        %v3647 = vld [vmem:[%s431 + $0x20] sm:$0xff]
        %v3648 = vld [vmem:[%s431 + $0x28] sm:$0xff]
        %v3649 = vld [vmem:[%s431 + $0x30] sm:$0xff]
        %v3650 = vld [vmem:[%s431 + $0x38] sm:$0xff]
        %v3651 = vld [vmem:[%s431 + $0x40] sm:$0xff]
        %v3652 = vld [vmem:[%s431 + $0x48] sm:$0xff]
        %v3653 = vld [vmem:[%s431 + $0x50] sm:$0xff]
        %v3654 = vld [vmem:[%s431 + $0x58] sm:$0xff]
        %v3655 = vld [vmem:[%s431 + $0x60] sm:$0xff]
        %v3656 = vld [vmem:[%s431 + $0x68] sm:$0xff]
        %v3657 = vld [vmem:[%s431 + $0x70] sm:$0xff]
        %v3658 = vld [vmem:[%s431 + $0x78] sm:$0xff]
        %v3659 = vld [vmem:[%s431 + $0x80] sm:$0xff]
        %v3660 = vld [vmem:[%s431 + $0x88] sm:$0xff]
        %v3661 = vld [vmem:[%s431 + $0x90] sm:$0xff]
        %v3662 = vld [vmem:[%s431 + $0x98] sm:$0xff]
        %v3663 = vld [vmem:[%s431 + $0xa0] sm:$0xff]
        %v3664 = vld [vmem:[%s431 + $0xa8] sm:$0xff]
        %v3665 = vld [vmem:[%s431 + $0xb0] sm:$0xff]
        %v3666 = vld [vmem:[%s431 + $0xb8] sm:$0xff]
        %v3667 = vld [vmem:[%s431 + $0xc0] sm:$0xff]
        %v3668 = vld [vmem:[%s431 + $0xc8] sm:$0xff]
        %v3669 = vld [vmem:[%s431 + $0xd0] sm:$0xff]
        %v3670 = vld [vmem:[%s431 + $0xd8] sm:$0xff]
        %v3671 = vld [vmem:[%s431 + $0xe0] sm:$0xff]
        %v3672 = vld [vmem:[%s431 + $0xe8] sm:$0xff]
        %v3673 = vld [vmem:[%s431 + $0xf0] sm:$0xff]
        %v3674 = vld [vmem:[%s431 + $0xf8] sm:$0xff]
        %v3675 = vld [vmem:[%s431 + $0x100] sm:$0xff]
        %v3676 = vld [vmem:[%s431 + $0x108] sm:$0xff]
        %v3677 = vld [vmem:[%s431 + $0x110] sm:$0xff]
        %v3678 = vld [vmem:[%s431 + $0x118] sm:$0xff]
        %v3679 = vld [vmem:[%s431 + $0x120] sm:$0xff]
        %v3680 = vld [vmem:[%s431 + $0x128] sm:$0xff]
        %v3681 = vld [vmem:[%s431 + $0x130] sm:$0xff]
        %v3682 = vld [vmem:[%s431 + $0x138] sm:$0xff]
        %v3683 = vld [vmem:[%s431 + $0x140] sm:$0xff]
        %v3684 = vld [vmem:[%s431 + $0x148] sm:$0xff]
        %v3685 = vld [vmem:[%s431 + $0x150] sm:$0xff]
        %v3686 = vld [vmem:[%s431 + $0x158] sm:$0xff]
        %v3687 = vld [vmem:[%s431 + $0x160] sm:$0xff]
        %v3688 = vld [vmem:[%s431 + $0x168] sm:$0xff]
        %v3689 = vld [vmem:[%s431 + $0x170] sm:$0xff]
        %v3690 = vld [vmem:[%s431 + $0x178] sm:$0xff]
        %v3691 = vld [vmem:[%s431 + $0x180] sm:$0xff]
        %v3692 = vld [vmem:[%s431 + $0x188] sm:$0xff]
        %v3693 = vld [vmem:[%s431 + $0x190] sm:$0xff]
        %v3694 = vld [vmem:[%s431 + $0x198] sm:$0xff]
        %v3695 = vld [vmem:[%s431 + $0x1a0] sm:$0xff]
        %v3696 = vld [vmem:[%s431 + $0x1a8] sm:$0xff]
        %v3697 = vld [vmem:[%s431 + $0x1b0] sm:$0xff]
        %v3698 = vld [vmem:[%s431 + $0x1b8] sm:$0xff]
        %v3699 = vld [vmem:[%s431 + $0x1c0] sm:$0xff]
        %v3700 = vld [vmem:[%s431 + $0x1c8] sm:$0xff]
        %v3701 = vld [vmem:[%s431 + $0x1d0] sm:$0xff]
        %v3702 = vld [vmem:[%s431 + $0x1d8] sm:$0xff]
        %v3703 = vld [vmem:[%s431 + $0x1e0] sm:$0xff]
        %v3704 = vld [vmem:[%s431 + $0x1e8] sm:$0xff]
        %v3705 = vld [vmem:[%s431 + $0x1f0] sm:$0xff]
        %v3706 = vld [vmem:[%s431 + $0x1f8] sm:$0xff]
        %v3707 = vld [vmem:[%s431 + $0x200] sm:$0xff]
        %v3708 = vld [vmem:[%s431 + $0x208] sm:$0xff]
        %v3709 = vld [vmem:[%s431 + $0x210] sm:$0xff]
        %v3710 = vld [vmem:[%s431 + $0x218] sm:$0xff]
        %v3711 = vld [vmem:[%s431 + $0x220] sm:$0xff]
        %v3712 = vld [vmem:[%s431 + $0x228] sm:$0xff]
        %v3713 = vld [vmem:[%s431 + $0x230] sm:$0xff]
        %v3714 = vld [vmem:[%s431 + $0x238] sm:$0xff]
        %v3715 = vld [vmem:[%s431 + $0x240] sm:$0xff]
        %v3716 = vld [vmem:[%s431 + $0x248] sm:$0xff]
        %v3717 = vld [vmem:[%s431 + $0x250] sm:$0xff]
        %v3718 = vld [vmem:[%s431 + $0x258] sm:$0xff]
        %v3719 = vld [vmem:[%s431 + $0x260] sm:$0xff]
        %v3720 = vld [vmem:[%s431 + $0x268] sm:$0xff]
        %v3721 = vld [vmem:[%s431 + $0x270] sm:$0xff]
        %v3722 = vld [vmem:[%s431 + $0x278] sm:$0xff]
        %v3723 = vld [vmem:[%s431 + $0x280] sm:$0xff]
        %v3724 = vld [vmem:[%s431 + $0x288] sm:$0xff]
        %v3725 = vld [vmem:[%s431 + $0x290] sm:$0xff]
        %v3726 = vld [vmem:[%s431 + $0x298] sm:$0xff]
        %v3727 = vld [vmem:[%s431 + $0x2a0] sm:$0xff]
        %v3728 = vld [vmem:[%s431 + $0x2a8] sm:$0xff]
        %v3729 = vld [vmem:[%s431 + $0x2b0] sm:$0xff]
        %v3730 = vld [vmem:[%s431 + $0x2b8] sm:$0xff]
        %v3731 = vld [vmem:[%s431 + $0x2c0] sm:$0xff]
        %v3732 = vld [vmem:[%s431 + $0x2c8] sm:$0xff]
        %v3733 = vld [vmem:[%s431 + $0x2d0] sm:$0xff]
        %v3734 = vld [vmem:[%s431 + $0x2d8] sm:$0xff]
        %v3735 = vld [vmem:[%s431 + $0x2e0] sm:$0xff]
        %v3736 = vld [vmem:[%s431 + $0x2e8] sm:$0xff]
        %v3737 = vld [vmem:[%s431 + $0x2f0] sm:$0xff]
        %v3738 = vld [vmem:[%s431 + $0x2f8] sm:$0xff]
        %v3739 = vld [vmem:[%s431 + $0x300] sm:$0xff]
        %v3740 = vld [vmem:[%s431 + $0x308] sm:$0xff]
        %v3741 = vld [vmem:[%s431 + $0x310] sm:$0xff]
        %v3742 = vld [vmem:[%s431 + $0x318] sm:$0xff]
        %v3743 = vld [vmem:[%s431 + $0x320] sm:$0xff]
        %v3744 = vld [vmem:[%s431 + $0x328] sm:$0xff]
        %v3745 = vld [vmem:[%s431 + $0x330] sm:$0xff]
        %v3746 = vld [vmem:[%s431 + $0x338] sm:$0xff]
        %v3747 = vld [vmem:[%s431 + $0x340] sm:$0xff]
        %v3748 = vld [vmem:[%s431 + $0x348] sm:$0xff]
        %v3749 = vld [vmem:[%s431 + $0x350] sm:$0xff]
        %v3750 = vld [vmem:[%s431 + $0x358] sm:$0xff]
        %v3751 = vld [vmem:[%s431 + $0x360] sm:$0xff]
        %v3752 = vld [vmem:[%s431 + $0x368] sm:$0xff]
        %v3753 = vld [vmem:[%s431 + $0x370] sm:$0xff]
        %v3754 = vld [vmem:[%s431 + $0x378] sm:$0xff]
        %v3755 = vld [vmem:[%s431 + $0x380] sm:$0xff]
        %v3756 = vld [vmem:[%s431 + $0x388] sm:$0xff]
        %v3757 = vld [vmem:[%s431 + $0x390] sm:$0xff]
        %v3758 = vld [vmem:[%s431 + $0x398] sm:$0xff]
        %v3759 = vld [vmem:[%s431 + $0x3a0] sm:$0xff]
        %v3760 = vld [vmem:[%s431 + $0x3a8] sm:$0xff]
        %v3761 = vld [vmem:[%s431 + $0x3b0] sm:$0xff]
        %v3762 = vld [vmem:[%s431 + $0x3b8] sm:$0xff]
        %v3763 = vld [vmem:[%s431 + $0x3c0] sm:$0xff]
        %v3764 = vld [vmem:[%s431 + $0x3c8] sm:$0xff]
        %v3765 = vld [vmem:[%s431 + $0x3d0] sm:$0xff]
        %v3766 = vld [vmem:[%s431 + $0x3d8] sm:$0xff]
        %v3767 = vld [vmem:[%s431 + $0x3e0] sm:$0xff]
        %v3768 = vld [vmem:[%s431 + $0x3e8] sm:$0xff]
        %v3769 = vld [vmem:[%s431 + $0x3f0] sm:$0xff]
        %v3770 = vld [vmem:[%s431 + $0x3f8] sm:$0xff]
        %v3771 = vld [vmem:[%s431 + $0x400] sm:$0xff]
        %v3772 = vld [vmem:[%s431 + $0x408] sm:$0xff]
        %v3773 = vld [vmem:[%s431 + $0x410] sm:$0xff]
        %v3774 = vld [vmem:[%s431 + $0x418] sm:$0xff]
        %v3775 = vld [vmem:[%s431 + $0x420] sm:$0xff]
        %v3776 = vld [vmem:[%s431 + $0x428] sm:$0xff]
        %v3777 = vld [vmem:[%s431 + $0x430] sm:$0xff]
        %v3778 = vld [vmem:[%s431 + $0x438] sm:$0xff]
        %v3779 = vld [vmem:[%s431 + $0x440] sm:$0xff]
        %v3780 = vld [vmem:[%s431 + $0x448] sm:$0xff]
        %v3781 = vld [vmem:[%s431 + $0x450] sm:$0xff]
        %v3782 = vld [vmem:[%s431 + $0x458] sm:$0xff]
        %v3783 = vld [vmem:[%s431 + $0x460] sm:$0xff]
        %v3784 = vld [vmem:[%s431 + $0x468] sm:$0xff]
        %v3785 = vld [vmem:[%s431 + $0x470] sm:$0xff]
        %v3786 = vld [vmem:[%s431 + $0x478] sm:$0xff]
        %v3787 = vld [vmem:[%s431 + $0x480] sm:$0xff]
        %v3788 = vld [vmem:[%s431 + $0x488] sm:$0xff]
        %v3789 = vld [vmem:[%s431 + $0x490] sm:$0xff]
        %v3790 = vld [vmem:[%s431 + $0x498] sm:$0xff]
        %v3791 = vld [vmem:[%s431 + $0x4a0] sm:$0xff]
        %v3792 = vld [vmem:[%s431 + $0x4a8] sm:$0xff]
        %v3793 = vld [vmem:[%s431 + $0x4b0] sm:$0xff]
        %v3794 = vld [vmem:[%s431 + $0x4b8] sm:$0xff]
        %v3795 = vld [vmem:[%s431 + $0x4c0] sm:$0xff]
        %v3796 = vld [vmem:[%s431 + $0x4c8] sm:$0xff]
        %v3797 = vld [vmem:[%s431 + $0x4d0] sm:$0xff]
        %v3798 = vld [vmem:[%s431 + $0x4d8] sm:$0xff]
        %v3799 = vld [vmem:[%s431 + $0x4e0] sm:$0xff]
        %v3800 = vld [vmem:[%s431 + $0x4e8] sm:$0xff]
        %v3801 = vld [vmem:[%s431 + $0x4f0] sm:$0xff]
        %v3802 = vld [vmem:[%s431 + $0x4f8] sm:$0xff]
        %v3803 = vld [vmem:[%s431 + $0x500] sm:$0xff]
        %v3804 = vld [vmem:[%s431 + $0x508] sm:$0xff]
        %v3805 = vld [vmem:[%s431 + $0x510] sm:$0xff]
        %v3806 = vld [vmem:[%s431 + $0x518] sm:$0xff]
        %v3807 = vld [vmem:[%s431 + $0x520] sm:$0xff]
        %v3808 = vld [vmem:[%s431 + $0x528] sm:$0xff]
        %v3809 = vld [vmem:[%s431 + $0x530] sm:$0xff]
        %v3810 = vld [vmem:[%s431 + $0x538] sm:$0xff]
        %v3811 = vld [vmem:[%s431 + $0x540] sm:$0xff]
        %v3812 = vld [vmem:[%s431 + $0x548] sm:$0xff]
        %v3813 = vld [vmem:[%s431 + $0x550] sm:$0xff]
        %v3814 = vld [vmem:[%s431 + $0x558] sm:$0xff]
        %v3815 = vld [vmem:[%s431 + $0x560] sm:$0xff]
        %v3816 = vld [vmem:[%s431 + $0x568] sm:$0xff]
        %v3817 = vld [vmem:[%s431 + $0x570] sm:$0xff]
        %v3818 = vld [vmem:[%s431 + $0x578] sm:$0xff]
        %v3819 = vld [vmem:[%s431 + $0x580] sm:$0xff]
        %v3820 = vld [vmem:[%s431 + $0x588] sm:$0xff]
        %v3821 = vld [vmem:[%s431 + $0x590] sm:$0xff]
        %v3822 = vld [vmem:[%s431 + $0x598] sm:$0xff]
        %v3823 = vld [vmem:[%s431 + $0x5a0] sm:$0xff]
        %v3824 = vld [vmem:[%s431 + $0x5a8] sm:$0xff]
        %v3825 = vld [vmem:[%s431 + $0x5b0] sm:$0xff]
        %v3826 = vld [vmem:[%s431 + $0x5b8] sm:$0xff]
        %v3827 = vld [vmem:[%s431 + $0x5c0] sm:$0xff]
        %v3828 = vld [vmem:[%s431 + $0x5c8] sm:$0xff]
        %v3829 = vld [vmem:[%s431 + $0x5d0] sm:$0xff]
        %v3830 = vld [vmem:[%s431 + $0x5d8] sm:$0xff]
        %v3831 = vld [vmem:[%s431 + $0x5e0] sm:$0xff]
        %v3832 = vld [vmem:[%s431 + $0x5e8] sm:$0xff]
        %v3833 = vld [vmem:[%s431 + $0x5f0] sm:$0xff]
        %v3834 = vld [vmem:[%s431 + $0x5f8] sm:$0xff]
        %v3835 = vld [vmem:[%s431 + $0x600] sm:$0xff]
        %v3836 = vld [vmem:[%s431 + $0x608] sm:$0xff]
        %v3837 = vld [vmem:[%s431 + $0x610] sm:$0xff]
        %v3838 = vld [vmem:[%s431 + $0x618] sm:$0xff]
        %v3839 = vld [vmem:[%s431 + $0x620] sm:$0xff]
        %v3840 = vld [vmem:[%s431 + $0x628] sm:$0xff]
        %v3841 = vld [vmem:[%s431 + $0x630] sm:$0xff]
        %v3842 = vld [vmem:[%s431 + $0x638] sm:$0xff]
        %v3843 = vld [vmem:[%s431 + $0x640] sm:$0xff]
        %v3844 = vld [vmem:[%s431 + $0x648] sm:$0xff]
        %v3845 = vld [vmem:[%s431 + $0x650] sm:$0xff]
        %v3846 = vld [vmem:[%s431 + $0x658] sm:$0xff]
        %v3847 = vld [vmem:[%s431 + $0x660] sm:$0xff]
        %v3848 = vld [vmem:[%s431 + $0x668] sm:$0xff]
        %v3849 = vld [vmem:[%s431 + $0x670] sm:$0xff]
        %v3850 = vld [vmem:[%s431 + $0x678] sm:$0xff]
        %v3851 = vld [vmem:[%s431 + $0x680] sm:$0xff]
        %v3852 = vld [vmem:[%s431 + $0x688] sm:$0xff]
        %v3853 = vld [vmem:[%s431 + $0x690] sm:$0xff]
        %v3854 = vld [vmem:[%s431 + $0x698] sm:$0xff]
        %v3855 = vld [vmem:[%s431 + $0x6a0] sm:$0xff]
        %v3856 = vld [vmem:[%s431 + $0x6a8] sm:$0xff]
        %v3857 = vld [vmem:[%s431 + $0x6b0] sm:$0xff]
        %v3858 = vld [vmem:[%s431 + $0x6b8] sm:$0xff]
        %v3859 = vld [vmem:[%s431 + $0x6c0] sm:$0xff]
        %v3860 = vld [vmem:[%s431 + $0x6c8] sm:$0xff]
        %v3861 = vld [vmem:[%s431 + $0x6d0] sm:$0xff]
        %v3862 = vld [vmem:[%s431 + $0x6d8] sm:$0xff]
        %v3863 = vld [vmem:[%s431 + $0x6e0] sm:$0xff]
        %v3864 = vld [vmem:[%s431 + $0x6e8] sm:$0xff]
        %v3865 = vld [vmem:[%s431 + $0x6f0] sm:$0xff]
        %v3866 = vld [vmem:[%s431 + $0x6f8] sm:$0xff]
        %v3867 = vld [vmem:[%s431 + $0x700] sm:$0xff]
        %v3868 = vld [vmem:[%s431 + $0x708] sm:$0xff]
        %v3869 = vld [vmem:[%s431 + $0x710] sm:$0xff]
        %v3870 = vld [vmem:[%s431 + $0x718] sm:$0xff]
        %v3871 = vld [vmem:[%s431 + $0x720] sm:$0xff]
        %v3872 = vld [vmem:[%s431 + $0x728] sm:$0xff]
        %v3873 = vld [vmem:[%s431 + $0x730] sm:$0xff]
        %v3874 = vld [vmem:[%s431 + $0x738] sm:$0xff]
        %v3875 = vld [vmem:[%s431 + $0x740] sm:$0xff]
        %v3876 = vld [vmem:[%s431 + $0x748] sm:$0xff]
        %v3877 = vld [vmem:[%s431 + $0x750] sm:$0xff]
        %v3878 = vld [vmem:[%s431 + $0x758] sm:$0xff]
        %v3879 = vld [vmem:[%s431 + $0x760] sm:$0xff]
        %v3880 = vld [vmem:[%s431 + $0x768] sm:$0xff]
        %v3881 = vld [vmem:[%s431 + $0x770] sm:$0xff]
        %v3882 = vld [vmem:[%s431 + $0x778] sm:$0xff]
        %v3883 = vld [vmem:[%s431 + $0x780] sm:$0xff]
        %v3884 = vld [vmem:[%s431 + $0x788] sm:$0xff]
        %v3885 = vld [vmem:[%s431 + $0x790] sm:$0xff]
        %v3886 = vld [vmem:[%s431 + $0x798] sm:$0xff]
        %v3887 = vld [vmem:[%s431 + $0x7a0] sm:$0xff]
        %v3888 = vld [vmem:[%s431 + $0x7a8] sm:$0xff]
        %v3889 = vld [vmem:[%s431 + $0x7b0] sm:$0xff]
        %v3890 = vld [vmem:[%s431 + $0x7b8] sm:$0xff]
        %v3891 = vld [vmem:[%s431 + $0x7c0] sm:$0xff]
        %v3892 = vld [vmem:[%s431 + $0x7c8] sm:$0xff]
        %v3893 = vld [vmem:[%s431 + $0x7d0] sm:$0xff]
        %v3894 = vld [vmem:[%s431 + $0x7d8] sm:$0xff]
        %v3895 = vld [vmem:[%s431 + $0x7e0] sm:$0xff]
        %v3896 = vld [vmem:[%s431 + $0x7e8] sm:$0xff]
        %v3897 = vld [vmem:[%s431 + $0x7f0] sm:$0xff]
        %v3898 = vld [vmem:[%s431 + $0x7f8] sm:$0xff]
        %v3899 = vld [vmem:[%s431 + $0x800] sm:$0xff]
        %v3900 = vld [vmem:[%s431 + $0x808] sm:$0xff]
        %v3901 = vld [vmem:[%s431 + $0x810] sm:$0xff]
        %v3902 = vld [vmem:[%s431 + $0x818] sm:$0xff]
        %v3903 = vld [vmem:[%s431 + $0x820] sm:$0xff]
        %v3904 = vld [vmem:[%s431 + $0x828] sm:$0xff]
        %v3905 = vld [vmem:[%s431 + $0x830] sm:$0xff]
        %v3906 = vld [vmem:[%s431 + $0x838] sm:$0xff]
        %v3907 = vld [vmem:[%s431 + $0x840] sm:$0xff]
        %v3908 = vld [vmem:[%s431 + $0x848] sm:$0xff]
        %v3909 = vld [vmem:[%s431 + $0x850] sm:$0xff]
        %v3910 = vld [vmem:[%s431 + $0x858] sm:$0xff]
        %v3911 = vld [vmem:[%s431 + $0x860] sm:$0xff]
        %v3912 = vld [vmem:[%s431 + $0x868] sm:$0xff]
        %v3913 = vld [vmem:[%s431 + $0x870] sm:$0xff]
        %v3914 = vld [vmem:[%s431 + $0x878] sm:$0xff]
        %v3915 = vld [vmem:[%s431 + $0x880] sm:$0xff]
        %v3916 = vld [vmem:[%s431 + $0x888] sm:$0xff]
        %v3917 = vld [vmem:[%s431 + $0x890] sm:$0xff]
        %v3918 = vld [vmem:[%s431 + $0x898] sm:$0xff]
        %v3919 = vld [vmem:[%s431 + $0x8a0] sm:$0xff]
        %v3920 = vld [vmem:[%s431 + $0x8a8] sm:$0xff]
        %v3921 = vld [vmem:[%s431 + $0x8b0] sm:$0xff]
        %v3922 = vld [vmem:[%s431 + $0x8b8] sm:$0xff]
        %v3923 = vld [vmem:[%s431 + $0x8c0] sm:$0xff]
        %v3924 = vld [vmem:[%s431 + $0x8c8] sm:$0xff]
        %v3925 = vld [vmem:[%s431 + $0x8d0] sm:$0xff]
        %v3926 = vld [vmem:[%s431 + $0x8d8] sm:$0xff]
        %v3927 = vld [vmem:[%s431 + $0x8e0] sm:$0xff]
        %v3928 = vld [vmem:[%s431 + $0x8e8] sm:$0xff]
        %v3929 = vld [vmem:[%s431 + $0x8f0] sm:$0xff]
        %v3930 = vld [vmem:[%s431 + $0x8f8] sm:$0xff]
        %v3931 = vld [vmem:[%s431 + $0x900] sm:$0xff]
        %v3932 = vld [vmem:[%s431 + $0x908] sm:$0xff]
        %v3933 = vld [vmem:[%s431 + $0x910] sm:$0xff]
        %v3934 = vld [vmem:[%s431 + $0x918] sm:$0xff]
        %v3935 = vld [vmem:[%s431 + $0x920] sm:$0xff]
        %v3936 = vld [vmem:[%s431 + $0x928] sm:$0xff]
        %v3937 = vld [vmem:[%s431 + $0x930] sm:$0xff]
        %v3938 = vld [vmem:[%s431 + $0x938] sm:$0xff]
        %v3939 = vld [vmem:[%s431 + $0x940] sm:$0xff]
        %v3940 = vld [vmem:[%s431 + $0x948] sm:$0xff]
        %v3941 = vld [vmem:[%s431 + $0x950] sm:$0xff]
        %v3942 = vld [vmem:[%s431 + $0x958] sm:$0xff]
        %v3943 = vld [vmem:[%s431 + $0x960] sm:$0xff]
        %v3944 = vld [vmem:[%s431 + $0x968] sm:$0xff]
        %v3945 = vld [vmem:[%s431 + $0x970] sm:$0xff]
        %v3946 = vld [vmem:[%s431 + $0x978] sm:$0xff]
        %v3947 = vld [vmem:[%s431 + $0x980] sm:$0xff]
        %v3948 = vld [vmem:[%s431 + $0x988] sm:$0xff]
        %v3949 = vld [vmem:[%s431 + $0x990] sm:$0xff]
        %v3950 = vld [vmem:[%s431 + $0x998] sm:$0xff]
        %v3951 = vld [vmem:[%s431 + $0x9a0] sm:$0xff]
        %v3952 = vld [vmem:[%s431 + $0x9a8] sm:$0xff]
        %v3953 = vld [vmem:[%s431 + $0x9b0] sm:$0xff]
        %v3954 = vld [vmem:[%s431 + $0x9b8] sm:$0xff]
        %v3955 = vld [vmem:[%s431 + $0x9c0] sm:$0xff]
        %v3956 = vld [vmem:[%s431 + $0x9c8] sm:$0xff]
        %v3957 = vld [vmem:[%s431 + $0x9d0] sm:$0xff]
        %v3958 = vld [vmem:[%s431 + $0x9d8] sm:$0xff]
        %v3959 = vld [vmem:[%s431 + $0x9e0] sm:$0xff]
        %v3960 = vld [vmem:[%s431 + $0x9e8] sm:$0xff]
        %v3961 = vld [vmem:[%s431 + $0x9f0] sm:$0xff]
        %v3962 = vld [vmem:[%s431 + $0x9f8] sm:$0xff]
        %v3963 = vld [vmem:[%s431 + $0xa00] sm:$0xff]
        %v3964 = vld [vmem:[%s431 + $0xa08] sm:$0xff]
        %v3965 = vld [vmem:[%s431 + $0xa10] sm:$0xff]
        %v3966 = vld [vmem:[%s431 + $0xa18] sm:$0xff]
        %v3967 = vld [vmem:[%s431 + $0xa20] sm:$0xff]
        %v3968 = vld [vmem:[%s431 + $0xa28] sm:$0xff]
        %v3969 = vld [vmem:[%s431 + $0xa30] sm:$0xff]
        %v3970 = vld [vmem:[%s431 + $0xa38] sm:$0xff]
        %v3971 = vld [vmem:[%s431 + $0xa40] sm:$0xff]
        %v3972 = vld [vmem:[%s431 + $0xa48] sm:$0xff]
        %v3973 = vld [vmem:[%s431 + $0xa50] sm:$0xff]
        %v3974 = vld [vmem:[%s431 + $0xa58] sm:$0xff]
        %v3975 = vld [vmem:[%s431 + $0xa60] sm:$0xff]
        %v3976 = vld [vmem:[%s431 + $0xa68] sm:$0xff]
        %v3977 = vld [vmem:[%s431 + $0xa70] sm:$0xff]
        %v3978 = vld [vmem:[%s431 + $0xa78] sm:$0xff]
        %v3979 = vld [vmem:[%s431 + $0xa80] sm:$0xff]
        %v3980 = vld [vmem:[%s431 + $0xa88] sm:$0xff]
        %v3981 = vld [vmem:[%s431 + $0xa90] sm:$0xff]
        %v3982 = vld [vmem:[%s431 + $0xa98] sm:$0xff]
        %v3983 = vld [vmem:[%s431 + $0xaa0] sm:$0xff]
        %v3984 = vld [vmem:[%s431 + $0xaa8] sm:$0xff]
        %v3985 = vld [vmem:[%s431 + $0xab0] sm:$0xff]
        %v3986 = vld [vmem:[%s431 + $0xab8] sm:$0xff]
        %v3987 = vld [vmem:[%s431 + $0xac0] sm:$0xff]
        %v3988 = vld [vmem:[%s431 + $0xac8] sm:$0xff]
        %v3989 = vld [vmem:[%s431 + $0xad0] sm:$0xff]
        %v3990 = vld [vmem:[%s431 + $0xad8] sm:$0xff]
        %v3991 = vld [vmem:[%s431 + $0xae0] sm:$0xff]
        %v3992 = vld [vmem:[%s431 + $0xae8] sm:$0xff]
        %v3993 = vld [vmem:[%s431 + $0xaf0] sm:$0xff]
        %v3994 = vld [vmem:[%s431 + $0xaf8] sm:$0xff]
        %v3995 = vld [vmem:[%s431 + $0xb00] sm:$0xff]
        %v3996 = vld [vmem:[%s431 + $0xb08] sm:$0xff]
        %v3997 = vld [vmem:[%s431 + $0xb10] sm:$0xff]
        %v3998 = vld [vmem:[%s431 + $0xb18] sm:$0xff]
        %v3999 = vld [vmem:[%s431 + $0xb20] sm:$0xff]
        %v4000 = vld [vmem:[%s431 + $0xb28] sm:$0xff]
        %v4001 = vld [vmem:[%s431 + $0xb30] sm:$0xff]
        %v4002 = vld [vmem:[%s431 + $0xb38] sm:$0xff]
        %v4003 = vld [vmem:[%s431 + $0xb40] sm:$0xff]
        %v4004 = vld [vmem:[%s431 + $0xb48] sm:$0xff]
        %v4005 = vld [vmem:[%s431 + $0xb50] sm:$0xff]
        %v4006 = vld [vmem:[%s431 + $0xb58] sm:$0xff]
        %v4007 = vld [vmem:[%s431 + $0xb60] sm:$0xff]
        %v4008 = vld [vmem:[%s431 + $0xb68] sm:$0xff]
        %v4009 = vld [vmem:[%s431 + $0xb70] sm:$0xff]
        %v4010 = vld [vmem:[%s431 + $0xb78] sm:$0xff]
        %v4011 = vld [vmem:[%s431 + $0xb80] sm:$0xff]
        %v4012 = vld [vmem:[%s431 + $0xb88] sm:$0xff]
        %v4013 = vld [vmem:[%s431 + $0xb90] sm:$0xff]
        %v4014 = vld [vmem:[%s431 + $0xb98] sm:$0xff]
        %v4015 = vld [vmem:[%s431 + $0xba0] sm:$0xff]
        %v4016 = vld [vmem:[%s431 + $0xba8] sm:$0xff]
        %v4017 = vld [vmem:[%s431 + $0xbb0] sm:$0xff]
        %v4018 = vld [vmem:[%s431 + $0xbb8] sm:$0xff]
        %v4019 = vld [vmem:[%s431 + $0xbc0] sm:$0xff]
        %v4020 = vld [vmem:[%s431 + $0xbc8] sm:$0xff]
        %v4021 = vld [vmem:[%s431 + $0xbd0] sm:$0xff]
        %v4022 = vld [vmem:[%s431 + $0xbd8] sm:$0xff]
        %v4023 = vld [vmem:[%s431 + $0xbe0] sm:$0xff]
        %v4024 = vld [vmem:[%s431 + $0xbe8] sm:$0xff]
        %v4025 = vld [vmem:[%s431 + $0xbf0] sm:$0xff]
        %v4026 = vld [vmem:[%s431 + $0xbf8] sm:$0xff]
        %v4027 = vld [vmem:[%s431 + $0xc00] sm:$0xff]
        %v4028 = vld [vmem:[%s431 + $0xc08] sm:$0xff]
        %v4029 = vld [vmem:[%s431 + $0xc10] sm:$0xff]
        %v4030 = vld [vmem:[%s431 + $0xc18] sm:$0xff]
        %v4031 = vld [vmem:[%s431 + $0xc20] sm:$0xff]
        %v4032 = vld [vmem:[%s431 + $0xc28] sm:$0xff]
        %v4033 = vld [vmem:[%s431 + $0xc30] sm:$0xff]
        %v4034 = vld [vmem:[%s431 + $0xc38] sm:$0xff]
        %v4035 = vld [vmem:[%s431 + $0xc40] sm:$0xff]
        %v4036 = vld [vmem:[%s431 + $0xc48] sm:$0xff]
        %v4037 = vld [vmem:[%s431 + $0xc50] sm:$0xff]
        %v4038 = vld [vmem:[%s431 + $0xc58] sm:$0xff]
        %v4039 = vld [vmem:[%s431 + $0xc60] sm:$0xff]
        %v4040 = vld [vmem:[%s431 + $0xc68] sm:$0xff]
        %v4041 = vld [vmem:[%s431 + $0xc70] sm:$0xff]
        %v4042 = vld [vmem:[%s431 + $0xc78] sm:$0xff]
        %v4043 = vld [vmem:[%s431 + $0xc80] sm:$0xff]
        %v4044 = vld [vmem:[%s431 + $0xc88] sm:$0xff]
        %v4045 = vld [vmem:[%s431 + $0xc90] sm:$0xff]
        %v4046 = vld [vmem:[%s431 + $0xc98] sm:$0xff]
        %v4047 = vld [vmem:[%s431 + $0xca0] sm:$0xff]
        %v4048 = vld [vmem:[%s431 + $0xca8] sm:$0xff]
        %v4049 = vld [vmem:[%s431 + $0xcb0] sm:$0xff]
        %v4050 = vld [vmem:[%s431 + $0xcb8] sm:$0xff]
        %v4051 = vld [vmem:[%s431 + $0xcc0] sm:$0xff]
        %v4052 = vld [vmem:[%s431 + $0xcc8] sm:$0xff]
        %v4053 = vld [vmem:[%s431 + $0xcd0] sm:$0xff]
        %v4054 = vld [vmem:[%s431 + $0xcd8] sm:$0xff]
        %v4055 = vld [vmem:[%s431 + $0xce0] sm:$0xff]
        %v4056 = vld [vmem:[%s431 + $0xce8] sm:$0xff]
        %v4057 = vld [vmem:[%s431 + $0xcf0] sm:$0xff]
        %v4058 = vld [vmem:[%s431 + $0xcf8] sm:$0xff]
        %v4059 = vld [vmem:[%s431 + $0xd00] sm:$0xff]
        %v4060 = vld [vmem:[%s431 + $0xd08] sm:$0xff]
        %v4061 = vld [vmem:[%s431 + $0xd10] sm:$0xff]
        %v4062 = vld [vmem:[%s431 + $0xd18] sm:$0xff]
        %v4063 = vld [vmem:[%s431 + $0xd20] sm:$0xff]
        %v4064 = vld [vmem:[%s431 + $0xd28] sm:$0xff]
        %v4065 = vld [vmem:[%s431 + $0xd30] sm:$0xff]
        %v4066 = vld [vmem:[%s431 + $0xd38] sm:$0xff]
        %v4067 = vld [vmem:[%s431 + $0xd40] sm:$0xff]
        %v4068 = vld [vmem:[%s431 + $0xd48] sm:$0xff]
        %v4069 = vld [vmem:[%s431 + $0xd50] sm:$0xff]
        %v4070 = vld [vmem:[%s431 + $0xd58] sm:$0xff]
        %v4071 = vld [vmem:[%s431 + $0xd60] sm:$0xff]
        %v4072 = vld [vmem:[%s431 + $0xd68] sm:$0xff]
        %v4073 = vld [vmem:[%s431 + $0xd70] sm:$0xff]
        %v4074 = vld [vmem:[%s431 + $0xd78] sm:$0xff]
        %v4075 = vld [vmem:[%s431 + $0xd80] sm:$0xff]
        %v4076 = vld [vmem:[%s431 + $0xd88] sm:$0xff]
        %v4077 = vld [vmem:[%s431 + $0xd90] sm:$0xff]
        %v4078 = vld [vmem:[%s431 + $0xd98] sm:$0xff]
        %v4079 = vld [vmem:[%s431 + $0xda0] sm:$0xff]
        %v4080 = vld [vmem:[%s431 + $0xda8] sm:$0xff]
        %v4081 = vld [vmem:[%s431 + $0xdb0] sm:$0xff]
        %v4082 = vld [vmem:[%s431 + $0xdb8] sm:$0xff]
        %v4083 = vld [vmem:[%s431 + $0xdc0] sm:$0xff]
        %v4084 = vld [vmem:[%s431 + $0xdc8] sm:$0xff]
        %v4085 = vld [vmem:[%s431 + $0xdd0] sm:$0xff]
        %v4086 = vld [vmem:[%s431 + $0xdd8] sm:$0xff]
        %v4087 = vld [vmem:[%s431 + $0xde0] sm:$0xff]
        %v4088 = vld [vmem:[%s431 + $0xde8] sm:$0xff]
        %v4089 = vld [vmem:[%s431 + $0xdf0] sm:$0xff]
        %v4090 = vld [vmem:[%s431 + $0xdf8] sm:$0xff]
        %v4091 = vld [vmem:[%s431 + $0xe00] sm:$0xff]
        %v4092 = vld [vmem:[%s431 + $0xe08] sm:$0xff]
        %v4093 = vld [vmem:[%s431 + $0xe10] sm:$0xff]
        %v4094 = vld [vmem:[%s431 + $0xe18] sm:$0xff]
        %v4095 = vld [vmem:[%s431 + $0xe20] sm:$0xff]
        %v4096 = vld [vmem:[%s431 + $0xe28] sm:$0xff]
        %v4097 = vld [vmem:[%s431 + $0xe30] sm:$0xff]
        %v4098 = vld [vmem:[%s431 + $0xe38] sm:$0xff]
        %v4099 = vld [vmem:[%s431 + $0xe40] sm:$0xff]
        %v4100 = vld [vmem:[%s431 + $0xe48] sm:$0xff]
        %v4101 = vld [vmem:[%s431 + $0xe50] sm:$0xff]
        %v4102 = vld [vmem:[%s431 + $0xe58] sm:$0xff]
        %v4103 = vld [vmem:[%s431 + $0xe60] sm:$0xff]
        %v4104 = vld [vmem:[%s431 + $0xe68] sm:$0xff]
        %v4105 = vld [vmem:[%s431 + $0xe70] sm:$0xff]
        %v4106 = vld [vmem:[%s431 + $0xe78] sm:$0xff]
        %v4107 = vld [vmem:[%s431 + $0xe80] sm:$0xff]
        %v4108 = vld [vmem:[%s431 + $0xe88] sm:$0xff]
        %v4109 = vld [vmem:[%s431 + $0xe90] sm:$0xff]
        %v4110 = vld [vmem:[%s431 + $0xe98] sm:$0xff]
        %v4111 = vld [vmem:[%s431 + $0xea0] sm:$0xff]
        %v4112 = vld [vmem:[%s431 + $0xea8] sm:$0xff]
        %v4113 = vld [vmem:[%s431 + $0xeb0] sm:$0xff]
        %v4114 = vld [vmem:[%s431 + $0xeb8] sm:$0xff]
        %v4115 = vld [vmem:[%s431 + $0xec0] sm:$0xff]
        %v4116 = vld [vmem:[%s431 + $0xec8] sm:$0xff]
        %v4117 = vld [vmem:[%s431 + $0xed0] sm:$0xff]
        %v4118 = vld [vmem:[%s431 + $0xed8] sm:$0xff]
        %v4119 = vld [vmem:[%s431 + $0xee0] sm:$0xff]
        %v4120 = vld [vmem:[%s431 + $0xee8] sm:$0xff]
        %v4121 = vld [vmem:[%s431 + $0xef0] sm:$0xff]
        %v4122 = vld [vmem:[%s431 + $0xef8] sm:$0xff]
        %v4123 = vld [vmem:[%s431 + $0xf00] sm:$0xff]
        %v4124 = vld [vmem:[%s431 + $0xf08] sm:$0xff]
        %v4125 = vld [vmem:[%s431 + $0xf10] sm:$0xff]
        %v4126 = vld [vmem:[%s431 + $0xf18] sm:$0xff]
        %v4127 = vld [vmem:[%s431 + $0xf20] sm:$0xff]
        %v4128 = vld [vmem:[%s431 + $0xf28] sm:$0xff]
        %v4129 = vld [vmem:[%s431 + $0xf30] sm:$0xff]
        %v4130 = vld [vmem:[%s431 + $0xf38] sm:$0xff]
        %v4131 = vld [vmem:[%s431 + $0xf40] sm:$0xff]
        %v4132 = vld [vmem:[%s431 + $0xf48] sm:$0xff]
        %v4133 = vld [vmem:[%s431 + $0xf50] sm:$0xff]
        %v4134 = vld [vmem:[%s431 + $0xf58] sm:$0xff]
        %v4135 = vld [vmem:[%s431 + $0xf60] sm:$0xff]
        %v4136 = vld [vmem:[%s431 + $0xf68] sm:$0xff]
        %v4137 = vld [vmem:[%s431 + $0xf70] sm:$0xff]
        %v4138 = vld [vmem:[%s431 + $0xf78] sm:$0xff]
        %v4139 = vld [vmem:[%s431 + $0xf80] sm:$0xff]
        %v4140 = vld [vmem:[%s431 + $0xf88] sm:$0xff]
        %v4141 = vld [vmem:[%s431 + $0xf90] sm:$0xff]
        %v4142 = vld [vmem:[%s431 + $0xf98] sm:$0xff]
        %v4143 = vld [vmem:[%s431 + $0xfa0] sm:$0xff]
        %v4144 = vld [vmem:[%s431 + $0xfa8] sm:$0xff]
        %v4145 = vld [vmem:[%s431 + $0xfb0] sm:$0xff]
        %v4146 = vld [vmem:[%s431 + $0xfb8] sm:$0xff]
        %v4147 = vld [vmem:[%s431 + $0xfc0] sm:$0xff]
        %v4148 = vld [vmem:[%s431 + $0xfc8] sm:$0xff]
        %v4149 = vld [vmem:[%s431 + $0xfd0] sm:$0xff]
        %v4150 = vld [vmem:[%s431 + $0xfd8] sm:$0xff]
        %v4151 = vld [vmem:[%s431 + $0xfe0] sm:$0xff]
        %v4152 = vld [vmem:[%s431 + $0xfe8] sm:$0xff]
        %v4153 = vld [vmem:[%s431 + $0xff0] sm:$0xff]
        %v4154 = vld [vmem:[%s431 + $0xff8] sm:$0xff]
        %v4155 = vld [vmem:[%s440] sm:$0xff]
        %v4156 = vld [vmem:[%s440 + $0x8] sm:$0xff]
        %v4157 = vpack.c.bf16 %v3635, %v3635
        %v4158 = vpack.c.bf16 %v3636, %v3636
        %v4159 = vpack.c.bf16 %v3637, %v3637
        %v4160 = vpack.c.bf16 %v3638, %v3638
        %v4161 = vpack.c.bf16 %v3639, %v3639
        %v4162 = vpack.c.bf16 %v3640, %v3640
        %v4163 = vpack.c.bf16 %v3641, %v3641
        %v4164 = vpack.c.bf16 %v3642, %v3642
        %v4677 = vunpack.c.l.b16 %v3643
        %v4678 = vunpack.c.h.b16 %v3643
        %v4679 = vunpack.c.l.b16 %v3644
        %v4680 = vunpack.c.h.b16 %v3644
        %v4681 = vunpack.c.l.b16 %v3645
        %v4682 = vunpack.c.h.b16 %v3645
        %v4683 = vunpack.c.l.b16 %v3646
        %v4684 = vunpack.c.h.b16 %v3646
        %v4685 = vunpack.c.l.b16 %v3647
        %v4686 = vunpack.c.h.b16 %v3647
        %v4687 = vunpack.c.l.b16 %v3648
        %v4688 = vunpack.c.h.b16 %v3648
        %v4689 = vunpack.c.l.b16 %v3649
        %v4690 = vunpack.c.h.b16 %v3649
        %v4691 = vunpack.c.l.b16 %v3650
        %v4692 = vunpack.c.h.b16 %v3650
        %v4693 = vunpack.c.l.b16 %v3651
        %v4694 = vunpack.c.h.b16 %v3651
        %v4695 = vunpack.c.l.b16 %v3652
        %v4696 = vunpack.c.h.b16 %v3652
        %v4697 = vunpack.c.l.b16 %v3653
        %v4698 = vunpack.c.h.b16 %v3653
        %v4699 = vunpack.c.l.b16 %v3654
        %v4700 = vunpack.c.h.b16 %v3654
        %v4701 = vunpack.c.l.b16 %v3655
        %v4702 = vunpack.c.h.b16 %v3655
        %v4703 = vunpack.c.l.b16 %v3656
        %v4704 = vunpack.c.h.b16 %v3656
        %v4705 = vunpack.c.l.b16 %v3657
        %v4706 = vunpack.c.h.b16 %v3657
        %v4707 = vunpack.c.l.b16 %v3658
        %v4708 = vunpack.c.h.b16 %v3658
        %v4709 = vunpack.c.l.b16 %v3659
        %v4710 = vunpack.c.h.b16 %v3659
        %v4711 = vunpack.c.l.b16 %v3660
        %v4712 = vunpack.c.h.b16 %v3660
        %v4713 = vunpack.c.l.b16 %v3661
        %v4714 = vunpack.c.h.b16 %v3661
        %v4715 = vunpack.c.l.b16 %v3662
        %v4716 = vunpack.c.h.b16 %v3662
        %v4717 = vunpack.c.l.b16 %v3663
        %v4718 = vunpack.c.h.b16 %v3663
        %v4719 = vunpack.c.l.b16 %v3664
        %v4720 = vunpack.c.h.b16 %v3664
        %v4721 = vunpack.c.l.b16 %v3665
        %v4722 = vunpack.c.h.b16 %v3665
        %v4723 = vunpack.c.l.b16 %v3666
        %v4724 = vunpack.c.h.b16 %v3666
        %v4725 = vunpack.c.l.b16 %v3667
        %v4726 = vunpack.c.h.b16 %v3667
        %v4727 = vunpack.c.l.b16 %v3668
        %v4728 = vunpack.c.h.b16 %v3668
        %v4729 = vunpack.c.l.b16 %v3669
        %v4730 = vunpack.c.h.b16 %v3669
        %v4731 = vunpack.c.l.b16 %v3670
        %v4732 = vunpack.c.h.b16 %v3670
        %v4733 = vunpack.c.l.b16 %v3671
        %v4734 = vunpack.c.h.b16 %v3671
        %v4735 = vunpack.c.l.b16 %v3672
        %v4736 = vunpack.c.h.b16 %v3672
        %v4737 = vunpack.c.l.b16 %v3673
        %v4738 = vunpack.c.h.b16 %v3673
        %v4739 = vunpack.c.l.b16 %v3674
        %v4740 = vunpack.c.h.b16 %v3674
        %v4741 = vunpack.c.l.b16 %v3675
        %v4742 = vunpack.c.h.b16 %v3675
        %v4743 = vunpack.c.l.b16 %v3676
        %v4744 = vunpack.c.h.b16 %v3676
        %v4745 = vunpack.c.l.b16 %v3677
        %v4746 = vunpack.c.h.b16 %v3677
        %v4747 = vunpack.c.l.b16 %v3678
        %v4748 = vunpack.c.h.b16 %v3678
        %v4749 = vunpack.c.l.b16 %v3679
        %v4750 = vunpack.c.h.b16 %v3679
        %v4751 = vunpack.c.l.b16 %v3680
        %v4752 = vunpack.c.h.b16 %v3680
        %v4753 = vunpack.c.l.b16 %v3681
        %v4754 = vunpack.c.h.b16 %v3681
        %v4755 = vunpack.c.l.b16 %v3682
        %v4756 = vunpack.c.h.b16 %v3682
        %v4757 = vunpack.c.l.b16 %v3683
        %v4758 = vunpack.c.h.b16 %v3683
        %v4759 = vunpack.c.l.b16 %v3684
        %v4760 = vunpack.c.h.b16 %v3684
        %v4761 = vunpack.c.l.b16 %v3685
        %v4762 = vunpack.c.h.b16 %v3685
        %v4763 = vunpack.c.l.b16 %v3686
        %v4764 = vunpack.c.h.b16 %v3686
        %v4765 = vunpack.c.l.b16 %v3687
        %v4766 = vunpack.c.h.b16 %v3687
        %v4767 = vunpack.c.l.b16 %v3688
        %v4768 = vunpack.c.h.b16 %v3688
        %v4769 = vunpack.c.l.b16 %v3689
        %v4770 = vunpack.c.h.b16 %v3689
        %v4771 = vunpack.c.l.b16 %v3690
        %v4772 = vunpack.c.h.b16 %v3690
        %v4773 = vunpack.c.l.b16 %v3691
        %v4774 = vunpack.c.h.b16 %v3691
        %v4775 = vunpack.c.l.b16 %v3692
        %v4776 = vunpack.c.h.b16 %v3692
        %v4777 = vunpack.c.l.b16 %v3693
        %v4778 = vunpack.c.h.b16 %v3693
        %v4779 = vunpack.c.l.b16 %v3694
        %v4780 = vunpack.c.h.b16 %v3694
        %v4781 = vunpack.c.l.b16 %v3695
        %v4782 = vunpack.c.h.b16 %v3695
        %v4783 = vunpack.c.l.b16 %v3696
        %v4784 = vunpack.c.h.b16 %v3696
        %v4785 = vunpack.c.l.b16 %v3697
        %v4786 = vunpack.c.h.b16 %v3697
        %v4787 = vunpack.c.l.b16 %v3698
        %v4788 = vunpack.c.h.b16 %v3698
        %v4789 = vunpack.c.l.b16 %v3699
        %v4790 = vunpack.c.h.b16 %v3699
        %v4791 = vunpack.c.l.b16 %v3700
        %v4792 = vunpack.c.h.b16 %v3700
        %v4793 = vunpack.c.l.b16 %v3701
        %v4794 = vunpack.c.h.b16 %v3701
        %v4795 = vunpack.c.l.b16 %v3702
        %v4796 = vunpack.c.h.b16 %v3702
        %v4797 = vunpack.c.l.b16 %v3703
        %v4798 = vunpack.c.h.b16 %v3703
        %v4799 = vunpack.c.l.b16 %v3704
        %v4800 = vunpack.c.h.b16 %v3704
        %v4801 = vunpack.c.l.b16 %v3705
        %v4802 = vunpack.c.h.b16 %v3705
        %v4803 = vunpack.c.l.b16 %v3706
        %v4804 = vunpack.c.h.b16 %v3706
        %v4805 = vunpack.c.l.b16 %v3707
        %v4806 = vunpack.c.h.b16 %v3707
        %v4807 = vunpack.c.l.b16 %v3708
        %v4808 = vunpack.c.h.b16 %v3708
        %v4809 = vunpack.c.l.b16 %v3709
        %v4810 = vunpack.c.h.b16 %v3709
        %v4811 = vunpack.c.l.b16 %v3710
        %v4812 = vunpack.c.h.b16 %v3710
        %v4813 = vunpack.c.l.b16 %v3711
        %v4814 = vunpack.c.h.b16 %v3711
        %v4815 = vunpack.c.l.b16 %v3712
        %v4816 = vunpack.c.h.b16 %v3712
        %v4817 = vunpack.c.l.b16 %v3713
        %v4818 = vunpack.c.h.b16 %v3713
        %v4819 = vunpack.c.l.b16 %v3714
        %v4820 = vunpack.c.h.b16 %v3714
        %v4821 = vunpack.c.l.b16 %v3715
        %v4822 = vunpack.c.h.b16 %v3715
        %v4823 = vunpack.c.l.b16 %v3716
        %v4824 = vunpack.c.h.b16 %v3716
        %v4825 = vunpack.c.l.b16 %v3717
        %v4826 = vunpack.c.h.b16 %v3717
        %v4827 = vunpack.c.l.b16 %v3718
        %v4828 = vunpack.c.h.b16 %v3718
        %v4829 = vunpack.c.l.b16 %v3719
        %v4830 = vunpack.c.h.b16 %v3719
        %v4831 = vunpack.c.l.b16 %v3720
        %v4832 = vunpack.c.h.b16 %v3720
        %v4833 = vunpack.c.l.b16 %v3721
        %v4834 = vunpack.c.h.b16 %v3721
        %v4835 = vunpack.c.l.b16 %v3722
        %v4836 = vunpack.c.h.b16 %v3722
        %v4837 = vunpack.c.l.b16 %v3723
        %v4838 = vunpack.c.h.b16 %v3723
        %v4839 = vunpack.c.l.b16 %v3724
        %v4840 = vunpack.c.h.b16 %v3724
        %v4841 = vunpack.c.l.b16 %v3725
        %v4842 = vunpack.c.h.b16 %v3725
        %v4843 = vunpack.c.l.b16 %v3726
        %v4844 = vunpack.c.h.b16 %v3726
        %v4845 = vunpack.c.l.b16 %v3727
        %v4846 = vunpack.c.h.b16 %v3727
        %v4847 = vunpack.c.l.b16 %v3728
        %v4848 = vunpack.c.h.b16 %v3728
        %v4849 = vunpack.c.l.b16 %v3729
        %v4850 = vunpack.c.h.b16 %v3729
        %v4851 = vunpack.c.l.b16 %v3730
        %v4852 = vunpack.c.h.b16 %v3730
        %v4853 = vunpack.c.l.b16 %v3731
        %v4854 = vunpack.c.h.b16 %v3731
        %v4855 = vunpack.c.l.b16 %v3732
        %v4856 = vunpack.c.h.b16 %v3732
        %v4857 = vunpack.c.l.b16 %v3733
        %v4858 = vunpack.c.h.b16 %v3733
        %v4859 = vunpack.c.l.b16 %v3734
        %v4860 = vunpack.c.h.b16 %v3734
        %v4861 = vunpack.c.l.b16 %v3735
        %v4862 = vunpack.c.h.b16 %v3735
        %v4863 = vunpack.c.l.b16 %v3736
        %v4864 = vunpack.c.h.b16 %v3736
        %v4865 = vunpack.c.l.b16 %v3737
        %v4866 = vunpack.c.h.b16 %v3737
        %v4867 = vunpack.c.l.b16 %v3738
        %v4868 = vunpack.c.h.b16 %v3738
        %v4869 = vunpack.c.l.b16 %v3739
        %v4870 = vunpack.c.h.b16 %v3739
        %v4871 = vunpack.c.l.b16 %v3740
        %v4872 = vunpack.c.h.b16 %v3740
        %v4873 = vunpack.c.l.b16 %v3741
        %v4874 = vunpack.c.h.b16 %v3741
        %v4875 = vunpack.c.l.b16 %v3742
        %v4876 = vunpack.c.h.b16 %v3742
        %v4877 = vunpack.c.l.b16 %v3743
        %v4878 = vunpack.c.h.b16 %v3743
        %v4879 = vunpack.c.l.b16 %v3744
        %v4880 = vunpack.c.h.b16 %v3744
        %v4881 = vunpack.c.l.b16 %v3745
        %v4882 = vunpack.c.h.b16 %v3745
        %v4883 = vunpack.c.l.b16 %v3746
        %v4884 = vunpack.c.h.b16 %v3746
        %v4885 = vunpack.c.l.b16 %v3747
        %v4886 = vunpack.c.h.b16 %v3747
        %v4887 = vunpack.c.l.b16 %v3748
        %v4888 = vunpack.c.h.b16 %v3748
        %v4889 = vunpack.c.l.b16 %v3749
        %v4890 = vunpack.c.h.b16 %v3749
        %v4891 = vunpack.c.l.b16 %v3750
        %v4892 = vunpack.c.h.b16 %v3750
        %v4893 = vunpack.c.l.b16 %v3751
        %v4894 = vunpack.c.h.b16 %v3751
        %v4895 = vunpack.c.l.b16 %v3752
        %v4896 = vunpack.c.h.b16 %v3752
        %v4897 = vunpack.c.l.b16 %v3753
        %v4898 = vunpack.c.h.b16 %v3753
        %v4899 = vunpack.c.l.b16 %v3754
        %v4900 = vunpack.c.h.b16 %v3754
        %v4901 = vunpack.c.l.b16 %v3755
        %v4902 = vunpack.c.h.b16 %v3755
        %v4903 = vunpack.c.l.b16 %v3756
        %v4904 = vunpack.c.h.b16 %v3756
        %v4905 = vunpack.c.l.b16 %v3757
        %v4906 = vunpack.c.h.b16 %v3757
        %v4907 = vunpack.c.l.b16 %v3758
        %v4908 = vunpack.c.h.b16 %v3758
        %v4909 = vunpack.c.l.b16 %v3759
        %v4910 = vunpack.c.h.b16 %v3759
        %v4911 = vunpack.c.l.b16 %v3760
        %v4912 = vunpack.c.h.b16 %v3760
        %v4913 = vunpack.c.l.b16 %v3761
        %v4914 = vunpack.c.h.b16 %v3761
        %v4915 = vunpack.c.l.b16 %v3762
        %v4916 = vunpack.c.h.b16 %v3762
        %v4917 = vunpack.c.l.b16 %v3763
        %v4918 = vunpack.c.h.b16 %v3763
        %v4919 = vunpack.c.l.b16 %v3764
        %v4920 = vunpack.c.h.b16 %v3764
        %v4921 = vunpack.c.l.b16 %v3765
        %v4922 = vunpack.c.h.b16 %v3765
        %v4923 = vunpack.c.l.b16 %v3766
        %v4924 = vunpack.c.h.b16 %v3766
        %v4925 = vunpack.c.l.b16 %v3767
        %v4926 = vunpack.c.h.b16 %v3767
        %v4927 = vunpack.c.l.b16 %v3768
        %v4928 = vunpack.c.h.b16 %v3768
        %v4929 = vunpack.c.l.b16 %v3769
        %v4930 = vunpack.c.h.b16 %v3769
        %v4931 = vunpack.c.l.b16 %v3770
        %v4932 = vunpack.c.h.b16 %v3770
        %v4933 = vunpack.c.l.b16 %v3771
        %v4934 = vunpack.c.h.b16 %v3771
        %v4935 = vunpack.c.l.b16 %v3772
        %v4936 = vunpack.c.h.b16 %v3772
        %v4937 = vunpack.c.l.b16 %v3773
        %v4938 = vunpack.c.h.b16 %v3773
        %v4939 = vunpack.c.l.b16 %v3774
        %v4940 = vunpack.c.h.b16 %v3774
        %v4941 = vunpack.c.l.b16 %v3775
        %v4942 = vunpack.c.h.b16 %v3775
        %v4943 = vunpack.c.l.b16 %v3776
        %v4944 = vunpack.c.h.b16 %v3776
        %v4945 = vunpack.c.l.b16 %v3777
        %v4946 = vunpack.c.h.b16 %v3777
        %v4947 = vunpack.c.l.b16 %v3778
        %v4948 = vunpack.c.h.b16 %v3778
        %v4949 = vunpack.c.l.b16 %v3779
        %v4950 = vunpack.c.h.b16 %v3779
        %v4951 = vunpack.c.l.b16 %v3780
        %v4952 = vunpack.c.h.b16 %v3780
        %v4953 = vunpack.c.l.b16 %v3781
        %v4954 = vunpack.c.h.b16 %v3781
        %v4955 = vunpack.c.l.b16 %v3782
        %v4956 = vunpack.c.h.b16 %v3782
        %v4957 = vunpack.c.l.b16 %v3783
        %v4958 = vunpack.c.h.b16 %v3783
        %v4959 = vunpack.c.l.b16 %v3784
        %v4960 = vunpack.c.h.b16 %v3784
        %v4961 = vunpack.c.l.b16 %v3785
        %v4962 = vunpack.c.h.b16 %v3785
        %v4963 = vunpack.c.l.b16 %v3786
        %v4964 = vunpack.c.h.b16 %v3786
        %v4965 = vunpack.c.l.b16 %v3787
        %v4966 = vunpack.c.h.b16 %v3787
        %v4967 = vunpack.c.l.b16 %v3788
        %v4968 = vunpack.c.h.b16 %v3788
        %v4969 = vunpack.c.l.b16 %v3789
        %v4970 = vunpack.c.h.b16 %v3789
        %v4971 = vunpack.c.l.b16 %v3790
        %v4972 = vunpack.c.h.b16 %v3790
        %v4973 = vunpack.c.l.b16 %v3791
        %v4974 = vunpack.c.h.b16 %v3791
        %v4975 = vunpack.c.l.b16 %v3792
        %v4976 = vunpack.c.h.b16 %v3792
        %v4977 = vunpack.c.l.b16 %v3793
        %v4978 = vunpack.c.h.b16 %v3793
        %v4979 = vunpack.c.l.b16 %v3794
        %v4980 = vunpack.c.h.b16 %v3794
        %v4981 = vunpack.c.l.b16 %v3795
        %v4982 = vunpack.c.h.b16 %v3795
        %v4983 = vunpack.c.l.b16 %v3796
        %v4984 = vunpack.c.h.b16 %v3796
        %v4985 = vunpack.c.l.b16 %v3797
        %v4986 = vunpack.c.h.b16 %v3797
        %v4987 = vunpack.c.l.b16 %v3798
        %v4988 = vunpack.c.h.b16 %v3798
        %v4989 = vunpack.c.l.b16 %v3799
        %v4990 = vunpack.c.h.b16 %v3799
        %v4991 = vunpack.c.l.b16 %v3800
        %v4992 = vunpack.c.h.b16 %v3800
        %v4993 = vunpack.c.l.b16 %v3801
        %v4994 = vunpack.c.h.b16 %v3801
        %v4995 = vunpack.c.l.b16 %v3802
        %v4996 = vunpack.c.h.b16 %v3802
        %v4997 = vunpack.c.l.b16 %v3803
        %v4998 = vunpack.c.h.b16 %v3803
        %v4999 = vunpack.c.l.b16 %v3804
        %v5000 = vunpack.c.h.b16 %v3804
        %v5001 = vunpack.c.l.b16 %v3805
        %v5002 = vunpack.c.h.b16 %v3805
        %v5003 = vunpack.c.l.b16 %v3806
        %v5004 = vunpack.c.h.b16 %v3806
        %v5005 = vunpack.c.l.b16 %v3807
        %v5006 = vunpack.c.h.b16 %v3807
        %v5007 = vunpack.c.l.b16 %v3808
        %v5008 = vunpack.c.h.b16 %v3808
        %v5009 = vunpack.c.l.b16 %v3809
        %v5010 = vunpack.c.h.b16 %v3809
        %v5011 = vunpack.c.l.b16 %v3810
        %v5012 = vunpack.c.h.b16 %v3810
        %v5013 = vunpack.c.l.b16 %v3811
        %v5014 = vunpack.c.h.b16 %v3811
        %v5015 = vunpack.c.l.b16 %v3812
        %v5016 = vunpack.c.h.b16 %v3812
        %v5017 = vunpack.c.l.b16 %v3813
        %v5018 = vunpack.c.h.b16 %v3813
        %v5019 = vunpack.c.l.b16 %v3814
        %v5020 = vunpack.c.h.b16 %v3814
        %v5021 = vunpack.c.l.b16 %v3815
        %v5022 = vunpack.c.h.b16 %v3815
        %v5023 = vunpack.c.l.b16 %v3816
        %v5024 = vunpack.c.h.b16 %v3816
        %v5025 = vunpack.c.l.b16 %v3817
        %v5026 = vunpack.c.h.b16 %v3817
        %v5027 = vunpack.c.l.b16 %v3818
        %v5028 = vunpack.c.h.b16 %v3818
        %v5029 = vunpack.c.l.b16 %v3819
        %v5030 = vunpack.c.h.b16 %v3819
        %v5031 = vunpack.c.l.b16 %v3820
        %v5032 = vunpack.c.h.b16 %v3820
        %v5033 = vunpack.c.l.b16 %v3821
        %v5034 = vunpack.c.h.b16 %v3821
        %v5035 = vunpack.c.l.b16 %v3822
        %v5036 = vunpack.c.h.b16 %v3822
        %v5037 = vunpack.c.l.b16 %v3823
        %v5038 = vunpack.c.h.b16 %v3823
        %v5039 = vunpack.c.l.b16 %v3824
        %v5040 = vunpack.c.h.b16 %v3824
        %v5041 = vunpack.c.l.b16 %v3825
        %v5042 = vunpack.c.h.b16 %v3825
        %v5043 = vunpack.c.l.b16 %v3826
        %v5044 = vunpack.c.h.b16 %v3826
        %v5045 = vunpack.c.l.b16 %v3827
        %v5046 = vunpack.c.h.b16 %v3827
        %v5047 = vunpack.c.l.b16 %v3828
        %v5048 = vunpack.c.h.b16 %v3828
        %v5049 = vunpack.c.l.b16 %v3829
        %v5050 = vunpack.c.h.b16 %v3829
        %v5051 = vunpack.c.l.b16 %v3830
        %v5052 = vunpack.c.h.b16 %v3830
        %v5053 = vunpack.c.l.b16 %v3831
        %v5054 = vunpack.c.h.b16 %v3831
        %v5055 = vunpack.c.l.b16 %v3832
        %v5056 = vunpack.c.h.b16 %v3832
        %v5057 = vunpack.c.l.b16 %v3833
        %v5058 = vunpack.c.h.b16 %v3833
        %v5059 = vunpack.c.l.b16 %v3834
        %v5060 = vunpack.c.h.b16 %v3834
        %v5061 = vunpack.c.l.b16 %v3835
        %v5062 = vunpack.c.h.b16 %v3835
        %v5063 = vunpack.c.l.b16 %v3836
        %v5064 = vunpack.c.h.b16 %v3836
        %v5065 = vunpack.c.l.b16 %v3837
        %v5066 = vunpack.c.h.b16 %v3837
        %v5067 = vunpack.c.l.b16 %v3838
        %v5068 = vunpack.c.h.b16 %v3838
        %v5069 = vunpack.c.l.b16 %v3839
        %v5070 = vunpack.c.h.b16 %v3839
        %v5071 = vunpack.c.l.b16 %v3840
        %v5072 = vunpack.c.h.b16 %v3840
        %v5073 = vunpack.c.l.b16 %v3841
        %v5074 = vunpack.c.h.b16 %v3841
        %v5075 = vunpack.c.l.b16 %v3842
        %v5076 = vunpack.c.h.b16 %v3842
        %v5077 = vunpack.c.l.b16 %v3843
        %v5078 = vunpack.c.h.b16 %v3843
        %v5079 = vunpack.c.l.b16 %v3844
        %v5080 = vunpack.c.h.b16 %v3844
        %v5081 = vunpack.c.l.b16 %v3845
        %v5082 = vunpack.c.h.b16 %v3845
        %v5083 = vunpack.c.l.b16 %v3846
        %v5084 = vunpack.c.h.b16 %v3846
        %v5085 = vunpack.c.l.b16 %v3847
        %v5086 = vunpack.c.h.b16 %v3847
        %v5087 = vunpack.c.l.b16 %v3848
        %v5088 = vunpack.c.h.b16 %v3848
        %v5089 = vunpack.c.l.b16 %v3849
        %v5090 = vunpack.c.h.b16 %v3849
        %v5091 = vunpack.c.l.b16 %v3850
        %v5092 = vunpack.c.h.b16 %v3850
        %v5093 = vunpack.c.l.b16 %v3851
        %v5094 = vunpack.c.h.b16 %v3851
        %v5095 = vunpack.c.l.b16 %v3852
        %v5096 = vunpack.c.h.b16 %v3852
        %v5097 = vunpack.c.l.b16 %v3853
        %v5098 = vunpack.c.h.b16 %v3853
        %v5099 = vunpack.c.l.b16 %v3854
        %v5100 = vunpack.c.h.b16 %v3854
        %v5101 = vunpack.c.l.b16 %v3855
        %v5102 = vunpack.c.h.b16 %v3855
        %v5103 = vunpack.c.l.b16 %v3856
        %v5104 = vunpack.c.h.b16 %v3856
        %v5105 = vunpack.c.l.b16 %v3857
        %v5106 = vunpack.c.h.b16 %v3857
        %v5107 = vunpack.c.l.b16 %v3858
        %v5108 = vunpack.c.h.b16 %v3858
        %v5109 = vunpack.c.l.b16 %v3859
        %v5110 = vunpack.c.h.b16 %v3859
        %v5111 = vunpack.c.l.b16 %v3860
        %v5112 = vunpack.c.h.b16 %v3860
        %v5113 = vunpack.c.l.b16 %v3861
        %v5114 = vunpack.c.h.b16 %v3861
        %v5115 = vunpack.c.l.b16 %v3862
        %v5116 = vunpack.c.h.b16 %v3862
        %v5117 = vunpack.c.l.b16 %v3863
        %v5118 = vunpack.c.h.b16 %v3863
        %v5119 = vunpack.c.l.b16 %v3864
        %v5120 = vunpack.c.h.b16 %v3864
        %v5121 = vunpack.c.l.b16 %v3865
        %v5122 = vunpack.c.h.b16 %v3865
        %v5123 = vunpack.c.l.b16 %v3866
        %v5124 = vunpack.c.h.b16 %v3866
        %v5125 = vunpack.c.l.b16 %v3867
        %v5126 = vunpack.c.h.b16 %v3867
        %v5127 = vunpack.c.l.b16 %v3868
        %v5128 = vunpack.c.h.b16 %v3868
        %v5129 = vunpack.c.l.b16 %v3869
        %v5130 = vunpack.c.h.b16 %v3869
        %v5131 = vunpack.c.l.b16 %v3870
        %v5132 = vunpack.c.h.b16 %v3870
        %v5133 = vunpack.c.l.b16 %v3871
        %v5134 = vunpack.c.h.b16 %v3871
        %v5135 = vunpack.c.l.b16 %v3872
        %v5136 = vunpack.c.h.b16 %v3872
        %v5137 = vunpack.c.l.b16 %v3873
        %v5138 = vunpack.c.h.b16 %v3873
        %v5139 = vunpack.c.l.b16 %v3874
        %v5140 = vunpack.c.h.b16 %v3874
        %v5141 = vunpack.c.l.b16 %v3875
        %v5142 = vunpack.c.h.b16 %v3875
        %v5143 = vunpack.c.l.b16 %v3876
        %v5144 = vunpack.c.h.b16 %v3876
        %v5145 = vunpack.c.l.b16 %v3877
        %v5146 = vunpack.c.h.b16 %v3877
        %v5147 = vunpack.c.l.b16 %v3878
        %v5148 = vunpack.c.h.b16 %v3878
        %v5149 = vunpack.c.l.b16 %v3879
        %v5150 = vunpack.c.h.b16 %v3879
        %v5151 = vunpack.c.l.b16 %v3880
        %v5152 = vunpack.c.h.b16 %v3880
        %v5153 = vunpack.c.l.b16 %v3881
        %v5154 = vunpack.c.h.b16 %v3881
        %v5155 = vunpack.c.l.b16 %v3882
        %v5156 = vunpack.c.h.b16 %v3882
        %v5157 = vunpack.c.l.b16 %v3883
        %v5158 = vunpack.c.h.b16 %v3883
        %v5159 = vunpack.c.l.b16 %v3884
        %v5160 = vunpack.c.h.b16 %v3884
        %v5161 = vunpack.c.l.b16 %v3885
        %v5162 = vunpack.c.h.b16 %v3885
        %v5163 = vunpack.c.l.b16 %v3886
        %v5164 = vunpack.c.h.b16 %v3886
        %v5165 = vunpack.c.l.b16 %v3887
        %v5166 = vunpack.c.h.b16 %v3887
        %v5167 = vunpack.c.l.b16 %v3888
        %v5168 = vunpack.c.h.b16 %v3888
        %v5169 = vunpack.c.l.b16 %v3889
        %v5170 = vunpack.c.h.b16 %v3889
        %v5171 = vunpack.c.l.b16 %v3890
        %v5172 = vunpack.c.h.b16 %v3890
        %v5173 = vunpack.c.l.b16 %v3891
        %v5174 = vunpack.c.h.b16 %v3891
        %v5175 = vunpack.c.l.b16 %v3892
        %v5176 = vunpack.c.h.b16 %v3892
        %v5177 = vunpack.c.l.b16 %v3893
        %v5178 = vunpack.c.h.b16 %v3893
        %v5179 = vunpack.c.l.b16 %v3894
        %v5180 = vunpack.c.h.b16 %v3894
        %v5181 = vunpack.c.l.b16 %v3895
        %v5182 = vunpack.c.h.b16 %v3895
        %v5183 = vunpack.c.l.b16 %v3896
        %v5184 = vunpack.c.h.b16 %v3896
        %v5185 = vunpack.c.l.b16 %v3897
        %v5186 = vunpack.c.h.b16 %v3897
        %v5187 = vunpack.c.l.b16 %v3898
        %v5188 = vunpack.c.h.b16 %v3898
        %v5189 = vunpack.c.l.b16 %v3899
        %v5190 = vunpack.c.h.b16 %v3899
        %v5191 = vunpack.c.l.b16 %v3900
        %v5192 = vunpack.c.h.b16 %v3900
        %v5193 = vunpack.c.l.b16 %v3901
        %v5194 = vunpack.c.h.b16 %v3901
        %v5195 = vunpack.c.l.b16 %v3902
        %v5196 = vunpack.c.h.b16 %v3902
        %v5197 = vunpack.c.l.b16 %v3903
        %v5198 = vunpack.c.h.b16 %v3903
        %v5199 = vunpack.c.l.b16 %v3904
        %v5200 = vunpack.c.h.b16 %v3904
        %v5201 = vunpack.c.l.b16 %v3905
        %v5202 = vunpack.c.h.b16 %v3905
        %v5203 = vunpack.c.l.b16 %v3906
        %v5204 = vunpack.c.h.b16 %v3906
        %v5205 = vunpack.c.l.b16 %v3907
        %v5206 = vunpack.c.h.b16 %v3907
        %v5207 = vunpack.c.l.b16 %v3908
        %v5208 = vunpack.c.h.b16 %v3908
        %v5209 = vunpack.c.l.b16 %v3909
        %v5210 = vunpack.c.h.b16 %v3909
        %v5211 = vunpack.c.l.b16 %v3910
        %v5212 = vunpack.c.h.b16 %v3910
        %v5213 = vunpack.c.l.b16 %v3911
        %v5214 = vunpack.c.h.b16 %v3911
        %v5215 = vunpack.c.l.b16 %v3912
        %v5216 = vunpack.c.h.b16 %v3912
        %v5217 = vunpack.c.l.b16 %v3913
        %v5218 = vunpack.c.h.b16 %v3913
        %v5219 = vunpack.c.l.b16 %v3914
        %v5220 = vunpack.c.h.b16 %v3914
        %v5221 = vunpack.c.l.b16 %v3915
        %v5222 = vunpack.c.h.b16 %v3915
        %v5223 = vunpack.c.l.b16 %v3916
        %v5224 = vunpack.c.h.b16 %v3916
        %v5225 = vunpack.c.l.b16 %v3917
        %v5226 = vunpack.c.h.b16 %v3917
        %v5227 = vunpack.c.l.b16 %v3918
        %v5228 = vunpack.c.h.b16 %v3918
        %v5229 = vunpack.c.l.b16 %v3919
        %v5230 = vunpack.c.h.b16 %v3919
        %v5231 = vunpack.c.l.b16 %v3920
        %v5232 = vunpack.c.h.b16 %v3920
        %v5233 = vunpack.c.l.b16 %v3921
        %v5234 = vunpack.c.h.b16 %v3921
        %v5235 = vunpack.c.l.b16 %v3922
        %v5236 = vunpack.c.h.b16 %v3922
        %v5237 = vunpack.c.l.b16 %v3923
        %v5238 = vunpack.c.h.b16 %v3923
        %v5239 = vunpack.c.l.b16 %v3924
        %v5240 = vunpack.c.h.b16 %v3924
        %v5241 = vunpack.c.l.b16 %v3925
        %v5242 = vunpack.c.h.b16 %v3925
        %v5243 = vunpack.c.l.b16 %v3926
        %v5244 = vunpack.c.h.b16 %v3926
        %v5245 = vunpack.c.l.b16 %v3927
        %v5246 = vunpack.c.h.b16 %v3927
        %v5247 = vunpack.c.l.b16 %v3928
        %v5248 = vunpack.c.h.b16 %v3928
        %v5249 = vunpack.c.l.b16 %v3929
        %v5250 = vunpack.c.h.b16 %v3929
        %v5251 = vunpack.c.l.b16 %v3930
        %v5252 = vunpack.c.h.b16 %v3930
        %v5253 = vunpack.c.l.b16 %v3931
        %v5254 = vunpack.c.h.b16 %v3931
        %v5255 = vunpack.c.l.b16 %v3932
        %v5256 = vunpack.c.h.b16 %v3932
        %v5257 = vunpack.c.l.b16 %v3933
        %v5258 = vunpack.c.h.b16 %v3933
        %v5259 = vunpack.c.l.b16 %v3934
        %v5260 = vunpack.c.h.b16 %v3934
        %v5261 = vunpack.c.l.b16 %v3935
        %v5262 = vunpack.c.h.b16 %v3935
        %v5263 = vunpack.c.l.b16 %v3936
        %v5264 = vunpack.c.h.b16 %v3936
        %v5265 = vunpack.c.l.b16 %v3937
        %v5266 = vunpack.c.h.b16 %v3937
        %v5267 = vunpack.c.l.b16 %v3938
        %v5268 = vunpack.c.h.b16 %v3938
        %v5269 = vunpack.c.l.b16 %v3939
        %v5270 = vunpack.c.h.b16 %v3939
        %v5271 = vunpack.c.l.b16 %v3940
        %v5272 = vunpack.c.h.b16 %v3940
        %v5273 = vunpack.c.l.b16 %v3941
        %v5274 = vunpack.c.h.b16 %v3941
        %v5275 = vunpack.c.l.b16 %v3942
        %v5276 = vunpack.c.h.b16 %v3942
        %v5277 = vunpack.c.l.b16 %v3943
        %v5278 = vunpack.c.h.b16 %v3943
        %v5279 = vunpack.c.l.b16 %v3944
        %v5280 = vunpack.c.h.b16 %v3944
        %v5281 = vunpack.c.l.b16 %v3945
        %v5282 = vunpack.c.h.b16 %v3945
        %v5283 = vunpack.c.l.b16 %v3946
        %v5284 = vunpack.c.h.b16 %v3946
        %v5285 = vunpack.c.l.b16 %v3947
        %v5286 = vunpack.c.h.b16 %v3947
        %v5287 = vunpack.c.l.b16 %v3948
        %v5288 = vunpack.c.h.b16 %v3948
        %v5289 = vunpack.c.l.b16 %v3949
        %v5290 = vunpack.c.h.b16 %v3949
        %v5291 = vunpack.c.l.b16 %v3950
        %v5292 = vunpack.c.h.b16 %v3950
        %v5293 = vunpack.c.l.b16 %v3951
        %v5294 = vunpack.c.h.b16 %v3951
        %v5295 = vunpack.c.l.b16 %v3952
        %v5296 = vunpack.c.h.b16 %v3952
        %v5297 = vunpack.c.l.b16 %v3953
        %v5298 = vunpack.c.h.b16 %v3953
        %v5299 = vunpack.c.l.b16 %v3954
        %v5300 = vunpack.c.h.b16 %v3954
        %v5301 = vunpack.c.l.b16 %v3955
        %v5302 = vunpack.c.h.b16 %v3955
        %v5303 = vunpack.c.l.b16 %v3956
        %v5304 = vunpack.c.h.b16 %v3956
        %v5305 = vunpack.c.l.b16 %v3957
        %v5306 = vunpack.c.h.b16 %v3957
        %v5307 = vunpack.c.l.b16 %v3958
        %v5308 = vunpack.c.h.b16 %v3958
        %v5309 = vunpack.c.l.b16 %v3959
        %v5310 = vunpack.c.h.b16 %v3959
        %v5311 = vunpack.c.l.b16 %v3960
        %v5312 = vunpack.c.h.b16 %v3960
        %v5313 = vunpack.c.l.b16 %v3961
        %v5314 = vunpack.c.h.b16 %v3961
        %v5315 = vunpack.c.l.b16 %v3962
        %v5316 = vunpack.c.h.b16 %v3962
        %v5317 = vunpack.c.l.b16 %v3963
        %v5318 = vunpack.c.h.b16 %v3963
        %v5319 = vunpack.c.l.b16 %v3964
        %v5320 = vunpack.c.h.b16 %v3964
        %v5321 = vunpack.c.l.b16 %v3965
        %v5322 = vunpack.c.h.b16 %v3965
        %v5323 = vunpack.c.l.b16 %v3966
        %v5324 = vunpack.c.h.b16 %v3966
        %v5325 = vunpack.c.l.b16 %v3967
        %v5326 = vunpack.c.h.b16 %v3967
        %v5327 = vunpack.c.l.b16 %v3968
        %v5328 = vunpack.c.h.b16 %v3968
        %v5329 = vunpack.c.l.b16 %v3969
        %v5330 = vunpack.c.h.b16 %v3969
        %v5331 = vunpack.c.l.b16 %v3970
        %v5332 = vunpack.c.h.b16 %v3970
        %v5333 = vunpack.c.l.b16 %v3971
        %v5334 = vunpack.c.h.b16 %v3971
        %v5335 = vunpack.c.l.b16 %v3972
        %v5336 = vunpack.c.h.b16 %v3972
        %v5337 = vunpack.c.l.b16 %v3973
        %v5338 = vunpack.c.h.b16 %v3973
        %v5339 = vunpack.c.l.b16 %v3974
        %v5340 = vunpack.c.h.b16 %v3974
        %v5341 = vunpack.c.l.b16 %v3975
        %v5342 = vunpack.c.h.b16 %v3975
        %v5343 = vunpack.c.l.b16 %v3976
        %v5344 = vunpack.c.h.b16 %v3976
        %v5345 = vunpack.c.l.b16 %v3977
        %v5346 = vunpack.c.h.b16 %v3977
        %v5347 = vunpack.c.l.b16 %v3978
        %v5348 = vunpack.c.h.b16 %v3978
        %v5349 = vunpack.c.l.b16 %v3979
        %v5350 = vunpack.c.h.b16 %v3979
        %v5351 = vunpack.c.l.b16 %v3980
        %v5352 = vunpack.c.h.b16 %v3980
        %v5353 = vunpack.c.l.b16 %v3981
        %v5354 = vunpack.c.h.b16 %v3981
        %v5355 = vunpack.c.l.b16 %v3982
        %v5356 = vunpack.c.h.b16 %v3982
        %v5357 = vunpack.c.l.b16 %v3983
        %v5358 = vunpack.c.h.b16 %v3983
        %v5359 = vunpack.c.l.b16 %v3984
        %v5360 = vunpack.c.h.b16 %v3984
        %v5361 = vunpack.c.l.b16 %v3985
        %v5362 = vunpack.c.h.b16 %v3985
        %v5363 = vunpack.c.l.b16 %v3986
        %v5364 = vunpack.c.h.b16 %v3986
        %v5365 = vunpack.c.l.b16 %v3987
        %v5366 = vunpack.c.h.b16 %v3987
        %v5367 = vunpack.c.l.b16 %v3988
        %v5368 = vunpack.c.h.b16 %v3988
        %v5369 = vunpack.c.l.b16 %v3989
        %v5370 = vunpack.c.h.b16 %v3989
        %v5371 = vunpack.c.l.b16 %v3990
        %v5372 = vunpack.c.h.b16 %v3990
        %v5373 = vunpack.c.l.b16 %v3991
        %v5374 = vunpack.c.h.b16 %v3991
        %v5375 = vunpack.c.l.b16 %v3992
        %v5376 = vunpack.c.h.b16 %v3992
        %v5377 = vunpack.c.l.b16 %v3993
        %v5378 = vunpack.c.h.b16 %v3993
        %v5379 = vunpack.c.l.b16 %v3994
        %v5380 = vunpack.c.h.b16 %v3994
        %v5381 = vunpack.c.l.b16 %v3995
        %v5382 = vunpack.c.h.b16 %v3995
        %v5383 = vunpack.c.l.b16 %v3996
        %v5384 = vunpack.c.h.b16 %v3996
        %v5385 = vunpack.c.l.b16 %v3997
        %v5386 = vunpack.c.h.b16 %v3997
        %v5387 = vunpack.c.l.b16 %v3998
        %v5388 = vunpack.c.h.b16 %v3998
        %v5389 = vunpack.c.l.b16 %v3999
        %v5390 = vunpack.c.h.b16 %v3999
        %v5391 = vunpack.c.l.b16 %v4000
        %v5392 = vunpack.c.h.b16 %v4000
        %v5393 = vunpack.c.l.b16 %v4001
        %v5394 = vunpack.c.h.b16 %v4001
        %v5395 = vunpack.c.l.b16 %v4002
        %v5396 = vunpack.c.h.b16 %v4002
        %v5397 = vunpack.c.l.b16 %v4003
        %v5398 = vunpack.c.h.b16 %v4003
        %v5399 = vunpack.c.l.b16 %v4004
        %v5400 = vunpack.c.h.b16 %v4004
        %v5401 = vunpack.c.l.b16 %v4005
        %v5402 = vunpack.c.h.b16 %v4005
        %v5403 = vunpack.c.l.b16 %v4006
        %v5404 = vunpack.c.h.b16 %v4006
        %v5405 = vunpack.c.l.b16 %v4007
        %v5406 = vunpack.c.h.b16 %v4007
        %v5407 = vunpack.c.l.b16 %v4008
        %v5408 = vunpack.c.h.b16 %v4008
        %v5409 = vunpack.c.l.b16 %v4009
        %v5410 = vunpack.c.h.b16 %v4009
        %v5411 = vunpack.c.l.b16 %v4010
        %v5412 = vunpack.c.h.b16 %v4010
        %v5413 = vunpack.c.l.b16 %v4011
        %v5414 = vunpack.c.h.b16 %v4011
        %v5415 = vunpack.c.l.b16 %v4012
        %v5416 = vunpack.c.h.b16 %v4012
        %v5417 = vunpack.c.l.b16 %v4013
        %v5418 = vunpack.c.h.b16 %v4013
        %v5419 = vunpack.c.l.b16 %v4014
        %v5420 = vunpack.c.h.b16 %v4014
        %v5421 = vunpack.c.l.b16 %v4015
        %v5422 = vunpack.c.h.b16 %v4015
        %v5423 = vunpack.c.l.b16 %v4016
        %v5424 = vunpack.c.h.b16 %v4016
        %v5425 = vunpack.c.l.b16 %v4017
        %v5426 = vunpack.c.h.b16 %v4017
        %v5427 = vunpack.c.l.b16 %v4018
        %v5428 = vunpack.c.h.b16 %v4018
        %v5429 = vunpack.c.l.b16 %v4019
        %v5430 = vunpack.c.h.b16 %v4019
        %v5431 = vunpack.c.l.b16 %v4020
        %v5432 = vunpack.c.h.b16 %v4020
        %v5433 = vunpack.c.l.b16 %v4021
        %v5434 = vunpack.c.h.b16 %v4021
        %v5435 = vunpack.c.l.b16 %v4022
        %v5436 = vunpack.c.h.b16 %v4022
        %v5437 = vunpack.c.l.b16 %v4023
        %v5438 = vunpack.c.h.b16 %v4023
        %v5439 = vunpack.c.l.b16 %v4024
        %v5440 = vunpack.c.h.b16 %v4024
        %v5441 = vunpack.c.l.b16 %v4025
        %v5442 = vunpack.c.h.b16 %v4025
        %v5443 = vunpack.c.l.b16 %v4026
        %v5444 = vunpack.c.h.b16 %v4026
        %v5445 = vunpack.c.l.b16 %v4027
        %v5446 = vunpack.c.h.b16 %v4027
        %v5447 = vunpack.c.l.b16 %v4028
        %v5448 = vunpack.c.h.b16 %v4028
        %v5449 = vunpack.c.l.b16 %v4029
        %v5450 = vunpack.c.h.b16 %v4029
        %v5451 = vunpack.c.l.b16 %v4030
        %v5452 = vunpack.c.h.b16 %v4030
        %v5453 = vunpack.c.l.b16 %v4031
        %v5454 = vunpack.c.h.b16 %v4031
        %v5455 = vunpack.c.l.b16 %v4032
        %v5456 = vunpack.c.h.b16 %v4032
        %v5457 = vunpack.c.l.b16 %v4033
        %v5458 = vunpack.c.h.b16 %v4033
        %v5459 = vunpack.c.l.b16 %v4034
        %v5460 = vunpack.c.h.b16 %v4034
        %v5461 = vunpack.c.l.b16 %v4035
        %v5462 = vunpack.c.h.b16 %v4035
        %v5463 = vunpack.c.l.b16 %v4036
        %v5464 = vunpack.c.h.b16 %v4036
        %v5465 = vunpack.c.l.b16 %v4037
        %v5466 = vunpack.c.h.b16 %v4037
        %v5467 = vunpack.c.l.b16 %v4038
        %v5468 = vunpack.c.h.b16 %v4038
        %v5469 = vunpack.c.l.b16 %v4039
        %v5470 = vunpack.c.h.b16 %v4039
        %v5471 = vunpack.c.l.b16 %v4040
        %v5472 = vunpack.c.h.b16 %v4040
        %v5473 = vunpack.c.l.b16 %v4041
        %v5474 = vunpack.c.h.b16 %v4041
        %v5475 = vunpack.c.l.b16 %v4042
        %v5476 = vunpack.c.h.b16 %v4042
        %v5477 = vunpack.c.l.b16 %v4043
        %v5478 = vunpack.c.h.b16 %v4043
        %v5479 = vunpack.c.l.b16 %v4044
        %v5480 = vunpack.c.h.b16 %v4044
        %v5481 = vunpack.c.l.b16 %v4045
        %v5482 = vunpack.c.h.b16 %v4045
        %v5483 = vunpack.c.l.b16 %v4046
        %v5484 = vunpack.c.h.b16 %v4046
        %v5485 = vunpack.c.l.b16 %v4047
        %v5486 = vunpack.c.h.b16 %v4047
        %v5487 = vunpack.c.l.b16 %v4048
        %v5488 = vunpack.c.h.b16 %v4048
        %v5489 = vunpack.c.l.b16 %v4049
        %v5490 = vunpack.c.h.b16 %v4049
        %v5491 = vunpack.c.l.b16 %v4050
        %v5492 = vunpack.c.h.b16 %v4050
        %v5493 = vunpack.c.l.b16 %v4051
        %v5494 = vunpack.c.h.b16 %v4051
        %v5495 = vunpack.c.l.b16 %v4052
        %v5496 = vunpack.c.h.b16 %v4052
        %v5497 = vunpack.c.l.b16 %v4053
        %v5498 = vunpack.c.h.b16 %v4053
        %v5499 = vunpack.c.l.b16 %v4054
        %v5500 = vunpack.c.h.b16 %v4054
        %v5501 = vunpack.c.l.b16 %v4055
        %v5502 = vunpack.c.h.b16 %v4055
        %v5503 = vunpack.c.l.b16 %v4056
        %v5504 = vunpack.c.h.b16 %v4056
        %v5505 = vunpack.c.l.b16 %v4057
        %v5506 = vunpack.c.h.b16 %v4057
        %v5507 = vunpack.c.l.b16 %v4058
        %v5508 = vunpack.c.h.b16 %v4058
        %v5509 = vunpack.c.l.b16 %v4059
        %v5510 = vunpack.c.h.b16 %v4059
        %v5511 = vunpack.c.l.b16 %v4060
        %v5512 = vunpack.c.h.b16 %v4060
        %v5513 = vunpack.c.l.b16 %v4061
        %v5514 = vunpack.c.h.b16 %v4061
        %v5515 = vunpack.c.l.b16 %v4062
        %v5516 = vunpack.c.h.b16 %v4062
        %v5517 = vunpack.c.l.b16 %v4063
        %v5518 = vunpack.c.h.b16 %v4063
        %v5519 = vunpack.c.l.b16 %v4064
        %v5520 = vunpack.c.h.b16 %v4064
        %v5521 = vunpack.c.l.b16 %v4065
        %v5522 = vunpack.c.h.b16 %v4065
        %v5523 = vunpack.c.l.b16 %v4066
        %v5524 = vunpack.c.h.b16 %v4066
        %v5525 = vunpack.c.l.b16 %v4067
        %v5526 = vunpack.c.h.b16 %v4067
        %v5527 = vunpack.c.l.b16 %v4068
        %v5528 = vunpack.c.h.b16 %v4068
        %v5529 = vunpack.c.l.b16 %v4069
        %v5530 = vunpack.c.h.b16 %v4069
        %v5531 = vunpack.c.l.b16 %v4070
        %v5532 = vunpack.c.h.b16 %v4070
        %v5533 = vunpack.c.l.b16 %v4071
        %v5534 = vunpack.c.h.b16 %v4071
        %v5535 = vunpack.c.l.b16 %v4072
        %v5536 = vunpack.c.h.b16 %v4072
        %v5537 = vunpack.c.l.b16 %v4073
        %v5538 = vunpack.c.h.b16 %v4073
        %v5539 = vunpack.c.l.b16 %v4074
        %v5540 = vunpack.c.h.b16 %v4074
        %v5541 = vunpack.c.l.b16 %v4075
        %v5542 = vunpack.c.h.b16 %v4075
        %v5543 = vunpack.c.l.b16 %v4076
        %v5544 = vunpack.c.h.b16 %v4076
        %v5545 = vunpack.c.l.b16 %v4077
        %v5546 = vunpack.c.h.b16 %v4077
        %v5547 = vunpack.c.l.b16 %v4078
        %v5548 = vunpack.c.h.b16 %v4078
        %v5549 = vunpack.c.l.b16 %v4079
        %v5550 = vunpack.c.h.b16 %v4079
        %v5551 = vunpack.c.l.b16 %v4080
        %v5552 = vunpack.c.h.b16 %v4080
        %v5553 = vunpack.c.l.b16 %v4081
        %v5554 = vunpack.c.h.b16 %v4081
        %v5555 = vunpack.c.l.b16 %v4082
        %v5556 = vunpack.c.h.b16 %v4082
        %v5557 = vunpack.c.l.b16 %v4083
        %v5558 = vunpack.c.h.b16 %v4083
        %v5559 = vunpack.c.l.b16 %v4084
        %v5560 = vunpack.c.h.b16 %v4084
        %v5561 = vunpack.c.l.b16 %v4085
        %v5562 = vunpack.c.h.b16 %v4085
        %v5563 = vunpack.c.l.b16 %v4086
        %v5564 = vunpack.c.h.b16 %v4086
        %v5565 = vunpack.c.l.b16 %v4087
        %v5566 = vunpack.c.h.b16 %v4087
        %v5567 = vunpack.c.l.b16 %v4088
        %v5568 = vunpack.c.h.b16 %v4088
        %v5569 = vunpack.c.l.b16 %v4089
        %v5570 = vunpack.c.h.b16 %v4089
        %v5571 = vunpack.c.l.b16 %v4090
        %v5572 = vunpack.c.h.b16 %v4090
        %v5573 = vunpack.c.l.b16 %v4091
        %v5574 = vunpack.c.h.b16 %v4091
        %v5575 = vunpack.c.l.b16 %v4092
        %v5576 = vunpack.c.h.b16 %v4092
        %v5577 = vunpack.c.l.b16 %v4093
        %v5578 = vunpack.c.h.b16 %v4093
        %v5579 = vunpack.c.l.b16 %v4094
        %v5580 = vunpack.c.h.b16 %v4094
        %v5581 = vunpack.c.l.b16 %v4095
        %v5582 = vunpack.c.h.b16 %v4095
        %v5583 = vunpack.c.l.b16 %v4096
        %v5584 = vunpack.c.h.b16 %v4096
        %v5585 = vunpack.c.l.b16 %v4097
        %v5586 = vunpack.c.h.b16 %v4097
        %v5587 = vunpack.c.l.b16 %v4098
        %v5588 = vunpack.c.h.b16 %v4098
        %v5589 = vunpack.c.l.b16 %v4099
        %v5590 = vunpack.c.h.b16 %v4099
        %v5591 = vunpack.c.l.b16 %v4100
        %v5592 = vunpack.c.h.b16 %v4100
        %v5593 = vunpack.c.l.b16 %v4101
        %v5594 = vunpack.c.h.b16 %v4101
        %v5595 = vunpack.c.l.b16 %v4102
        %v5596 = vunpack.c.h.b16 %v4102
        %v5597 = vunpack.c.l.b16 %v4103
        %v5598 = vunpack.c.h.b16 %v4103
        %v5599 = vunpack.c.l.b16 %v4104
        %v5600 = vunpack.c.h.b16 %v4104
        %v5601 = vunpack.c.l.b16 %v4105
        %v5602 = vunpack.c.h.b16 %v4105
        %v5603 = vunpack.c.l.b16 %v4106
        %v5604 = vunpack.c.h.b16 %v4106
        %v5605 = vunpack.c.l.b16 %v4107
        %v5606 = vunpack.c.h.b16 %v4107
        %v5607 = vunpack.c.l.b16 %v4108
        %v5608 = vunpack.c.h.b16 %v4108
        %v5609 = vunpack.c.l.b16 %v4109
        %v5610 = vunpack.c.h.b16 %v4109
        %v5611 = vunpack.c.l.b16 %v4110
        %v5612 = vunpack.c.h.b16 %v4110
        %v5613 = vunpack.c.l.b16 %v4111
        %v5614 = vunpack.c.h.b16 %v4111
        %v5615 = vunpack.c.l.b16 %v4112
        %v5616 = vunpack.c.h.b16 %v4112
        %v5617 = vunpack.c.l.b16 %v4113
        %v5618 = vunpack.c.h.b16 %v4113
        %v5619 = vunpack.c.l.b16 %v4114
        %v5620 = vunpack.c.h.b16 %v4114
        %v5621 = vunpack.c.l.b16 %v4115
        %v5622 = vunpack.c.h.b16 %v4115
        %v5623 = vunpack.c.l.b16 %v4116
        %v5624 = vunpack.c.h.b16 %v4116
        %v5625 = vunpack.c.l.b16 %v4117
        %v5626 = vunpack.c.h.b16 %v4117
        %v5627 = vunpack.c.l.b16 %v4118
        %v5628 = vunpack.c.h.b16 %v4118
        %v5629 = vunpack.c.l.b16 %v4119
        %v5630 = vunpack.c.h.b16 %v4119
        %v5631 = vunpack.c.l.b16 %v4120
        %v5632 = vunpack.c.h.b16 %v4120
        %v5633 = vunpack.c.l.b16 %v4121
        %v5634 = vunpack.c.h.b16 %v4121
        %v5635 = vunpack.c.l.b16 %v4122
        %v5636 = vunpack.c.h.b16 %v4122
        %v5637 = vunpack.c.l.b16 %v4123
        %v5638 = vunpack.c.h.b16 %v4123
        %v5639 = vunpack.c.l.b16 %v4124
        %v5640 = vunpack.c.h.b16 %v4124
        %v5641 = vunpack.c.l.b16 %v4125
        %v5642 = vunpack.c.h.b16 %v4125
        %v5643 = vunpack.c.l.b16 %v4126
        %v5644 = vunpack.c.h.b16 %v4126
        %v5645 = vunpack.c.l.b16 %v4127
        %v5646 = vunpack.c.h.b16 %v4127
        %v5647 = vunpack.c.l.b16 %v4128
        %v5648 = vunpack.c.h.b16 %v4128
        %v5649 = vunpack.c.l.b16 %v4129
        %v5650 = vunpack.c.h.b16 %v4129
        %v5651 = vunpack.c.l.b16 %v4130
        %v5652 = vunpack.c.h.b16 %v4130
        %v5653 = vunpack.c.l.b16 %v4131
        %v5654 = vunpack.c.h.b16 %v4131
        %v5655 = vunpack.c.l.b16 %v4132
        %v5656 = vunpack.c.h.b16 %v4132
        %v5657 = vunpack.c.l.b16 %v4133
        %v5658 = vunpack.c.h.b16 %v4133
        %v5659 = vunpack.c.l.b16 %v4134
        %v5660 = vunpack.c.h.b16 %v4134
        %v5661 = vunpack.c.l.b16 %v4135
        %v5662 = vunpack.c.h.b16 %v4135
        %v5663 = vunpack.c.l.b16 %v4136
        %v5664 = vunpack.c.h.b16 %v4136
        %v5665 = vunpack.c.l.b16 %v4137
        %v5666 = vunpack.c.h.b16 %v4137
        %v5667 = vunpack.c.l.b16 %v4138
        %v5668 = vunpack.c.h.b16 %v4138
        %v5669 = vunpack.c.l.b16 %v4139
        %v5670 = vunpack.c.h.b16 %v4139
        %v5671 = vunpack.c.l.b16 %v4140
        %v5672 = vunpack.c.h.b16 %v4140
        %v5673 = vunpack.c.l.b16 %v4141
        %v5674 = vunpack.c.h.b16 %v4141
        %v5675 = vunpack.c.l.b16 %v4142
        %v5676 = vunpack.c.h.b16 %v4142
        %v5677 = vunpack.c.l.b16 %v4143
        %v5678 = vunpack.c.h.b16 %v4143
        %v5679 = vunpack.c.l.b16 %v4144
        %v5680 = vunpack.c.h.b16 %v4144
        %v5681 = vunpack.c.l.b16 %v4145
        %v5682 = vunpack.c.h.b16 %v4145
        %v5683 = vunpack.c.l.b16 %v4146
        %v5684 = vunpack.c.h.b16 %v4146
        %v5685 = vunpack.c.l.b16 %v4147
        %v5686 = vunpack.c.h.b16 %v4147
        %v5687 = vunpack.c.l.b16 %v4148
        %v5688 = vunpack.c.h.b16 %v4148
        %v5689 = vunpack.c.l.b16 %v4149
        %v5690 = vunpack.c.h.b16 %v4149
        %v5691 = vunpack.c.l.b16 %v4150
        %v5692 = vunpack.c.h.b16 %v4150
        %v5693 = vunpack.c.l.b16 %v4151
        %v5694 = vunpack.c.h.b16 %v4151
        %v5695 = vunpack.c.l.b16 %v4152
        %v5696 = vunpack.c.h.b16 %v4152
        %v5697 = vunpack.c.l.b16 %v4153
        %v5698 = vunpack.c.h.b16 %v4153
        %v5699 = vunpack.c.l.b16 %v4154
        %v5700 = vunpack.c.h.b16 %v4154
        %v5701 = vpack.c.b16 %v4685, %v4677
        %v5702 = vpack.c.b16 %v4686, %v4678
        %v5703 = vpack.c.b16 %v4687, %v4679
        %v5704 = vpack.c.b16 %v4688, %v4680
        %v5705 = vpack.c.b16 %v4689, %v4681
        %v5706 = vpack.c.b16 %v4690, %v4682
        %v5707 = vpack.c.b16 %v4691, %v4683
        %v5708 = vpack.c.b16 %v4692, %v4684
        %v5709 = vpack.c.b16 %v4701, %v4693
        %v5710 = vpack.c.b16 %v4702, %v4694
        %v5711 = vpack.c.b16 %v4703, %v4695
        %v5712 = vpack.c.b16 %v4704, %v4696
        %v5713 = vpack.c.b16 %v4705, %v4697
        %v5714 = vpack.c.b16 %v4706, %v4698
        %v5715 = vpack.c.b16 %v4707, %v4699
        %v5716 = vpack.c.b16 %v4708, %v4700
        %v5717 = vpack.c.b16 %v4717, %v4709
        %v5718 = vpack.c.b16 %v4718, %v4710
        %v5719 = vpack.c.b16 %v4719, %v4711
        %v5720 = vpack.c.b16 %v4720, %v4712
        %v5721 = vpack.c.b16 %v4721, %v4713
        %v5722 = vpack.c.b16 %v4722, %v4714
        %v5723 = vpack.c.b16 %v4723, %v4715
        %v5724 = vpack.c.b16 %v4724, %v4716
        %v5725 = vpack.c.b16 %v4733, %v4725
        %v5726 = vpack.c.b16 %v4734, %v4726
        %v5727 = vpack.c.b16 %v4735, %v4727
        %v5728 = vpack.c.b16 %v4736, %v4728
        %v5729 = vpack.c.b16 %v4737, %v4729
        %v5730 = vpack.c.b16 %v4738, %v4730
        %v5731 = vpack.c.b16 %v4739, %v4731
        %v5732 = vpack.c.b16 %v4740, %v4732
        %v5733 = vpack.c.b16 %v4749, %v4741
        %v5734 = vpack.c.b16 %v4750, %v4742
        %v5735 = vpack.c.b16 %v4751, %v4743
        %v5736 = vpack.c.b16 %v4752, %v4744
        %v5737 = vpack.c.b16 %v4753, %v4745
        %v5738 = vpack.c.b16 %v4754, %v4746
        %v5739 = vpack.c.b16 %v4755, %v4747
        %v5740 = vpack.c.b16 %v4756, %v4748
        %v5741 = vpack.c.b16 %v4765, %v4757
        %v5742 = vpack.c.b16 %v4766, %v4758
        %v5743 = vpack.c.b16 %v4767, %v4759
        %v5744 = vpack.c.b16 %v4768, %v4760
        %v5745 = vpack.c.b16 %v4769, %v4761
        %v5746 = vpack.c.b16 %v4770, %v4762
        %v5747 = vpack.c.b16 %v4771, %v4763
        %v5748 = vpack.c.b16 %v4772, %v4764
        %v5749 = vpack.c.b16 %v4781, %v4773
        %v5750 = vpack.c.b16 %v4782, %v4774
        %v5751 = vpack.c.b16 %v4783, %v4775
        %v5752 = vpack.c.b16 %v4784, %v4776
        %v5753 = vpack.c.b16 %v4785, %v4777
        %v5754 = vpack.c.b16 %v4786, %v4778
        %v5755 = vpack.c.b16 %v4787, %v4779
        %v5756 = vpack.c.b16 %v4788, %v4780
        %v5757 = vpack.c.b16 %v4797, %v4789
        %v5758 = vpack.c.b16 %v4798, %v4790
        %v5759 = vpack.c.b16 %v4799, %v4791
        %v5760 = vpack.c.b16 %v4800, %v4792
        %v5761 = vpack.c.b16 %v4801, %v4793
        %v5762 = vpack.c.b16 %v4802, %v4794
        %v5763 = vpack.c.b16 %v4803, %v4795
        %v5764 = vpack.c.b16 %v4804, %v4796
        %v5765 = vpack.c.b16 %v4813, %v4805
        %v5766 = vpack.c.b16 %v4814, %v4806
        %v5767 = vpack.c.b16 %v4815, %v4807
        %v5768 = vpack.c.b16 %v4816, %v4808
        %v5769 = vpack.c.b16 %v4817, %v4809
        %v5770 = vpack.c.b16 %v4818, %v4810
        %v5771 = vpack.c.b16 %v4819, %v4811
        %v5772 = vpack.c.b16 %v4820, %v4812
        %v5773 = vpack.c.b16 %v4829, %v4821
        %v5774 = vpack.c.b16 %v4830, %v4822
        %v5775 = vpack.c.b16 %v4831, %v4823
        %v5776 = vpack.c.b16 %v4832, %v4824
        %v5777 = vpack.c.b16 %v4833, %v4825
        %v5778 = vpack.c.b16 %v4834, %v4826
        %v5779 = vpack.c.b16 %v4835, %v4827
        %v5780 = vpack.c.b16 %v4836, %v4828
        %v5781 = vpack.c.b16 %v4845, %v4837
        %v5782 = vpack.c.b16 %v4846, %v4838
        %v5783 = vpack.c.b16 %v4847, %v4839
        %v5784 = vpack.c.b16 %v4848, %v4840
        %v5785 = vpack.c.b16 %v4849, %v4841
        %v5786 = vpack.c.b16 %v4850, %v4842
        %v5787 = vpack.c.b16 %v4851, %v4843
        %v5788 = vpack.c.b16 %v4852, %v4844
        %v5789 = vpack.c.b16 %v4861, %v4853
        %v5790 = vpack.c.b16 %v4862, %v4854
        %v5791 = vpack.c.b16 %v4863, %v4855
        %v5792 = vpack.c.b16 %v4864, %v4856
        %v5793 = vpack.c.b16 %v4865, %v4857
        %v5794 = vpack.c.b16 %v4866, %v4858
        %v5795 = vpack.c.b16 %v4867, %v4859
        %v5796 = vpack.c.b16 %v4868, %v4860
        %v5797 = vpack.c.b16 %v4877, %v4869
        %v5798 = vpack.c.b16 %v4878, %v4870
        %v5799 = vpack.c.b16 %v4879, %v4871
        %v5800 = vpack.c.b16 %v4880, %v4872
        %v5801 = vpack.c.b16 %v4881, %v4873
        %v5802 = vpack.c.b16 %v4882, %v4874
        %v5803 = vpack.c.b16 %v4883, %v4875
        %v5804 = vpack.c.b16 %v4884, %v4876
        %v5805 = vpack.c.b16 %v4893, %v4885
        %v5806 = vpack.c.b16 %v4894, %v4886
        %v5807 = vpack.c.b16 %v4895, %v4887
        %v5808 = vpack.c.b16 %v4896, %v4888
        %v5809 = vpack.c.b16 %v4897, %v4889
        %v5810 = vpack.c.b16 %v4898, %v4890
        %v5811 = vpack.c.b16 %v4899, %v4891
        %v5812 = vpack.c.b16 %v4900, %v4892
        %v5813 = vpack.c.b16 %v4909, %v4901
        %v5814 = vpack.c.b16 %v4910, %v4902
        %v5815 = vpack.c.b16 %v4911, %v4903
        %v5816 = vpack.c.b16 %v4912, %v4904
        %v5817 = vpack.c.b16 %v4913, %v4905
        %v5818 = vpack.c.b16 %v4914, %v4906
        %v5819 = vpack.c.b16 %v4915, %v4907
        %v5820 = vpack.c.b16 %v4916, %v4908
        %v5821 = vpack.c.b16 %v4925, %v4917
        %v5822 = vpack.c.b16 %v4926, %v4918
        %v5823 = vpack.c.b16 %v4927, %v4919
        %v5824 = vpack.c.b16 %v4928, %v4920
        %v5825 = vpack.c.b16 %v4929, %v4921
        %v5826 = vpack.c.b16 %v4930, %v4922
        %v5827 = vpack.c.b16 %v4931, %v4923
        %v5828 = vpack.c.b16 %v4932, %v4924
        %v5829 = vpack.c.b16 %v4941, %v4933
        %v5830 = vpack.c.b16 %v4942, %v4934
        %v5831 = vpack.c.b16 %v4943, %v4935
        %v5832 = vpack.c.b16 %v4944, %v4936
        %v5833 = vpack.c.b16 %v4945, %v4937
        %v5834 = vpack.c.b16 %v4946, %v4938
        %v5835 = vpack.c.b16 %v4947, %v4939
        %v5836 = vpack.c.b16 %v4948, %v4940
        %v5837 = vpack.c.b16 %v4957, %v4949
        %v5838 = vpack.c.b16 %v4958, %v4950
        %v5839 = vpack.c.b16 %v4959, %v4951
        %v5840 = vpack.c.b16 %v4960, %v4952
        %v5841 = vpack.c.b16 %v4961, %v4953
        %v5842 = vpack.c.b16 %v4962, %v4954
        %v5843 = vpack.c.b16 %v4963, %v4955
        %v5844 = vpack.c.b16 %v4964, %v4956
        %v5845 = vpack.c.b16 %v4973, %v4965
        %v5846 = vpack.c.b16 %v4974, %v4966
        %v5847 = vpack.c.b16 %v4975, %v4967
        %v5848 = vpack.c.b16 %v4976, %v4968
        %v5849 = vpack.c.b16 %v4977, %v4969
        %v5850 = vpack.c.b16 %v4978, %v4970
        %v5851 = vpack.c.b16 %v4979, %v4971
        %v5852 = vpack.c.b16 %v4980, %v4972
        %v5853 = vpack.c.b16 %v4989, %v4981
        %v5854 = vpack.c.b16 %v4990, %v4982
        %v5855 = vpack.c.b16 %v4991, %v4983
        %v5856 = vpack.c.b16 %v4992, %v4984
        %v5857 = vpack.c.b16 %v4993, %v4985
        %v5858 = vpack.c.b16 %v4994, %v4986
        %v5859 = vpack.c.b16 %v4995, %v4987
        %v5860 = vpack.c.b16 %v4996, %v4988
        %v5861 = vpack.c.b16 %v5005, %v4997
        %v5862 = vpack.c.b16 %v5006, %v4998
        %v5863 = vpack.c.b16 %v5007, %v4999
        %v5864 = vpack.c.b16 %v5008, %v5000
        %v5865 = vpack.c.b16 %v5009, %v5001
        %v5866 = vpack.c.b16 %v5010, %v5002
        %v5867 = vpack.c.b16 %v5011, %v5003
        %v5868 = vpack.c.b16 %v5012, %v5004
        %v5869 = vpack.c.b16 %v5021, %v5013
        %v5870 = vpack.c.b16 %v5022, %v5014
        %v5871 = vpack.c.b16 %v5023, %v5015
        %v5872 = vpack.c.b16 %v5024, %v5016
        %v5873 = vpack.c.b16 %v5025, %v5017
        %v5874 = vpack.c.b16 %v5026, %v5018
        %v5875 = vpack.c.b16 %v5027, %v5019
        %v5876 = vpack.c.b16 %v5028, %v5020
        %v5877 = vpack.c.b16 %v5037, %v5029
        %v5878 = vpack.c.b16 %v5038, %v5030
        %v5879 = vpack.c.b16 %v5039, %v5031
        %v5880 = vpack.c.b16 %v5040, %v5032
        %v5881 = vpack.c.b16 %v5041, %v5033
        %v5882 = vpack.c.b16 %v5042, %v5034
        %v5883 = vpack.c.b16 %v5043, %v5035
        %v5884 = vpack.c.b16 %v5044, %v5036
        %v5885 = vpack.c.b16 %v5053, %v5045
        %v5886 = vpack.c.b16 %v5054, %v5046
        %v5887 = vpack.c.b16 %v5055, %v5047
        %v5888 = vpack.c.b16 %v5056, %v5048
        %v5889 = vpack.c.b16 %v5057, %v5049
        %v5890 = vpack.c.b16 %v5058, %v5050
        %v5891 = vpack.c.b16 %v5059, %v5051
        %v5892 = vpack.c.b16 %v5060, %v5052
        %v5893 = vpack.c.b16 %v5069, %v5061
        %v5894 = vpack.c.b16 %v5070, %v5062
        %v5895 = vpack.c.b16 %v5071, %v5063
        %v5896 = vpack.c.b16 %v5072, %v5064
        %v5897 = vpack.c.b16 %v5073, %v5065
        %v5898 = vpack.c.b16 %v5074, %v5066
        %v5899 = vpack.c.b16 %v5075, %v5067
        %v5900 = vpack.c.b16 %v5076, %v5068
        %v5901 = vpack.c.b16 %v5085, %v5077
        %v5902 = vpack.c.b16 %v5086, %v5078
        %v5903 = vpack.c.b16 %v5087, %v5079
        %v5904 = vpack.c.b16 %v5088, %v5080
        %v5905 = vpack.c.b16 %v5089, %v5081
        %v5906 = vpack.c.b16 %v5090, %v5082
        %v5907 = vpack.c.b16 %v5091, %v5083
        %v5908 = vpack.c.b16 %v5092, %v5084
        %v5909 = vpack.c.b16 %v5101, %v5093
        %v5910 = vpack.c.b16 %v5102, %v5094
        %v5911 = vpack.c.b16 %v5103, %v5095
        %v5912 = vpack.c.b16 %v5104, %v5096
        %v5913 = vpack.c.b16 %v5105, %v5097
        %v5914 = vpack.c.b16 %v5106, %v5098
        %v5915 = vpack.c.b16 %v5107, %v5099
        %v5916 = vpack.c.b16 %v5108, %v5100
        %v5917 = vpack.c.b16 %v5117, %v5109
        %v5918 = vpack.c.b16 %v5118, %v5110
        %v5919 = vpack.c.b16 %v5119, %v5111
        %v5920 = vpack.c.b16 %v5120, %v5112
        %v5921 = vpack.c.b16 %v5121, %v5113
        %v5922 = vpack.c.b16 %v5122, %v5114
        %v5923 = vpack.c.b16 %v5123, %v5115
        %v5924 = vpack.c.b16 %v5124, %v5116
        %v5925 = vpack.c.b16 %v5133, %v5125
        %v5926 = vpack.c.b16 %v5134, %v5126
        %v5927 = vpack.c.b16 %v5135, %v5127
        %v5928 = vpack.c.b16 %v5136, %v5128
        %v5929 = vpack.c.b16 %v5137, %v5129
        %v5930 = vpack.c.b16 %v5138, %v5130
        %v5931 = vpack.c.b16 %v5139, %v5131
        %v5932 = vpack.c.b16 %v5140, %v5132
        %v5933 = vpack.c.b16 %v5149, %v5141
        %v5934 = vpack.c.b16 %v5150, %v5142
        %v5935 = vpack.c.b16 %v5151, %v5143
        %v5936 = vpack.c.b16 %v5152, %v5144
        %v5937 = vpack.c.b16 %v5153, %v5145
        %v5938 = vpack.c.b16 %v5154, %v5146
        %v5939 = vpack.c.b16 %v5155, %v5147
        %v5940 = vpack.c.b16 %v5156, %v5148
        %v5941 = vpack.c.b16 %v5165, %v5157
        %v5942 = vpack.c.b16 %v5166, %v5158
        %v5943 = vpack.c.b16 %v5167, %v5159
        %v5944 = vpack.c.b16 %v5168, %v5160
        %v5945 = vpack.c.b16 %v5169, %v5161
        %v5946 = vpack.c.b16 %v5170, %v5162
        %v5947 = vpack.c.b16 %v5171, %v5163
        %v5948 = vpack.c.b16 %v5172, %v5164
        %v5949 = vpack.c.b16 %v5181, %v5173
        %v5950 = vpack.c.b16 %v5182, %v5174
        %v5951 = vpack.c.b16 %v5183, %v5175
        %v5952 = vpack.c.b16 %v5184, %v5176
        %v5953 = vpack.c.b16 %v5185, %v5177
        %v5954 = vpack.c.b16 %v5186, %v5178
        %v5955 = vpack.c.b16 %v5187, %v5179
        %v5956 = vpack.c.b16 %v5188, %v5180
        %v5957 = vpack.c.b16 %v5197, %v5189
        %v5958 = vpack.c.b16 %v5198, %v5190
        %v5959 = vpack.c.b16 %v5199, %v5191
        %v5960 = vpack.c.b16 %v5200, %v5192
        %v5961 = vpack.c.b16 %v5201, %v5193
        %v5962 = vpack.c.b16 %v5202, %v5194
        %v5963 = vpack.c.b16 %v5203, %v5195
        %v5964 = vpack.c.b16 %v5204, %v5196
        %v5965 = vpack.c.b16 %v5213, %v5205
        %v5966 = vpack.c.b16 %v5214, %v5206
        %v5967 = vpack.c.b16 %v5215, %v5207
        %v5968 = vpack.c.b16 %v5216, %v5208
        %v5969 = vpack.c.b16 %v5217, %v5209
        %v5970 = vpack.c.b16 %v5218, %v5210
        %v5971 = vpack.c.b16 %v5219, %v5211
        %v5972 = vpack.c.b16 %v5220, %v5212
        %v5973 = vpack.c.b16 %v5229, %v5221
        %v5974 = vpack.c.b16 %v5230, %v5222
        %v5975 = vpack.c.b16 %v5231, %v5223
        %v5976 = vpack.c.b16 %v5232, %v5224
        %v5977 = vpack.c.b16 %v5233, %v5225
        %v5978 = vpack.c.b16 %v5234, %v5226
        %v5979 = vpack.c.b16 %v5235, %v5227
        %v5980 = vpack.c.b16 %v5236, %v5228
        %v5981 = vpack.c.b16 %v5245, %v5237
        %v5982 = vpack.c.b16 %v5246, %v5238
        %v5983 = vpack.c.b16 %v5247, %v5239
        %v5984 = vpack.c.b16 %v5248, %v5240
        %v5985 = vpack.c.b16 %v5249, %v5241
        %v5986 = vpack.c.b16 %v5250, %v5242
        %v5987 = vpack.c.b16 %v5251, %v5243
        %v5988 = vpack.c.b16 %v5252, %v5244
        %v5989 = vpack.c.b16 %v5261, %v5253
        %v5990 = vpack.c.b16 %v5262, %v5254
        %v5991 = vpack.c.b16 %v5263, %v5255
        %v5992 = vpack.c.b16 %v5264, %v5256
        %v5993 = vpack.c.b16 %v5265, %v5257
        %v5994 = vpack.c.b16 %v5266, %v5258
        %v5995 = vpack.c.b16 %v5267, %v5259
        %v5996 = vpack.c.b16 %v5268, %v5260
        %v5997 = vpack.c.b16 %v5277, %v5269
        %v5998 = vpack.c.b16 %v5278, %v5270
        %v5999 = vpack.c.b16 %v5279, %v5271
        %v6000 = vpack.c.b16 %v5280, %v5272
        %v6001 = vpack.c.b16 %v5281, %v5273
        %v6002 = vpack.c.b16 %v5282, %v5274
        %v6003 = vpack.c.b16 %v5283, %v5275
        %v6004 = vpack.c.b16 %v5284, %v5276
        %v6005 = vpack.c.b16 %v5293, %v5285
        %v6006 = vpack.c.b16 %v5294, %v5286
        %v6007 = vpack.c.b16 %v5295, %v5287
        %v6008 = vpack.c.b16 %v5296, %v5288
        %v6009 = vpack.c.b16 %v5297, %v5289
        %v6010 = vpack.c.b16 %v5298, %v5290
        %v6011 = vpack.c.b16 %v5299, %v5291
        %v6012 = vpack.c.b16 %v5300, %v5292
        %v6013 = vpack.c.b16 %v5309, %v5301
        %v6014 = vpack.c.b16 %v5310, %v5302
        %v6015 = vpack.c.b16 %v5311, %v5303
        %v6016 = vpack.c.b16 %v5312, %v5304
        %v6017 = vpack.c.b16 %v5313, %v5305
        %v6018 = vpack.c.b16 %v5314, %v5306
        %v6019 = vpack.c.b16 %v5315, %v5307
        %v6020 = vpack.c.b16 %v5316, %v5308
        %v6021 = vpack.c.b16 %v5325, %v5317
        %v6022 = vpack.c.b16 %v5326, %v5318
        %v6023 = vpack.c.b16 %v5327, %v5319
        %v6024 = vpack.c.b16 %v5328, %v5320
        %v6025 = vpack.c.b16 %v5329, %v5321
        %v6026 = vpack.c.b16 %v5330, %v5322
        %v6027 = vpack.c.b16 %v5331, %v5323
        %v6028 = vpack.c.b16 %v5332, %v5324
        %v6029 = vpack.c.b16 %v5341, %v5333
        %v6030 = vpack.c.b16 %v5342, %v5334
        %v6031 = vpack.c.b16 %v5343, %v5335
        %v6032 = vpack.c.b16 %v5344, %v5336
        %v6033 = vpack.c.b16 %v5345, %v5337
        %v6034 = vpack.c.b16 %v5346, %v5338
        %v6035 = vpack.c.b16 %v5347, %v5339
        %v6036 = vpack.c.b16 %v5348, %v5340
        %v6037 = vpack.c.b16 %v5357, %v5349
        %v6038 = vpack.c.b16 %v5358, %v5350
        %v6039 = vpack.c.b16 %v5359, %v5351
        %v6040 = vpack.c.b16 %v5360, %v5352
        %v6041 = vpack.c.b16 %v5361, %v5353
        %v6042 = vpack.c.b16 %v5362, %v5354
        %v6043 = vpack.c.b16 %v5363, %v5355
        %v6044 = vpack.c.b16 %v5364, %v5356
        %v6045 = vpack.c.b16 %v5373, %v5365
        %v6046 = vpack.c.b16 %v5374, %v5366
        %v6047 = vpack.c.b16 %v5375, %v5367
        %v6048 = vpack.c.b16 %v5376, %v5368
        %v6049 = vpack.c.b16 %v5377, %v5369
        %v6050 = vpack.c.b16 %v5378, %v5370
        %v6051 = vpack.c.b16 %v5379, %v5371
        %v6052 = vpack.c.b16 %v5380, %v5372
        %v6053 = vpack.c.b16 %v5389, %v5381
        %v6054 = vpack.c.b16 %v5390, %v5382
        %v6055 = vpack.c.b16 %v5391, %v5383
        %v6056 = vpack.c.b16 %v5392, %v5384
        %v6057 = vpack.c.b16 %v5393, %v5385
        %v6058 = vpack.c.b16 %v5394, %v5386
        %v6059 = vpack.c.b16 %v5395, %v5387
        %v6060 = vpack.c.b16 %v5396, %v5388
        %v6061 = vpack.c.b16 %v5405, %v5397
        %v6062 = vpack.c.b16 %v5406, %v5398
        %v6063 = vpack.c.b16 %v5407, %v5399
        %v6064 = vpack.c.b16 %v5408, %v5400
        %v6065 = vpack.c.b16 %v5409, %v5401
        %v6066 = vpack.c.b16 %v5410, %v5402
        %v6067 = vpack.c.b16 %v5411, %v5403
        %v6068 = vpack.c.b16 %v5412, %v5404
        %v6069 = vpack.c.b16 %v5421, %v5413
        %v6070 = vpack.c.b16 %v5422, %v5414
        %v6071 = vpack.c.b16 %v5423, %v5415
        %v6072 = vpack.c.b16 %v5424, %v5416
        %v6073 = vpack.c.b16 %v5425, %v5417
        %v6074 = vpack.c.b16 %v5426, %v5418
        %v6075 = vpack.c.b16 %v5427, %v5419
        %v6076 = vpack.c.b16 %v5428, %v5420
        %v6077 = vpack.c.b16 %v5437, %v5429
        %v6078 = vpack.c.b16 %v5438, %v5430
        %v6079 = vpack.c.b16 %v5439, %v5431
        %v6080 = vpack.c.b16 %v5440, %v5432
        %v6081 = vpack.c.b16 %v5441, %v5433
        %v6082 = vpack.c.b16 %v5442, %v5434
        %v6083 = vpack.c.b16 %v5443, %v5435
        %v6084 = vpack.c.b16 %v5444, %v5436
        %v6085 = vpack.c.b16 %v5453, %v5445
        %v6086 = vpack.c.b16 %v5454, %v5446
        %v6087 = vpack.c.b16 %v5455, %v5447
        %v6088 = vpack.c.b16 %v5456, %v5448
        %v6089 = vpack.c.b16 %v5457, %v5449
        %v6090 = vpack.c.b16 %v5458, %v5450
        %v6091 = vpack.c.b16 %v5459, %v5451
        %v6092 = vpack.c.b16 %v5460, %v5452
        %v6093 = vpack.c.b16 %v5469, %v5461
        %v6094 = vpack.c.b16 %v5470, %v5462
        %v6095 = vpack.c.b16 %v5471, %v5463
        %v6096 = vpack.c.b16 %v5472, %v5464
        %v6097 = vpack.c.b16 %v5473, %v5465
        %v6098 = vpack.c.b16 %v5474, %v5466
        %v6099 = vpack.c.b16 %v5475, %v5467
        %v6100 = vpack.c.b16 %v5476, %v5468
        %v6101 = vpack.c.b16 %v5485, %v5477
        %v6102 = vpack.c.b16 %v5486, %v5478
        %v6103 = vpack.c.b16 %v5487, %v5479
        %v6104 = vpack.c.b16 %v5488, %v5480
        %v6105 = vpack.c.b16 %v5489, %v5481
        %v6106 = vpack.c.b16 %v5490, %v5482
        %v6107 = vpack.c.b16 %v5491, %v5483
        %v6108 = vpack.c.b16 %v5492, %v5484
        %v6109 = vpack.c.b16 %v5501, %v5493
        %v6110 = vpack.c.b16 %v5502, %v5494
        %v6111 = vpack.c.b16 %v5503, %v5495
        %v6112 = vpack.c.b16 %v5504, %v5496
        %v6113 = vpack.c.b16 %v5505, %v5497
        %v6114 = vpack.c.b16 %v5506, %v5498
        %v6115 = vpack.c.b16 %v5507, %v5499
        %v6116 = vpack.c.b16 %v5508, %v5500
        %v6117 = vpack.c.b16 %v5517, %v5509
        %v6118 = vpack.c.b16 %v5518, %v5510
        %v6119 = vpack.c.b16 %v5519, %v5511
        %v6120 = vpack.c.b16 %v5520, %v5512
        %v6121 = vpack.c.b16 %v5521, %v5513
        %v6122 = vpack.c.b16 %v5522, %v5514
        %v6123 = vpack.c.b16 %v5523, %v5515
        %v6124 = vpack.c.b16 %v5524, %v5516
        %v6125 = vpack.c.b16 %v5533, %v5525
        %v6126 = vpack.c.b16 %v5534, %v5526
        %v6127 = vpack.c.b16 %v5535, %v5527
        %v6128 = vpack.c.b16 %v5536, %v5528
        %v6129 = vpack.c.b16 %v5537, %v5529
        %v6130 = vpack.c.b16 %v5538, %v5530
        %v6131 = vpack.c.b16 %v5539, %v5531
        %v6132 = vpack.c.b16 %v5540, %v5532
        %v6133 = vpack.c.b16 %v5549, %v5541
        %v6134 = vpack.c.b16 %v5550, %v5542
        %v6135 = vpack.c.b16 %v5551, %v5543
        %v6136 = vpack.c.b16 %v5552, %v5544
        %v6137 = vpack.c.b16 %v5553, %v5545
        %v6138 = vpack.c.b16 %v5554, %v5546
        %v6139 = vpack.c.b16 %v5555, %v5547
        %v6140 = vpack.c.b16 %v5556, %v5548
        %v6141 = vpack.c.b16 %v5565, %v5557
        %v6142 = vpack.c.b16 %v5566, %v5558
        %v6143 = vpack.c.b16 %v5567, %v5559
        %v6144 = vpack.c.b16 %v5568, %v5560
        %v6145 = vpack.c.b16 %v5569, %v5561
        %v6146 = vpack.c.b16 %v5570, %v5562
        %v6147 = vpack.c.b16 %v5571, %v5563
        %v6148 = vpack.c.b16 %v5572, %v5564
        %v6149 = vpack.c.b16 %v5581, %v5573
        %v6150 = vpack.c.b16 %v5582, %v5574
        %v6151 = vpack.c.b16 %v5583, %v5575
        %v6152 = vpack.c.b16 %v5584, %v5576
        %v6153 = vpack.c.b16 %v5585, %v5577
        %v6154 = vpack.c.b16 %v5586, %v5578
        %v6155 = vpack.c.b16 %v5587, %v5579
        %v6156 = vpack.c.b16 %v5588, %v5580
        %v6157 = vpack.c.b16 %v5597, %v5589
        %v6158 = vpack.c.b16 %v5598, %v5590
        %v6159 = vpack.c.b16 %v5599, %v5591
        %v6160 = vpack.c.b16 %v5600, %v5592
        %v6161 = vpack.c.b16 %v5601, %v5593
        %v6162 = vpack.c.b16 %v5602, %v5594
        %v6163 = vpack.c.b16 %v5603, %v5595
        %v6164 = vpack.c.b16 %v5604, %v5596
        %v6165 = vpack.c.b16 %v5613, %v5605
        %v6166 = vpack.c.b16 %v5614, %v5606
        %v6167 = vpack.c.b16 %v5615, %v5607
        %v6168 = vpack.c.b16 %v5616, %v5608
        %v6169 = vpack.c.b16 %v5617, %v5609
        %v6170 = vpack.c.b16 %v5618, %v5610
        %v6171 = vpack.c.b16 %v5619, %v5611
        %v6172 = vpack.c.b16 %v5620, %v5612
        %v6173 = vpack.c.b16 %v5629, %v5621
        %v6174 = vpack.c.b16 %v5630, %v5622
        %v6175 = vpack.c.b16 %v5631, %v5623
        %v6176 = vpack.c.b16 %v5632, %v5624
        %v6177 = vpack.c.b16 %v5633, %v5625
        %v6178 = vpack.c.b16 %v5634, %v5626
        %v6179 = vpack.c.b16 %v5635, %v5627
        %v6180 = vpack.c.b16 %v5636, %v5628
        %v6181 = vpack.c.b16 %v5645, %v5637
        %v6182 = vpack.c.b16 %v5646, %v5638
        %v6183 = vpack.c.b16 %v5647, %v5639
        %v6184 = vpack.c.b16 %v5648, %v5640
        %v6185 = vpack.c.b16 %v5649, %v5641
        %v6186 = vpack.c.b16 %v5650, %v5642
        %v6187 = vpack.c.b16 %v5651, %v5643
        %v6188 = vpack.c.b16 %v5652, %v5644
        %v6189 = vpack.c.b16 %v5661, %v5653
        %v6190 = vpack.c.b16 %v5662, %v5654
        %v6191 = vpack.c.b16 %v5663, %v5655
        %v6192 = vpack.c.b16 %v5664, %v5656
        %v6193 = vpack.c.b16 %v5665, %v5657
        %v6194 = vpack.c.b16 %v5666, %v5658
        %v6195 = vpack.c.b16 %v5667, %v5659
        %v6196 = vpack.c.b16 %v5668, %v5660
        %v6197 = vpack.c.b16 %v5677, %v5669
        %v6198 = vpack.c.b16 %v5678, %v5670
        %v6199 = vpack.c.b16 %v5679, %v5671
        %v6200 = vpack.c.b16 %v5680, %v5672
        %v6201 = vpack.c.b16 %v5681, %v5673
        %v6202 = vpack.c.b16 %v5682, %v5674
        %v6203 = vpack.c.b16 %v5683, %v5675
        %v6204 = vpack.c.b16 %v5684, %v5676
        %v6205 = vpack.c.b16 %v5693, %v5685
        %v6206 = vpack.c.b16 %v5694, %v5686
        %v6207 = vpack.c.b16 %v5695, %v5687
        %v6208 = vpack.c.b16 %v5696, %v5688
        %v6209 = vpack.c.b16 %v5697, %v5689
        %v6210 = vpack.c.b16 %v5698, %v5690
        %v6211 = vpack.c.b16 %v5699, %v5691
        %v6212 = vpack.c.b16 %v5700, %v5692
        %6725 = vmatprep.subr.bf16.mxu0 %v5702
        %6726 = vmatpush1.bf16.msra.mxu0 %v5701
        %6727 = vmatprep.subr.bf16.mxu0 %v5710
        %6728 = vmatpush1.bf16.msra.mxu0 %v5709
        %6729 = vmatprep.subr.bf16.mxu0 %v5718
        %6730 = vmatpush1.bf16.msra.mxu0 %v5717
        %6731 = vmatprep.subr.bf16.mxu0 %v5726
        %6732 = vmatpush1.bf16.msra.mxu0 %v5725
        %6733 = vmatprep.subr.bf16.mxu0 %v5734
        %6734 = vmatpush1.bf16.msra.mxu0 %v5733
        %6735 = vmatprep.subr.bf16.mxu0 %v5742
        %6736 = vmatpush1.bf16.msra.mxu0 %v5741
        %6737 = vmatprep.subr.bf16.mxu0 %v5750
        %6738 = vmatpush1.bf16.msra.mxu0 %v5749
        %6739 = vmatprep.subr.bf16.mxu0 %v5758
        %6740 = vmatpush1.bf16.msra.mxu0 %v5757
        %6741 = vmatprep.subr.bf16.mxu0 %v5766
        %6742 = vmatpush1.bf16.msra.mxu0 %v5765
        %6743 = vmatprep.subr.bf16.mxu0 %v5774
        %6744 = vmatpush1.bf16.msra.mxu0 %v5773
        %6745 = vmatprep.subr.bf16.mxu0 %v5782
        %6746 = vmatpush1.bf16.msra.mxu0 %v5781
        %6747 = vmatprep.subr.bf16.mxu0 %v5790
        %6748 = vmatpush1.bf16.msra.mxu0 %v5789
        %6749 = vmatprep.subr.bf16.mxu0 %v5798
        %6750 = vmatpush1.bf16.msra.mxu0 %v5797
        %6751 = vmatprep.subr.bf16.mxu0 %v5806
        %6752 = vmatpush1.bf16.msra.mxu0 %v5805
        %6753 = vmatprep.subr.bf16.mxu0 %v5814
        %6754 = vmatpush1.bf16.msra.mxu0 %v5813
        %6755 = vmatprep.subr.bf16.mxu0 %v5822
        %6756 = vmatpush1.bf16.msra.mxu0 %v5821
        %6757 = vmatprep.mubr.bf16.mxu0 %v4158
        %6758 = vmatmul.mubr.bf16.gmra.mrb[0].mxu0 %v4157
        %v6759 = vpop.f32.mrb[0].mxu0
        %v6760 = vadd.f32 0.0, %v6759
        %v6761 = vpop.f32.mrb[0].mxu0
        %v6762 = vadd.f32 0.0, %v6761
        %v6763 = vpop.f32.mrb[0].mxu0
        %v6764 = vpop.f32.mrb[0].mxu0
        %6765 = vdwg.mxu0
        %6766 = vmatprep.subr.bf16.mxu0 %v5830
        %6767 = vmatpush1.bf16.msra.mxu0 %v5829
        %6768 = vmatprep.subr.bf16.mxu0 %v5838
        %6769 = vmatpush1.bf16.msra.mxu0 %v5837
        %6770 = vmatprep.subr.bf16.mxu0 %v5846
        %6771 = vmatpush1.bf16.msra.mxu0 %v5845
        %6772 = vmatprep.subr.bf16.mxu0 %v5854
        %6773 = vmatpush1.bf16.msra.mxu0 %v5853
        %6774 = vmatprep.subr.bf16.mxu0 %v5862
        %6775 = vmatpush1.bf16.msra.mxu0 %v5861
        %6776 = vmatprep.subr.bf16.mxu0 %v5870
        %6777 = vmatpush1.bf16.msra.mxu0 %v5869
        %6778 = vmatprep.subr.bf16.mxu0 %v5878
        %6779 = vmatpush1.bf16.msra.mxu0 %v5877
        %6780 = vmatprep.subr.bf16.mxu0 %v5886
        %6781 = vmatpush1.bf16.msra.mxu0 %v5885
        %6782 = vmatprep.subr.bf16.mxu0 %v5894
        %6783 = vmatpush1.bf16.msra.mxu0 %v5893
        %6784 = vmatprep.subr.bf16.mxu0 %v5902
        %6785 = vmatpush1.bf16.msra.mxu0 %v5901
        %6786 = vmatprep.subr.bf16.mxu0 %v5910
        %6787 = vmatpush1.bf16.msra.mxu0 %v5909
        %6788 = vmatprep.subr.bf16.mxu0 %v5918
        %6789 = vmatpush1.bf16.msra.mxu0 %v5917
        %6790 = vmatprep.subr.bf16.mxu0 %v5926
        %6791 = vmatpush1.bf16.msra.mxu0 %v5925
        %6792 = vmatprep.subr.bf16.mxu0 %v5934
        %6793 = vmatpush1.bf16.msra.mxu0 %v5933
        %6794 = vmatprep.subr.bf16.mxu0 %v5942
        %6795 = vmatpush1.bf16.msra.mxu0 %v5941
        %6796 = vmatprep.subr.bf16.mxu0 %v5950
        %6797 = vmatpush1.bf16.msra.mxu0 %v5949
        %6798 = vmatprep.mubr.bf16.mxu0 %v4160
        %6799 = vmatmul.mubr.bf16.gmra.mrb[0].mxu0 %v4159
        %v6800 = vpop.f32.mrb[0].mxu0
        %v6801 = vadd.f32 %v6760, %v6800
        %v6802 = vpop.f32.mrb[0].mxu0
        %v6803 = vadd.f32 %v6762, %v6802
        %v6804 = vpop.f32.mrb[0].mxu0
        %v6805 = vpop.f32.mrb[0].mxu0
        %6806 = vdwg.mxu0
        %6807 = vmatprep.subr.bf16.mxu0 %v5958
        %6808 = vmatpush1.bf16.msra.mxu0 %v5957
        %6809 = vmatprep.subr.bf16.mxu0 %v5966
        %6810 = vmatpush1.bf16.msra.mxu0 %v5965
        %6811 = vmatprep.subr.bf16.mxu0 %v5974
        %6812 = vmatpush1.bf16.msra.mxu0 %v5973
        %6813 = vmatprep.subr.bf16.mxu0 %v5982
        %6814 = vmatpush1.bf16.msra.mxu0 %v5981
        %6815 = vmatprep.subr.bf16.mxu0 %v5990
        %6816 = vmatpush1.bf16.msra.mxu0 %v5989
        %6817 = vmatprep.subr.bf16.mxu0 %v5998
        %6818 = vmatpush1.bf16.msra.mxu0 %v5997
        %6819 = vmatprep.subr.bf16.mxu0 %v6006
        %6820 = vmatpush1.bf16.msra.mxu0 %v6005
        %6821 = vmatprep.subr.bf16.mxu0 %v6014
        %6822 = vmatpush1.bf16.msra.mxu0 %v6013
        %6823 = vmatprep.subr.bf16.mxu0 %v6022
        %6824 = vmatpush1.bf16.msra.mxu0 %v6021
        %6825 = vmatprep.subr.bf16.mxu0 %v6030
        %6826 = vmatpush1.bf16.msra.mxu0 %v6029
        %6827 = vmatprep.subr.bf16.mxu0 %v6038
        %6828 = vmatpush1.bf16.msra.mxu0 %v6037
        %6829 = vmatprep.subr.bf16.mxu0 %v6046
        %6830 = vmatpush1.bf16.msra.mxu0 %v6045
        %6831 = vmatprep.subr.bf16.mxu0 %v6054
        %6832 = vmatpush1.bf16.msra.mxu0 %v6053
        %6833 = vmatprep.subr.bf16.mxu0 %v6062
        %6834 = vmatpush1.bf16.msra.mxu0 %v6061
        %6835 = vmatprep.subr.bf16.mxu0 %v6070
        %6836 = vmatpush1.bf16.msra.mxu0 %v6069
        %6837 = vmatprep.subr.bf16.mxu0 %v6078
        %6838 = vmatpush1.bf16.msra.mxu0 %v6077
        %6839 = vmatprep.mubr.bf16.mxu0 %v4162
        %6840 = vmatmul.mubr.bf16.gmra.mrb[0].mxu0 %v4161
        %v6841 = vpop.f32.mrb[0].mxu0
        %v6842 = vadd.f32 %v6801, %v6841
        %v6843 = vpop.f32.mrb[0].mxu0
        %v6844 = vadd.f32 %v6803, %v6843
        %v6845 = vpop.f32.mrb[0].mxu0
        %v6846 = vpop.f32.mrb[0].mxu0
        %6847 = vdwg.mxu0
        %6848 = vmatprep.subr.bf16.mxu0 %v6086
        %6849 = vmatpush1.bf16.msra.mxu0 %v6085
        %6850 = vmatprep.subr.bf16.mxu0 %v6094
        %6851 = vmatpush1.bf16.msra.mxu0 %v6093
        %6852 = vmatprep.subr.bf16.mxu0 %v6102
        %6853 = vmatpush1.bf16.msra.mxu0 %v6101
        %6854 = vmatprep.subr.bf16.mxu0 %v6110
        %6855 = vmatpush1.bf16.msra.mxu0 %v6109
        %6856 = vmatprep.subr.bf16.mxu0 %v6118
        %6857 = vmatpush1.bf16.msra.mxu0 %v6117
        %6858 = vmatprep.subr.bf16.mxu0 %v6126
        %6859 = vmatpush1.bf16.msra.mxu0 %v6125
        %6860 = vmatprep.subr.bf16.mxu0 %v6134
        %6861 = vmatpush1.bf16.msra.mxu0 %v6133
        %6862 = vmatprep.subr.bf16.mxu0 %v6142
        %6863 = vmatpush1.bf16.msra.mxu0 %v6141
        %6864 = vmatprep.subr.bf16.mxu0 %v6150
        %6865 = vmatpush1.bf16.msra.mxu0 %v6149
        %6866 = vmatprep.subr.bf16.mxu0 %v6158
        %6867 = vmatpush1.bf16.msra.mxu0 %v6157
        %6868 = vmatprep.subr.bf16.mxu0 %v6166
        %6869 = vmatpush1.bf16.msra.mxu0 %v6165
        %6870 = vmatprep.subr.bf16.mxu0 %v6174
        %6871 = vmatpush1.bf16.msra.mxu0 %v6173
        %6872 = vmatprep.subr.bf16.mxu0 %v6182
        %6873 = vmatpush1.bf16.msra.mxu0 %v6181
        %6874 = vmatprep.subr.bf16.mxu0 %v6190
        %6875 = vmatpush1.bf16.msra.mxu0 %v6189
        %6876 = vmatprep.subr.bf16.mxu0 %v6198
        %6877 = vmatpush1.bf16.msra.mxu0 %v6197
        %6878 = vmatprep.subr.bf16.mxu0 %v6206
        %6879 = vmatpush1.bf16.msra.mxu0 %v6205
        %6880 = vmatprep.mubr.bf16.mxu0 %v4164
        %6881 = vmatmul.mubr.bf16.gmra.mrb[0].mxu0 %v4163
        %v6882 = vpop.f32.mrb[0].mxu0
        %v6883 = vadd.f32 %v6842, %v6882
        %v6884 = vpop.f32.mrb[0].mxu0
        %v6885 = vadd.f32 %v6844, %v6884
        %v6886 = vpop.f32.mrb[0].mxu0
        %v6887 = vpop.f32.mrb[0].mxu0
        %6888 = vdwg.mxu0
        %6889 = vmatprep.subr.bf16.mxu0 %v5704
        %6890 = vmatpush1.bf16.msra.mxu0 %v5703
        %6891 = vmatprep.subr.bf16.mxu0 %v5712
        %6892 = vmatpush1.bf16.msra.mxu0 %v5711
        %6893 = vmatprep.subr.bf16.mxu0 %v5720
        %6894 = vmatpush1.bf16.msra.mxu0 %v5719
        %6895 = vmatprep.subr.bf16.mxu0 %v5728
        %6896 = vmatpush1.bf16.msra.mxu0 %v5727
        %6897 = vmatprep.subr.bf16.mxu0 %v5736
        %6898 = vmatpush1.bf16.msra.mxu0 %v5735
        %6899 = vmatprep.subr.bf16.mxu0 %v5744
        %6900 = vmatpush1.bf16.msra.mxu0 %v5743
        %6901 = vmatprep.subr.bf16.mxu0 %v5752
        %6902 = vmatpush1.bf16.msra.mxu0 %v5751
        %6903 = vmatprep.subr.bf16.mxu0 %v5760
        %6904 = vmatpush1.bf16.msra.mxu0 %v5759
        %6905 = vmatprep.subr.bf16.mxu0 %v5768
        %6906 = vmatpush1.bf16.msra.mxu0 %v5767
        %6907 = vmatprep.subr.bf16.mxu0 %v5776
        %6908 = vmatpush1.bf16.msra.mxu0 %v5775
        %6909 = vmatprep.subr.bf16.mxu0 %v5784
        %6910 = vmatpush1.bf16.msra.mxu0 %v5783
        %6911 = vmatprep.subr.bf16.mxu0 %v5792
        %6912 = vmatpush1.bf16.msra.mxu0 %v5791
        %6913 = vmatprep.subr.bf16.mxu0 %v5800
        %6914 = vmatpush1.bf16.msra.mxu0 %v5799
        %6915 = vmatprep.subr.bf16.mxu0 %v5808
        %6916 = vmatpush1.bf16.msra.mxu0 %v5807
        %6917 = vmatprep.subr.bf16.mxu0 %v5816
        %6918 = vmatpush1.bf16.msra.mxu0 %v5815
        %6919 = vmatprep.subr.bf16.mxu0 %v5824
        %6920 = vmatpush1.bf16.msra.mxu0 %v5823
        %6921 = vmatprep.mubr.bf16.mxu0 %v4158
        %6922 = vmatmul.mubr.bf16.gmra.mrb[0].mxu0 %v4157
        %v6923 = vpop.f32.mrb[0].mxu0
        %v6924 = vadd.f32 0.0, %v6923
        %v6925 = vpop.f32.mrb[0].mxu0
        %v6926 = vadd.f32 0.0, %v6925
        %v6927 = vpop.f32.mrb[0].mxu0
        %v6928 = vpop.f32.mrb[0].mxu0
        %6929 = vdwg.mxu0
        %6930 = vmatprep.subr.bf16.mxu0 %v5832
        %6931 = vmatpush1.bf16.msra.mxu0 %v5831
        %6932 = vmatprep.subr.bf16.mxu0 %v5840
        %6933 = vmatpush1.bf16.msra.mxu0 %v5839
        %6934 = vmatprep.subr.bf16.mxu0 %v5848
        %6935 = vmatpush1.bf16.msra.mxu0 %v5847
        %6936 = vmatprep.subr.bf16.mxu0 %v5856
        %6937 = vmatpush1.bf16.msra.mxu0 %v5855
        %6938 = vmatprep.subr.bf16.mxu0 %v5864
        %6939 = vmatpush1.bf16.msra.mxu0 %v5863
        %6940 = vmatprep.subr.bf16.mxu0 %v5872
        %6941 = vmatpush1.bf16.msra.mxu0 %v5871
        %6942 = vmatprep.subr.bf16.mxu0 %v5880
        %6943 = vmatpush1.bf16.msra.mxu0 %v5879
        %6944 = vmatprep.subr.bf16.mxu0 %v5888
        %6945 = vmatpush1.bf16.msra.mxu0 %v5887
        %6946 = vmatprep.subr.bf16.mxu0 %v5896
        %6947 = vmatpush1.bf16.msra.mxu0 %v5895
        %6948 = vmatprep.subr.bf16.mxu0 %v5904
        %6949 = vmatpush1.bf16.msra.mxu0 %v5903
        %6950 = vmatprep.subr.bf16.mxu0 %v5912
        %6951 = vmatpush1.bf16.msra.mxu0 %v5911
        %6952 = vmatprep.subr.bf16.mxu0 %v5920
        %6953 = vmatpush1.bf16.msra.mxu0 %v5919
        %6954 = vmatprep.subr.bf16.mxu0 %v5928
        %6955 = vmatpush1.bf16.msra.mxu0 %v5927
        %6956 = vmatprep.subr.bf16.mxu0 %v5936
        %6957 = vmatpush1.bf16.msra.mxu0 %v5935
        %6958 = vmatprep.subr.bf16.mxu0 %v5944
        %6959 = vmatpush1.bf16.msra.mxu0 %v5943
        %6960 = vmatprep.subr.bf16.mxu0 %v5952
        %6961 = vmatpush1.bf16.msra.mxu0 %v5951
        %6962 = vmatprep.mubr.bf16.mxu0 %v4160
        %6963 = vmatmul.mubr.bf16.gmra.mrb[0].mxu0 %v4159
        %v6964 = vpop.f32.mrb[0].mxu0
        %v6965 = vadd.f32 %v6924, %v6964
        %v6966 = vpop.f32.mrb[0].mxu0
        %v6967 = vadd.f32 %v6926, %v6966
        %v6968 = vpop.f32.mrb[0].mxu0
        %v6969 = vpop.f32.mrb[0].mxu0
        %6970 = vdwg.mxu0
        %6971 = vmatprep.subr.bf16.mxu0 %v5960
        %6972 = vmatpush1.bf16.msra.mxu0 %v5959
        %6973 = vmatprep.subr.bf16.mxu0 %v5968
        %6974 = vmatpush1.bf16.msra.mxu0 %v5967
        %6975 = vmatprep.subr.bf16.mxu0 %v5976
        %6976 = vmatpush1.bf16.msra.mxu0 %v5975
        %6977 = vmatprep.subr.bf16.mxu0 %v5984
        %6978 = vmatpush1.bf16.msra.mxu0 %v5983
        %6979 = vmatprep.subr.bf16.mxu0 %v5992
        %6980 = vmatpush1.bf16.msra.mxu0 %v5991
        %6981 = vmatprep.subr.bf16.mxu0 %v6000
        %6982 = vmatpush1.bf16.msra.mxu0 %v5999
        %6983 = vmatprep.subr.bf16.mxu0 %v6008
        %6984 = vmatpush1.bf16.msra.mxu0 %v6007
        %6985 = vmatprep.subr.bf16.mxu0 %v6016
        %6986 = vmatpush1.bf16.msra.mxu0 %v6015
        %6987 = vmatprep.subr.bf16.mxu0 %v6024
        %6988 = vmatpush1.bf16.msra.mxu0 %v6023
        %6989 = vmatprep.subr.bf16.mxu0 %v6032
        %6990 = vmatpush1.bf16.msra.mxu0 %v6031
        %6991 = vmatprep.subr.bf16.mxu0 %v6040
        %6992 = vmatpush1.bf16.msra.mxu0 %v6039
        %6993 = vmatprep.subr.bf16.mxu0 %v6048
        %6994 = vmatpush1.bf16.msra.mxu0 %v6047
        %6995 = vmatprep.subr.bf16.mxu0 %v6056
        %6996 = vmatpush1.bf16.msra.mxu0 %v6055
        %6997 = vmatprep.subr.bf16.mxu0 %v6064
        %6998 = vmatpush1.bf16.msra.mxu0 %v6063
        %6999 = vmatprep.subr.bf16.mxu0 %v6072
        %7000 = vmatpush1.bf16.msra.mxu0 %v6071
        %7001 = vmatprep.subr.bf16.mxu0 %v6080
        %7002 = vmatpush1.bf16.msra.mxu0 %v6079
        %7003 = vmatprep.mubr.bf16.mxu0 %v4162
        %7004 = vmatmul.mubr.bf16.gmra.mrb[0].mxu0 %v4161
        %v7005 = vpop.f32.mrb[0].mxu0
        %v7006 = vadd.f32 %v6965, %v7005
        %v7007 = vpop.f32.mrb[0].mxu0
        %v7008 = vadd.f32 %v6967, %v7007
        %v7009 = vpop.f32.mrb[0].mxu0
        %v7010 = vpop.f32.mrb[0].mxu0
        %7011 = vdwg.mxu0
        %7012 = vmatprep.subr.bf16.mxu0 %v6088
        %7013 = vmatpush1.bf16.msra.mxu0 %v6087
        %7014 = vmatprep.subr.bf16.mxu0 %v6096
        %7015 = vmatpush1.bf16.msra.mxu0 %v6095
        %7016 = vmatprep.subr.bf16.mxu0 %v6104
        %7017 = vmatpush1.bf16.msra.mxu0 %v6103
        %7018 = vmatprep.subr.bf16.mxu0 %v6112
        %7019 = vmatpush1.bf16.msra.mxu0 %v6111
        %7020 = vmatprep.subr.bf16.mxu0 %v6120
        %7021 = vmatpush1.bf16.msra.mxu0 %v6119
        %7022 = vmatprep.subr.bf16.mxu0 %v6128
        %7023 = vmatpush1.bf16.msra.mxu0 %v6127
        %7024 = vmatprep.subr.bf16.mxu0 %v6136
        %7025 = vmatpush1.bf16.msra.mxu0 %v6135
        %7026 = vmatprep.subr.bf16.mxu0 %v6144
        %7027 = vmatpush1.bf16.msra.mxu0 %v6143
        %7028 = vmatprep.subr.bf16.mxu0 %v6152
        %7029 = vmatpush1.bf16.msra.mxu0 %v6151
        %7030 = vmatprep.subr.bf16.mxu0 %v6160
        %7031 = vmatpush1.bf16.msra.mxu0 %v6159
        %7032 = vmatprep.subr.bf16.mxu0 %v6168
        %7033 = vmatpush1.bf16.msra.mxu0 %v6167
        %7034 = vmatprep.subr.bf16.mxu0 %v6176
        %7035 = vmatpush1.bf16.msra.mxu0 %v6175
        %7036 = vmatprep.subr.bf16.mxu0 %v6184
        %7037 = vmatpush1.bf16.msra.mxu0 %v6183
        %7038 = vmatprep.subr.bf16.mxu0 %v6192
        %7039 = vmatpush1.bf16.msra.mxu0 %v6191
        %7040 = vmatprep.subr.bf16.mxu0 %v6200
        %7041 = vmatpush1.bf16.msra.mxu0 %v6199
        %7042 = vmatprep.subr.bf16.mxu0 %v6208
        %7043 = vmatpush1.bf16.msra.mxu0 %v6207
        %7044 = vmatprep.mubr.bf16.mxu0 %v4164
        %7045 = vmatmul.mubr.bf16.gmra.mrb[0].mxu0 %v4163
        %v7046 = vpop.f32.mrb[0].mxu0
        %v7047 = vadd.f32 %v7006, %v7046
        %v7048 = vpop.f32.mrb[0].mxu0
        %v7049 = vadd.f32 %v7008, %v7048
        %v7050 = vpop.f32.mrb[0].mxu0
        %v7051 = vpop.f32.mrb[0].mxu0
        %7052 = vdwg.mxu0
        %7053 = vmatprep.subr.bf16.mxu0 %v5706
        %7054 = vmatpush1.bf16.msra.mxu0 %v5705
        %7055 = vmatprep.subr.bf16.mxu0 %v5714
        %7056 = vmatpush1.bf16.msra.mxu0 %v5713
        %7057 = vmatprep.subr.bf16.mxu0 %v5722
        %7058 = vmatpush1.bf16.msra.mxu0 %v5721
        %7059 = vmatprep.subr.bf16.mxu0 %v5730
        %7060 = vmatpush1.bf16.msra.mxu0 %v5729
        %7061 = vmatprep.subr.bf16.mxu0 %v5738
        %7062 = vmatpush1.bf16.msra.mxu0 %v5737
        %7063 = vmatprep.subr.bf16.mxu0 %v5746
        %7064 = vmatpush1.bf16.msra.mxu0 %v5745
        %7065 = vmatprep.subr.bf16.mxu0 %v5754
        %7066 = vmatpush1.bf16.msra.mxu0 %v5753
        %7067 = vmatprep.subr.bf16.mxu0 %v5762
        %7068 = vmatpush1.bf16.msra.mxu0 %v5761
        %7069 = vmatprep.subr.bf16.mxu0 %v5770
        %7070 = vmatpush1.bf16.msra.mxu0 %v5769
        %7071 = vmatprep.subr.bf16.mxu0 %v5778
        %7072 = vmatpush1.bf16.msra.mxu0 %v5777
        %7073 = vmatprep.subr.bf16.mxu0 %v5786
        %7074 = vmatpush1.bf16.msra.mxu0 %v5785
        %7075 = vmatprep.subr.bf16.mxu0 %v5794
        %7076 = vmatpush1.bf16.msra.mxu0 %v5793
        %7077 = vmatprep.subr.bf16.mxu0 %v5802
        %7078 = vmatpush1.bf16.msra.mxu0 %v5801
        %7079 = vmatprep.subr.bf16.mxu0 %v5810
        %7080 = vmatpush1.bf16.msra.mxu0 %v5809
        %7081 = vmatprep.subr.bf16.mxu0 %v5818
        %7082 = vmatpush1.bf16.msra.mxu0 %v5817
        %7083 = vmatprep.subr.bf16.mxu0 %v5826
        %7084 = vmatpush1.bf16.msra.mxu0 %v5825
        %7085 = vmatprep.mubr.bf16.mxu0 %v4158
        %7086 = vmatmul.mubr.bf16.gmra.mrb[0].mxu0 %v4157
        %v7087 = vpop.f32.mrb[0].mxu0
        %v7088 = vadd.f32 0.0, %v7087
        %v7089 = vpop.f32.mrb[0].mxu0
        %v7090 = vadd.f32 0.0, %v7089
        %v7091 = vpop.f32.mrb[0].mxu0
        %v7092 = vpop.f32.mrb[0].mxu0
        %7093 = vdwg.mxu0
        %7094 = vmatprep.subr.bf16.mxu0 %v5834
        %7095 = vmatpush1.bf16.msra.mxu0 %v5833
        %7096 = vmatprep.subr.bf16.mxu0 %v5842
        %7097 = vmatpush1.bf16.msra.mxu0 %v5841
        %7098 = vmatprep.subr.bf16.mxu0 %v5850
        %7099 = vmatpush1.bf16.msra.mxu0 %v5849
        %7100 = vmatprep.subr.bf16.mxu0 %v5858
        %7101 = vmatpush1.bf16.msra.mxu0 %v5857
        %7102 = vmatprep.subr.bf16.mxu0 %v5866
        %7103 = vmatpush1.bf16.msra.mxu0 %v5865
        %7104 = vmatprep.subr.bf16.mxu0 %v5874
        %7105 = vmatpush1.bf16.msra.mxu0 %v5873
        %7106 = vmatprep.subr.bf16.mxu0 %v5882
        %7107 = vmatpush1.bf16.msra.mxu0 %v5881
        %7108 = vmatprep.subr.bf16.mxu0 %v5890
        %7109 = vmatpush1.bf16.msra.mxu0 %v5889
        %7110 = vmatprep.subr.bf16.mxu0 %v5898
        %7111 = vmatpush1.bf16.msra.mxu0 %v5897
        %7112 = vmatprep.subr.bf16.mxu0 %v5906
        %7113 = vmatpush1.bf16.msra.mxu0 %v5905
        %7114 = vmatprep.subr.bf16.mxu0 %v5914
        %7115 = vmatpush1.bf16.msra.mxu0 %v5913
        %7116 = vmatprep.subr.bf16.mxu0 %v5922
        %7117 = vmatpush1.bf16.msra.mxu0 %v5921
        %7118 = vmatprep.subr.bf16.mxu0 %v5930
        %7119 = vmatpush1.bf16.msra.mxu0 %v5929
        %7120 = vmatprep.subr.bf16.mxu0 %v5938
        %7121 = vmatpush1.bf16.msra.mxu0 %v5937
        %7122 = vmatprep.subr.bf16.mxu0 %v5946
        %7123 = vmatpush1.bf16.msra.mxu0 %v5945
        %7124 = vmatprep.subr.bf16.mxu0 %v5954
        %7125 = vmatpush1.bf16.msra.mxu0 %v5953
        %7126 = vmatprep.mubr.bf16.mxu0 %v4160
        %7127 = vmatmul.mubr.bf16.gmra.mrb[0].mxu0 %v4159
        %v7128 = vpop.f32.mrb[0].mxu0
        %v7129 = vadd.f32 %v7088, %v7128
        %v7130 = vpop.f32.mrb[0].mxu0
        %v7131 = vadd.f32 %v7090, %v7130
        %v7132 = vpop.f32.mrb[0].mxu0
        %v7133 = vpop.f32.mrb[0].mxu0
        %7134 = vdwg.mxu0
        %7135 = vmatprep.subr.bf16.mxu0 %v5962
        %7136 = vmatpush1.bf16.msra.mxu0 %v5961
        %7137 = vmatprep.subr.bf16.mxu0 %v5970
        %7138 = vmatpush1.bf16.msra.mxu0 %v5969
        %7139 = vmatprep.subr.bf16.mxu0 %v5978
        %7140 = vmatpush1.bf16.msra.mxu0 %v5977
        %7141 = vmatprep.subr.bf16.mxu0 %v5986
        %7142 = vmatpush1.bf16.msra.mxu0 %v5985
        %7143 = vmatprep.subr.bf16.mxu0 %v5994
        %7144 = vmatpush1.bf16.msra.mxu0 %v5993
        %7145 = vmatprep.subr.bf16.mxu0 %v6002
        %7146 = vmatpush1.bf16.msra.mxu0 %v6001
        %7147 = vmatprep.subr.bf16.mxu0 %v6010
        %7148 = vmatpush1.bf16.msra.mxu0 %v6009
        %7149 = vmatprep.subr.bf16.mxu0 %v6018
        %7150 = vmatpush1.bf16.msra.mxu0 %v6017
        %7151 = vmatprep.subr.bf16.mxu0 %v6026
        %7152 = vmatpush1.bf16.msra.mxu0 %v6025
        %7153 = vmatprep.subr.bf16.mxu0 %v6034
        %7154 = vmatpush1.bf16.msra.mxu0 %v6033
        %7155 = vmatprep.subr.bf16.mxu0 %v6042
        %7156 = vmatpush1.bf16.msra.mxu0 %v6041
        %7157 = vmatprep.subr.bf16.mxu0 %v6050
        %7158 = vmatpush1.bf16.msra.mxu0 %v6049
        %7159 = vmatprep.subr.bf16.mxu0 %v6058
        %7160 = vmatpush1.bf16.msra.mxu0 %v6057
        %7161 = vmatprep.subr.bf16.mxu0 %v6066
        %7162 = vmatpush1.bf16.msra.mxu0 %v6065
        %7163 = vmatprep.subr.bf16.mxu0 %v6074
        %7164 = vmatpush1.bf16.msra.mxu0 %v6073
        %7165 = vmatprep.subr.bf16.mxu0 %v6082
        %7166 = vmatpush1.bf16.msra.mxu0 %v6081
        %7167 = vmatprep.mubr.bf16.mxu0 %v4162
        %7168 = vmatmul.mubr.bf16.gmra.mrb[0].mxu0 %v4161
        %v7169 = vpop.f32.mrb[0].mxu0
        %v7170 = vadd.f32 %v7129, %v7169
        %v7171 = vpop.f32.mrb[0].mxu0
        %v7172 = vadd.f32 %v7131, %v7171
        %v7173 = vpop.f32.mrb[0].mxu0
        %v7174 = vpop.f32.mrb[0].mxu0
        %7175 = vdwg.mxu0
        %7176 = vmatprep.subr.bf16.mxu0 %v6090
        %7177 = vmatpush1.bf16.msra.mxu0 %v6089
        %7178 = vmatprep.subr.bf16.mxu0 %v6098
        %7179 = vmatpush1.bf16.msra.mxu0 %v6097
        %7180 = vmatprep.subr.bf16.mxu0 %v6106
        %7181 = vmatpush1.bf16.msra.mxu0 %v6105
        %7182 = vmatprep.subr.bf16.mxu0 %v6114
        %7183 = vmatpush1.bf16.msra.mxu0 %v6113
        %7184 = vmatprep.subr.bf16.mxu0 %v6122
        %7185 = vmatpush1.bf16.msra.mxu0 %v6121
        %7186 = vmatprep.subr.bf16.mxu0 %v6130
        %7187 = vmatpush1.bf16.msra.mxu0 %v6129
        %7188 = vmatprep.subr.bf16.mxu0 %v6138
        %7189 = vmatpush1.bf16.msra.mxu0 %v6137
        %7190 = vmatprep.subr.bf16.mxu0 %v6146
        %7191 = vmatpush1.bf16.msra.mxu0 %v6145
        %7192 = vmatprep.subr.bf16.mxu0 %v6154
        %7193 = vmatpush1.bf16.msra.mxu0 %v6153
        %7194 = vmatprep.subr.bf16.mxu0 %v6162
        %7195 = vmatpush1.bf16.msra.mxu0 %v6161
        %7196 = vmatprep.subr.bf16.mxu0 %v6170
        %7197 = vmatpush1.bf16.msra.mxu0 %v6169
        %7198 = vmatprep.subr.bf16.mxu0 %v6178
        %7199 = vmatpush1.bf16.msra.mxu0 %v6177
        %7200 = vmatprep.subr.bf16.mxu0 %v6186
        %7201 = vmatpush1.bf16.msra.mxu0 %v6185
        %7202 = vmatprep.subr.bf16.mxu0 %v6194
        %7203 = vmatpush1.bf16.msra.mxu0 %v6193
        %7204 = vmatprep.subr.bf16.mxu0 %v6202
        %7205 = vmatpush1.bf16.msra.mxu0 %v6201
        %7206 = vmatprep.subr.bf16.mxu0 %v6210
        %7207 = vmatpush1.bf16.msra.mxu0 %v6209
        %7208 = vmatprep.mubr.bf16.mxu0 %v4164
        %7209 = vmatmul.mubr.bf16.gmra.mrb[0].mxu0 %v4163
        %v7210 = vpop.f32.mrb[0].mxu0
        %v7211 = vadd.f32 %v7170, %v7210
        %v7212 = vpop.f32.mrb[0].mxu0
        %v7213 = vadd.f32 %v7172, %v7212
        %v7214 = vpop.f32.mrb[0].mxu0
        %v7215 = vpop.f32.mrb[0].mxu0
        %7216 = vdwg.mxu0
        %7217 = vmatprep.subr.bf16.mxu0 %v5708
        %7218 = vmatpush1.bf16.msra.mxu0 %v5707
        %7219 = vmatprep.subr.bf16.mxu0 %v5716
        %7220 = vmatpush1.bf16.msra.mxu0 %v5715
        %7221 = vmatprep.subr.bf16.mxu0 %v5724
        %7222 = vmatpush1.bf16.msra.mxu0 %v5723
        %7223 = vmatprep.subr.bf16.mxu0 %v5732
        %7224 = vmatpush1.bf16.msra.mxu0 %v5731
        %7225 = vmatprep.subr.bf16.mxu0 %v5740
        %7226 = vmatpush1.bf16.msra.mxu0 %v5739
        %7227 = vmatprep.subr.bf16.mxu0 %v5748
        %7228 = vmatpush1.bf16.msra.mxu0 %v5747
        %7229 = vmatprep.subr.bf16.mxu0 %v5756
        %7230 = vmatpush1.bf16.msra.mxu0 %v5755
        %7231 = vmatprep.subr.bf16.mxu0 %v5764
        %7232 = vmatpush1.bf16.msra.mxu0 %v5763
        %7233 = vmatprep.subr.bf16.mxu0 %v5772
        %7234 = vmatpush1.bf16.msra.mxu0 %v5771
        %7235 = vmatprep.subr.bf16.mxu0 %v5780
        %7236 = vmatpush1.bf16.msra.mxu0 %v5779
        %7237 = vmatprep.subr.bf16.mxu0 %v5788
        %7238 = vmatpush1.bf16.msra.mxu0 %v5787
        %7239 = vmatprep.subr.bf16.mxu0 %v5796
        %7240 = vmatpush1.bf16.msra.mxu0 %v5795
        %7241 = vmatprep.subr.bf16.mxu0 %v5804
        %7242 = vmatpush1.bf16.msra.mxu0 %v5803
        %7243 = vmatprep.subr.bf16.mxu0 %v5812
        %7244 = vmatpush1.bf16.msra.mxu0 %v5811
        %7245 = vmatprep.subr.bf16.mxu0 %v5820
        %7246 = vmatpush1.bf16.msra.mxu0 %v5819
        %7247 = vmatprep.subr.bf16.mxu0 %v5828
        %7248 = vmatpush1.bf16.msra.mxu0 %v5827
        %7249 = vmatprep.mubr.bf16.mxu0 %v4158
        %7250 = vmatmul.mubr.bf16.gmra.mrb[0].mxu0 %v4157
        %v7251 = vpop.f32.mrb[0].mxu0
        %v7252 = vadd.f32 0.0, %v7251
        %v7253 = vpop.f32.mrb[0].mxu0
        %v7254 = vadd.f32 0.0, %v7253
        %v7255 = vpop.f32.mrb[0].mxu0
        %v7256 = vpop.f32.mrb[0].mxu0
        %7257 = vdwg.mxu0
        %7258 = vmatprep.subr.bf16.mxu0 %v5836
        %7259 = vmatpush1.bf16.msra.mxu0 %v5835
        %7260 = vmatprep.subr.bf16.mxu0 %v5844
        %7261 = vmatpush1.bf16.msra.mxu0 %v5843
        %7262 = vmatprep.subr.bf16.mxu0 %v5852
        %7263 = vmatpush1.bf16.msra.mxu0 %v5851
        %7264 = vmatprep.subr.bf16.mxu0 %v5860
        %7265 = vmatpush1.bf16.msra.mxu0 %v5859
        %7266 = vmatprep.subr.bf16.mxu0 %v5868
        %7267 = vmatpush1.bf16.msra.mxu0 %v5867
        %7268 = vmatprep.subr.bf16.mxu0 %v5876
        %7269 = vmatpush1.bf16.msra.mxu0 %v5875
        %7270 = vmatprep.subr.bf16.mxu0 %v5884
        %7271 = vmatpush1.bf16.msra.mxu0 %v5883
        %7272 = vmatprep.subr.bf16.mxu0 %v5892
        %7273 = vmatpush1.bf16.msra.mxu0 %v5891
        %7274 = vmatprep.subr.bf16.mxu0 %v5900
        %7275 = vmatpush1.bf16.msra.mxu0 %v5899
        %7276 = vmatprep.subr.bf16.mxu0 %v5908
        %7277 = vmatpush1.bf16.msra.mxu0 %v5907
        %7278 = vmatprep.subr.bf16.mxu0 %v5916
        %7279 = vmatpush1.bf16.msra.mxu0 %v5915
        %7280 = vmatprep.subr.bf16.mxu0 %v5924
        %7281 = vmatpush1.bf16.msra.mxu0 %v5923
        %7282 = vmatprep.subr.bf16.mxu0 %v5932
        %7283 = vmatpush1.bf16.msra.mxu0 %v5931
        %7284 = vmatprep.subr.bf16.mxu0 %v5940
        %7285 = vmatpush1.bf16.msra.mxu0 %v5939
        %7286 = vmatprep.subr.bf16.mxu0 %v5948
        %7287 = vmatpush1.bf16.msra.mxu0 %v5947
        %7288 = vmatprep.subr.bf16.mxu0 %v5956
        %7289 = vmatpush1.bf16.msra.mxu0 %v5955
        %7290 = vmatprep.mubr.bf16.mxu0 %v4160
        %7291 = vmatmul.mubr.bf16.gmra.mrb[0].mxu0 %v4159
        %v7292 = vpop.f32.mrb[0].mxu0
        %v7293 = vadd.f32 %v7252, %v7292
        %v7294 = vpop.f32.mrb[0].mxu0
        %v7295 = vadd.f32 %v7254, %v7294
        %v7296 = vpop.f32.mrb[0].mxu0
        %v7297 = vpop.f32.mrb[0].mxu0
        %7298 = vdwg.mxu0
        %7299 = vmatprep.subr.bf16.mxu0 %v5964
        %7300 = vmatpush1.bf16.msra.mxu0 %v5963
        %7301 = vmatprep.subr.bf16.mxu0 %v5972
        %7302 = vmatpush1.bf16.msra.mxu0 %v5971
        %7303 = vmatprep.subr.bf16.mxu0 %v5980
        %7304 = vmatpush1.bf16.msra.mxu0 %v5979
        %7305 = vmatprep.subr.bf16.mxu0 %v5988
        %7306 = vmatpush1.bf16.msra.mxu0 %v5987
        %7307 = vmatprep.subr.bf16.mxu0 %v5996
        %7308 = vmatpush1.bf16.msra.mxu0 %v5995
        %7309 = vmatprep.subr.bf16.mxu0 %v6004
        %7310 = vmatpush1.bf16.msra.mxu0 %v6003
        %7311 = vmatprep.subr.bf16.mxu0 %v6012
        %7312 = vmatpush1.bf16.msra.mxu0 %v6011
        %7313 = vmatprep.subr.bf16.mxu0 %v6020
        %7314 = vmatpush1.bf16.msra.mxu0 %v6019
        %7315 = vmatprep.subr.bf16.mxu0 %v6028
        %7316 = vmatpush1.bf16.msra.mxu0 %v6027
        %7317 = vmatprep.subr.bf16.mxu0 %v6036
        %7318 = vmatpush1.bf16.msra.mxu0 %v6035
        %7319 = vmatprep.subr.bf16.mxu0 %v6044
        %7320 = vmatpush1.bf16.msra.mxu0 %v6043
        %7321 = vmatprep.subr.bf16.mxu0 %v6052
        %7322 = vmatpush1.bf16.msra.mxu0 %v6051
        %7323 = vmatprep.subr.bf16.mxu0 %v6060
        %7324 = vmatpush1.bf16.msra.mxu0 %v6059
        %7325 = vmatprep.subr.bf16.mxu0 %v6068
        %7326 = vmatpush1.bf16.msra.mxu0 %v6067
        %7327 = vmatprep.subr.bf16.mxu0 %v6076
        %7328 = vmatpush1.bf16.msra.mxu0 %v6075
        %7329 = vmatprep.subr.bf16.mxu0 %v6084
        %7330 = vmatpush1.bf16.msra.mxu0 %v6083
        %7331 = vmatprep.mubr.bf16.mxu0 %v4162
        %7332 = vmatmul.mubr.bf16.gmra.mrb[0].mxu0 %v4161
        %v7333 = vpop.f32.mrb[0].mxu0
        %v7334 = vadd.f32 %v7293, %v7333
        %v7335 = vpop.f32.mrb[0].mxu0
        %v7336 = vadd.f32 %v7295, %v7335
        %v7337 = vpop.f32.mrb[0].mxu0
        %v7338 = vpop.f32.mrb[0].mxu0
        %7339 = vdwg.mxu0
        %7340 = vmatprep.subr.bf16.mxu0 %v6092
        %7341 = vmatpush1.bf16.msra.mxu0 %v6091
        %7342 = vmatprep.subr.bf16.mxu0 %v6100
        %7343 = vmatpush1.bf16.msra.mxu0 %v6099
        %7344 = vmatprep.subr.bf16.mxu0 %v6108
        %7345 = vmatpush1.bf16.msra.mxu0 %v6107
        %7346 = vmatprep.subr.bf16.mxu0 %v6116
        %7347 = vmatpush1.bf16.msra.mxu0 %v6115
        %7348 = vmatprep.subr.bf16.mxu0 %v6124
        %7349 = vmatpush1.bf16.msra.mxu0 %v6123
        %7350 = vmatprep.subr.bf16.mxu0 %v6132
        %7351 = vmatpush1.bf16.msra.mxu0 %v6131
        %7352 = vmatprep.subr.bf16.mxu0 %v6140
        %7353 = vmatpush1.bf16.msra.mxu0 %v6139
        %7354 = vmatprep.subr.bf16.mxu0 %v6148
        %7355 = vmatpush1.bf16.msra.mxu0 %v6147
        %7356 = vmatprep.subr.bf16.mxu0 %v6156
        %7357 = vmatpush1.bf16.msra.mxu0 %v6155
        %7358 = vmatprep.subr.bf16.mxu0 %v6164
        %7359 = vmatpush1.bf16.msra.mxu0 %v6163
        %7360 = vmatprep.subr.bf16.mxu0 %v6172
        %7361 = vmatpush1.bf16.msra.mxu0 %v6171
        %7362 = vmatprep.subr.bf16.mxu0 %v6180
        %7363 = vmatpush1.bf16.msra.mxu0 %v6179
        %7364 = vmatprep.subr.bf16.mxu0 %v6188
        %7365 = vmatpush1.bf16.msra.mxu0 %v6187
        %7366 = vmatprep.subr.bf16.mxu0 %v6196
        %7367 = vmatpush1.bf16.msra.mxu0 %v6195
        %7368 = vmatprep.subr.bf16.mxu0 %v6204
        %7369 = vmatpush1.bf16.msra.mxu0 %v6203
        %7370 = vmatprep.subr.bf16.mxu0 %v6212
        %7371 = vmatpush1.bf16.msra.mxu0 %v6211
        %7372 = vmatprep.mubr.bf16.mxu0 %v4164
        %7373 = vmatmul.mubr.bf16.gmra.mrb[0].mxu0 %v4163
        %v7374 = vpop.f32.mrb[0].mxu0
        %v7375 = vadd.f32 %v7334, %v7374
        %v7376 = vpop.f32.mrb[0].mxu0
        %v7377 = vadd.f32 %v7336, %v7376
        %v7378 = vpop.f32.mrb[0].mxu0
        %v7379 = vpop.f32.mrb[0].mxu0
        %7380 = vdwg.mxu0
        %v7381 = vrot.slane %v6883, 4
        %v7382 = vadd.f32 %v6883, %v7381
        %v7383 = vrot.slane %v7382, 2
        %v7384 = vadd.f32 %v7382, %v7383
        %v7385 = vrot.slane %v7384, 1
        %v7386 = vadd.f32 %v7384, %v7385
        %v7387 = vrot.slane %v6885, 4
        %v7388 = vadd.f32 %v6885, %v7387
        %v7389 = vrot.slane %v7388, 2
        %v7390 = vadd.f32 %v7388, %v7389
        %v7391 = vrot.slane %v7390, 1
        %v7392 = vadd.f32 %v7390, %v7391
        %v7393 = vrot.slane %v7047, 4
        %v7394 = vadd.f32 %v7047, %v7393
        %v7395 = vrot.slane %v7394, 2
        %v7396 = vadd.f32 %v7394, %v7395
        %v7397 = vrot.slane %v7396, 1
        %v7398 = vadd.f32 %v7396, %v7397
        %v7399 = vrot.slane %v7049, 4
        %v7400 = vadd.f32 %v7049, %v7399
        %v7401 = vrot.slane %v7400, 2
        %v7402 = vadd.f32 %v7400, %v7401
        %v7403 = vrot.slane %v7402, 1
        %v7404 = vadd.f32 %v7402, %v7403
        %v7405 = vrot.slane %v7211, 4
        %v7406 = vadd.f32 %v7211, %v7405
        %v7407 = vrot.slane %v7406, 2
        %v7408 = vadd.f32 %v7406, %v7407
        %v7409 = vrot.slane %v7408, 1
        %v7410 = vadd.f32 %v7408, %v7409
        %v7411 = vrot.slane %v7213, 4
        %v7412 = vadd.f32 %v7213, %v7411
        %v7413 = vrot.slane %v7412, 2
        %v7414 = vadd.f32 %v7412, %v7413
        %v7415 = vrot.slane %v7414, 1
        %v7416 = vadd.f32 %v7414, %v7415
        %v7417 = vrot.slane %v7375, 4
        %v7418 = vadd.f32 %v7375, %v7417
        %v7419 = vrot.slane %v7418, 2
        %v7420 = vadd.f32 %v7418, %v7419
        %v7421 = vrot.slane %v7420, 1
        %v7422 = vadd.f32 %v7420, %v7421
        %v7423 = vrot.slane %v7377, 4
        %v7424 = vadd.f32 %v7377, %v7423
        %v7425 = vrot.slane %v7424, 2
        %v7426 = vadd.f32 %v7424, %v7425
        %v7427 = vrot.slane %v7426, 1
        %v7428 = vadd.f32 %v7426, %v7427
        %v7429 = vmul.f32 %v7386, %v567
        %v7430 = vmul.f32 %v7392, %v567
        %v7431 = vmul.f32 %v7398, %v567
        %v7432 = vmul.f32 %v7404, %v567
        %v7433 = vmul.f32 %v7410, %v567
        %v7434 = vmul.f32 %v7416, %v567
        %v7435 = vmul.f32 %v7422, %v567
        %v7436 = vmul.f32 %v7428, %v567
        %v7437 = vsub.f32 %v6883, %v7429
        %v7438 = vsub.f32 %v6885, %v7430
        %v7439 = vsub.f32 %v7047, %v7431
        %v7440 = vsub.f32 %v7049, %v7432
        %v7441 = vsub.f32 %v7211, %v7433
        %v7442 = vsub.f32 %v7213, %v7434
        %v7443 = vsub.f32 %v7375, %v7435
        %v7444 = vsub.f32 %v7377, %v7436
        %v7445 = vmul.f32 %v7437, %v7437
        %v7446 = vmul.f32 %v7438, %v7438
        %v7447 = vmul.f32 %v7439, %v7439
        %v7448 = vmul.f32 %v7440, %v7440
        %v7449 = vmul.f32 %v7441, %v7441
        %v7450 = vmul.f32 %v7442, %v7442
        %v7451 = vmul.f32 %v7443, %v7443
        %v7452 = vmul.f32 %v7444, %v7444
        %v7453 = vrot.slane %v7445, 4
        %v7454 = vadd.f32 %v7445, %v7453
        %v7455 = vrot.slane %v7454, 2
        %v7456 = vadd.f32 %v7454, %v7455
        %v7457 = vrot.slane %v7456, 1
        %v7458 = vadd.f32 %v7456, %v7457
        %v7459 = vrot.slane %v7446, 4
        %v7460 = vadd.f32 %v7446, %v7459
        %v7461 = vrot.slane %v7460, 2
        %v7462 = vadd.f32 %v7460, %v7461
        %v7463 = vrot.slane %v7462, 1
        %v7464 = vadd.f32 %v7462, %v7463
        %v7465 = vrot.slane %v7447, 4
        %v7466 = vadd.f32 %v7447, %v7465
        %v7467 = vrot.slane %v7466, 2
        %v7468 = vadd.f32 %v7466, %v7467
        %v7469 = vrot.slane %v7468, 1
        %v7470 = vadd.f32 %v7468, %v7469
        %v7471 = vrot.slane %v7448, 4
        %v7472 = vadd.f32 %v7448, %v7471
        %v7473 = vrot.slane %v7472, 2
        %v7474 = vadd.f32 %v7472, %v7473
        %v7475 = vrot.slane %v7474, 1
        %v7476 = vadd.f32 %v7474, %v7475
        %v7477 = vrot.slane %v7449, 4
        %v7478 = vadd.f32 %v7449, %v7477
        %v7479 = vrot.slane %v7478, 2
        %v7480 = vadd.f32 %v7478, %v7479
        %v7481 = vrot.slane %v7480, 1
        %v7482 = vadd.f32 %v7480, %v7481
        %v7483 = vrot.slane %v7450, 4
        %v7484 = vadd.f32 %v7450, %v7483
        %v7485 = vrot.slane %v7484, 2
        %v7486 = vadd.f32 %v7484, %v7485
        %v7487 = vrot.slane %v7486, 1
        %v7488 = vadd.f32 %v7486, %v7487
        %v7489 = vrot.slane %v7451, 4
        %v7490 = vadd.f32 %v7451, %v7489
        %v7491 = vrot.slane %v7490, 2
        %v7492 = vadd.f32 %v7490, %v7491
        %v7493 = vrot.slane %v7492, 1
        %v7494 = vadd.f32 %v7492, %v7493
        %v7495 = vrot.slane %v7452, 4
        %v7496 = vadd.f32 %v7452, %v7495
        %v7497 = vrot.slane %v7496, 2
        %v7498 = vadd.f32 %v7496, %v7497
        %v7499 = vrot.slane %v7498, 1
        %v7500 = vadd.f32 %v7498, %v7499
        %v7501 = vmul.f32 %v7458, %v567
        %v7502 = vmul.f32 %v7464, %v567
        %v7503 = vmul.f32 %v7470, %v567
        %v7504 = vmul.f32 %v7476, %v567
        %v7505 = vmul.f32 %v7482, %v567
        %v7506 = vmul.f32 %v7488, %v567
        %v7507 = vmul.f32 %v7494, %v567
        %v7508 = vmul.f32 %v7500, %v567
        %v7509 = vadd.f32 %v7501, 0.8
        %v7510 = vadd.f32 %v7502, 0.8
        %v7511 = vadd.f32 %v7503, 0.8
        %v7512 = vadd.f32 %v7504, 0.8
        %v7513 = vadd.f32 %v7505, 0.8
        %v7514 = vadd.f32 %v7506, 0.8
        %v7515 = vadd.f32 %v7507, 0.8
        %v7516 = vadd.f32 %v7508, 0.8
        %v7517 = vrsqrt.pop %v7509
        %v7518 = vrsqrt.pop %v7510
        %v7519 = vrsqrt.pop %v7511
        %v7520 = vrsqrt.pop %v7512
        %v7521 = vrsqrt.pop %v7513
        %v7522 = vrsqrt.pop %v7514
        %v7523 = vrsqrt.pop %v7515
        %v7524 = vrsqrt.pop %v7516
        %v7533 = vcombine.low %v7517, %v7518
        %v7534 = vcombine.low %v7519, %v7520
        %v7536 = vunpack.c.l.s4 1983009808
        %v7537 = vunpack.c.0.s8 %v7536
        %v7538 = vlaneseq
        %v7539 = vshrl.u32 %v7538, 7
        %v7540 = vsub.s32 %v7537, %v7539
        %v7541 = vrot.slane %v7533, %v7540
        %v7543 = vunpack.c.l.s4 1983009808
        %v7544 = vunpack.c.0.s8 %v7543
        %v7545 = vlaneseq
        %v7546 = vshrl.u32 %v7545, 7
        %v7547 = vsub.s32 %v7544, %v7546
        %v7548 = vrot.slane %v7534, %v7547
        %v7549 = vcombine.low %v7541, %v7548
        %v7550 = vcombine.low %v7521, %v7522
        %v7551 = vcombine.low %v7523, %v7524
        %v7553 = vunpack.c.l.s4 1983009808
        %v7554 = vunpack.c.0.s8 %v7553
        %v7555 = vlaneseq
        %v7556 = vshrl.u32 %v7555, 7
        %v7557 = vsub.s32 %v7554, %v7556
        %v7558 = vrot.slane %v7550, %v7557
        %v7560 = vunpack.c.l.s4 1983009808
        %v7561 = vunpack.c.0.s8 %v7560
        %v7562 = vlaneseq
        %v7563 = vshrl.u32 %v7562, 7
        %v7564 = vsub.s32 %v7561, %v7563
        %v7565 = vrot.slane %v7551, %v7564
        %v7566 = vcombine.low %v7558, %v7565
        %v7569 = vmul.f32 %v4155, %v7549
        %v7570 = vmul.f32 %v4156, %v7566
        %v7573 = vlaneseq
        %v7574 = vshrl.u32 %v7573, 7
        %v7575 = vsub.s32 0, %v7574
        %v7576 = vrot.slane %v7569, %v7575
        %v7577 = vlaneseq
        %v7578 = vshrl.u32 %v7577, 7
        %v7579 = vsub.s32 2, %v7578
        %v7580 = vrot.slane %v7569, %v7579
        %v7581 = vlaneseq
        %v7582 = vshrl.u32 %v7581, 7
        %v7583 = vsub.s32 4, %v7582
        %v7584 = vrot.slane %v7569, %v7583
        %v7585 = vlaneseq
        %v7586 = vshrl.u32 %v7585, 7
        %v7587 = vsub.s32 6, %v7586
        %v7588 = vrot.slane %v7569, %v7587
        %v7589 = vlaneseq
        %v7590 = vshrl.u32 %v7589, 7
        %v7591 = vsub.s32 0, %v7590
        %v7592 = vrot.slane %v7570, %v7591
        %v7593 = vlaneseq
        %v7594 = vshrl.u32 %v7593, 7
        %v7595 = vsub.s32 2, %v7594
        %v7596 = vrot.slane %v7570, %v7595
        %v7597 = vlaneseq
        %v7598 = vshrl.u32 %v7597, 7
        %v7599 = vsub.s32 4, %v7598
        %v7600 = vrot.slane %v7570, %v7599
        %v7601 = vlaneseq
        %v7602 = vshrl.u32 %v7601, 7
        %v7603 = vsub.s32 6, %v7602
        %v7604 = vrot.slane %v7570, %v7603
        %v7613 = vmul.f32 %v7429, %v7576
        %v7614 = vmul.f32 %v7430, %v7580
        %v7615 = vmul.f32 %v7431, %v7584
        %v7616 = vmul.f32 %v7432, %v7588
        %v7617 = vmul.f32 %v7433, %v7592
        %v7618 = vmul.f32 %v7434, %v7596
        %v7619 = vmul.f32 %v7435, %v7600
        %v7620 = vmul.f32 %v7436, %v7604
        %v7629 = vcombine.low %v7613, %v7614
        %v7630 = vcombine.low %v7615, %v7616
        %v7632 = vunpack.c.l.s4 1983009808
        %v7633 = vunpack.c.0.s8 %v7632
        %v7634 = vlaneseq
        %v7635 = vshrl.u32 %v7634, 7
        %v7636 = vsub.s32 %v7633, %v7635
        %v7637 = vrot.slane %v7629, %v7636
        %v7639 = vunpack.c.l.s4 1983009808
        %v7640 = vunpack.c.0.s8 %v7639
        %v7641 = vlaneseq
        %v7642 = vshrl.u32 %v7641, 7
        %v7643 = vsub.s32 %v7640, %v7642
        %v7644 = vrot.slane %v7630, %v7643
        %v7645 = vcombine.low %v7637, %v7644
        %v7646 = vcombine.low %v7617, %v7618
        %v7647 = vcombine.low %v7619, %v7620
        %v7649 = vunpack.c.l.s4 1983009808
        %v7650 = vunpack.c.0.s8 %v7649
        %v7651 = vlaneseq
        %v7652 = vshrl.u32 %v7651, 7
        %v7653 = vsub.s32 %v7650, %v7652
        %v7654 = vrot.slane %v7646, %v7653
        %v7656 = vunpack.c.l.s4 1983009808
        %v7657 = vunpack.c.0.s8 %v7656
        %v7658 = vlaneseq
        %v7659 = vshrl.u32 %v7658, 7
        %v7660 = vsub.s32 %v7657, %v7659
        %v7661 = vrot.slane %v7647, %v7660
        %v7662 = vcombine.low %v7654, %v7661
        %v7663 = vrot.slane %v7645, 7
        %v7664 = vrot.slane %v7662, 7
        %v7667 = vsub.f32 %v4155, %v7663
        %v7668 = vsub.f32 %v4156, %v7664
        %v7669 = vlaneseq
        %v7670 = vshrl.u32 %v7669, 7
        %v7671 = vsub.s32 0, %v7670
        %v7672 = vrot.slane %v7576, %v7671
        %v7673 = vlaneseq
        %v7674 = vshrl.u32 %v7673, 7
        %v7675 = vsub.s32 0, %v7674
        %v7676 = vrot.slane %v7580, %v7675
        %v7677 = vlaneseq
        %v7678 = vshrl.u32 %v7677, 7
        %v7679 = vsub.s32 0, %v7678
        %v7680 = vrot.slane %v7584, %v7679
        %v7681 = vlaneseq
        %v7682 = vshrl.u32 %v7681, 7
        %v7683 = vsub.s32 0, %v7682
        %v7684 = vrot.slane %v7588, %v7683
        %v7685 = vlaneseq
        %v7686 = vshrl.u32 %v7685, 7
        %v7687 = vsub.s32 0, %v7686
        %v7688 = vrot.slane %v7592, %v7687
        %v7689 = vlaneseq
        %v7690 = vshrl.u32 %v7689, 7
        %v7691 = vsub.s32 0, %v7690
        %v7692 = vrot.slane %v7596, %v7691
        %v7693 = vlaneseq
        %v7694 = vshrl.u32 %v7693, 7
        %v7695 = vsub.s32 0, %v7694
        %v7696 = vrot.slane %v7600, %v7695
        %v7697 = vlaneseq
        %v7698 = vshrl.u32 %v7697, 7
        %v7699 = vsub.s32 0, %v7698
        %v7700 = vrot.slane %v7604, %v7699
        %v7701 = vmul.f32 %v6883, %v7672
        %v7702 = vmul.f32 %v6885, %v7676
        %v7703 = vmul.f32 %v7047, %v7680
        %v7704 = vmul.f32 %v7049, %v7684
        %v7705 = vmul.f32 %v7211, %v7688
        %v7706 = vmul.f32 %v7213, %v7692
        %v7707 = vmul.f32 %v7375, %v7696
        %v7708 = vmul.f32 %v7377, %v7700
        %v7711 = vlaneseq
        %v7712 = vshrl.u32 %v7711, 7
        %v7713 = vsub.s32 1, %v7712
        %v7714 = vrot.slane %v7667, %v7713
        %v7715 = vlaneseq
        %v7716 = vshrl.u32 %v7715, 7
        %v7717 = vsub.s32 3, %v7716
        %v7718 = vrot.slane %v7667, %v7717
        %v7719 = vlaneseq
        %v7720 = vshrl.u32 %v7719, 7
        %v7721 = vsub.s32 5, %v7720
        %v7722 = vrot.slane %v7667, %v7721
        %v7723 = vlaneseq
        %v7724 = vshrl.u32 %v7723, 7
        %v7725 = vsub.s32 7, %v7724
        %v7726 = vrot.slane %v7667, %v7725
        %v7727 = vlaneseq
        %v7728 = vshrl.u32 %v7727, 7
        %v7729 = vsub.s32 1, %v7728
        %v7730 = vrot.slane %v7668, %v7729
        %v7731 = vlaneseq
        %v7732 = vshrl.u32 %v7731, 7
        %v7733 = vsub.s32 3, %v7732
        %v7734 = vrot.slane %v7668, %v7733
        %v7735 = vlaneseq
        %v7736 = vshrl.u32 %v7735, 7
        %v7737 = vsub.s32 5, %v7736
        %v7738 = vrot.slane %v7668, %v7737
        %v7739 = vlaneseq
        %v7740 = vshrl.u32 %v7739, 7
        %v7741 = vsub.s32 7, %v7740
        %v7742 = vrot.slane %v7668, %v7741
        %v7751 = vlaneseq
        %v7752 = vshrl.u32 %v7751, 7
        %v7753 = vsub.s32 1, %v7752
        %v7754 = vrot.slane %v7714, %v7753
        %v7755 = vlaneseq
        %v7756 = vshrl.u32 %v7755, 7
        %v7757 = vsub.s32 1, %v7756
        %v7758 = vrot.slane %v7718, %v7757
        %v7759 = vlaneseq
        %v7760 = vshrl.u32 %v7759, 7
        %v7761 = vsub.s32 1, %v7760
        %v7762 = vrot.slane %v7722, %v7761
        %v7763 = vlaneseq
        %v7764 = vshrl.u32 %v7763, 7
        %v7765 = vsub.s32 1, %v7764
        %v7766 = vrot.slane %v7726, %v7765
        %v7767 = vlaneseq
        %v7768 = vshrl.u32 %v7767, 7
        %v7769 = vsub.s32 1, %v7768
        %v7770 = vrot.slane %v7730, %v7769
        %v7771 = vlaneseq
        %v7772 = vshrl.u32 %v7771, 7
        %v7773 = vsub.s32 1, %v7772
        %v7774 = vrot.slane %v7734, %v7773
        %v7775 = vlaneseq
        %v7776 = vshrl.u32 %v7775, 7
        %v7777 = vsub.s32 1, %v7776
        %v7778 = vrot.slane %v7738, %v7777
        %v7779 = vlaneseq
        %v7780 = vshrl.u32 %v7779, 7
        %v7781 = vsub.s32 1, %v7780
        %v7782 = vrot.slane %v7742, %v7781
        %v7783 = vadd.f32 %v7701, %v7754
        %v7784 = vadd.f32 %v7702, %v7758
        %v7785 = vadd.f32 %v7703, %v7762
        %v7786 = vadd.f32 %v7704, %v7766
        %v7787 = vadd.f32 %v7705, %v7770
        %v7788 = vadd.f32 %v7706, %v7774
        %v7789 = vadd.f32 %v7707, %v7778
        %v7790 = vadd.f32 %v7708, %v7782
        %v7791 = vmul.f32 %v7783, 0.2
        %v7792 = vmul.f32 %v7784, 0.2
        %v7793 = vmul.f32 %v7785, 0.2
        %v7794 = vmul.f32 %v7786, 0.2
        %v7795 = vmul.f32 %v7787, 0.2
        %v7796 = vmul.f32 %v7788, 0.2
        %v7797 = vmul.f32 %v7789, 0.2
        %v7798 = vmul.f32 %v7790, 0.2
        %v7799 = vmax.f32 %v7783, %v7791
        %v7800 = vmax.f32 %v7784, %v7792
        %v7801 = vmax.f32 %v7785, %v7793
        %v7802 = vmax.f32 %v7786, %v7794
        %v7803 = vmax.f32 %v7787, %v7795
        %v7804 = vmax.f32 %v7788, %v7796
        %v7805 = vmax.f32 %v7789, %v7797
        %v7806 = vmax.f32 %v7790, %v7798
        %7807 = vst [vmem:[%s479] sm:$0xff] %v7799
        %7808 = vst [vmem:[%s479 + $0x8] sm:$0xff] %v7800
        %7809 = vst [vmem:[%s479 + $0x10] sm:$0xff] %v7801
        %7810 = vst [vmem:[%s479 + $0x18] sm:$0xff] %v7802
        %7811 = vst [vmem:[%s479 + $0x20] sm:$0xff] %v7803
        %7812 = vst [vmem:[%s479 + $0x28] sm:$0xff] %v7804
        %7813 = vst [vmem:[%s479 + $0x30] sm:$0xff] %v7805
        %7814 = vst [vmem:[%s479 + $0x38] sm:$0xff] %v7806
        %s7815 = sand.u32 %s237, 1
        %s7816 = scalar_lea.sflag [#allocation4], %s7815
        %s7817 = sand.u32 %s237, 1
        %s7818 = smul.addr %s7817, 64
        %s7819 = scalar_lea.vmem [#allocation17], %s7818
        // Predicated region
        $region93: #{tpu_custom_call.1} parent=55 // pred_check
          %p7820 = pneg %p247
        $region94: #{tpu_custom_call.1} parent=55 // pred_check_branch
          %7822 = sbr.rel (%p7820) target = $region96
        $region95: #{tpu_custom_call.1} parent=55 // pred_region
          %s7823 = smul.u32 8, %s30
          %s7825 = ssub.s32 1024, 1024
          %7826 = vsyncadd %s7816, %s7825
          %s7827 = smul.addr %s7823, 128
          %s7828 = scalar_lea.hbm %s9, %s7827
          %s7830 = sshll.u32 %s7819, 4
          %s7831 = int_to_ptr.vmem [resolvable:$true] %s7830
          %7833 = dma.vmem_to_hbm [thread:$0]  %s7831, 1024, %s7828, %s7816
        $region96: #{tpu_custom_call.1} parent=55 // pred_fallthru
          _
      $region56: #{tpu_custom_call.1} parent=5 // pred_fallthru
        _
      %p7834 = scmp.le.s32.totalorder 2, %s25
      // Predicated region
      $region97: #{tpu_custom_call.1} parent=5 // pred_check
        %p7835 = pneg %p7834
      $region98: #{tpu_custom_call.1} parent=5 // pred_check_branch
        %7837 = sbr.rel (%p7835) target = $region100
      $region99: #{tpu_custom_call.1} parent=5 // pred_region
        %s7838 = ssub.s32 %s25, 2
        // Predicated region
        $region101: #{tpu_custom_call.1} parent=99 // pred_check
          %p7839 = pneg %p253
        $region102: #{tpu_custom_call.1} parent=99 // pred_check_branch
          %7841 = sbr.rel (%p7839) target = $region104
        $region103: #{tpu_custom_call.1} parent=99 // pred_region
          %s7842 = sand.u32 %s238, 1
          %s7843 = scalar_lea.sflag [#allocation4], %s7842
          %s7844 = sand.u32 %s238, 1
          %s7845 = smul.addr %s7844, 64
          %s7846 = scalar_lea.vmem [#allocation17], %s7845
          %7847 = dma.done %s7843, 1024
        $region104: #{tpu_custom_call.1} parent=99 // pred_fallthru
          _
      $region100: #{tpu_custom_call.1} parent=5 // pred_fallthru
        _
    $region6: #{tpu_custom_call.1} parent=1 // loop_footer
      %s29 = sadd.s32 1, %s25
    $region7: #{tpu_custom_call.1} parent=1 // loop_footer_branch
      %24 = sbr.rel target = $region3
    $region8: #{tpu_custom_call.1} parent=1 // loop_exit
      _
    %7848 = vsyncpa [#allocation3], 1
    %s7849 = scalar_lea.sflag [#allocation3], 1
    %7850 = vsyncpa %s7849, 1
    %7851 = vsyncpa [#allocation6], 1
    %7852 = vsyncpa [#allocation9], 1
    %7853 = vsyncpa [#allocation12], 1
    %7854 = vsyncpa [#allocation15], 1
    %s7855 = scalar_lea.sflag [#allocation15], 1
    %7856 = vsyncpa %s7855, 1
    %7857 = vsyncpa [#allocation4], 1
    %s7858 = scalar_lea.sflag [#allocation4], 1
    %7859 = vsyncpa %s7858, 1

</llo_original>
